<compile_context>
chip_gen: v6e
topology: v6e:2x2x1
jax: 0.10.0
libtpu: 0.0.40
codegen_flags: <defaults>
</compile_context>

<pallas_src>
import jax
import jax.numpy as jnp
from jax.experimental import pallas as pl
from jax.experimental.pallas import tpu as pltpu

FILTER = 256        # self.filter_size
NUM_LAYERS = 8
SKIP_LAYER = 4
LANE = 128          # padded input width (pos | dir | zeros)


def _nerf_kernel(x_ref,
                 w0, b0, w1, b1, w2, b2, w3, b3,
                 w4x, w4h, b4, w5, b5, w6, b6, w7, b7,
                 wd1a, bd1a, wd2x, wd2f, bd2, wr4, br4,
                 out_ref):
    f32 = jnp.float32
    bf16 = jnp.bfloat16

    def mm(a, w):
        # bf16 operands on the MXU, f32 accumulation.
        return jnp.dot(a.astype(bf16), w[...], preferred_element_type=f32)

    def relu(v):
        return jnp.maximum(v, 0.0)

    x = x_ref[...].astype(bf16)   # (T, 128): pos lanes [0,36), dir lanes [36,60), zeros

    # fc_layers 0..3
    h = relu(mm(x, w0) + b0[...])
    h = relu(mm(h, w1) + b1[...])
    h = relu(mm(h, w2) + b2[...])
    h = relu(mm(h, w3) + b3[...])
    # fc_layers[4] = skip layer: fc4(concat(pos, h)) as a split matmul.
    # w4x has the pos rows of W4 in rows [0,36) and zeros elsewhere, so the
    # dir / pad lanes of x contribute nothing.
    h = relu(mm(x, w4x) + mm(h, w4h) + b4[...])
    # fc_layers 5..7
    h = relu(mm(h, w5) + b5[...])
    h = relu(mm(h, w6) + b6[...])
    h = relu(mm(h, w7) + b7[...])

    # Fused feature + alpha head: cols [0,256) = fc_dir1, col 256+3 = alpha.
    fa = mm(h, wd1a) + bd1a[...]             # (T, 384) f32
    feat = fa[:, :FILTER]                    # (T, 256)
    alpha4 = fa[:, FILTER:FILTER + 4]        # (T, 4): alpha in lane 3, zeros elsewhere

    # fc_dir2(concat(dir, feature)) as a split matmul (dir rows of wd2x nonzero).
    h2 = relu(mm(x, wd2x) + mm(feat, wd2f) + bd2[...])

    # rgb head padded to 4 output lanes (col 3 zero) so rgb + alpha lands in a
    # single dense block store — no in-kernel concatenate.
    out_ref[...] = mm(h2, wr4) + br4[...] + alpha4


def nerf_forward(x, kparams, input_pos_dim, input_dir_dim, tile=512):
    N, D = x.shape
    assert D == input_pos_dim + input_dir_dim
    assert D <= LANE
    assert tile % 8 == 0

    npad = pl.cdiv(N, tile) * tile
    # One dense padded input slab: rows padded to a tile multiple, lanes to 128.
    xpad = jnp.pad(x, ((0, npad - N), (0, LANE - D)))

    def full_spec(p):
        nd = p.ndim
        return pl.BlockSpec(p.shape, lambda i, _nd=nd: (0,) * _nd)

    in_specs = [pl.BlockSpec((tile, LANE), lambda i: (i, 0))]
    in_specs += [full_spec(p) for p in kparams]

    flops_per_row = 2 * (
        input_pos_dim * FILTER                      # fc0
        + 6 * FILTER * FILTER                       # fc1-3, fc5-7
        + (input_pos_dim + FILTER) * FILTER         # fc4 (skip)
        + FILTER * (FILTER + 1)                     # fc_dir1 + alpha
        + (input_dir_dim + FILTER) * (FILTER // 2)  # fc_dir2
        + (FILTER // 2) * 3)                        # rgb
    weight_bytes = sum(int(p.size) * p.dtype.itemsize for p in kparams)
    cost = pl.CostEstimate(
        flops=int(flops_per_row) * int(npad),
        transcendentals=0,
        bytes_accessed=int(npad) * (LANE + 4) * 4 + weight_bytes)

    out = pl.pallas_call(
        _nerf_kernel,
        out_shape=jax.ShapeDtypeStruct((npad, 4), jnp.float32),
        grid_spec=pltpu.PrefetchScalarGridSpec(
            num_scalar_prefetch=0,
            grid=(npad // tile,),
            in_specs=in_specs,
            out_specs=pl.BlockSpec((tile, 4), lambda i: (i, 0)),
        ),
        compiler_params=pltpu.CompilerParams(
            dimension_semantics=("parallel",),
            vmem_limit_bytes=48 * 1024 * 1024),
        cost_estimate=cost,
    )(xpad, *kparams)
    return out[:N] if npad != N else out


def init_params(key, input_pos_dim, input_dir_dim):
    """Logical f32 params (weights stored (in_dim, out_dim)), PyTorch-style
    uniform(-1/sqrt(fan_in), 1/sqrt(fan_in)) init."""
    keys = iter(jax.random.split(key, 32))

    def linear(in_dim, out_dim):
        bound = 1.0 / float(in_dim) ** 0.5
        w = jax.random.uniform(next(keys), (in_dim, out_dim), jnp.float32,
                               -bound, bound)
        b = jax.random.uniform(next(keys), (1, out_dim), jnp.float32,
                               -bound, bound)
        return w, b

    fc = [linear(input_pos_dim, FILTER)]
    for i in range(1, NUM_LAYERS):
        in_dim = input_pos_dim + FILTER if i == SKIP_LAYER else FILTER
        fc.append(linear(in_dim, FILTER))
    return {
        "fc": fc,
        "alpha": linear(FILTER, 1),
        "dir1": linear(FILTER, FILTER),
        "dir2": linear(input_dir_dim + FILTER, FILTER // 2),
        "rgb": linear(FILTER // 2, 3),
    }


def prepare_kernel_params(params, input_pos_dim, input_dir_dim):
    """Pad / fuse / cast the logical params into the flat list the kernel takes.

    Weights -> bf16 (zero-padded so the padded input lanes contribute nothing),
    biases -> f32. Alpha head fused into the feature head at column FILTER+3;
    rgb head padded to 4 output lanes.
    """
    bf16 = jnp.bfloat16
    dpos, ddir = input_pos_dim, input_dir_dim

    def pad_rows(w, row_offset):
        out = jnp.zeros((LANE, w.shape[1]), jnp.float32)
        return out.at[row_offset:row_offset + w.shape[0]].set(w)

    fc = params["fc"]
    plist = []
    w0, b0 = fc[0]
    plist += [pad_rows(w0, 0).astype(bf16), b0]
    for i in (1, 2, 3):
        w, b = fc[i]
        plist += [w.astype(bf16), b]
    w4, b4 = fc[SKIP_LAYER]
    plist += [pad_rows(w4[:dpos], 0).astype(bf16), w4[dpos:].astype(bf16), b4]
    for i in (5, 6, 7):
        w, b = fc[i]
        plist += [w.astype(bf16), b]

    wa, ba = params["alpha"]
    wd1, bd1 = params["dir1"]
    wd1a = jnp.zeros((FILTER, FILTER + LANE), jnp.float32)
    wd1a = wd1a.at[:, :FILTER].set(wd1).at[:, FILTER + 3].set(wa[:, 0])
    bd1a = jnp.zeros((1, FILTER + LANE), jnp.float32)
    bd1a = bd1a.at[:, :FILTER].set(bd1).at[:, FILTER + 3].set(ba[:, 0])
    plist += [wd1a.astype(bf16), bd1a]

    wd2, bd2 = params["dir2"]
    # x layout: pos in lanes [0, dpos), dir in lanes [dpos, dpos + ddir)
    plist += [pad_rows(wd2[:ddir], dpos).astype(bf16), wd2[ddir:].astype(bf16), bd2]

    wr, br = params["rgb"]
    wr4 = jnp.zeros((FILTER // 2, 4), jnp.float32).at[:, :3].set(wr)
    br4 = jnp.zeros((1, 4), jnp.float32).at[:, :3].set(br)
    plist += [wr4.astype(bf16), br4]
    return plist


def nerf_reference(x, params, input_pos_dim):
    """Pure-JAX reference matching the PyTorch forward (use_viewdirs=True),
    emulating the kernel's numerics (bf16 operands, f32 accumulation)."""
    bf16, f32 = jnp.bfloat16, jnp.float32

    def lin(a, w, b):
        return jnp.dot(a.astype(bf16), w.astype(bf16),
                       preferred_element_type=f32) + b

    relu = lambda v: jnp.maximum(v, 0.0)
    pos = x[:, :input_pos_dim]
    vdir = x[:, input_pos_dim:]
    h = pos
    for i, (w, b) in enumerate(params["fc"]):
        inp = jnp.concatenate([pos, h], axis=-1) if i == SKIP_LAYER else h
        h = relu(lin(inp, w, b))
    alpha = lin(h, *params["alpha"])
    feat = lin(h, *params["dir1"])
    h2 = relu(lin(jnp.concatenate([vdir, feat], axis=-1), *params["dir2"]))
    rgb = lin(h2, *params["rgb"])
    return jnp.concatenate([rgb, alpha], axis=-1)


if __name__ == "__main__":
    num_pos_encoding_func = 6
    num_dir_encoding_func = 4
    input_pos_dim = 2 * num_pos_encoding_func * 3   # 36
    input_dir_dim = 2 * num_dir_encoding_func * 3   # 24
    N = 1024                                        # h*w*num_samples (small); 2 tiles

    key = jax.random.PRNGKey(0)
    kx, kp = jax.random.split(key)
    x = jax.random.normal(kx, (N, input_pos_dim + input_dir_dim), jnp.float32)

    params = init_params(kp, input_pos_dim, input_dir_dim)
    kparams = prepare_kernel_params(params, input_pos_dim, input_dir_dim)

    out = nerf_forward(x, kparams, input_pos_dim, input_dir_dim, tile=512)
    out = jax.block_until_ready(out)

    ref = nerf_reference(x, params, input_pos_dim)
    assert out.shape == (N, 4), out.shape
    max_err = float(jnp.max(jnp.abs(out - ref)))
    assert jnp.allclose(out, ref, atol=2e-3, rtol=2e-3), max_err
    print("KERNEL_OK")
</pallas_src>

<mosaic_0001>
module attributes {stable_mosaic.version = 11 : i64} {
  func.func @_nerf_kernel(%arg0: i32, %arg1: memref<512x128xf32, #tpu.memory_space<vmem>>, %arg2: memref<128x256xbf16, #tpu.memory_space<vmem>>, %arg3: memref<1x256xf32, #tpu.memory_space<vmem>>, %arg4: memref<256x256xbf16, #tpu.memory_space<vmem>>, %arg5: memref<1x256xf32, #tpu.memory_space<vmem>>, %arg6: memref<256x256xbf16, #tpu.memory_space<vmem>>, %arg7: memref<1x256xf32, #tpu.memory_space<vmem>>, %arg8: memref<256x256xbf16, #tpu.memory_space<vmem>>, %arg9: memref<1x256xf32, #tpu.memory_space<vmem>>, %arg10: memref<128x256xbf16, #tpu.memory_space<vmem>>, %arg11: memref<256x256xbf16, #tpu.memory_space<vmem>>, %arg12: memref<1x256xf32, #tpu.memory_space<vmem>>, %arg13: memref<256x256xbf16, #tpu.memory_space<vmem>>, %arg14: memref<1x256xf32, #tpu.memory_space<vmem>>, %arg15: memref<256x256xbf16, #tpu.memory_space<vmem>>, %arg16: memref<1x256xf32, #tpu.memory_space<vmem>>, %arg17: memref<256x256xbf16, #tpu.memory_space<vmem>>, %arg18: memref<1x256xf32, #tpu.memory_space<vmem>>, %arg19: memref<256x384xbf16, #tpu.memory_space<vmem>>, %arg20: memref<1x384xf32, #tpu.memory_space<vmem>>, %arg21: memref<128x128xbf16, #tpu.memory_space<vmem>>, %arg22: memref<256x128xbf16, #tpu.memory_space<vmem>>, %arg23: memref<1x128xf32, #tpu.memory_space<vmem>>, %arg24: memref<128x4xbf16, #tpu.memory_space<vmem>>, %arg25: memref<1x4xf32, #tpu.memory_space<vmem>>, %arg26: memref<512x4xf32, #tpu.memory_space<vmem>>) attributes {dimension_semantics = [#tpu.dimension_semantics<parallel>], iteration_bounds = array<i64: 2>, scalar_prefetch = 0 : i64, scratch_operands = 0 : i64, tpu.core_type = #tpu.core_type<tc>, window_params = [{transform_indices = @transform_0, window_bounds = array<i64: 512, 128>}, {pipeline_mode = #tpu.pipeline_mode<synchronous>, transform_indices = @transform_1, window_bounds = array<i64: 128, 256>}, {pipeline_mode = #tpu.pipeline_mode<synchronous>, transform_indices = @transform_2, window_bounds = array<i64: 1, 256>}, {pipeline_mode = #tpu.pipeline_mode<synchronous>, transform_indices = @transform_3, window_bounds = array<i64: 256, 256>}, {pipeline_mode = #tpu.pipeline_mode<synchronous>, transform_indices = @transform_4, window_bounds = array<i64: 1, 256>}, {pipeline_mode = #tpu.pipeline_mode<synchronous>, transform_indices = @transform_5, window_bounds = array<i64: 256, 256>}, {pipeline_mode = #tpu.pipeline_mode<synchronous>, transform_indices = @transform_6, window_bounds = array<i64: 1, 256>}, {pipeline_mode = #tpu.pipeline_mode<synchronous>, transform_indices = @transform_7, window_bounds = array<i64: 256, 256>}, {pipeline_mode = #tpu.pipeline_mode<synchronous>, transform_indices = @transform_8, window_bounds = array<i64: 1, 256>}, {pipeline_mode = #tpu.pipeline_mode<synchronous>, transform_indices = @transform_9, window_bounds = array<i64: 128, 256>}, {pipeline_mode = #tpu.pipeline_mode<synchronous>, transform_indices = @transform_10, window_bounds = array<i64: 256, 256>}, {pipeline_mode = #tpu.pipeline_mode<synchronous>, transform_indices = @transform_11, window_bounds = array<i64: 1, 256>}, {pipeline_mode = #tpu.pipeline_mode<synchronous>, transform_indices = @transform_12, window_bounds = array<i64: 256, 256>}, {pipeline_mode = #tpu.pipeline_mode<synchronous>, transform_indices = @transform_13, window_bounds = array<i64: 1, 256>}, {pipeline_mode = #tpu.pipeline_mode<synchronous>, transform_indices = @transform_14, window_bounds = array<i64: 256, 256>}, {pipeline_mode = #tpu.pipeline_mode<synchronous>, transform_indices = @transform_15, window_bounds = array<i64: 1, 256>}, {pipeline_mode = #tpu.pipeline_mode<synchronous>, transform_indices = @transform_16, window_bounds = array<i64: 256, 256>}, {pipeline_mode = #tpu.pipeline_mode<synchronous>, transform_indices = @transform_17, window_bounds = array<i64: 1, 256>}, {pipeline_mode = #tpu.pipeline_mode<synchronous>, transform_indices = @transform_18, window_bounds = array<i64: 256, 384>}, {pipeline_mode = #tpu.pipeline_mode<synchronous>, transform_indices = @transform_19, window_bounds = array<i64: 1, 384>}, {pipeline_mode = #tpu.pipeline_mode<synchronous>, transform_indices = @transform_20, window_bounds = array<i64: 128, 128>}, {pipeline_mode = #tpu.pipeline_mode<synchronous>, transform_indices = @transform_21, window_bounds = array<i64: 256, 128>}, {pipeline_mode = #tpu.pipeline_mode<synchronous>, transform_indices = @transform_22, window_bounds = array<i64: 1, 128>}, {pipeline_mode = #tpu.pipeline_mode<synchronous>, transform_indices = @transform_23, window_bounds = array<i64: 128, 4>}, {pipeline_mode = #tpu.pipeline_mode<synchronous>, transform_indices = @transform_24, window_bounds = array<i64: 1, 4>}, {transform_indices = @transform_25, window_bounds = array<i64: 512, 4>}]} {
    %c0 = arith.constant 0 : index
    %c0_0 = arith.constant 0 : index
    %0 = vector.load %arg1[%c0, %c0_0] : memref<512x128xf32, #tpu.memory_space<vmem>>, vector<512x128xf32>
    %1 = arith.truncf %0 : vector<512x128xf32> to vector<512x128xbf16>
    %c0_1 = arith.constant 0 : index
    %c0_2 = arith.constant 0 : index
    %2 = vector.load %arg2[%c0_1, %c0_2] : memref<128x256xbf16, #tpu.memory_space<vmem>>, vector<128x256xbf16>
    %cst = arith.constant dense<0.000000e+00> : vector<512x256xf32>
    %3 = tpu.matmul %1, %2, %cst {dimension_numbers = #tpu.dot_dimension_numbers<[1], [0], [0], [1], [0, 0, 1, 1], [], []>} : vector<512x128xbf16>, vector<128x256xbf16>, vector<512x256xf32> -> vector<512x256xf32>
    %c0_3 = arith.constant 0 : index
    %c0_4 = arith.constant 0 : index
    %4 = vector.load %arg3[%c0_3, %c0_4] : memref<1x256xf32, #tpu.memory_space<vmem>>, vector<1x256xf32>
    %5 = vector.broadcast %4 : vector<1x256xf32> to vector<512x256xf32>
    %6 = arith.addf %3, %5 : vector<512x256xf32>
    %cst_5 = arith.constant 0.000000e+00 : f32
    %7 = vector.broadcast %cst_5 : f32 to vector<512x256xf32>
    %8 = arith.maximumf %6, %7 : vector<512x256xf32>
    %9 = arith.truncf %8 : vector<512x256xf32> to vector<512x256xbf16>
    %c0_6 = arith.constant 0 : index
    %c0_7 = arith.constant 0 : index
    %10 = vector.load %arg4[%c0_6, %c0_7] : memref<256x256xbf16, #tpu.memory_space<vmem>>, vector<256x256xbf16>
    %cst_8 = arith.constant dense<0.000000e+00> : vector<512x256xf32>
    %11 = tpu.matmul %9, %10, %cst_8 {dimension_numbers = #tpu.dot_dimension_numbers<[1], [0], [0], [1], [0, 0, 1, 1], [], []>} : vector<512x256xbf16>, vector<256x256xbf16>, vector<512x256xf32> -> vector<512x256xf32>
    %c0_9 = arith.constant 0 : index
    %c0_10 = arith.constant 0 : index
    %12 = vector.load %arg5[%c0_9, %c0_10] : memref<1x256xf32, #tpu.memory_space<vmem>>, vector<1x256xf32>
    %13 = vector.broadcast %12 : vector<1x256xf32> to vector<512x256xf32>
    %14 = arith.addf %11, %13 : vector<512x256xf32>
    %cst_11 = arith.constant 0.000000e+00 : f32
    %15 = vector.broadcast %cst_11 : f32 to vector<512x256xf32>
    %16 = arith.maximumf %14, %15 : vector<512x256xf32>
    %17 = arith.truncf %16 : vector<512x256xf32> to vector<512x256xbf16>
    %c0_12 = arith.constant 0 : index
    %c0_13 = arith.constant 0 : index
    %18 = vector.load %arg6[%c0_12, %c0_13] : memref<256x256xbf16, #tpu.memory_space<vmem>>, vector<256x256xbf16>
    %cst_14 = arith.constant dense<0.000000e+00> : vector<512x256xf32>
    %19 = tpu.matmul %17, %18, %cst_14 {dimension_numbers = #tpu.dot_dimension_numbers<[1], [0], [0], [1], [0, 0, 1, 1], [], []>} : vector<512x256xbf16>, vector<256x256xbf16>, vector<512x256xf32> -> vector<512x256xf32>
    %c0_15 = arith.constant 0 : index
    %c0_16 = arith.constant 0 : index
    %20 = vector.load %arg7[%c0_15, %c0_16] : memref<1x256xf32, #tpu.memory_space<vmem>>, vector<1x256xf32>
    %21 = vector.broadcast %20 : vector<1x256xf32> to vector<512x256xf32>
    %22 = arith.addf %19, %21 : vector<512x256xf32>
    %cst_17 = arith.constant 0.000000e+00 : f32
    %23 = vector.broadcast %cst_17 : f32 to vector<512x256xf32>
    %24 = arith.maximumf %22, %23 : vector<512x256xf32>
    %25 = arith.truncf %24 : vector<512x256xf32> to vector<512x256xbf16>
    %c0_18 = arith.constant 0 : index
    %c0_19 = arith.constant 0 : index
    %26 = vector.load %arg8[%c0_18, %c0_19] : memref<256x256xbf16, #tpu.memory_space<vmem>>, vector<256x256xbf16>
    %cst_20 = arith.constant dense<0.000000e+00> : vector<512x256xf32>
    %27 = tpu.matmul %25, %26, %cst_20 {dimension_numbers = #tpu.dot_dimension_numbers<[1], [0], [0], [1], [0, 0, 1, 1], [], []>} : vector<512x256xbf16>, vector<256x256xbf16>, vector<512x256xf32> -> vector<512x256xf32>
    %c0_21 = arith.constant 0 : index
    %c0_22 = arith.constant 0 : index
    %28 = vector.load %arg9[%c0_21, %c0_22] : memref<1x256xf32, #tpu.memory_space<vmem>>, vector<1x256xf32>
    %29 = vector.broadcast %28 : vector<1x256xf32> to vector<512x256xf32>
    %30 = arith.addf %27, %29 : vector<512x256xf32>
    %cst_23 = arith.constant 0.000000e+00 : f32
    %31 = vector.broadcast %cst_23 : f32 to vector<512x256xf32>
    %32 = arith.maximumf %30, %31 : vector<512x256xf32>
    %c0_24 = arith.constant 0 : index
    %c0_25 = arith.constant 0 : index
    %33 = vector.load %arg10[%c0_24, %c0_25] : memref<128x256xbf16, #tpu.memory_space<vmem>>, vector<128x256xbf16>
    %cst_26 = arith.constant dense<0.000000e+00> : vector<512x256xf32>
    %34 = tpu.matmul %1, %33, %cst_26 {dimension_numbers = #tpu.dot_dimension_numbers<[1], [0], [0], [1], [0, 0, 1, 1], [], []>} : vector<512x128xbf16>, vector<128x256xbf16>, vector<512x256xf32> -> vector<512x256xf32>
    %35 = arith.truncf %32 : vector<512x256xf32> to vector<512x256xbf16>
    %c0_27 = arith.constant 0 : index
    %c0_28 = arith.constant 0 : index
    %36 = vector.load %arg11[%c0_27, %c0_28] : memref<256x256xbf16, #tpu.memory_space<vmem>>, vector<256x256xbf16>
    %cst_29 = arith.constant dense<0.000000e+00> : vector<512x256xf32>
    %37 = tpu.matmul %35, %36, %cst_29 {dimension_numbers = #tpu.dot_dimension_numbers<[1], [0], [0], [1], [0, 0, 1, 1], [], []>} : vector<512x256xbf16>, vector<256x256xbf16>, vector<512x256xf32> -> vector<512x256xf32>
    %38 = arith.addf %34, %37 : vector<512x256xf32>
    %c0_30 = arith.constant 0 : index
    %c0_31 = arith.constant 0 : index
    %39 = vector.load %arg12[%c0_30, %c0_31] : memref<1x256xf32, #tpu.memory_space<vmem>>, vector<1x256xf32>
    %40 = vector.broadcast %39 : vector<1x256xf32> to vector<512x256xf32>
    %41 = arith.addf %38, %40 : vector<512x256xf32>
    %cst_32 = arith.constant 0.000000e+00 : f32
    %42 = vector.broadcast %cst_32 : f32 to vector<512x256xf32>
    %43 = arith.maximumf %41, %42 : vector<512x256xf32>
    %44 = arith.truncf %43 : vector<512x256xf32> to vector<512x256xbf16>
    %c0_33 = arith.constant 0 : index
    %c0_34 = arith.constant 0 : index
    %45 = vector.load %arg13[%c0_33, %c0_34] : memref<256x256xbf16, #tpu.memory_space<vmem>>, vector<256x256xbf16>
    %cst_35 = arith.constant dense<0.000000e+00> : vector<512x256xf32>
    %46 = tpu.matmul %44, %45, %cst_35 {dimension_numbers = #tpu.dot_dimension_numbers<[1], [0], [0], [1], [0, 0, 1, 1], [], []>} : vector<512x256xbf16>, vector<256x256xbf16>, vector<512x256xf32> -> vector<512x256xf32>
    %c0_36 = arith.constant 0 : index
    %c0_37 = arith.constant 0 : index
    %47 = vector.load %arg14[%c0_36, %c0_37] : memref<1x256xf32, #tpu.memory_space<vmem>>, vector<1x256xf32>
    %48 = vector.broadcast %47 : vector<1x256xf32> to vector<512x256xf32>
    %49 = arith.addf %46, %48 : vector<512x256xf32>
    %cst_38 = arith.constant 0.000000e+00 : f32
    %50 = vector.broadcast %cst_38 : f32 to vector<512x256xf32>
    %51 = arith.maximumf %49, %50 : vector<512x256xf32>
    %52 = arith.truncf %51 : vector<512x256xf32> to vector<512x256xbf16>
    %c0_39 = arith.constant 0 : index
    %c0_40 = arith.constant 0 : index
    %53 = vector.load %arg15[%c0_39, %c0_40] : memref<256x256xbf16, #tpu.memory_space<vmem>>, vector<256x256xbf16>
    %cst_41 = arith.constant dense<0.000000e+00> : vector<512x256xf32>
    %54 = tpu.matmul %52, %53, %cst_41 {dimension_numbers = #tpu.dot_dimension_numbers<[1], [0], [0], [1], [0, 0, 1, 1], [], []>} : vector<512x256xbf16>, vector<256x256xbf16>, vector<512x256xf32> -> vector<512x256xf32>
    %c0_42 = arith.constant 0 : index
    %c0_43 = arith.constant 0 : index
    %55 = vector.load %arg16[%c0_42, %c0_43] : memref<1x256xf32, #tpu.memory_space<vmem>>, vector<1x256xf32>
    %56 = vector.broadcast %55 : vector<1x256xf32> to vector<512x256xf32>
    %57 = arith.addf %54, %56 : vector<512x256xf32>
    %cst_44 = arith.constant 0.000000e+00 : f32
    %58 = vector.broadcast %cst_44 : f32 to vector<512x256xf32>
    %59 = arith.maximumf %57, %58 : vector<512x256xf32>
    %60 = arith.truncf %59 : vector<512x256xf32> to vector<512x256xbf16>
    %c0_45 = arith.constant 0 : index
    %c0_46 = arith.constant 0 : index
    %61 = vector.load %arg17[%c0_45, %c0_46] : memref<256x256xbf16, #tpu.memory_space<vmem>>, vector<256x256xbf16>
    %cst_47 = arith.constant dense<0.000000e+00> : vector<512x256xf32>
    %62 = tpu.matmul %60, %61, %cst_47 {dimension_numbers = #tpu.dot_dimension_numbers<[1], [0], [0], [1], [0, 0, 1, 1], [], []>} : vector<512x256xbf16>, vector<256x256xbf16>, vector<512x256xf32> -> vector<512x256xf32>
    %c0_48 = arith.constant 0 : index
    %c0_49 = arith.constant 0 : index
    %63 = vector.load %arg18[%c0_48, %c0_49] : memref<1x256xf32, #tpu.memory_space<vmem>>, vector<1x256xf32>
    %64 = vector.broadcast %63 : vector<1x256xf32> to vector<512x256xf32>
    %65 = arith.addf %62, %64 : vector<512x256xf32>
    %cst_50 = arith.constant 0.000000e+00 : f32
    %66 = vector.broadcast %cst_50 : f32 to vector<512x256xf32>
    %67 = arith.maximumf %65, %66 : vector<512x256xf32>
    %68 = arith.truncf %67 : vector<512x256xf32> to vector<512x256xbf16>
    %c0_51 = arith.constant 0 : index
    %c0_52 = arith.constant 0 : index
    %69 = vector.load %arg19[%c0_51, %c0_52] : memref<256x384xbf16, #tpu.memory_space<vmem>>, vector<256x384xbf16>
    %cst_53 = arith.constant dense<0.000000e+00> : vector<512x384xf32>
    %70 = tpu.matmul %68, %69, %cst_53 {dimension_numbers = #tpu.dot_dimension_numbers<[1], [0], [0], [1], [0, 0, 1, 1], [], []>} : vector<512x256xbf16>, vector<256x384xbf16>, vector<512x384xf32> -> vector<512x384xf32>
    %c0_54 = arith.constant 0 : index
    %c0_55 = arith.constant 0 : index
    %71 = vector.load %arg20[%c0_54, %c0_55] : memref<1x384xf32, #tpu.memory_space<vmem>>, vector<1x384xf32>
    %72 = vector.broadcast %71 : vector<1x384xf32> to vector<512x384xf32>
    %73 = arith.addf %70, %72 : vector<512x384xf32>
    %74 = vector.extract_strided_slice %73 {offsets = [0, 0], sizes = [512, 256], strides = [1, 1]} : vector<512x384xf32> to vector<512x256xf32>
    %75 = vector.extract_strided_slice %73 {offsets = [0, 256], sizes = [512, 4], strides = [1, 1]} : vector<512x384xf32> to vector<512x4xf32>
    %c0_56 = arith.constant 0 : index
    %c0_57 = arith.constant 0 : index
    %76 = vector.load %arg21[%c0_56, %c0_57] : memref<128x128xbf16, #tpu.memory_space<vmem>>, vector<128x128xbf16>
    %cst_58 = arith.constant dense<0.000000e+00> : vector<512x128xf32>
    %77 = tpu.matmul %1, %76, %cst_58 {dimension_numbers = #tpu.dot_dimension_numbers<[1], [0], [0], [1], [0, 0, 1, 1], [], []>} : vector<512x128xbf16>, vector<128x128xbf16>, vector<512x128xf32> -> vector<512x128xf32>
    %78 = arith.truncf %74 : vector<512x256xf32> to vector<512x256xbf16>
    %c0_59 = arith.constant 0 : index
    %c0_60 = arith.constant 0 : index
    %79 = vector.load %arg22[%c0_59, %c0_60] : memref<256x128xbf16, #tpu.memory_space<vmem>>, vector<256x128xbf16>
    %cst_61 = arith.constant dense<0.000000e+00> : vector<512x128xf32>
    %80 = tpu.matmul %78, %79, %cst_61 {dimension_numbers = #tpu.dot_dimension_numbers<[1], [0], [0], [1], [0, 0, 1, 1], [], []>} : vector<512x256xbf16>, vector<256x128xbf16>, vector<512x128xf32> -> vector<512x128xf32>
    %81 = arith.addf %77, %80 : vector<512x128xf32>
    %c0_62 = arith.constant 0 : index
    %c0_63 = arith.constant 0 : index
    %82 = vector.load %arg23[%c0_62, %c0_63] : memref<1x128xf32, #tpu.memory_space<vmem>>, vector<1x128xf32>
    %83 = vector.broadcast %82 : vector<1x128xf32> to vector<512x128xf32>
    %84 = arith.addf %81, %83 : vector<512x128xf32>
    %cst_64 = arith.constant 0.000000e+00 : f32
    %85 = vector.broadcast %cst_64 : f32 to vector<512x128xf32>
    %86 = arith.maximumf %84, %85 : vector<512x128xf32>
    %87 = arith.truncf %86 : vector<512x128xf32> to vector<512x128xbf16>
    %c0_65 = arith.constant 0 : index
    %c0_66 = arith.constant 0 : index
    %88 = vector.load %arg24[%c0_65, %c0_66] : memref<128x4xbf16, #tpu.memory_space<vmem>>, vector<128x4xbf16>
    %cst_67 = arith.constant dense<0.000000e+00> : vector<512x4xf32>
    %89 = tpu.matmul %87, %88, %cst_67 {dimension_numbers = #tpu.dot_dimension_numbers<[1], [0], [0], [1], [0, 0, 1, 1], [], []>} : vector<512x128xbf16>, vector<128x4xbf16>, vector<512x4xf32> -> vector<512x4xf32>
    %c0_68 = arith.constant 0 : index
    %c0_69 = arith.constant 0 : index
    %90 = vector.load %arg25[%c0_68, %c0_69] : memref<1x4xf32, #tpu.memory_space<vmem>>, vector<1x4xf32>
    %91 = vector.broadcast %90 : vector<1x4xf32> to vector<512x4xf32>
    %92 = arith.addf %89, %91 : vector<512x4xf32>
    %93 = arith.addf %92, %75 : vector<512x4xf32>
    %c0_70 = arith.constant 0 : index
    %c0_71 = arith.constant 0 : index
    %94 = vector.load %arg26[%c0_70, %c0_71] : memref<512x4xf32, #tpu.memory_space<vmem>>, vector<512x4xf32>
    tpu.vector_store %arg26[%c0_70, %c0_71], %93 {strides = array<i32>} : memref<512x4xf32, #tpu.memory_space<vmem>>, vector<512x4xf32>,
    return
  }
  func.func @transform_0(%arg0: i32) -> (i32, i32) {
    %c0_i32 = arith.constant 0 : i32
    %c0_i32_0 = arith.constant 0 : i32
    return %arg0, %c0_i32 : i32, i32
  }
  func.func @transform_1(%arg0: i32) -> (i32, i32) {
    %c0_i32 = arith.constant 0 : i32
    %c0_i32_0 = arith.constant 0 : i32
    %c0_i32_1 = arith.constant 0 : i32
    return %c0_i32, %c0_i32_0 : i32, i32
  }
  func.func @transform_2(%arg0: i32) -> (i32, i32) {
    %c0_i32 = arith.constant 0 : i32
    %c0_i32_0 = arith.constant 0 : i32
    %c0_i32_1 = arith.constant 0 : i32
    return %c0_i32, %c0_i32_0 : i32, i32
  }
  func.func @transform_3(%arg0: i32) -> (i32, i32) {
    %c0_i32 = arith.constant 0 : i32
    %c0_i32_0 = arith.constant 0 : i32
    %c0_i32_1 = arith.constant 0 : i32
    return %c0_i32, %c0_i32_0 : i32, i32
  }
  func.func @transform_4(%arg0: i32) -> (i32, i32) {
    %c0_i32 = arith.constant 0 : i32
    %c0_i32_0 = arith.constant 0 : i32
    %c0_i32_1 = arith.constant 0 : i32
    return %c0_i32, %c0_i32_0 : i32, i32
  }
  func.func @transform_5(%arg0: i32) -> (i32, i32) {
    %c0_i32 = arith.constant 0 : i32
    %c0_i32_0 = arith.constant 0 : i32
    %c0_i32_1 = arith.constant 0 : i32
    return %c0_i32, %c0_i32_0 : i32, i32
  }
  func.func @transform_6(%arg0: i32) -> (i32, i32) {
    %c0_i32 = arith.constant 0 : i32
    %c0_i32_0 = arith.constant 0 : i32
    %c0_i32_1 = arith.constant 0 : i32
    return %c0_i32, %c0_i32_0 : i32, i32
  }
  func.func @transform_7(%arg0: i32) -> (i32, i32) {
    %c0_i32 = arith.constant 0 : i32
    %c0_i32_0 = arith.constant 0 : i32
    %c0_i32_1 = arith.constant 0 : i32
    return %c0_i32, %c0_i32_0 : i32, i32
  }
  func.func @transform_8(%arg0: i32) -> (i32, i32) {
    %c0_i32 = arith.constant 0 : i32
    %c0_i32_0 = arith.constant 0 : i32
    %c0_i32_1 = arith.constant 0 : i32
    return %c0_i32, %c0_i32_0 : i32, i32
  }
  func.func @transform_9(%arg0: i32) -> (i32, i32) {
    %c0_i32 = arith.constant 0 : i32
    %c0_i32_0 = arith.constant 0 : i32
    %c0_i32_1 = arith.constant 0 : i32
    return %c0_i32, %c0_i32_0 : i32, i32
  }
  func.func @transform_10(%arg0: i32) -> (i32, i32) {
    %c0_i32 = arith.constant 0 : i32
    %c0_i32_0 = arith.constant 0 : i32
    %c0_i32_1 = arith.constant 0 : i32
    return %c0_i32, %c0_i32_0 : i32, i32
  }
  func.func @transform_11(%arg0: i32) -> (i32, i32) {
    %c0_i32 = arith.constant 0 : i32
    %c0_i32_0 = arith.constant 0 : i32
    %c0_i32_1 = arith.constant 0 : i32
    return %c0_i32, %c0_i32_0 : i32, i32
  }
  func.func @transform_12(%arg0: i32) -> (i32, i32) {
    %c0_i32 = arith.constant 0 : i32
    %c0_i32_0 = arith.constant 0 : i32
    %c0_i32_1 = arith.constant 0 : i32
    return %c0_i32, %c0_i32_0 : i32, i32
  }
  func.func @transform_13(%arg0: i32) -> (i32, i32) {
    %c0_i32 = arith.constant 0 : i32
    %c0_i32_0 = arith.constant 0 : i32
    %c0_i32_1 = arith.constant 0 : i32
    return %c0_i32, %c0_i32_0 : i32, i32
  }
  func.func @transform_14(%arg0: i32) -> (i32, i32) {
    %c0_i32 = arith.constant 0 : i32
    %c0_i32_0 = arith.constant 0 : i32
    %c0_i32_1 = arith.constant 0 : i32
    return %c0_i32, %c0_i32_0 : i32, i32
  }
  func.func @transform_15(%arg0: i32) -> (i32, i32) {
    %c0_i32 = arith.constant 0 : i32
    %c0_i32_0 = arith.constant 0 : i32
    %c0_i32_1 = arith.constant 0 : i32
    return %c0_i32, %c0_i32_0 : i32, i32
  }
  func.func @transform_16(%arg0: i32) -> (i32, i32) {
    %c0_i32 = arith.constant 0 : i32
    %c0_i32_0 = arith.constant 0 : i32
    %c0_i32_1 = arith.constant 0 : i32
    return %c0_i32, %c0_i32_0 : i32, i32
  }
  func.func @transform_17(%arg0: i32) -> (i32, i32) {
    %c0_i32 = arith.constant 0 : i32
    %c0_i32_0 = arith.constant 0 : i32
    %c0_i32_1 = arith.constant 0 : i32
    return %c0_i32, %c0_i32_0 : i32, i32
  }
  func.func @transform_18(%arg0: i32) -> (i32, i32) {
    %c0_i32 = arith.constant 0 : i32
    %c0_i32_0 = arith.constant 0 : i32
    %c0_i32_1 = arith.constant 0 : i32
    return %c0_i32, %c0_i32_0 : i32, i32
  }
  func.func @transform_19(%arg0: i32) -> (i32, i32) {
    %c0_i32 = arith.constant 0 : i32
    %c0_i32_0 = arith.constant 0 : i32
    %c0_i32_1 = arith.constant 0 : i32
    return %c0_i32, %c0_i32_0 : i32, i32
  }
  func.func @transform_20(%arg0: i32) -> (i32, i32) {
    %c0_i32 = arith.constant 0 : i32
    %c0_i32_0 = arith.constant 0 : i32
    %c0_i32_1 = arith.constant 0 : i32
    return %c0_i32, %c0_i32_0 : i32, i32
  }
  func.func @transform_21(%arg0: i32) -> (i32, i32) {
    %c0_i32 = arith.constant 0 : i32
    %c0_i32_0 = arith.constant 0 : i32
    %c0_i32_1 = arith.constant 0 : i32
    return %c0_i32, %c0_i32_0 : i32, i32
  }
  func.func @transform_22(%arg0: i32) -> (i32, i32) {
    %c0_i32 = arith.constant 0 : i32
    %c0_i32_0 = arith.constant 0 : i32
    %c0_i32_1 = arith.constant 0 : i32
    return %c0_i32, %c0_i32_0 : i32, i32
  }
  func.func @transform_23(%arg0: i32) -> (i32, i32) {
    %c0_i32 = arith.constant 0 : i32
    %c0_i32_0 = arith.constant 0 : i32
    %c0_i32_1 = arith.constant 0 : i32
    return %c0_i32, %c0_i32_0 : i32, i32
  }
  func.func @transform_24(%arg0: i32) -> (i32, i32) {
    %c0_i32 = arith.constant 0 : i32
    %c0_i32_0 = arith.constant 0 : i32
    %c0_i32_1 = arith.constant 0 : i32
    return %c0_i32, %c0_i32_0 : i32, i32
  }
  func.func @transform_25(%arg0: i32) -> (i32, i32) {
    %c0_i32 = arith.constant 0 : i32
    %c0_i32_0 = arith.constant 0 : i32
    return %arg0, %c0_i32 : i32, i32
  }
}

</mosaic_0001>

<llo_original>
// kernel: tpu_custom_call.1
$region0: #{tpu_custom_call.1}
  #allocation0 [shape = 'u32[]', space=smem, size = 0x4, offset = 0x4, fixed_abs, tag = 'smem constant byte address 0x4 - core index']
  #allocation1 [shape = 'u32[144,128]{1,0:T(1,128)}', space=vmem, size = 0x12000, scoped, tag = 'internal scratch']
  %s0 = inlined_call_operand.hbm [shape: f32[1024,128], index: 0, kind: input, shape index: {}]
  %s1 = inlined_call_operand.hbm [shape: bf16[128,256], index: 1, kind: input, shape index: {}]
  %s2 = inlined_call_operand.vmem [shape: f32[1,256], index: 2, kind: input, shape index: {}]
  %s3 = inlined_call_operand.hbm [shape: bf16[256,256], index: 3, kind: input, shape index: {}]
  %s4 = inlined_call_operand.vmem [shape: f32[1,256], index: 4, kind: input, shape index: {}]
  %s5 = inlined_call_operand.hbm [shape: bf16[256,256], index: 5, kind: input, shape index: {}]
  %s6 = inlined_call_operand.vmem [shape: f32[1,256], index: 6, kind: input, shape index: {}]
  %s7 = inlined_call_operand.hbm [shape: bf16[256,256], index: 7, kind: input, shape index: {}]
  %s8 = inlined_call_operand.vmem [shape: f32[1,256], index: 8, kind: input, shape index: {}]
  %s9 = inlined_call_operand.hbm [shape: bf16[128,256], index: 9, kind: input, shape index: {}]
  %s10 = inlined_call_operand.hbm [shape: bf16[256,256], index: 10, kind: input, shape index: {}]
  %s11 = inlined_call_operand.vmem [shape: f32[1,256], index: 11, kind: input, shape index: {}]
  %s12 = inlined_call_operand.hbm [shape: bf16[256,256], index: 12, kind: input, shape index: {}]
  %s13 = inlined_call_operand.vmem [shape: f32[1,256], index: 13, kind: input, shape index: {}]
  %s14 = inlined_call_operand.hbm [shape: bf16[256,256], index: 14, kind: input, shape index: {}]
  %s15 = inlined_call_operand.vmem [shape: f32[1,256], index: 15, kind: input, shape index: {}]
  %s16 = inlined_call_operand.hbm [shape: bf16[256,256], index: 16, kind: input, shape index: {}]
  %s17 = inlined_call_operand.vmem [shape: f32[1,256], index: 17, kind: input, shape index: {}]
  %s18 = inlined_call_operand.hbm [shape: bf16[256,384], index: 18, kind: input, shape index: {}]
  %s19 = inlined_call_operand.vmem [shape: f32[1,384], index: 19, kind: input, shape index: {}]
  %s20 = inlined_call_operand.vmem [shape: bf16[128,128], index: 20, kind: input, shape index: {}]
  %s21 = inlined_call_operand.hbm [shape: bf16[256,128], index: 21, kind: input, shape index: {}]
  %s22 = inlined_call_operand.vmem [shape: f32[1,128], index: 22, kind: input, shape index: {}]
  %s23 = inlined_call_operand.vmem [shape: bf16[128,4], index: 23, kind: input, shape index: {}]
  %s24 = inlined_call_operand.vmem [shape: f32[1,4], index: 24, kind: input, shape index: {}]
  %s25 = inlined_call_operand.vmem [shape: f32[1024,4], index: 25, kind: output, shape index: {}]
  %s26 = sld [smem:[#allocation0]]
  $region181: #{tpu_custom_call.1} parent=0
    _
  %s28 = ssub.s32 1, %s26
  %s29 = scalar_select 0, %s28, %s26
  $region1: #{tpu_custom_call.1} parent=0
    #allocation2 [shape = 'u8[524288]{0}', space=vmem, size = 0x80000, scoped, tag = 'input window, operand 0']
    #allocation3 [shape = 's32[2]{0}', space=sflag, size = 0x8, scoped, tag = 'scoped memory for tpu_custom_call.1']
    #allocation4 [shape = 'u8[65536]{0}', space=vmem, size = 0x10000, scoped, tag = 'input window, operand 1, single buffered']
    #allocation5 [shape = 's32[1]{0}', space=sflag, size = 0x4, scoped, tag = 'scoped memory for tpu_custom_call.1']
    #allocation6 [shape = 'u8[131072]{0}', space=vmem, size = 0x20000, scoped, tag = 'input window, operand 3, single buffered']
    #allocation7 [shape = 'u8[131072]{0}', space=vmem, size = 0x20000, scoped, tag = 'input window, operand 5, single buffered']
    #allocation8 [shape = 's32[1]{0}', space=sflag, size = 0x4, scoped, tag = 'scoped memory for tpu_custom_call.1']
    #allocation9 [shape = 'u8[131072]{0}', space=vmem, size = 0x20000, scoped, tag = 'input window, operand 7, single buffered']
    #allocation10 [shape = 'u8[65536]{0}', space=vmem, size = 0x10000, scoped, tag = 'input window, operand 9, single buffered']
    #allocation11 [shape = 's32[1]{0}', space=sflag, size = 0x4, scoped, tag = 'scoped memory for tpu_custom_call.1']
    #allocation12 [shape = 'u8[131072]{0}', space=vmem, size = 0x20000, scoped, tag = 'input window, operand 10, single buffered']
    #allocation13 [shape = 'u8[131072]{0}', space=vmem, size = 0x20000, scoped, tag = 'input window, operand 12, single buffered']
    #allocation14 [shape = 's32[1]{0}', space=sflag, size = 0x4, scoped, tag = 'scoped memory for tpu_custom_call.1']
    #allocation15 [shape = 'u8[131072]{0}', space=vmem, size = 0x20000, scoped, tag = 'input window, operand 14, single buffered']
    #allocation16 [shape = 'u8[131072]{0}', space=vmem, size = 0x20000, scoped, tag = 'input window, operand 16, single buffered']
    #allocation17 [shape = 's32[1]{0}', space=sflag, size = 0x4, scoped, tag = 'scoped memory for tpu_custom_call.1']
    #allocation18 [shape = 'u8[196608]{0}', space=vmem, size = 0x30000, scoped, tag = 'input window, operand 18, single buffered']
    #allocation19 [shape = 'u8[65536]{0}', space=vmem, size = 0x10000, scoped, tag = 'input window, operand 21, single buffered']
    #allocation20 [shape = 's32[1]{0}', space=sflag, size = 0x4, scoped, tag = 'scoped memory for tpu_custom_call.1']
    %30 = vsyncpa [#allocation3], 0
    %s31 = scalar_lea.sflag [#allocation3], 1
    %32 = vsyncpa %s31, 0
    %33 = vsyncpa [#allocation5], 0
    %34 = vsyncpa [#allocation8], 0
    %35 = vsyncpa [#allocation11], 0
    %36 = vsyncpa [#allocation14], 0
    %37 = vsyncpa [#allocation17], 0
    %38 = vsyncpa [#allocation20], 0
    loop: start=0, step=1, limit=4
    $region2: #{tpu_custom_call.1} parent=1 // loop_pre_header
      _
    $region3: #{tpu_custom_call.1} parent=1 // loop_header
      %s40 = sphi 0, %s44
      %p41 = scmp.ge.s32.totalorder %s40, 4
      %s50 = sphi 0, %s52
      %s53 = sphi 0, %s50
      %s54 = sphi 0, %s53
      %s70 = sphi 0, %s54
      %s74 = sphi 0, %s74
      %s76 = sphi 0, %s74
      %s77 = sphi 0, %s76
      %s91 = sphi 0, %s77
      %s95 = sphi 0, %s95
      %s97 = sphi 0, %s95
      %s98 = sphi 0, %s97
      %s112 = sphi 0, %s98
      %s116 = sphi 0, %s116
      %s118 = sphi 0, %s116
      %s119 = sphi 0, %s118
      %s133 = sphi 0, %s119
      %s137 = sphi 0, %s137
      %s139 = sphi 0, %s137
      %s140 = sphi 0, %s139
      %s154 = sphi 0, %s140
      %s158 = sphi 0, %s158
      %s160 = sphi 0, %s158
      %s161 = sphi 0, %s160
      %s175 = sphi 0, %s161
      %s179 = sphi 0, %s179
      %s181 = sphi 0, %s179
      %s182 = sphi 0, %s181
      %s196 = sphi 0, %s182
      %s200 = sphi 0, %s200
      %s202 = sphi 0, %s200
      %s203 = sphi 0, %s202
      %s217 = sphi 0, %s203
      %s221 = sphi 0, %s221
      %s223 = sphi 0, %s221
      %s224 = sphi 0, %s223
      %s238 = sphi 0, %s224
      %s242 = sphi 0, %s242
      %s244 = sphi 0, %s242
      %s245 = sphi 0, %s244
      %s259 = sphi 0, %s245
      %s263 = sphi 0, %s263
      %s265 = sphi 0, %s263
      %s266 = sphi 0, %s265
      %s280 = sphi 0, %s266
      %s284 = sphi 0, %s284
      %s286 = sphi 0, %s284
      %s287 = sphi 0, %s286
      %s301 = sphi 0, %s287
      %s305 = sphi 0, %s305
      %s307 = sphi 0, %s305
      %s308 = sphi 0, %s307
      %s322 = sphi 0, %s308
      %s326 = sphi 0, %s326
      %s328 = sphi 0, %s326
      %s329 = sphi 0, %s328
      %s343 = sphi 0, %s329
      %s347 = sphi 0, %s347
      %s349 = sphi 0, %s347
      %s350 = sphi 0, %s349
      %s364 = sphi 0, %s350
      %s368 = sphi 0, %s368
      %s370 = sphi 0, %s368
      %s371 = sphi 0, %s370
      %s385 = sphi 0, %s371
      %s389 = sphi 0, %s389
      %s391 = sphi 0, %s389
      %s392 = sphi 0, %s391
      %s406 = sphi 0, %s392
      %s410 = sphi 0, %s410
      %s412 = sphi 0, %s410
      %s413 = sphi 0, %s412
      %s427 = sphi 0, %s413
      %s431 = sphi 0, %s431
      %s433 = sphi 0, %s431
      %s434 = sphi 0, %s433
      %s448 = sphi 0, %s434
      %s452 = sphi 0, %s452
      %s454 = sphi 0, %s452
      %s455 = sphi 0, %s454
      %s469 = sphi 0, %s455
      %s473 = sphi 0, %s473
      %s475 = sphi 0, %s473
      %s476 = sphi 0, %s475
      %s490 = sphi 0, %s476
      %s494 = sphi 0, %s494
      %s496 = sphi 0, %s494
      %s497 = sphi 0, %s496
      %s511 = sphi 0, %s497
      %s515 = sphi 0, %s515
      %s517 = sphi 0, %s515
      %s518 = sphi 0, %s517
      %s532 = sphi 0, %s518
      %s536 = sphi 0, %s536
      %s538 = sphi 0, %s536
      %s539 = sphi 0, %s538
      %s553 = sphi 0, %s539
      %s557 = sphi 0, %s557
      %s559 = sphi 0, %s557
      %s560 = sphi 0, %s559
      %s574 = sphi 0, %s560
      %s580 = sphi 0, %s582
      %s583 = sphi 0, %s580
      %s584 = sphi 0, %s583
      %s600 = sphi 0, %s584
    $region4: #{tpu_custom_call.1} parent=1 // loop_header_branch
      %43 = sbr.rel (%p41) target = $region8
    $region5: #{tpu_custom_call.1} parent=1 // loop_body
      %s45 = ssub.s32 %s40, 1
      %s46 = ssub.s32 %s40, 2
      %s47 = sadd.s32 %s40, 1
      %s48 = ssub.s32 %s40, %s47
      %p49 = scmp.eq.s32.totalorder %s48, 0
      %s51 = sadd.s32 %s50, 1
      %s52 = scalar_select %p49, %s50, %s51
      %p55 = pneg %p49
      %p56 = scmp.eq.s32.totalorder %s40, 1
      %p57 = por %p55, %p56
      %p58 = scmp.ne.s32.totalorder %s50, %s53
      %p59 = scmp.eq.s32.totalorder %s40, 0
      %p60 = por %p58, %p59
      %p61 = scmp.ne.s32.totalorder %s50, %s53
      %p62 = scmp.eq.s32.totalorder %s45, 1
      %p63 = por %p61, %p62
      %p64 = scmp.ne.s32.totalorder %s53, %s54
      %p65 = scmp.eq.s32.totalorder %s45, 0
      %p66 = por %p64, %p65
      %p67 = scmp.ne.s32.totalorder %s53, %s54
      %p68 = scmp.eq.s32.totalorder %s46, 1
      %p69 = por %p67, %p68
      %p71 = scmp.ne.s32.totalorder %s54, %s70
      %p72 = scmp.eq.s32.totalorder %s46, 0
      %p73 = por %p71, %p72
      %s75 = sadd.s32 %s74, 1
      %p78 = scmp.eq.s32.totalorder %s40, 1
      %p79 = scmp.ne.s32.totalorder %s74, %s76
      %p80 = scmp.eq.s32.totalorder %s40, 0
      %p81 = por %p79, %p80
      %p82 = scmp.ne.s32.totalorder %s74, %s76
      %p83 = scmp.eq.s32.totalorder %s45, 1
      %p84 = por %p82, %p83
      %p85 = scmp.ne.s32.totalorder %s76, %s77
      %p86 = scmp.eq.s32.totalorder %s45, 0
      %p87 = por %p85, %p86
      %p88 = scmp.ne.s32.totalorder %s76, %s77
      %p89 = scmp.eq.s32.totalorder %s46, 1
      %p90 = por %p88, %p89
      %p92 = scmp.ne.s32.totalorder %s77, %s91
      %p93 = scmp.eq.s32.totalorder %s46, 0
      %p94 = por %p92, %p93
      %s96 = sadd.s32 %s95, 1
      %p99 = scmp.eq.s32.totalorder %s40, 1
      %p100 = scmp.ne.s32.totalorder %s95, %s97
      %p101 = scmp.eq.s32.totalorder %s40, 0
      %p102 = por %p100, %p101
      %p103 = scmp.ne.s32.totalorder %s95, %s97
      %p104 = scmp.eq.s32.totalorder %s45, 1
      %p105 = por %p103, %p104
      %p106 = scmp.ne.s32.totalorder %s97, %s98
      %p107 = scmp.eq.s32.totalorder %s45, 0
      %p108 = por %p106, %p107
      %p109 = scmp.ne.s32.totalorder %s97, %s98
      %p110 = scmp.eq.s32.totalorder %s46, 1
      %p111 = por %p109, %p110
      %p113 = scmp.ne.s32.totalorder %s98, %s112
      %p114 = scmp.eq.s32.totalorder %s46, 0
      %p115 = por %p113, %p114
      %s117 = sadd.s32 %s116, 1
      %p120 = scmp.eq.s32.totalorder %s40, 1
      %p121 = scmp.ne.s32.totalorder %s116, %s118
      %p122 = scmp.eq.s32.totalorder %s40, 0
      %p123 = por %p121, %p122
      %p124 = scmp.ne.s32.totalorder %s116, %s118
      %p125 = scmp.eq.s32.totalorder %s45, 1
      %p126 = por %p124, %p125
      %p127 = scmp.ne.s32.totalorder %s118, %s119
      %p128 = scmp.eq.s32.totalorder %s45, 0
      %p129 = por %p127, %p128
      %p130 = scmp.ne.s32.totalorder %s118, %s119
      %p131 = scmp.eq.s32.totalorder %s46, 1
      %p132 = por %p130, %p131
      %p134 = scmp.ne.s32.totalorder %s119, %s133
      %p135 = scmp.eq.s32.totalorder %s46, 0
      %p136 = por %p134, %p135
      %s138 = sadd.s32 %s137, 1
      %p141 = scmp.eq.s32.totalorder %s40, 1
      %p142 = scmp.ne.s32.totalorder %s137, %s139
      %p143 = scmp.eq.s32.totalorder %s40, 0
      %p144 = por %p142, %p143
      %p145 = scmp.ne.s32.totalorder %s137, %s139
      %p146 = scmp.eq.s32.totalorder %s45, 1
      %p147 = por %p145, %p146
      %p148 = scmp.ne.s32.totalorder %s139, %s140
      %p149 = scmp.eq.s32.totalorder %s45, 0
      %p150 = por %p148, %p149
      %p151 = scmp.ne.s32.totalorder %s139, %s140
      %p152 = scmp.eq.s32.totalorder %s46, 1
      %p153 = por %p151, %p152
      %p155 = scmp.ne.s32.totalorder %s140, %s154
      %p156 = scmp.eq.s32.totalorder %s46, 0
      %p157 = por %p155, %p156
      %s159 = sadd.s32 %s158, 1
      %p162 = scmp.eq.s32.totalorder %s40, 1
      %p163 = scmp.ne.s32.totalorder %s158, %s160
      %p164 = scmp.eq.s32.totalorder %s40, 0
      %p165 = por %p163, %p164
      %p166 = scmp.ne.s32.totalorder %s158, %s160
      %p167 = scmp.eq.s32.totalorder %s45, 1
      %p168 = por %p166, %p167
      %p169 = scmp.ne.s32.totalorder %s160, %s161
      %p170 = scmp.eq.s32.totalorder %s45, 0
      %p171 = por %p169, %p170
      %p172 = scmp.ne.s32.totalorder %s160, %s161
      %p173 = scmp.eq.s32.totalorder %s46, 1
      %p174 = por %p172, %p173
      %p176 = scmp.ne.s32.totalorder %s161, %s175
      %p177 = scmp.eq.s32.totalorder %s46, 0
      %p178 = por %p176, %p177
      %s180 = sadd.s32 %s179, 1
      %p183 = scmp.eq.s32.totalorder %s40, 1
      %p184 = scmp.ne.s32.totalorder %s179, %s181
      %p185 = scmp.eq.s32.totalorder %s40, 0
      %p186 = por %p184, %p185
      %p187 = scmp.ne.s32.totalorder %s179, %s181
      %p188 = scmp.eq.s32.totalorder %s45, 1
      %p189 = por %p187, %p188
      %p190 = scmp.ne.s32.totalorder %s181, %s182
      %p191 = scmp.eq.s32.totalorder %s45, 0
      %p192 = por %p190, %p191
      %p193 = scmp.ne.s32.totalorder %s181, %s182
      %p194 = scmp.eq.s32.totalorder %s46, 1
      %p195 = por %p193, %p194
      %p197 = scmp.ne.s32.totalorder %s182, %s196
      %p198 = scmp.eq.s32.totalorder %s46, 0
      %p199 = por %p197, %p198
      %s201 = sadd.s32 %s200, 1
      %p204 = scmp.eq.s32.totalorder %s40, 1
      %p205 = scmp.ne.s32.totalorder %s200, %s202
      %p206 = scmp.eq.s32.totalorder %s40, 0
      %p207 = por %p205, %p206
      %p208 = scmp.ne.s32.totalorder %s200, %s202
      %p209 = scmp.eq.s32.totalorder %s45, 1
      %p210 = por %p208, %p209
      %p211 = scmp.ne.s32.totalorder %s202, %s203
      %p212 = scmp.eq.s32.totalorder %s45, 0
      %p213 = por %p211, %p212
      %p214 = scmp.ne.s32.totalorder %s202, %s203
      %p215 = scmp.eq.s32.totalorder %s46, 1
      %p216 = por %p214, %p215
      %p218 = scmp.ne.s32.totalorder %s203, %s217
      %p219 = scmp.eq.s32.totalorder %s46, 0
      %p220 = por %p218, %p219
      %s222 = sadd.s32 %s221, 1
      %p225 = scmp.eq.s32.totalorder %s40, 1
      %p226 = scmp.ne.s32.totalorder %s221, %s223
      %p227 = scmp.eq.s32.totalorder %s40, 0
      %p228 = por %p226, %p227
      %p229 = scmp.ne.s32.totalorder %s221, %s223
      %p230 = scmp.eq.s32.totalorder %s45, 1
      %p231 = por %p229, %p230
      %p232 = scmp.ne.s32.totalorder %s223, %s224
      %p233 = scmp.eq.s32.totalorder %s45, 0
      %p234 = por %p232, %p233
      %p235 = scmp.ne.s32.totalorder %s223, %s224
      %p236 = scmp.eq.s32.totalorder %s46, 1
      %p237 = por %p235, %p236
      %p239 = scmp.ne.s32.totalorder %s224, %s238
      %p240 = scmp.eq.s32.totalorder %s46, 0
      %p241 = por %p239, %p240
      %s243 = sadd.s32 %s242, 1
      %p246 = scmp.eq.s32.totalorder %s40, 1
      %p247 = scmp.ne.s32.totalorder %s242, %s244
      %p248 = scmp.eq.s32.totalorder %s40, 0
      %p249 = por %p247, %p248
      %p250 = scmp.ne.s32.totalorder %s242, %s244
      %p251 = scmp.eq.s32.totalorder %s45, 1
      %p252 = por %p250, %p251
      %p253 = scmp.ne.s32.totalorder %s244, %s245
      %p254 = scmp.eq.s32.totalorder %s45, 0
      %p255 = por %p253, %p254
      %p256 = scmp.ne.s32.totalorder %s244, %s245
      %p257 = scmp.eq.s32.totalorder %s46, 1
      %p258 = por %p256, %p257
      %p260 = scmp.ne.s32.totalorder %s245, %s259
      %p261 = scmp.eq.s32.totalorder %s46, 0
      %p262 = por %p260, %p261
      %s264 = sadd.s32 %s263, 1
      %p267 = scmp.eq.s32.totalorder %s40, 1
      %p268 = scmp.ne.s32.totalorder %s263, %s265
      %p269 = scmp.eq.s32.totalorder %s40, 0
      %p270 = por %p268, %p269
      %p271 = scmp.ne.s32.totalorder %s263, %s265
      %p272 = scmp.eq.s32.totalorder %s45, 1
      %p273 = por %p271, %p272
      %p274 = scmp.ne.s32.totalorder %s265, %s266
      %p275 = scmp.eq.s32.totalorder %s45, 0
      %p276 = por %p274, %p275
      %p277 = scmp.ne.s32.totalorder %s265, %s266
      %p278 = scmp.eq.s32.totalorder %s46, 1
      %p279 = por %p277, %p278
      %p281 = scmp.ne.s32.totalorder %s266, %s280
      %p282 = scmp.eq.s32.totalorder %s46, 0
      %p283 = por %p281, %p282
      %s285 = sadd.s32 %s284, 1
      %p288 = scmp.eq.s32.totalorder %s40, 1
      %p289 = scmp.ne.s32.totalorder %s284, %s286
      %p290 = scmp.eq.s32.totalorder %s40, 0
      %p291 = por %p289, %p290
      %p292 = scmp.ne.s32.totalorder %s284, %s286
      %p293 = scmp.eq.s32.totalorder %s45, 1
      %p294 = por %p292, %p293
      %p295 = scmp.ne.s32.totalorder %s286, %s287
      %p296 = scmp.eq.s32.totalorder %s45, 0
      %p297 = por %p295, %p296
      %p298 = scmp.ne.s32.totalorder %s286, %s287
      %p299 = scmp.eq.s32.totalorder %s46, 1
      %p300 = por %p298, %p299
      %p302 = scmp.ne.s32.totalorder %s287, %s301
      %p303 = scmp.eq.s32.totalorder %s46, 0
      %p304 = por %p302, %p303
      %s306 = sadd.s32 %s305, 1
      %p309 = scmp.eq.s32.totalorder %s40, 1
      %p310 = scmp.ne.s32.totalorder %s305, %s307
      %p311 = scmp.eq.s32.totalorder %s40, 0
      %p312 = por %p310, %p311
      %p313 = scmp.ne.s32.totalorder %s305, %s307
      %p314 = scmp.eq.s32.totalorder %s45, 1
      %p315 = por %p313, %p314
      %p316 = scmp.ne.s32.totalorder %s307, %s308
      %p317 = scmp.eq.s32.totalorder %s45, 0
      %p318 = por %p316, %p317
      %p319 = scmp.ne.s32.totalorder %s307, %s308
      %p320 = scmp.eq.s32.totalorder %s46, 1
      %p321 = por %p319, %p320
      %p323 = scmp.ne.s32.totalorder %s308, %s322
      %p324 = scmp.eq.s32.totalorder %s46, 0
      %p325 = por %p323, %p324
      %s327 = sadd.s32 %s326, 1
      %p330 = scmp.eq.s32.totalorder %s40, 1
      %p331 = scmp.ne.s32.totalorder %s326, %s328
      %p332 = scmp.eq.s32.totalorder %s40, 0
      %p333 = por %p331, %p332
      %p334 = scmp.ne.s32.totalorder %s326, %s328
      %p335 = scmp.eq.s32.totalorder %s45, 1
      %p336 = por %p334, %p335
      %p337 = scmp.ne.s32.totalorder %s328, %s329
      %p338 = scmp.eq.s32.totalorder %s45, 0
      %p339 = por %p337, %p338
      %p340 = scmp.ne.s32.totalorder %s328, %s329
      %p341 = scmp.eq.s32.totalorder %s46, 1
      %p342 = por %p340, %p341
      %p344 = scmp.ne.s32.totalorder %s329, %s343
      %p345 = scmp.eq.s32.totalorder %s46, 0
      %p346 = por %p344, %p345
      %s348 = sadd.s32 %s347, 1
      %p351 = scmp.eq.s32.totalorder %s40, 1
      %p352 = scmp.ne.s32.totalorder %s347, %s349
      %p353 = scmp.eq.s32.totalorder %s40, 0
      %p354 = por %p352, %p353
      %p355 = scmp.ne.s32.totalorder %s347, %s349
      %p356 = scmp.eq.s32.totalorder %s45, 1
      %p357 = por %p355, %p356
      %p358 = scmp.ne.s32.totalorder %s349, %s350
      %p359 = scmp.eq.s32.totalorder %s45, 0
      %p360 = por %p358, %p359
      %p361 = scmp.ne.s32.totalorder %s349, %s350
      %p362 = scmp.eq.s32.totalorder %s46, 1
      %p363 = por %p361, %p362
      %p365 = scmp.ne.s32.totalorder %s350, %s364
      %p366 = scmp.eq.s32.totalorder %s46, 0
      %p367 = por %p365, %p366
      %s369 = sadd.s32 %s368, 1
      %p372 = scmp.eq.s32.totalorder %s40, 1
      %p373 = scmp.ne.s32.totalorder %s368, %s370
      %p374 = scmp.eq.s32.totalorder %s40, 0
      %p375 = por %p373, %p374
      %p376 = scmp.ne.s32.totalorder %s368, %s370
      %p377 = scmp.eq.s32.totalorder %s45, 1
      %p378 = por %p376, %p377
      %p379 = scmp.ne.s32.totalorder %s370, %s371
      %p380 = scmp.eq.s32.totalorder %s45, 0
      %p381 = por %p379, %p380
      %p382 = scmp.ne.s32.totalorder %s370, %s371
      %p383 = scmp.eq.s32.totalorder %s46, 1
      %p384 = por %p382, %p383
      %p386 = scmp.ne.s32.totalorder %s371, %s385
      %p387 = scmp.eq.s32.totalorder %s46, 0
      %p388 = por %p386, %p387
      %s390 = sadd.s32 %s389, 1
      %p393 = scmp.eq.s32.totalorder %s40, 1
      %p394 = scmp.ne.s32.totalorder %s389, %s391
      %p395 = scmp.eq.s32.totalorder %s40, 0
      %p396 = por %p394, %p395
      %p397 = scmp.ne.s32.totalorder %s389, %s391
      %p398 = scmp.eq.s32.totalorder %s45, 1
      %p399 = por %p397, %p398
      %p400 = scmp.ne.s32.totalorder %s391, %s392
      %p401 = scmp.eq.s32.totalorder %s45, 0
      %p402 = por %p400, %p401
      %p403 = scmp.ne.s32.totalorder %s391, %s392
      %p404 = scmp.eq.s32.totalorder %s46, 1
      %p405 = por %p403, %p404
      %p407 = scmp.ne.s32.totalorder %s392, %s406
      %p408 = scmp.eq.s32.totalorder %s46, 0
      %p409 = por %p407, %p408
      %s411 = sadd.s32 %s410, 1
      %p414 = scmp.eq.s32.totalorder %s40, 1
      %p415 = scmp.ne.s32.totalorder %s410, %s412
      %p416 = scmp.eq.s32.totalorder %s40, 0
      %p417 = por %p415, %p416
      %p418 = scmp.ne.s32.totalorder %s410, %s412
      %p419 = scmp.eq.s32.totalorder %s45, 1
      %p420 = por %p418, %p419
      %p421 = scmp.ne.s32.totalorder %s412, %s413
      %p422 = scmp.eq.s32.totalorder %s45, 0
      %p423 = por %p421, %p422
      %p424 = scmp.ne.s32.totalorder %s412, %s413
      %p425 = scmp.eq.s32.totalorder %s46, 1
      %p426 = por %p424, %p425
      %p428 = scmp.ne.s32.totalorder %s413, %s427
      %p429 = scmp.eq.s32.totalorder %s46, 0
      %p430 = por %p428, %p429
      %s432 = sadd.s32 %s431, 1
      %p435 = scmp.eq.s32.totalorder %s40, 1
      %p436 = scmp.ne.s32.totalorder %s431, %s433
      %p437 = scmp.eq.s32.totalorder %s40, 0
      %p438 = por %p436, %p437
      %p439 = scmp.ne.s32.totalorder %s431, %s433
      %p440 = scmp.eq.s32.totalorder %s45, 1
      %p441 = por %p439, %p440
      %p442 = scmp.ne.s32.totalorder %s433, %s434
      %p443 = scmp.eq.s32.totalorder %s45, 0
      %p444 = por %p442, %p443
      %p445 = scmp.ne.s32.totalorder %s433, %s434
      %p446 = scmp.eq.s32.totalorder %s46, 1
      %p447 = por %p445, %p446
      %p449 = scmp.ne.s32.totalorder %s434, %s448
      %p450 = scmp.eq.s32.totalorder %s46, 0
      %p451 = por %p449, %p450
      %s453 = sadd.s32 %s452, 1
      %p456 = scmp.eq.s32.totalorder %s40, 1
      %p457 = scmp.ne.s32.totalorder %s452, %s454
      %p458 = scmp.eq.s32.totalorder %s40, 0
      %p459 = por %p457, %p458
      %p460 = scmp.ne.s32.totalorder %s452, %s454
      %p461 = scmp.eq.s32.totalorder %s45, 1
      %p462 = por %p460, %p461
      %p463 = scmp.ne.s32.totalorder %s454, %s455
      %p464 = scmp.eq.s32.totalorder %s45, 0
      %p465 = por %p463, %p464
      %p466 = scmp.ne.s32.totalorder %s454, %s455
      %p467 = scmp.eq.s32.totalorder %s46, 1
      %p468 = por %p466, %p467
      %p470 = scmp.ne.s32.totalorder %s455, %s469
      %p471 = scmp.eq.s32.totalorder %s46, 0
      %p472 = por %p470, %p471
      %s474 = sadd.s32 %s473, 1
      %p477 = scmp.eq.s32.totalorder %s40, 1
      %p478 = scmp.ne.s32.totalorder %s473, %s475
      %p479 = scmp.eq.s32.totalorder %s40, 0
      %p480 = por %p478, %p479
      %p481 = scmp.ne.s32.totalorder %s473, %s475
      %p482 = scmp.eq.s32.totalorder %s45, 1
      %p483 = por %p481, %p482
      %p484 = scmp.ne.s32.totalorder %s475, %s476
      %p485 = scmp.eq.s32.totalorder %s45, 0
      %p486 = por %p484, %p485
      %p487 = scmp.ne.s32.totalorder %s475, %s476
      %p488 = scmp.eq.s32.totalorder %s46, 1
      %p489 = por %p487, %p488
      %p491 = scmp.ne.s32.totalorder %s476, %s490
      %p492 = scmp.eq.s32.totalorder %s46, 0
      %p493 = por %p491, %p492
      %s495 = sadd.s32 %s494, 1
      %p498 = scmp.eq.s32.totalorder %s40, 1
      %p499 = scmp.ne.s32.totalorder %s494, %s496
      %p500 = scmp.eq.s32.totalorder %s40, 0
      %p501 = por %p499, %p500
      %p502 = scmp.ne.s32.totalorder %s494, %s496
      %p503 = scmp.eq.s32.totalorder %s45, 1
      %p504 = por %p502, %p503
      %p505 = scmp.ne.s32.totalorder %s496, %s497
      %p506 = scmp.eq.s32.totalorder %s45, 0
      %p507 = por %p505, %p506
      %p508 = scmp.ne.s32.totalorder %s496, %s497
      %p509 = scmp.eq.s32.totalorder %s46, 1
      %p510 = por %p508, %p509
      %p512 = scmp.ne.s32.totalorder %s497, %s511
      %p513 = scmp.eq.s32.totalorder %s46, 0
      %p514 = por %p512, %p513
      %s516 = sadd.s32 %s515, 1
      %p519 = scmp.eq.s32.totalorder %s40, 1
      %p520 = scmp.ne.s32.totalorder %s515, %s517
      %p521 = scmp.eq.s32.totalorder %s40, 0
      %p522 = por %p520, %p521
      %p523 = scmp.ne.s32.totalorder %s515, %s517
      %p524 = scmp.eq.s32.totalorder %s45, 1
      %p525 = por %p523, %p524
      %p526 = scmp.ne.s32.totalorder %s517, %s518
      %p527 = scmp.eq.s32.totalorder %s45, 0
      %p528 = por %p526, %p527
      %p529 = scmp.ne.s32.totalorder %s517, %s518
      %p530 = scmp.eq.s32.totalorder %s46, 1
      %p531 = por %p529, %p530
      %p533 = scmp.ne.s32.totalorder %s518, %s532
      %p534 = scmp.eq.s32.totalorder %s46, 0
      %p535 = por %p533, %p534
      %s537 = sadd.s32 %s536, 1
      %p540 = scmp.eq.s32.totalorder %s40, 1
      %p541 = scmp.ne.s32.totalorder %s536, %s538
      %p542 = scmp.eq.s32.totalorder %s40, 0
      %p543 = por %p541, %p542
      %p544 = scmp.ne.s32.totalorder %s536, %s538
      %p545 = scmp.eq.s32.totalorder %s45, 1
      %p546 = por %p544, %p545
      %p547 = scmp.ne.s32.totalorder %s538, %s539
      %p548 = scmp.eq.s32.totalorder %s45, 0
      %p549 = por %p547, %p548
      %p550 = scmp.ne.s32.totalorder %s538, %s539
      %p551 = scmp.eq.s32.totalorder %s46, 1
      %p552 = por %p550, %p551
      %p554 = scmp.ne.s32.totalorder %s539, %s553
      %p555 = scmp.eq.s32.totalorder %s46, 0
      %p556 = por %p554, %p555
      %s558 = sadd.s32 %s557, 1
      %p561 = scmp.eq.s32.totalorder %s40, 1
      %p562 = scmp.ne.s32.totalorder %s557, %s559
      %p563 = scmp.eq.s32.totalorder %s40, 0
      %p564 = por %p562, %p563
      %p565 = scmp.ne.s32.totalorder %s557, %s559
      %p566 = scmp.eq.s32.totalorder %s45, 1
      %p567 = por %p565, %p566
      %p568 = scmp.ne.s32.totalorder %s559, %s560
      %p569 = scmp.eq.s32.totalorder %s45, 0
      %p570 = por %p568, %p569
      %p571 = scmp.ne.s32.totalorder %s559, %s560
      %p572 = scmp.eq.s32.totalorder %s46, 1
      %p573 = por %p571, %p572
      %p575 = scmp.ne.s32.totalorder %s560, %s574
      %p576 = scmp.eq.s32.totalorder %s46, 0
      %p577 = por %p575, %p576
      %s578 = ssub.s32 %s40, %s47
      %p579 = scmp.eq.s32.totalorder %s578, 0
      %s581 = sadd.s32 %s580, 1
      %s582 = scalar_select %p579, %s580, %s581
      %p585 = pneg %p579
      %p586 = scmp.eq.s32.totalorder %s40, 1
      %p587 = por %p585, %p586
      %p588 = scmp.ne.s32.totalorder %s580, %s583
      %p589 = scmp.eq.s32.totalorder %s40, 0
      %p590 = por %p588, %p589
      %p591 = scmp.ne.s32.totalorder %s580, %s583
      %p592 = scmp.eq.s32.totalorder %s45, 1
      %p593 = por %p591, %p592
      %p594 = scmp.ne.s32.totalorder %s583, %s584
      %p595 = scmp.eq.s32.totalorder %s45, 0
      %p596 = por %p594, %p595
      %p597 = scmp.ne.s32.totalorder %s583, %s584
      %p598 = scmp.eq.s32.totalorder %s46, 1
      %p599 = por %p597, %p598
      %p601 = scmp.ne.s32.totalorder %s584, %s600
      %p602 = scmp.eq.s32.totalorder %s46, 0
      %p603 = por %p601, %p602
      %p604 = scmp.le.s32.totalorder 1, %s40
      %p605 = scmp.lt.s32.totalorder %s40, 3
      %p606 = pnand %p604, %p605
      %p607 = pneg %p606
      // Predicated region
      $region9: #{tpu_custom_call.1} parent=5 // pred_check
        _
      $region10: #{tpu_custom_call.1} parent=5 // pred_check_branch
        %609 = sbr.rel (%p606) target = $region12
      $region11: #{tpu_custom_call.1} parent=5 // pred_region
        %s610 = ssub.s32 %s40, 1
        // Predicated region
        $region13: #{tpu_custom_call.1} parent=11 // pred_check
          %p611 = pneg %p87
        $region14: #{tpu_custom_call.1} parent=11 // pred_check_branch
          %613 = sbr.rel (%p611) target = $region16
        $region15: #{tpu_custom_call.1} parent=11 // pred_region
          %s615 = ssub.s32 2048, 2048
          %616 = vsyncadd [#allocation5], %s615
          %s617 = sshll.u32 [#allocation4], 4
          %s618 = int_to_ptr.vmem [resolvable:$true] %s617
          %623 = dma.hbm_to_vmem [thread:$0]  %s1, 2048, %s618, [#allocation5], 128, 128, 8
        $region16: #{tpu_custom_call.1} parent=11 // pred_fallthru
          _
        // Predicated region
        $region17: #{tpu_custom_call.1} parent=11 // pred_check
          %p624 = pneg %p108
        $region18: #{tpu_custom_call.1} parent=11 // pred_check_branch
          %626 = sbr.rel (%p624) target = $region20
        $region19: #{tpu_custom_call.1} parent=11 // pred_region
          _
        $region20: #{tpu_custom_call.1} parent=11 // pred_fallthru
          _
        // Predicated region
        $region21: #{tpu_custom_call.1} parent=11 // pred_check
          %p627 = pneg %p129
        $region22: #{tpu_custom_call.1} parent=11 // pred_check_branch
          %629 = sbr.rel (%p627) target = $region24
        $region23: #{tpu_custom_call.1} parent=11 // pred_region
          %s631 = ssub.s32 4096, 4096
          %632 = vsyncadd [#allocation5], %s631
          %s633 = sshll.u32 [#allocation6], 4
          %s634 = int_to_ptr.vmem [resolvable:$true] %s633
          %639 = dma.hbm_to_vmem [thread:$0]  %s3, 4096, %s634, [#allocation5], 128, 128, 8
        $region24: #{tpu_custom_call.1} parent=11 // pred_fallthru
          _
        // Predicated region
        $region25: #{tpu_custom_call.1} parent=11 // pred_check
          %p640 = pneg %p150
        $region26: #{tpu_custom_call.1} parent=11 // pred_check_branch
          %642 = sbr.rel (%p640) target = $region28
        $region27: #{tpu_custom_call.1} parent=11 // pred_region
          _
        $region28: #{tpu_custom_call.1} parent=11 // pred_fallthru
          _
        // Predicated region
        $region29: #{tpu_custom_call.1} parent=11 // pred_check
          %p643 = pneg %p171
        $region30: #{tpu_custom_call.1} parent=11 // pred_check_branch
          %645 = sbr.rel (%p643) target = $region32
        $region31: #{tpu_custom_call.1} parent=11 // pred_region
          %s647 = ssub.s32 4096, 4096
          %648 = vsyncadd [#allocation8], %s647
          %s649 = sshll.u32 [#allocation7], 4
          %s650 = int_to_ptr.vmem [resolvable:$true] %s649
          %655 = dma.hbm_to_vmem [thread:$0]  %s5, 4096, %s650, [#allocation8], 128, 128, 8
        $region32: #{tpu_custom_call.1} parent=11 // pred_fallthru
          _
        // Predicated region
        $region33: #{tpu_custom_call.1} parent=11 // pred_check
          %p656 = pneg %p192
        $region34: #{tpu_custom_call.1} parent=11 // pred_check_branch
          %658 = sbr.rel (%p656) target = $region36
        $region35: #{tpu_custom_call.1} parent=11 // pred_region
          _
        $region36: #{tpu_custom_call.1} parent=11 // pred_fallthru
          _
        // Predicated region
        $region37: #{tpu_custom_call.1} parent=11 // pred_check
          %p659 = pneg %p213
        $region38: #{tpu_custom_call.1} parent=11 // pred_check_branch
          %661 = sbr.rel (%p659) target = $region40
        $region39: #{tpu_custom_call.1} parent=11 // pred_region
          %s663 = ssub.s32 4096, 4096
          %664 = vsyncadd [#allocation8], %s663
          %s665 = sshll.u32 [#allocation9], 4
          %s666 = int_to_ptr.vmem [resolvable:$true] %s665
          %671 = dma.hbm_to_vmem [thread:$0]  %s7, 4096, %s666, [#allocation8], 128, 128, 8
        $region40: #{tpu_custom_call.1} parent=11 // pred_fallthru
          _
        // Predicated region
        $region41: #{tpu_custom_call.1} parent=11 // pred_check
          %p672 = pneg %p234
        $region42: #{tpu_custom_call.1} parent=11 // pred_check_branch
          %674 = sbr.rel (%p672) target = $region44
        $region43: #{tpu_custom_call.1} parent=11 // pred_region
          _
        $region44: #{tpu_custom_call.1} parent=11 // pred_fallthru
          _
        // Predicated region
        $region45: #{tpu_custom_call.1} parent=11 // pred_check
          %p675 = pneg %p255
        $region46: #{tpu_custom_call.1} parent=11 // pred_check_branch
          %677 = sbr.rel (%p675) target = $region48
        $region47: #{tpu_custom_call.1} parent=11 // pred_region
          %s679 = ssub.s32 2048, 2048
          %680 = vsyncadd [#allocation11], %s679
          %s681 = sshll.u32 [#allocation10], 4
          %s682 = int_to_ptr.vmem [resolvable:$true] %s681
          %687 = dma.hbm_to_vmem [thread:$0]  %s9, 2048, %s682, [#allocation11], 128, 128, 8
        $region48: #{tpu_custom_call.1} parent=11 // pred_fallthru
          _
        // Predicated region
        $region49: #{tpu_custom_call.1} parent=11 // pred_check
          %p688 = pneg %p276
        $region50: #{tpu_custom_call.1} parent=11 // pred_check_branch
          %690 = sbr.rel (%p688) target = $region52
        $region51: #{tpu_custom_call.1} parent=11 // pred_region
          %s692 = ssub.s32 4096, 4096
          %693 = vsyncadd [#allocation11], %s692
          %s694 = sshll.u32 [#allocation12], 4
          %s695 = int_to_ptr.vmem [resolvable:$true] %s694
          %700 = dma.hbm_to_vmem [thread:$0]  %s10, 4096, %s695, [#allocation11], 128, 128, 8
        $region52: #{tpu_custom_call.1} parent=11 // pred_fallthru
          _
        // Predicated region
        $region53: #{tpu_custom_call.1} parent=11 // pred_check
          %p701 = pneg %p297
        $region54: #{tpu_custom_call.1} parent=11 // pred_check_branch
          %703 = sbr.rel (%p701) target = $region56
        $region55: #{tpu_custom_call.1} parent=11 // pred_region
          _
        $region56: #{tpu_custom_call.1} parent=11 // pred_fallthru
          _
        // Predicated region
        $region57: #{tpu_custom_call.1} parent=11 // pred_check
          %p704 = pneg %p318
        $region58: #{tpu_custom_call.1} parent=11 // pred_check_branch
          %706 = sbr.rel (%p704) target = $region60
        $region59: #{tpu_custom_call.1} parent=11 // pred_region
          %s708 = ssub.s32 4096, 4096
          %709 = vsyncadd [#allocation14], %s708
          %s710 = sshll.u32 [#allocation13], 4
          %s711 = int_to_ptr.vmem [resolvable:$true] %s710
          %716 = dma.hbm_to_vmem [thread:$0]  %s12, 4096, %s711, [#allocation14], 128, 128, 8
        $region60: #{tpu_custom_call.1} parent=11 // pred_fallthru
          _
        // Predicated region
        $region61: #{tpu_custom_call.1} parent=11 // pred_check
          %p717 = pneg %p339
        $region62: #{tpu_custom_call.1} parent=11 // pred_check_branch
          %719 = sbr.rel (%p717) target = $region64
        $region63: #{tpu_custom_call.1} parent=11 // pred_region
          _
        $region64: #{tpu_custom_call.1} parent=11 // pred_fallthru
          _
        // Predicated region
        $region65: #{tpu_custom_call.1} parent=11 // pred_check
          %p720 = pneg %p360
        $region66: #{tpu_custom_call.1} parent=11 // pred_check_branch
          %722 = sbr.rel (%p720) target = $region68
        $region67: #{tpu_custom_call.1} parent=11 // pred_region
          %s724 = ssub.s32 4096, 4096
          %725 = vsyncadd [#allocation14], %s724
          %s726 = sshll.u32 [#allocation15], 4
          %s727 = int_to_ptr.vmem [resolvable:$true] %s726
          %732 = dma.hbm_to_vmem [thread:$0]  %s14, 4096, %s727, [#allocation14], 128, 128, 8
        $region68: #{tpu_custom_call.1} parent=11 // pred_fallthru
          _
        // Predicated region
        $region69: #{tpu_custom_call.1} parent=11 // pred_check
          %p733 = pneg %p381
        $region70: #{tpu_custom_call.1} parent=11 // pred_check_branch
          %735 = sbr.rel (%p733) target = $region72
        $region71: #{tpu_custom_call.1} parent=11 // pred_region
          _
        $region72: #{tpu_custom_call.1} parent=11 // pred_fallthru
          _
        // Predicated region
        $region73: #{tpu_custom_call.1} parent=11 // pred_check
          %p736 = pneg %p402
        $region74: #{tpu_custom_call.1} parent=11 // pred_check_branch
          %738 = sbr.rel (%p736) target = $region76
        $region75: #{tpu_custom_call.1} parent=11 // pred_region
          %s740 = ssub.s32 4096, 4096
          %741 = vsyncadd [#allocation17], %s740
          %s742 = sshll.u32 [#allocation16], 4
          %s743 = int_to_ptr.vmem [resolvable:$true] %s742
          %748 = dma.hbm_to_vmem [thread:$0]  %s16, 4096, %s743, [#allocation17], 128, 128, 8
        $region76: #{tpu_custom_call.1} parent=11 // pred_fallthru
          _
        // Predicated region
        $region77: #{tpu_custom_call.1} parent=11 // pred_check
          %p749 = pneg %p423
        $region78: #{tpu_custom_call.1} parent=11 // pred_check_branch
          %751 = sbr.rel (%p749) target = $region80
        $region79: #{tpu_custom_call.1} parent=11 // pred_region
          _
        $region80: #{tpu_custom_call.1} parent=11 // pred_fallthru
          _
        // Predicated region
        $region81: #{tpu_custom_call.1} parent=11 // pred_check
          %p752 = pneg %p444
        $region82: #{tpu_custom_call.1} parent=11 // pred_check_branch
          %754 = sbr.rel (%p752) target = $region84
        $region83: #{tpu_custom_call.1} parent=11 // pred_region
          %s756 = ssub.s32 6144, 6144
          %757 = vsyncadd [#allocation17], %s756
          %s758 = sshll.u32 [#allocation18], 4
          %s759 = int_to_ptr.vmem [resolvable:$true] %s758
          %764 = dma.hbm_to_vmem [thread:$0]  %s18, 6144, %s759, [#allocation17], 192, 192, 12
        $region84: #{tpu_custom_call.1} parent=11 // pred_fallthru
          _
        // Predicated region
        $region85: #{tpu_custom_call.1} parent=11 // pred_check
          %p765 = pneg %p465
        $region86: #{tpu_custom_call.1} parent=11 // pred_check_branch
          %767 = sbr.rel (%p765) target = $region88
        $region87: #{tpu_custom_call.1} parent=11 // pred_region
          _
        $region88: #{tpu_custom_call.1} parent=11 // pred_fallthru
          _
        // Predicated region
        $region89: #{tpu_custom_call.1} parent=11 // pred_check
          %p768 = pneg %p486
        $region90: #{tpu_custom_call.1} parent=11 // pred_check_branch
          %770 = sbr.rel (%p768) target = $region92
        $region91: #{tpu_custom_call.1} parent=11 // pred_region
          _
        $region92: #{tpu_custom_call.1} parent=11 // pred_fallthru
          _
        // Predicated region
        $region93: #{tpu_custom_call.1} parent=11 // pred_check
          %p771 = pneg %p507
        $region94: #{tpu_custom_call.1} parent=11 // pred_check_branch
          %773 = sbr.rel (%p771) target = $region96
        $region95: #{tpu_custom_call.1} parent=11 // pred_region
          %s775 = ssub.s32 2048, 2048
          %776 = vsyncadd [#allocation20], %s775
          %s777 = sshll.u32 [#allocation19], 4
          %s778 = int_to_ptr.vmem [resolvable:$true] %s777
          %783 = dma.hbm_to_vmem [thread:$0]  %s21, 2048, %s778, [#allocation20], 64, 64, 4
        $region96: #{tpu_custom_call.1} parent=11 // pred_fallthru
          _
        // Predicated region
        $region97: #{tpu_custom_call.1} parent=11 // pred_check
          %p784 = pneg %p528
        $region98: #{tpu_custom_call.1} parent=11 // pred_check_branch
          %786 = sbr.rel (%p784) target = $region100
        $region99: #{tpu_custom_call.1} parent=11 // pred_region
          _
        $region100: #{tpu_custom_call.1} parent=11 // pred_fallthru
          _
        // Predicated region
        $region101: #{tpu_custom_call.1} parent=11 // pred_check
          %p787 = pneg %p549
        $region102: #{tpu_custom_call.1} parent=11 // pred_check_branch
          %789 = sbr.rel (%p787) target = $region104
        $region103: #{tpu_custom_call.1} parent=11 // pred_region
          _
        $region104: #{tpu_custom_call.1} parent=11 // pred_fallthru
          _
        // Predicated region
        $region105: #{tpu_custom_call.1} parent=11 // pred_check
          %p790 = pneg %p570
        $region106: #{tpu_custom_call.1} parent=11 // pred_check_branch
          %792 = sbr.rel (%p790) target = $region108
        $region107: #{tpu_custom_call.1} parent=11 // pred_region
          _
        $region108: #{tpu_custom_call.1} parent=11 // pred_fallthru
          _
      $region12: #{tpu_custom_call.1} parent=5 // pred_fallthru
        _
      %p793 = scmp.lt.s32.totalorder %s40, 2
      // Predicated region
      $region109: #{tpu_custom_call.1} parent=5 // pred_check
        %p794 = pneg %p793
      $region110: #{tpu_custom_call.1} parent=5 // pred_check_branch
        %796 = sbr.rel (%p794) target = $region112
      $region111: #{tpu_custom_call.1} parent=5 // pred_region
        // Predicated region
        $region113: #{tpu_custom_call.1} parent=111 // pred_check
          %p797 = pneg %p60
        $region114: #{tpu_custom_call.1} parent=111 // pred_check_branch
          %799 = sbr.rel (%p797) target = $region116
        $region115: #{tpu_custom_call.1} parent=111 // pred_region
          %s800 = sand.u32 %s50, 1
          %s801 = scalar_lea.sflag [#allocation3], %s800
          %s802 = sand.u32 %s50, 1
          %s803 = smul.addr %s802, 512
          %s804 = scalar_lea.vmem [#allocation2], %s803
          %s805 = smul.u32 64, %s40
          %s807 = ssub.s32 8192, 8192
          %808 = vsyncadd %s801, %s807
          %s809 = smul.addr %s805, 128
          %s810 = scalar_lea.hbm %s0, %s809
          %s811 = sshll.u32 %s804, 4
          %s812 = int_to_ptr.vmem [resolvable:$true] %s811
          %817 = dma.hbm_to_vmem [thread:$0]  %s810, 8192, %s812, %s801, 128, 128, 8
        $region116: #{tpu_custom_call.1} parent=111 // pred_fallthru
          _
      $region112: #{tpu_custom_call.1} parent=5 // pred_fallthru
        _
      %p818 = scmp.le.s32.totalorder 1, %s40
      %p819 = scmp.lt.s32.totalorder %s40, 3
      %p820 = pnand %p818, %p819
      %p821 = pneg %p820
      // Predicated region
      $region117: #{tpu_custom_call.1} parent=5 // pred_check
        _
      $region118: #{tpu_custom_call.1} parent=5 // pred_check_branch
        %823 = sbr.rel (%p820) target = $region120
      $region119: #{tpu_custom_call.1} parent=5 // pred_region
        %s824 = ssub.s32 %s40, 1
        %s825 = sand.u32 %s53, 1
        %s826 = scalar_lea.sflag [#allocation3], %s825
        %s827 = sand.u32 %s53, 1
        %s828 = smul.addr %s827, 512
        %s829 = scalar_lea.vmem [#allocation2], %s828
        // Predicated region
        $region121: #{tpu_custom_call.1} parent=119 // pred_check
          %p830 = pneg %p66
        $region122: #{tpu_custom_call.1} parent=119 // pred_check_branch
          %832 = sbr.rel (%p830) target = $region124
        $region123: #{tpu_custom_call.1} parent=119 // pred_region
          %833 = dma.done %s826, 8192
        $region124: #{tpu_custom_call.1} parent=119 // pred_fallthru
          _
        // Predicated region
        $region125: #{tpu_custom_call.1} parent=119 // pred_check
          %p834 = pneg %p87
        $region126: #{tpu_custom_call.1} parent=119 // pred_check_branch
          %836 = sbr.rel (%p834) target = $region128
        $region127: #{tpu_custom_call.1} parent=119 // pred_region
          %837 = dma.done [#allocation5], 2048
        $region128: #{tpu_custom_call.1} parent=119 // pred_fallthru
          _
        // Predicated region
        $region129: #{tpu_custom_call.1} parent=119 // pred_check
          %p838 = pneg %p129
        $region130: #{tpu_custom_call.1} parent=119 // pred_check_branch
          %840 = sbr.rel (%p838) target = $region132
        $region131: #{tpu_custom_call.1} parent=119 // pred_region
          %841 = dma.done [#allocation5], 4096
        $region132: #{tpu_custom_call.1} parent=119 // pred_fallthru
          _
        // Predicated region
        $region133: #{tpu_custom_call.1} parent=119 // pred_check
          %p842 = pneg %p171
        $region134: #{tpu_custom_call.1} parent=119 // pred_check_branch
          %844 = sbr.rel (%p842) target = $region136
        $region135: #{tpu_custom_call.1} parent=119 // pred_region
          %845 = dma.done [#allocation8], 4096
        $region136: #{tpu_custom_call.1} parent=119 // pred_fallthru
          _
        // Predicated region
        $region137: #{tpu_custom_call.1} parent=119 // pred_check
          %p846 = pneg %p213
        $region138: #{tpu_custom_call.1} parent=119 // pred_check_branch
          %848 = sbr.rel (%p846) target = $region140
        $region139: #{tpu_custom_call.1} parent=119 // pred_region
          %849 = dma.done [#allocation8], 4096
        $region140: #{tpu_custom_call.1} parent=119 // pred_fallthru
          _
        // Predicated region
        $region141: #{tpu_custom_call.1} parent=119 // pred_check
          %p850 = pneg %p255
        $region142: #{tpu_custom_call.1} parent=119 // pred_check_branch
          %852 = sbr.rel (%p850) target = $region144
        $region143: #{tpu_custom_call.1} parent=119 // pred_region
          %853 = dma.done [#allocation11], 2048
        $region144: #{tpu_custom_call.1} parent=119 // pred_fallthru
          _
        // Predicated region
        $region145: #{tpu_custom_call.1} parent=119 // pred_check
          %p854 = pneg %p276
        $region146: #{tpu_custom_call.1} parent=119 // pred_check_branch
          %856 = sbr.rel (%p854) target = $region148
        $region147: #{tpu_custom_call.1} parent=119 // pred_region
          %857 = dma.done [#allocation11], 4096
        $region148: #{tpu_custom_call.1} parent=119 // pred_fallthru
          _
        // Predicated region
        $region149: #{tpu_custom_call.1} parent=119 // pred_check
          %p858 = pneg %p318
        $region150: #{tpu_custom_call.1} parent=119 // pred_check_branch
          %860 = sbr.rel (%p858) target = $region152
        $region151: #{tpu_custom_call.1} parent=119 // pred_region
          %861 = dma.done [#allocation14], 4096
        $region152: #{tpu_custom_call.1} parent=119 // pred_fallthru
          _
        // Predicated region
        $region153: #{tpu_custom_call.1} parent=119 // pred_check
          %p862 = pneg %p360
        $region154: #{tpu_custom_call.1} parent=119 // pred_check_branch
          %864 = sbr.rel (%p862) target = $region156
        $region155: #{tpu_custom_call.1} parent=119 // pred_region
          %865 = dma.done [#allocation14], 4096
        $region156: #{tpu_custom_call.1} parent=119 // pred_fallthru
          _
        // Predicated region
        $region157: #{tpu_custom_call.1} parent=119 // pred_check
          %p866 = pneg %p402
        $region158: #{tpu_custom_call.1} parent=119 // pred_check_branch
          %868 = sbr.rel (%p866) target = $region160
        $region159: #{tpu_custom_call.1} parent=119 // pred_region
          %869 = dma.done [#allocation17], 4096
        $region160: #{tpu_custom_call.1} parent=119 // pred_fallthru
          _
        // Predicated region
        $region161: #{tpu_custom_call.1} parent=119 // pred_check
          %p870 = pneg %p444
        $region162: #{tpu_custom_call.1} parent=119 // pred_check_branch
          %872 = sbr.rel (%p870) target = $region164
        $region163: #{tpu_custom_call.1} parent=119 // pred_region
          %873 = dma.done [#allocation17], 6144
        $region164: #{tpu_custom_call.1} parent=119 // pred_fallthru
          _
        // Predicated region
        $region165: #{tpu_custom_call.1} parent=119 // pred_check
          %p874 = pneg %p507
        $region166: #{tpu_custom_call.1} parent=119 // pred_check_branch
          %876 = sbr.rel (%p874) target = $region168
        $region167: #{tpu_custom_call.1} parent=119 // pred_region
          %877 = dma.done [#allocation20], 2048
        $region168: #{tpu_custom_call.1} parent=119 // pred_fallthru
          _
        %s878 = sand.u32 %s53, 1
        %s879 = scalar_lea.sflag [#allocation3], %s878
        %s880 = sand.u32 %s53, 1
        %s881 = smul.addr %s880, 512
        %s882 = scalar_lea.vmem [#allocation2], %s881
        %p883 = pneg %p66
        %p884 = pneg %p63
        %p885 = pneg %p87
        %p886 = pneg %p84
        %p887 = pneg %p108
        %p888 = pneg %p105
        %p889 = pneg %p129
        %p890 = pneg %p126
        %p891 = pneg %p150
        %p892 = pneg %p147
        %p893 = pneg %p171
        %p894 = pneg %p168
        %p895 = pneg %p192
        %p896 = pneg %p189
        %p897 = pneg %p213
        %p898 = pneg %p210
        %p899 = pneg %p234
        %p900 = pneg %p231
        %p901 = pneg %p255
        %p902 = pneg %p252
        %p903 = pneg %p276
        %p904 = pneg %p273
        %p905 = pneg %p297
        %p906 = pneg %p294
        %p907 = pneg %p318
        %p908 = pneg %p315
        %p909 = pneg %p339
        %p910 = pneg %p336
        %p911 = pneg %p360
        %p912 = pneg %p357
        %p913 = pneg %p381
        %p914 = pneg %p378
        %p915 = pneg %p402
        %p916 = pneg %p399
        %p917 = pneg %p423
        %p918 = pneg %p420
        %p919 = pneg %p444
        %p920 = pneg %p441
        %p921 = pneg %p465
        %p922 = pneg %p462
        %p923 = pneg %p486
        %p924 = pneg %p483
        %p925 = pneg %p507
        %p926 = pneg %p504
        %p927 = pneg %p528
        %p928 = pneg %p525
        %p929 = pneg %p549
        %p930 = pneg %p546
        %p931 = pneg %p570
        %p932 = pneg %p567
        %p933 = pneg %p596
        %p934 = pneg %p593
        %s935 = smul.u32 64, %s45
        %p936 = scmp.lt.s32.totalorder %s935, 127
        %s937 = scalar_select %p936, %s935, 127
        %s938 = smul.addr %s937, 8
        %s939 = scalar_lea.vmem %s25, %s938
        %s940 = smul.u32 64, %s45
        %s941 = smul.u32 64, %s45
        %p942 = scmp.lt.s32.totalorder %s941, 127
        %s943 = scalar_select %p942, %s941, 127
        %s944 = smul.addr %s943, 8
        %s945 = scalar_lea.vmem %s25, %s944
        %s946 = smul.u32 64, %s45
        %v948 = vld [vmem:[%s829] sm:$0xff]
        %v949 = vld [vmem:[%s829 + $0x8] sm:$0xff]
        %v950 = vld [vmem:[%s829 + $0x10] sm:$0xff]
        %v951 = vld [vmem:[%s829 + $0x18] sm:$0xff]
        %v952 = vld [vmem:[%s829 + $0x20] sm:$0xff]
        %v953 = vld [vmem:[%s829 + $0x28] sm:$0xff]
        %v954 = vld [vmem:[%s829 + $0x30] sm:$0xff]
        %v955 = vld [vmem:[%s829 + $0x38] sm:$0xff]
        %v956 = vld [vmem:[%s829 + $0x40] sm:$0xff]
        %v957 = vld [vmem:[%s829 + $0x48] sm:$0xff]
        %v958 = vld [vmem:[%s829 + $0x50] sm:$0xff]
        %v959 = vld [vmem:[%s829 + $0x58] sm:$0xff]
        %v960 = vld [vmem:[%s829 + $0x60] sm:$0xff]
        %v961 = vld [vmem:[%s829 + $0x68] sm:$0xff]
        %v962 = vld [vmem:[%s829 + $0x70] sm:$0xff]
        %v963 = vld [vmem:[%s829 + $0x78] sm:$0xff]
        %v964 = vld [vmem:[%s829 + $0x80] sm:$0xff]
        %v965 = vld [vmem:[%s829 + $0x88] sm:$0xff]
        %v966 = vld [vmem:[%s829 + $0x90] sm:$0xff]
        %v967 = vld [vmem:[%s829 + $0x98] sm:$0xff]
        %v968 = vld [vmem:[%s829 + $0xa0] sm:$0xff]
        %v969 = vld [vmem:[%s829 + $0xa8] sm:$0xff]
        %v970 = vld [vmem:[%s829 + $0xb0] sm:$0xff]
        %v971 = vld [vmem:[%s829 + $0xb8] sm:$0xff]
        %v972 = vld [vmem:[%s829 + $0xc0] sm:$0xff]
        %v973 = vld [vmem:[%s829 + $0xc8] sm:$0xff]
        %v974 = vld [vmem:[%s829 + $0xd0] sm:$0xff]
        %v975 = vld [vmem:[%s829 + $0xd8] sm:$0xff]
        %v976 = vld [vmem:[%s829 + $0xe0] sm:$0xff]
        %v977 = vld [vmem:[%s829 + $0xe8] sm:$0xff]
        %v978 = vld [vmem:[%s829 + $0xf0] sm:$0xff]
        %v979 = vld [vmem:[%s829 + $0xf8] sm:$0xff]
        %v980 = vld [vmem:[%s829 + $0x100] sm:$0xff]
        %v981 = vld [vmem:[%s829 + $0x108] sm:$0xff]
        %v982 = vld [vmem:[%s829 + $0x110] sm:$0xff]
        %v983 = vld [vmem:[%s829 + $0x118] sm:$0xff]
        %v984 = vld [vmem:[%s829 + $0x120] sm:$0xff]
        %v985 = vld [vmem:[%s829 + $0x128] sm:$0xff]
        %v986 = vld [vmem:[%s829 + $0x130] sm:$0xff]
        %v987 = vld [vmem:[%s829 + $0x138] sm:$0xff]
        %v988 = vld [vmem:[%s829 + $0x140] sm:$0xff]
        %v989 = vld [vmem:[%s829 + $0x148] sm:$0xff]
        %v990 = vld [vmem:[%s829 + $0x150] sm:$0xff]
        %v991 = vld [vmem:[%s829 + $0x158] sm:$0xff]
        %v992 = vld [vmem:[%s829 + $0x160] sm:$0xff]
        %v993 = vld [vmem:[%s829 + $0x168] sm:$0xff]
        %v994 = vld [vmem:[%s829 + $0x170] sm:$0xff]
        %v995 = vld [vmem:[%s829 + $0x178] sm:$0xff]
        %v996 = vld [vmem:[%s829 + $0x180] sm:$0xff]
        %v997 = vld [vmem:[%s829 + $0x188] sm:$0xff]
        %v998 = vld [vmem:[%s829 + $0x190] sm:$0xff]
        %v999 = vld [vmem:[%s829 + $0x198] sm:$0xff]
        %v1000 = vld [vmem:[%s829 + $0x1a0] sm:$0xff]
        %v1001 = vld [vmem:[%s829 + $0x1a8] sm:$0xff]
        %v1002 = vld [vmem:[%s829 + $0x1b0] sm:$0xff]
        %v1003 = vld [vmem:[%s829 + $0x1b8] sm:$0xff]
        %v1004 = vld [vmem:[%s829 + $0x1c0] sm:$0xff]
        %v1005 = vld [vmem:[%s829 + $0x1c8] sm:$0xff]
        %v1006 = vld [vmem:[%s829 + $0x1d0] sm:$0xff]
        %v1007 = vld [vmem:[%s829 + $0x1d8] sm:$0xff]
        %v1008 = vld [vmem:[%s829 + $0x1e0] sm:$0xff]
        %v1009 = vld [vmem:[%s829 + $0x1e8] sm:$0xff]
        %v1010 = vld [vmem:[%s829 + $0x1f0] sm:$0xff]
        %v1011 = vld [vmem:[%s829 + $0x1f8] sm:$0xff]
        %v1012 = vpack.c.bf16 %v949, %v948
        %v1013 = vpack.c.bf16 %v951, %v950
        %v1014 = vpack.c.bf16 %v953, %v952
        %v1015 = vpack.c.bf16 %v955, %v954
        %v1016 = vpack.c.bf16 %v957, %v956
        %v1017 = vpack.c.bf16 %v959, %v958
        %v1018 = vpack.c.bf16 %v961, %v960
        %v1019 = vpack.c.bf16 %v963, %v962
        %v1020 = vpack.c.bf16 %v965, %v964
        %v1021 = vpack.c.bf16 %v967, %v966
        %v1022 = vpack.c.bf16 %v969, %v968
        %v1023 = vpack.c.bf16 %v971, %v970
        %v1024 = vpack.c.bf16 %v973, %v972
        %v1025 = vpack.c.bf16 %v975, %v974
        %v1026 = vpack.c.bf16 %v977, %v976
        %v1027 = vpack.c.bf16 %v979, %v978
        %v1028 = vpack.c.bf16 %v981, %v980
        %v1029 = vpack.c.bf16 %v983, %v982
        %v1030 = vpack.c.bf16 %v985, %v984
        %v1031 = vpack.c.bf16 %v987, %v986
        %v1032 = vpack.c.bf16 %v989, %v988
        %v1033 = vpack.c.bf16 %v991, %v990
        %v1034 = vpack.c.bf16 %v993, %v992
        %v1035 = vpack.c.bf16 %v995, %v994
        %v1036 = vpack.c.bf16 %v997, %v996
        %v1037 = vpack.c.bf16 %v999, %v998
        %v1038 = vpack.c.bf16 %v1001, %v1000
        %v1039 = vpack.c.bf16 %v1003, %v1002
        %v1040 = vpack.c.bf16 %v1005, %v1004
        %v1041 = vpack.c.bf16 %v1007, %v1006
        %v1042 = vpack.c.bf16 %v1009, %v1008
        %v1043 = vpack.c.bf16 %v1011, %v1010
        %v1044 = vld [vmem:[#allocation4] sm:$0xff]
        %v1045 = vld [vmem:[#allocation4 + $0x8] sm:$0xff]
        %v1046 = vld [vmem:[#allocation4 + $0x10] sm:$0xff]
        %v1047 = vld [vmem:[#allocation4 + $0x18] sm:$0xff]
        %v1048 = vld [vmem:[#allocation4 + $0x20] sm:$0xff]
        %v1049 = vld [vmem:[#allocation4 + $0x28] sm:$0xff]
        %v1050 = vld [vmem:[#allocation4 + $0x30] sm:$0xff]
        %v1051 = vld [vmem:[#allocation4 + $0x38] sm:$0xff]
        %v1052 = vld [vmem:[#allocation4 + $0x40] sm:$0xff]
        %v1053 = vld [vmem:[#allocation4 + $0x48] sm:$0xff]
        %v1054 = vld [vmem:[#allocation4 + $0x50] sm:$0xff]
        %v1055 = vld [vmem:[#allocation4 + $0x58] sm:$0xff]
        %v1056 = vld [vmem:[#allocation4 + $0x60] sm:$0xff]
        %v1057 = vld [vmem:[#allocation4 + $0x68] sm:$0xff]
        %v1058 = vld [vmem:[#allocation4 + $0x70] sm:$0xff]
        %v1059 = vld [vmem:[#allocation4 + $0x78] sm:$0xff]
        %v1060 = vld [vmem:[%s2] sm:$0x3]
        %v1062 = vlaneseq
        %v1063 = vshrl.u32 %v1062, 7
        %v1064 = vsub.s32 0, %v1063
        %v1065 = vrot.slane %v1060, %v1064
        %v1066 = vlaneseq
        %v1067 = vshrl.u32 %v1066, 7
        %v1068 = vsub.s32 1, %v1067
        %v1069 = vrot.slane %v1060, %v1068
        %v1088 = vunpack.c.l.b16 %v1044
        %v1089 = vunpack.c.h.b16 %v1044
        %v1090 = vunpack.c.l.b16 %v1045
        %v1091 = vunpack.c.h.b16 %v1045
        %v1092 = vunpack.c.l.b16 %v1046
        %v1093 = vunpack.c.h.b16 %v1046
        %v1094 = vunpack.c.l.b16 %v1047
        %v1095 = vunpack.c.h.b16 %v1047
        %v1096 = vunpack.c.l.b16 %v1048
        %v1097 = vunpack.c.h.b16 %v1048
        %v1098 = vunpack.c.l.b16 %v1049
        %v1099 = vunpack.c.h.b16 %v1049
        %v1100 = vunpack.c.l.b16 %v1050
        %v1101 = vunpack.c.h.b16 %v1050
        %v1102 = vunpack.c.l.b16 %v1051
        %v1103 = vunpack.c.h.b16 %v1051
        %v1104 = vunpack.c.l.b16 %v1052
        %v1105 = vunpack.c.h.b16 %v1052
        %v1106 = vunpack.c.l.b16 %v1053
        %v1107 = vunpack.c.h.b16 %v1053
        %v1108 = vunpack.c.l.b16 %v1054
        %v1109 = vunpack.c.h.b16 %v1054
        %v1110 = vunpack.c.l.b16 %v1055
        %v1111 = vunpack.c.h.b16 %v1055
        %v1112 = vunpack.c.l.b16 %v1056
        %v1113 = vunpack.c.h.b16 %v1056
        %v1114 = vunpack.c.l.b16 %v1057
        %v1115 = vunpack.c.h.b16 %v1057
        %v1116 = vunpack.c.l.b16 %v1058
        %v1117 = vunpack.c.h.b16 %v1058
        %v1118 = vunpack.c.l.b16 %v1059
        %v1119 = vunpack.c.h.b16 %v1059
        %v1120 = vpack.c.b16 %v1090, %v1088
        %v1121 = vpack.c.b16 %v1091, %v1089
        %v1122 = vpack.c.b16 %v1094, %v1092
        %v1123 = vpack.c.b16 %v1095, %v1093
        %v1124 = vpack.c.b16 %v1098, %v1096
        %v1125 = vpack.c.b16 %v1099, %v1097
        %v1126 = vpack.c.b16 %v1102, %v1100
        %v1127 = vpack.c.b16 %v1103, %v1101
        %v1128 = vpack.c.b16 %v1106, %v1104
        %v1129 = vpack.c.b16 %v1107, %v1105
        %v1130 = vpack.c.b16 %v1110, %v1108
        %v1131 = vpack.c.b16 %v1111, %v1109
        %v1132 = vpack.c.b16 %v1114, %v1112
        %v1133 = vpack.c.b16 %v1115, %v1113
        %v1134 = vpack.c.b16 %v1118, %v1116
        %v1135 = vpack.c.b16 %v1119, %v1117
        %1152 = vmatprep.subr.bf16.mxu0 %v1135
        %1153 = vmatpush1.bf16.msra.mxu0 %v1134
        %1154 = vmatprep.subr.bf16.mxu0 %v1133
        %1155 = vmatpush1.bf16.msra.mxu0 %v1132
        %1156 = vmatprep.subr.bf16.mxu0 %v1131
        %1157 = vmatpush1.bf16.msra.mxu0 %v1130
        %1158 = vmatprep.subr.bf16.mxu0 %v1129
        %1159 = vmatpush1.bf16.msra.mxu0 %v1128
        %1160 = vmatprep.subr.bf16.mxu0 %v1127
        %1161 = vmatpush1.bf16.msra.mxu0 %v1126
        %1162 = vmatprep.subr.bf16.mxu0 %v1125
        %1163 = vmatpush1.bf16.msra.mxu0 %v1124
        %1164 = vmatprep.subr.bf16.mxu0 %v1123
        %1165 = vmatpush1.bf16.msra.mxu0 %v1122
        %1166 = vmatprep.subr.bf16.mxu0 %v1121
        %1167 = vmatpush1.bf16.msra.mxu0 %v1120
        %1168 = vmatprep.subr.bf16.mxu0 0
        %1169 = vmatpush2.bf16.msra.mxu0 0
        %1170 = vmatprep.subr.bf16.mxu0 0
        %1171 = vmatpush2.bf16.msra.mxu0 0
        %1172 = vmatprep.subr.bf16.mxu0 0
        %1173 = vmatpush2.bf16.msra.mxu0 0
        %1174 = vmatprep.subr.bf16.mxu0 0
        %1175 = vmatpush2.bf16.msra.mxu0 0
        %1176 = vmatprep.subr.bf16.mxu0 0
        %1177 = vmatpush2.bf16.msra.mxu0 0
        %1178 = vmatprep.subr.bf16.mxu0 0
        %1179 = vmatpush2.bf16.msra.mxu0 0
        %1180 = vmatprep.subr.bf16.mxu0 0
        %1181 = vmatpush2.bf16.msra.mxu0 0
        %1182 = vmatprep.subr.bf16.mxu0 0
        %1183 = vmatpush2.bf16.msra.mxu0 0
        %1184 = vmatprep.mubr.bf16.mxu0 0
        %1185 = vmatmul.mubr.bf16.gmra.mxu0 %v1012
        %v1186 = vpop.f32.mrf.mxu0
        %v1187 = vadd.f32 %v1065, %v1186
        %v1188 = vpop.f32.mrf.mxu0
        %v1189 = vadd.f32 %v1069, %v1188
        %v1190 = vpop.f32.mrf.mxu0
        %v1191 = vadd.f32 %v1065, %v1190
        %v1192 = vpop.f32.mrf.mxu0
        %v1193 = vadd.f32 %v1069, %v1192
        %1194 = vmatprep.mubr.bf16.mxu0 0
        %1195 = vmatmul.mubr.bf16.gmra.mxu0 %v1013
        %v1196 = vpop.f32.mrf.mxu0
        %v1197 = vadd.f32 %v1065, %v1196
        %v1198 = vpop.f32.mrf.mxu0
        %v1199 = vadd.f32 %v1069, %v1198
        %v1200 = vpop.f32.mrf.mxu0
        %v1201 = vadd.f32 %v1065, %v1200
        %v1202 = vpop.f32.mrf.mxu0
        %v1203 = vadd.f32 %v1069, %v1202
        %1204 = vmatprep.mubr.bf16.mxu0 0
        %1205 = vmatmul.mubr.bf16.gmra.mxu0 %v1014
        %v1206 = vpop.f32.mrf.mxu0
        %v1207 = vadd.f32 %v1065, %v1206
        %v1208 = vpop.f32.mrf.mxu0
        %v1209 = vadd.f32 %v1069, %v1208
        %v1210 = vpop.f32.mrf.mxu0
        %v1211 = vadd.f32 %v1065, %v1210
        %v1212 = vpop.f32.mrf.mxu0
        %v1213 = vadd.f32 %v1069, %v1212
        %1214 = vmatprep.mubr.bf16.mxu0 0
        %1215 = vmatmul.mubr.bf16.gmra.mxu0 %v1015
        %v1216 = vpop.f32.mrf.mxu0
        %v1217 = vadd.f32 %v1065, %v1216
        %v1218 = vpop.f32.mrf.mxu0
        %v1219 = vadd.f32 %v1069, %v1218
        %v1220 = vpop.f32.mrf.mxu0
        %v1221 = vadd.f32 %v1065, %v1220
        %v1222 = vpop.f32.mrf.mxu0
        %v1223 = vadd.f32 %v1069, %v1222
        %1224 = vmatprep.mubr.bf16.mxu0 0
        %1225 = vmatmul.mubr.bf16.gmra.mxu0 %v1016
        %v1226 = vpop.f32.mrf.mxu0
        %v1227 = vadd.f32 %v1065, %v1226
        %v1228 = vpop.f32.mrf.mxu0
        %v1229 = vadd.f32 %v1069, %v1228
        %v1230 = vpop.f32.mrf.mxu0
        %v1231 = vadd.f32 %v1065, %v1230
        %v1232 = vpop.f32.mrf.mxu0
        %v1233 = vadd.f32 %v1069, %v1232
        %1234 = vmatprep.mubr.bf16.mxu0 0
        %1235 = vmatmul.mubr.bf16.gmra.mxu0 %v1017
        %v1236 = vpop.f32.mrf.mxu0
        %v1237 = vadd.f32 %v1065, %v1236
        %v1238 = vpop.f32.mrf.mxu0
        %v1239 = vadd.f32 %v1069, %v1238
        %v1240 = vpop.f32.mrf.mxu0
        %v1241 = vadd.f32 %v1065, %v1240
        %v1242 = vpop.f32.mrf.mxu0
        %v1243 = vadd.f32 %v1069, %v1242
        %1244 = vmatprep.mubr.bf16.mxu0 0
        %1245 = vmatmul.mubr.bf16.gmra.mxu0 %v1018
        %v1246 = vpop.f32.mrf.mxu0
        %v1247 = vadd.f32 %v1065, %v1246
        %v1248 = vpop.f32.mrf.mxu0
        %v1249 = vadd.f32 %v1069, %v1248
        %v1250 = vpop.f32.mrf.mxu0
        %v1251 = vadd.f32 %v1065, %v1250
        %v1252 = vpop.f32.mrf.mxu0
        %v1253 = vadd.f32 %v1069, %v1252
        %1254 = vmatprep.mubr.bf16.mxu0 0
        %1255 = vmatmul.mubr.bf16.gmra.mxu0 %v1019
        %v1256 = vpop.f32.mrf.mxu0
        %v1257 = vadd.f32 %v1065, %v1256
        %v1258 = vpop.f32.mrf.mxu0
        %v1259 = vadd.f32 %v1069, %v1258
        %v1260 = vpop.f32.mrf.mxu0
        %v1261 = vadd.f32 %v1065, %v1260
        %v1262 = vpop.f32.mrf.mxu0
        %v1263 = vadd.f32 %v1069, %v1262
        %1264 = vmatprep.mubr.bf16.mxu0 0
        %1265 = vmatmul.mubr.bf16.gmra.mxu0 %v1020
        %v1266 = vpop.f32.mrf.mxu0
        %v1267 = vadd.f32 %v1065, %v1266
        %v1268 = vpop.f32.mrf.mxu0
        %v1269 = vadd.f32 %v1069, %v1268
        %v1270 = vpop.f32.mrf.mxu0
        %v1271 = vadd.f32 %v1065, %v1270
        %v1272 = vpop.f32.mrf.mxu0
        %v1273 = vadd.f32 %v1069, %v1272
        %1274 = vmatprep.mubr.bf16.mxu0 0
        %1275 = vmatmul.mubr.bf16.gmra.mxu0 %v1021
        %v1276 = vpop.f32.mrf.mxu0
        %v1277 = vadd.f32 %v1065, %v1276
        %v1278 = vpop.f32.mrf.mxu0
        %v1279 = vadd.f32 %v1069, %v1278
        %v1280 = vpop.f32.mrf.mxu0
        %v1281 = vadd.f32 %v1065, %v1280
        %v1282 = vpop.f32.mrf.mxu0
        %v1283 = vadd.f32 %v1069, %v1282
        %1284 = vmatprep.mubr.bf16.mxu0 0
        %1285 = vmatmul.mubr.bf16.gmra.mxu0 %v1022
        %v1286 = vpop.f32.mrf.mxu0
        %v1287 = vadd.f32 %v1065, %v1286
        %v1288 = vpop.f32.mrf.mxu0
        %v1289 = vadd.f32 %v1069, %v1288
        %v1290 = vpop.f32.mrf.mxu0
        %v1291 = vadd.f32 %v1065, %v1290
        %v1292 = vpop.f32.mrf.mxu0
        %v1293 = vadd.f32 %v1069, %v1292
        %1294 = vmatprep.mubr.bf16.mxu0 0
        %1295 = vmatmul.mubr.bf16.gmra.mxu0 %v1023
        %v1296 = vpop.f32.mrf.mxu0
        %v1297 = vadd.f32 %v1065, %v1296
        %v1298 = vpop.f32.mrf.mxu0
        %v1299 = vadd.f32 %v1069, %v1298
        %v1300 = vpop.f32.mrf.mxu0
        %v1301 = vadd.f32 %v1065, %v1300
        %v1302 = vpop.f32.mrf.mxu0
        %v1303 = vadd.f32 %v1069, %v1302
        %1304 = vmatprep.mubr.bf16.mxu0 0
        %1305 = vmatmul.mubr.bf16.gmra.mxu0 %v1024
        %v1306 = vpop.f32.mrf.mxu0
        %v1307 = vadd.f32 %v1065, %v1306
        %v1308 = vpop.f32.mrf.mxu0
        %v1309 = vadd.f32 %v1069, %v1308
        %v1310 = vpop.f32.mrf.mxu0
        %v1311 = vadd.f32 %v1065, %v1310
        %v1312 = vpop.f32.mrf.mxu0
        %v1313 = vadd.f32 %v1069, %v1312
        %1314 = vmatprep.mubr.bf16.mxu0 0
        %1315 = vmatmul.mubr.bf16.gmra.mxu0 %v1025
        %v1316 = vpop.f32.mrf.mxu0
        %v1317 = vadd.f32 %v1065, %v1316
        %v1318 = vpop.f32.mrf.mxu0
        %v1319 = vadd.f32 %v1069, %v1318
        %v1320 = vpop.f32.mrf.mxu0
        %v1321 = vadd.f32 %v1065, %v1320
        %v1322 = vpop.f32.mrf.mxu0
        %v1323 = vadd.f32 %v1069, %v1322
        %1324 = vmatprep.mubr.bf16.mxu0 0
        %1325 = vmatmul.mubr.bf16.gmra.mxu0 %v1026
        %v1326 = vpop.f32.mrf.mxu0
        %v1327 = vadd.f32 %v1065, %v1326
        %v1328 = vpop.f32.mrf.mxu0
        %v1329 = vadd.f32 %v1069, %v1328
        %v1330 = vpop.f32.mrf.mxu0
        %v1331 = vadd.f32 %v1065, %v1330
        %v1332 = vpop.f32.mrf.mxu0
        %v1333 = vadd.f32 %v1069, %v1332
        %1334 = vmatprep.mubr.bf16.mxu0 0
        %1335 = vmatmul.mubr.bf16.gmra.mxu0 %v1027
        %v1336 = vpop.f32.mrf.mxu0
        %v1337 = vadd.f32 %v1065, %v1336
        %v1338 = vpop.f32.mrf.mxu0
        %v1339 = vadd.f32 %v1069, %v1338
        %v1340 = vpop.f32.mrf.mxu0
        %v1341 = vadd.f32 %v1065, %v1340
        %v1342 = vpop.f32.mrf.mxu0
        %v1343 = vadd.f32 %v1069, %v1342
        %1344 = vmatprep.mubr.bf16.mxu0 0
        %1345 = vmatmul.mubr.bf16.gmra.mxu0 %v1028
        %v1346 = vpop.f32.mrf.mxu0
        %v1347 = vadd.f32 %v1065, %v1346
        %v1348 = vpop.f32.mrf.mxu0
        %v1349 = vadd.f32 %v1069, %v1348
        %v1350 = vpop.f32.mrf.mxu0
        %v1351 = vadd.f32 %v1065, %v1350
        %v1352 = vpop.f32.mrf.mxu0
        %v1353 = vadd.f32 %v1069, %v1352
        %1354 = vmatprep.mubr.bf16.mxu0 0
        %1355 = vmatmul.mubr.bf16.gmra.mxu0 %v1029
        %v1356 = vpop.f32.mrf.mxu0
        %v1357 = vadd.f32 %v1065, %v1356
        %v1358 = vpop.f32.mrf.mxu0
        %v1359 = vadd.f32 %v1069, %v1358
        %v1360 = vpop.f32.mrf.mxu0
        %v1361 = vadd.f32 %v1065, %v1360
        %v1362 = vpop.f32.mrf.mxu0
        %v1363 = vadd.f32 %v1069, %v1362
        %1364 = vmatprep.mubr.bf16.mxu0 0
        %1365 = vmatmul.mubr.bf16.gmra.mxu0 %v1030
        %v1366 = vpop.f32.mrf.mxu0
        %v1367 = vadd.f32 %v1065, %v1366
        %v1368 = vpop.f32.mrf.mxu0
        %v1369 = vadd.f32 %v1069, %v1368
        %v1370 = vpop.f32.mrf.mxu0
        %v1371 = vadd.f32 %v1065, %v1370
        %v1372 = vpop.f32.mrf.mxu0
        %v1373 = vadd.f32 %v1069, %v1372
        %1374 = vmatprep.mubr.bf16.mxu0 0
        %1375 = vmatmul.mubr.bf16.gmra.mxu0 %v1031
        %v1376 = vpop.f32.mrf.mxu0
        %v1377 = vadd.f32 %v1065, %v1376
        %v1378 = vpop.f32.mrf.mxu0
        %v1379 = vadd.f32 %v1069, %v1378
        %v1380 = vpop.f32.mrf.mxu0
        %v1381 = vadd.f32 %v1065, %v1380
        %v1382 = vpop.f32.mrf.mxu0
        %v1383 = vadd.f32 %v1069, %v1382
        %1384 = vmatprep.mubr.bf16.mxu0 0
        %1385 = vmatmul.mubr.bf16.gmra.mxu0 %v1032
        %v1386 = vpop.f32.mrf.mxu0
        %v1387 = vadd.f32 %v1065, %v1386
        %v1388 = vpop.f32.mrf.mxu0
        %v1389 = vadd.f32 %v1069, %v1388
        %v1390 = vpop.f32.mrf.mxu0
        %v1391 = vadd.f32 %v1065, %v1390
        %v1392 = vpop.f32.mrf.mxu0
        %v1393 = vadd.f32 %v1069, %v1392
        %1394 = vmatprep.mubr.bf16.mxu0 0
        %1395 = vmatmul.mubr.bf16.gmra.mxu0 %v1033
        %v1396 = vpop.f32.mrf.mxu0
        %v1397 = vadd.f32 %v1065, %v1396
        %v1398 = vpop.f32.mrf.mxu0
        %v1399 = vadd.f32 %v1069, %v1398
        %v1400 = vpop.f32.mrf.mxu0
        %v1401 = vadd.f32 %v1065, %v1400
        %v1402 = vpop.f32.mrf.mxu0
        %v1403 = vadd.f32 %v1069, %v1402
        %1404 = vmatprep.mubr.bf16.mxu0 0
        %1405 = vmatmul.mubr.bf16.gmra.mxu0 %v1034
        %v1406 = vpop.f32.mrf.mxu0
        %v1407 = vadd.f32 %v1065, %v1406
        %v1408 = vpop.f32.mrf.mxu0
        %v1409 = vadd.f32 %v1069, %v1408
        %v1410 = vpop.f32.mrf.mxu0
        %v1411 = vadd.f32 %v1065, %v1410
        %v1412 = vpop.f32.mrf.mxu0
        %v1413 = vadd.f32 %v1069, %v1412
        %1414 = vmatprep.mubr.bf16.mxu0 0
        %1415 = vmatmul.mubr.bf16.gmra.mxu0 %v1035
        %v1416 = vpop.f32.mrf.mxu0
        %v1417 = vadd.f32 %v1065, %v1416
        %v1418 = vpop.f32.mrf.mxu0
        %v1419 = vadd.f32 %v1069, %v1418
        %v1420 = vpop.f32.mrf.mxu0
        %v1421 = vadd.f32 %v1065, %v1420
        %v1422 = vpop.f32.mrf.mxu0
        %v1423 = vadd.f32 %v1069, %v1422
        %1424 = vmatprep.mubr.bf16.mxu0 0
        %1425 = vmatmul.mubr.bf16.gmra.mxu0 %v1036
        %v1426 = vpop.f32.mrf.mxu0
        %v1427 = vadd.f32 %v1065, %v1426
        %v1428 = vpop.f32.mrf.mxu0
        %v1429 = vadd.f32 %v1069, %v1428
        %v1430 = vpop.f32.mrf.mxu0
        %v1431 = vadd.f32 %v1065, %v1430
        %v1432 = vpop.f32.mrf.mxu0
        %v1433 = vadd.f32 %v1069, %v1432
        %1434 = vmatprep.mubr.bf16.mxu0 0
        %1435 = vmatmul.mubr.bf16.gmra.mxu0 %v1037
        %v1436 = vpop.f32.mrf.mxu0
        %v1437 = vadd.f32 %v1065, %v1436
        %v1438 = vpop.f32.mrf.mxu0
        %v1439 = vadd.f32 %v1069, %v1438
        %v1440 = vpop.f32.mrf.mxu0
        %v1441 = vadd.f32 %v1065, %v1440
        %v1442 = vpop.f32.mrf.mxu0
        %v1443 = vadd.f32 %v1069, %v1442
        %1444 = vmatprep.mubr.bf16.mxu0 0
        %1445 = vmatmul.mubr.bf16.gmra.mxu0 %v1038
        %v1446 = vpop.f32.mrf.mxu0
        %v1447 = vadd.f32 %v1065, %v1446
        %v1448 = vpop.f32.mrf.mxu0
        %v1449 = vadd.f32 %v1069, %v1448
        %v1450 = vpop.f32.mrf.mxu0
        %v1451 = vadd.f32 %v1065, %v1450
        %v1452 = vpop.f32.mrf.mxu0
        %v1453 = vadd.f32 %v1069, %v1452
        %1454 = vmatprep.mubr.bf16.mxu0 0
        %1455 = vmatmul.mubr.bf16.gmra.mxu0 %v1039
        %v1456 = vpop.f32.mrf.mxu0
        %v1457 = vadd.f32 %v1065, %v1456
        %v1458 = vpop.f32.mrf.mxu0
        %v1459 = vadd.f32 %v1069, %v1458
        %v1460 = vpop.f32.mrf.mxu0
        %v1461 = vadd.f32 %v1065, %v1460
        %v1462 = vpop.f32.mrf.mxu0
        %v1463 = vadd.f32 %v1069, %v1462
        %1464 = vmatprep.mubr.bf16.mxu0 0
        %1465 = vmatmul.mubr.bf16.gmra.mxu0 %v1040
        %v1466 = vpop.f32.mrf.mxu0
        %v1467 = vadd.f32 %v1065, %v1466
        %v1468 = vpop.f32.mrf.mxu0
        %v1469 = vadd.f32 %v1069, %v1468
        %v1470 = vpop.f32.mrf.mxu0
        %v1471 = vadd.f32 %v1065, %v1470
        %v1472 = vpop.f32.mrf.mxu0
        %v1473 = vadd.f32 %v1069, %v1472
        %1474 = vmatprep.mubr.bf16.mxu0 0
        %1475 = vmatmul.mubr.bf16.gmra.mxu0 %v1041
        %v1476 = vpop.f32.mrf.mxu0
        %v1477 = vadd.f32 %v1065, %v1476
        %v1478 = vpop.f32.mrf.mxu0
        %v1479 = vadd.f32 %v1069, %v1478
        %v1480 = vpop.f32.mrf.mxu0
        %v1481 = vadd.f32 %v1065, %v1480
        %v1482 = vpop.f32.mrf.mxu0
        %v1483 = vadd.f32 %v1069, %v1482
        %1484 = vmatprep.mubr.bf16.mxu0 0
        %1485 = vmatmul.mubr.bf16.gmra.mxu0 %v1042
        %v1486 = vpop.f32.mrf.mxu0
        %v1487 = vadd.f32 %v1065, %v1486
        %v1488 = vpop.f32.mrf.mxu0
        %v1489 = vadd.f32 %v1069, %v1488
        %v1490 = vpop.f32.mrf.mxu0
        %v1491 = vadd.f32 %v1065, %v1490
        %v1492 = vpop.f32.mrf.mxu0
        %v1493 = vadd.f32 %v1069, %v1492
        %1494 = vmatprep.mubr.bf16.mxu0 0
        %1495 = vmatmul.mubr.bf16.gmra.mxu0 %v1043
        %v1496 = vpop.f32.mrf.mxu0
        %v1497 = vadd.f32 %v1065, %v1496
        %v1498 = vpop.f32.mrf.mxu0
        %v1499 = vadd.f32 %v1069, %v1498
        %v1500 = vpop.f32.mrf.mxu0
        %v1501 = vadd.f32 %v1065, %v1500
        %v1502 = vpop.f32.mrf.mxu0
        %v1503 = vadd.f32 %v1069, %v1502
        %1504 = vdwg.mxu0
        %v1505 = vmax.f32 %v1187, 0.0
        %v1506 = vmax.f32 %v1189, 0.0
        %v1507 = vmax.f32 %v1191, 0.0
        %v1508 = vmax.f32 %v1193, 0.0
        %v1509 = vmax.f32 %v1197, 0.0
        %v1510 = vmax.f32 %v1199, 0.0
        %v1511 = vmax.f32 %v1201, 0.0
        %v1512 = vmax.f32 %v1203, 0.0
        %v1513 = vmax.f32 %v1207, 0.0
        %v1514 = vmax.f32 %v1209, 0.0
        %v1515 = vmax.f32 %v1211, 0.0
        %v1516 = vmax.f32 %v1213, 0.0
        %v1517 = vmax.f32 %v1217, 0.0
        %v1518 = vmax.f32 %v1219, 0.0
        %v1519 = vmax.f32 %v1221, 0.0
        %v1520 = vmax.f32 %v1223, 0.0
        %v1521 = vmax.f32 %v1227, 0.0
        %v1522 = vmax.f32 %v1229, 0.0
        %v1523 = vmax.f32 %v1231, 0.0
        %v1524 = vmax.f32 %v1233, 0.0
        %v1525 = vmax.f32 %v1237, 0.0
        %v1526 = vmax.f32 %v1239, 0.0
        %v1527 = vmax.f32 %v1241, 0.0
        %v1528 = vmax.f32 %v1243, 0.0
        %v1529 = vmax.f32 %v1247, 0.0
        %v1530 = vmax.f32 %v1249, 0.0
        %v1531 = vmax.f32 %v1251, 0.0
        %v1532 = vmax.f32 %v1253, 0.0
        %v1533 = vmax.f32 %v1257, 0.0
        %v1534 = vmax.f32 %v1259, 0.0
        %v1535 = vmax.f32 %v1261, 0.0
        %v1536 = vmax.f32 %v1263, 0.0
        %v1537 = vmax.f32 %v1267, 0.0
        %v1538 = vmax.f32 %v1269, 0.0
        %v1539 = vmax.f32 %v1271, 0.0
        %v1540 = vmax.f32 %v1273, 0.0
        %v1541 = vmax.f32 %v1277, 0.0
        %v1542 = vmax.f32 %v1279, 0.0
        %v1543 = vmax.f32 %v1281, 0.0
        %v1544 = vmax.f32 %v1283, 0.0
        %v1545 = vmax.f32 %v1287, 0.0
        %v1546 = vmax.f32 %v1289, 0.0
        %v1547 = vmax.f32 %v1291, 0.0
        %v1548 = vmax.f32 %v1293, 0.0
        %v1549 = vmax.f32 %v1297, 0.0
        %v1550 = vmax.f32 %v1299, 0.0
        %v1551 = vmax.f32 %v1301, 0.0
        %v1552 = vmax.f32 %v1303, 0.0
        %v1553 = vmax.f32 %v1307, 0.0
        %v1554 = vmax.f32 %v1309, 0.0
        %v1555 = vmax.f32 %v1311, 0.0
        %v1556 = vmax.f32 %v1313, 0.0
        %v1557 = vmax.f32 %v1317, 0.0
        %v1558 = vmax.f32 %v1319, 0.0
        %v1559 = vmax.f32 %v1321, 0.0
        %v1560 = vmax.f32 %v1323, 0.0
        %v1561 = vmax.f32 %v1327, 0.0
        %v1562 = vmax.f32 %v1329, 0.0
        %v1563 = vmax.f32 %v1331, 0.0
        %v1564 = vmax.f32 %v1333, 0.0
        %v1565 = vmax.f32 %v1337, 0.0
        %v1566 = vmax.f32 %v1339, 0.0
        %v1567 = vmax.f32 %v1341, 0.0
        %v1568 = vmax.f32 %v1343, 0.0
        %v1569 = vmax.f32 %v1347, 0.0
        %v1570 = vmax.f32 %v1349, 0.0
        %v1571 = vmax.f32 %v1351, 0.0
        %v1572 = vmax.f32 %v1353, 0.0
        %v1573 = vmax.f32 %v1357, 0.0
        %v1574 = vmax.f32 %v1359, 0.0
        %v1575 = vmax.f32 %v1361, 0.0
        %v1576 = vmax.f32 %v1363, 0.0
        %v1577 = vmax.f32 %v1367, 0.0
        %v1578 = vmax.f32 %v1369, 0.0
        %v1579 = vmax.f32 %v1371, 0.0
        %v1580 = vmax.f32 %v1373, 0.0
        %v1581 = vmax.f32 %v1377, 0.0
        %v1582 = vmax.f32 %v1379, 0.0
        %v1583 = vmax.f32 %v1381, 0.0
        %v1584 = vmax.f32 %v1383, 0.0
        %v1585 = vmax.f32 %v1387, 0.0
        %v1586 = vmax.f32 %v1389, 0.0
        %v1587 = vmax.f32 %v1391, 0.0
        %v1588 = vmax.f32 %v1393, 0.0
        %v1589 = vmax.f32 %v1397, 0.0
        %v1590 = vmax.f32 %v1399, 0.0
        %v1591 = vmax.f32 %v1401, 0.0
        %v1592 = vmax.f32 %v1403, 0.0
        %v1593 = vmax.f32 %v1407, 0.0
        %v1594 = vmax.f32 %v1409, 0.0
        %v1595 = vmax.f32 %v1411, 0.0
        %v1596 = vmax.f32 %v1413, 0.0
        %v1597 = vmax.f32 %v1417, 0.0
        %v1598 = vmax.f32 %v1419, 0.0
        %v1599 = vmax.f32 %v1421, 0.0
        %v1600 = vmax.f32 %v1423, 0.0
        %v1601 = vmax.f32 %v1427, 0.0
        %v1602 = vmax.f32 %v1429, 0.0
        %v1603 = vmax.f32 %v1431, 0.0
        %v1604 = vmax.f32 %v1433, 0.0
        %v1605 = vmax.f32 %v1437, 0.0
        %v1606 = vmax.f32 %v1439, 0.0
        %v1607 = vmax.f32 %v1441, 0.0
        %v1608 = vmax.f32 %v1443, 0.0
        %v1609 = vmax.f32 %v1447, 0.0
        %v1610 = vmax.f32 %v1449, 0.0
        %v1611 = vmax.f32 %v1451, 0.0
        %v1612 = vmax.f32 %v1453, 0.0
        %v1613 = vmax.f32 %v1457, 0.0
        %v1614 = vmax.f32 %v1459, 0.0
        %v1615 = vmax.f32 %v1461, 0.0
        %v1616 = vmax.f32 %v1463, 0.0
        %v1617 = vmax.f32 %v1467, 0.0
        %v1618 = vmax.f32 %v1469, 0.0
        %v1619 = vmax.f32 %v1471, 0.0
        %v1620 = vmax.f32 %v1473, 0.0
        %v1621 = vmax.f32 %v1477, 0.0
        %v1622 = vmax.f32 %v1479, 0.0
        %v1623 = vmax.f32 %v1481, 0.0
        %v1624 = vmax.f32 %v1483, 0.0
        %v1625 = vmax.f32 %v1487, 0.0
        %v1626 = vmax.f32 %v1489, 0.0
        %v1627 = vmax.f32 %v1491, 0.0
        %v1628 = vmax.f32 %v1493, 0.0
        %v1629 = vmax.f32 %v1497, 0.0
        %v1630 = vmax.f32 %v1499, 0.0
        %v1631 = vmax.f32 %v1501, 0.0
        %v1632 = vmax.f32 %v1503, 0.0
        %v1633 = vpack.c.bf16 %v1507, %v1505
        %v1634 = vpack.c.bf16 %v1508, %v1506
        %v1635 = vpack.c.bf16 %v1511, %v1509
        %v1636 = vpack.c.bf16 %v1512, %v1510
        %v1637 = vpack.c.bf16 %v1515, %v1513
        %v1638 = vpack.c.bf16 %v1516, %v1514
        %v1639 = vpack.c.bf16 %v1519, %v1517
        %v1640 = vpack.c.bf16 %v1520, %v1518
        %v1641 = vpack.c.bf16 %v1523, %v1521
        %v1642 = vpack.c.bf16 %v1524, %v1522
        %v1643 = vpack.c.bf16 %v1527, %v1525
        %v1644 = vpack.c.bf16 %v1528, %v1526
        %v1645 = vpack.c.bf16 %v1531, %v1529
        %v1646 = vpack.c.bf16 %v1532, %v1530
        %v1647 = vpack.c.bf16 %v1535, %v1533
        %v1648 = vpack.c.bf16 %v1536, %v1534
        %v1649 = vpack.c.bf16 %v1539, %v1537
        %v1650 = vpack.c.bf16 %v1540, %v1538
        %v1651 = vpack.c.bf16 %v1543, %v1541
        %v1652 = vpack.c.bf16 %v1544, %v1542
        %v1653 = vpack.c.bf16 %v1547, %v1545
        %v1654 = vpack.c.bf16 %v1548, %v1546
        %v1655 = vpack.c.bf16 %v1551, %v1549
        %v1656 = vpack.c.bf16 %v1552, %v1550
        %v1657 = vpack.c.bf16 %v1555, %v1553
        %v1658 = vpack.c.bf16 %v1556, %v1554
        %v1659 = vpack.c.bf16 %v1559, %v1557
        %v1660 = vpack.c.bf16 %v1560, %v1558
        %v1661 = vpack.c.bf16 %v1563, %v1561
        %v1662 = vpack.c.bf16 %v1564, %v1562
        %v1663 = vpack.c.bf16 %v1567, %v1565
        %v1664 = vpack.c.bf16 %v1568, %v1566
        %v1665 = vpack.c.bf16 %v1571, %v1569
        %v1666 = vpack.c.bf16 %v1572, %v1570
        %v1667 = vpack.c.bf16 %v1575, %v1573
        %v1668 = vpack.c.bf16 %v1576, %v1574
        %v1669 = vpack.c.bf16 %v1579, %v1577
        %v1670 = vpack.c.bf16 %v1580, %v1578
        %v1671 = vpack.c.bf16 %v1583, %v1581
        %v1672 = vpack.c.bf16 %v1584, %v1582
        %v1673 = vpack.c.bf16 %v1587, %v1585
        %v1674 = vpack.c.bf16 %v1588, %v1586
        %v1675 = vpack.c.bf16 %v1591, %v1589
        %v1676 = vpack.c.bf16 %v1592, %v1590
        %v1677 = vpack.c.bf16 %v1595, %v1593
        %v1678 = vpack.c.bf16 %v1596, %v1594
        %v1679 = vpack.c.bf16 %v1599, %v1597
        %v1680 = vpack.c.bf16 %v1600, %v1598
        %v1681 = vpack.c.bf16 %v1603, %v1601
        %v1682 = vpack.c.bf16 %v1604, %v1602
        %v1683 = vpack.c.bf16 %v1607, %v1605
        %v1684 = vpack.c.bf16 %v1608, %v1606
        %v1685 = vpack.c.bf16 %v1611, %v1609
        %v1686 = vpack.c.bf16 %v1612, %v1610
        %v1687 = vpack.c.bf16 %v1615, %v1613
        %v1688 = vpack.c.bf16 %v1616, %v1614
        %v1689 = vpack.c.bf16 %v1619, %v1617
        %v1690 = vpack.c.bf16 %v1620, %v1618
        %v1691 = vpack.c.bf16 %v1623, %v1621
        %v1692 = vpack.c.bf16 %v1624, %v1622
        %v1693 = vpack.c.bf16 %v1627, %v1625
        %v1694 = vpack.c.bf16 %v1628, %v1626
        %v1695 = vpack.c.bf16 %v1631, %v1629
        %v1696 = vpack.c.bf16 %v1632, %v1630
        %v1697 = vld [vmem:[#allocation6] sm:$0xff]
        %v1698 = vld [vmem:[#allocation6 + $0x8] sm:$0xff]
        %v1699 = vld [vmem:[#allocation6 + $0x10] sm:$0xff]
        %v1700 = vld [vmem:[#allocation6 + $0x18] sm:$0xff]
        %v1701 = vld [vmem:[#allocation6 + $0x20] sm:$0xff]
        %v1702 = vld [vmem:[#allocation6 + $0x28] sm:$0xff]
        %v1703 = vld [vmem:[#allocation6 + $0x30] sm:$0xff]
        %v1704 = vld [vmem:[#allocation6 + $0x38] sm:$0xff]
        %v1705 = vld [vmem:[#allocation6 + $0x40] sm:$0xff]
        %v1706 = vld [vmem:[#allocation6 + $0x48] sm:$0xff]
        %v1707 = vld [vmem:[#allocation6 + $0x50] sm:$0xff]
        %v1708 = vld [vmem:[#allocation6 + $0x58] sm:$0xff]
        %v1709 = vld [vmem:[#allocation6 + $0x60] sm:$0xff]
        %v1710 = vld [vmem:[#allocation6 + $0x68] sm:$0xff]
        %v1711 = vld [vmem:[#allocation6 + $0x70] sm:$0xff]
        %v1712 = vld [vmem:[#allocation6 + $0x78] sm:$0xff]
        %v1713 = vld [vmem:[#allocation6 + $0x80] sm:$0xff]
        %v1714 = vld [vmem:[#allocation6 + $0x88] sm:$0xff]
        %v1715 = vld [vmem:[#allocation6 + $0x90] sm:$0xff]
        %v1716 = vld [vmem:[#allocation6 + $0x98] sm:$0xff]
        %v1717 = vld [vmem:[#allocation6 + $0xa0] sm:$0xff]
        %v1718 = vld [vmem:[#allocation6 + $0xa8] sm:$0xff]
        %v1719 = vld [vmem:[#allocation6 + $0xb0] sm:$0xff]
        %v1720 = vld [vmem:[#allocation6 + $0xb8] sm:$0xff]
        %v1721 = vld [vmem:[#allocation6 + $0xc0] sm:$0xff]
        %v1722 = vld [vmem:[#allocation6 + $0xc8] sm:$0xff]
        %v1723 = vld [vmem:[#allocation6 + $0xd0] sm:$0xff]
        %v1724 = vld [vmem:[#allocation6 + $0xd8] sm:$0xff]
        %v1725 = vld [vmem:[#allocation6 + $0xe0] sm:$0xff]
        %v1726 = vld [vmem:[#allocation6 + $0xe8] sm:$0xff]
        %v1727 = vld [vmem:[#allocation6 + $0xf0] sm:$0xff]
        %v1728 = vld [vmem:[#allocation6 + $0xf8] sm:$0xff]
        %v1729 = vld [vmem:[%s4] sm:$0x3]
        %v1731 = vlaneseq
        %v1732 = vshrl.u32 %v1731, 7
        %v1733 = vsub.s32 0, %v1732
        %v1734 = vrot.slane %v1729, %v1733
        %v1735 = vlaneseq
        %v1736 = vshrl.u32 %v1735, 7
        %v1737 = vsub.s32 1, %v1736
        %v1738 = vrot.slane %v1729, %v1737
        %v1773 = vunpack.c.l.b16 %v1697
        %v1774 = vunpack.c.h.b16 %v1697
        %v1775 = vunpack.c.l.b16 %v1698
        %v1776 = vunpack.c.h.b16 %v1698
        %v1777 = vunpack.c.l.b16 %v1699
        %v1778 = vunpack.c.h.b16 %v1699
        %v1779 = vunpack.c.l.b16 %v1700
        %v1780 = vunpack.c.h.b16 %v1700
        %v1781 = vunpack.c.l.b16 %v1701
        %v1782 = vunpack.c.h.b16 %v1701
        %v1783 = vunpack.c.l.b16 %v1702
        %v1784 = vunpack.c.h.b16 %v1702
        %v1785 = vunpack.c.l.b16 %v1703
        %v1786 = vunpack.c.h.b16 %v1703
        %v1787 = vunpack.c.l.b16 %v1704
        %v1788 = vunpack.c.h.b16 %v1704
        %v1789 = vunpack.c.l.b16 %v1705
        %v1790 = vunpack.c.h.b16 %v1705
        %v1791 = vunpack.c.l.b16 %v1706
        %v1792 = vunpack.c.h.b16 %v1706
        %v1793 = vunpack.c.l.b16 %v1707
        %v1794 = vunpack.c.h.b16 %v1707
        %v1795 = vunpack.c.l.b16 %v1708
        %v1796 = vunpack.c.h.b16 %v1708
        %v1797 = vunpack.c.l.b16 %v1709
        %v1798 = vunpack.c.h.b16 %v1709
        %v1799 = vunpack.c.l.b16 %v1710
        %v1800 = vunpack.c.h.b16 %v1710
        %v1801 = vunpack.c.l.b16 %v1711
        %v1802 = vunpack.c.h.b16 %v1711
        %v1803 = vunpack.c.l.b16 %v1712
        %v1804 = vunpack.c.h.b16 %v1712
        %v1805 = vunpack.c.l.b16 %v1713
        %v1806 = vunpack.c.h.b16 %v1713
        %v1807 = vunpack.c.l.b16 %v1714
        %v1808 = vunpack.c.h.b16 %v1714
        %v1809 = vunpack.c.l.b16 %v1715
        %v1810 = vunpack.c.h.b16 %v1715
        %v1811 = vunpack.c.l.b16 %v1716
        %v1812 = vunpack.c.h.b16 %v1716
        %v1813 = vunpack.c.l.b16 %v1717
        %v1814 = vunpack.c.h.b16 %v1717
        %v1815 = vunpack.c.l.b16 %v1718
        %v1816 = vunpack.c.h.b16 %v1718
        %v1817 = vunpack.c.l.b16 %v1719
        %v1818 = vunpack.c.h.b16 %v1719
        %v1819 = vunpack.c.l.b16 %v1720
        %v1820 = vunpack.c.h.b16 %v1720
        %v1821 = vunpack.c.l.b16 %v1721
        %v1822 = vunpack.c.h.b16 %v1721
        %v1823 = vunpack.c.l.b16 %v1722
        %v1824 = vunpack.c.h.b16 %v1722
        %v1825 = vunpack.c.l.b16 %v1723
        %v1826 = vunpack.c.h.b16 %v1723
        %v1827 = vunpack.c.l.b16 %v1724
        %v1828 = vunpack.c.h.b16 %v1724
        %v1829 = vunpack.c.l.b16 %v1725
        %v1830 = vunpack.c.h.b16 %v1725
        %v1831 = vunpack.c.l.b16 %v1726
        %v1832 = vunpack.c.h.b16 %v1726
        %v1833 = vunpack.c.l.b16 %v1727
        %v1834 = vunpack.c.h.b16 %v1727
        %v1835 = vunpack.c.l.b16 %v1728
        %v1836 = vunpack.c.h.b16 %v1728
        %v1837 = vpack.c.b16 %v1775, %v1773
        %v1838 = vpack.c.b16 %v1776, %v1774
        %v1839 = vpack.c.b16 %v1779, %v1777
        %v1840 = vpack.c.b16 %v1780, %v1778
        %v1841 = vpack.c.b16 %v1783, %v1781
        %v1842 = vpack.c.b16 %v1784, %v1782
        %v1843 = vpack.c.b16 %v1787, %v1785
        %v1844 = vpack.c.b16 %v1788, %v1786
        %v1845 = vpack.c.b16 %v1791, %v1789
        %v1846 = vpack.c.b16 %v1792, %v1790
        %v1847 = vpack.c.b16 %v1795, %v1793
        %v1848 = vpack.c.b16 %v1796, %v1794
        %v1849 = vpack.c.b16 %v1799, %v1797
        %v1850 = vpack.c.b16 %v1800, %v1798
        %v1851 = vpack.c.b16 %v1803, %v1801
        %v1852 = vpack.c.b16 %v1804, %v1802
        %v1853 = vpack.c.b16 %v1807, %v1805
        %v1854 = vpack.c.b16 %v1808, %v1806
        %v1855 = vpack.c.b16 %v1811, %v1809
        %v1856 = vpack.c.b16 %v1812, %v1810
        %v1857 = vpack.c.b16 %v1815, %v1813
        %v1858 = vpack.c.b16 %v1816, %v1814
        %v1859 = vpack.c.b16 %v1819, %v1817
        %v1860 = vpack.c.b16 %v1820, %v1818
        %v1861 = vpack.c.b16 %v1823, %v1821
        %v1862 = vpack.c.b16 %v1824, %v1822
        %v1863 = vpack.c.b16 %v1827, %v1825
        %v1864 = vpack.c.b16 %v1828, %v1826
        %v1865 = vpack.c.b16 %v1831, %v1829
        %v1866 = vpack.c.b16 %v1832, %v1830
        %v1867 = vpack.c.b16 %v1835, %v1833
        %v1868 = vpack.c.b16 %v1836, %v1834
        %1901 = vmatprep.subr.bf16.mxu0 %v1852
        %1902 = vmatpush1.bf16.msra.mxu0 %v1851
        %1903 = vmatprep.subr.bf16.mxu0 %v1850
        %1904 = vmatpush1.bf16.msra.mxu0 %v1849
        %1905 = vmatprep.subr.bf16.mxu0 %v1848
        %1906 = vmatpush1.bf16.msra.mxu0 %v1847
        %1907 = vmatprep.subr.bf16.mxu0 %v1846
        %1908 = vmatpush1.bf16.msra.mxu0 %v1845
        %1909 = vmatprep.subr.bf16.mxu0 %v1844
        %1910 = vmatpush1.bf16.msra.mxu0 %v1843
        %1911 = vmatprep.subr.bf16.mxu0 %v1842
        %1912 = vmatpush1.bf16.msra.mxu0 %v1841
        %1913 = vmatprep.subr.bf16.mxu0 %v1840
        %1914 = vmatpush1.bf16.msra.mxu0 %v1839
        %1915 = vmatprep.subr.bf16.mxu0 %v1838
        %1916 = vmatpush1.bf16.msra.mxu0 %v1837
        %1917 = vmatprep.subr.bf16.mxu0 %v1868
        %1918 = vmatpush2.bf16.msra.mxu0 %v1867
        %1919 = vmatprep.subr.bf16.mxu0 %v1866
        %1920 = vmatpush2.bf16.msra.mxu0 %v1865
        %1921 = vmatprep.subr.bf16.mxu0 %v1864
        %1922 = vmatpush2.bf16.msra.mxu0 %v1863
        %1923 = vmatprep.subr.bf16.mxu0 %v1862
        %1924 = vmatpush2.bf16.msra.mxu0 %v1861
        %1925 = vmatprep.subr.bf16.mxu0 %v1860
        %1926 = vmatpush2.bf16.msra.mxu0 %v1859
        %1927 = vmatprep.subr.bf16.mxu0 %v1858
        %1928 = vmatpush2.bf16.msra.mxu0 %v1857
        %1929 = vmatprep.subr.bf16.mxu0 %v1856
        %1930 = vmatpush2.bf16.msra.mxu0 %v1855
        %1931 = vmatprep.subr.bf16.mxu0 %v1854
        %1932 = vmatpush2.bf16.msra.mxu0 %v1853
        %1933 = vmatprep.mubr.bf16.mxu0 %v1634
        %1934 = vmatmul.mubr.bf16.gmra.mxu0 %v1633
        %v1935 = vpop.f32.mrf.mxu0
        %v1936 = vadd.f32 %v1734, %v1935
        %v1937 = vpop.f32.mrf.mxu0
        %v1938 = vadd.f32 %v1738, %v1937
        %v1939 = vpop.f32.mrf.mxu0
        %v1940 = vadd.f32 %v1734, %v1939
        %v1941 = vpop.f32.mrf.mxu0
        %v1942 = vadd.f32 %v1738, %v1941
        %1943 = vmatprep.mubr.bf16.mxu0 %v1636
        %1944 = vmatmul.mubr.bf16.gmra.mxu0 %v1635
        %v1945 = vpop.f32.mrf.mxu0
        %v1946 = vadd.f32 %v1734, %v1945
        %v1947 = vpop.f32.mrf.mxu0
        %v1948 = vadd.f32 %v1738, %v1947
        %v1949 = vpop.f32.mrf.mxu0
        %v1950 = vadd.f32 %v1734, %v1949
        %v1951 = vpop.f32.mrf.mxu0
        %v1952 = vadd.f32 %v1738, %v1951
        %1953 = vmatprep.mubr.bf16.mxu0 %v1638
        %1954 = vmatmul.mubr.bf16.gmra.mxu0 %v1637
        %v1955 = vpop.f32.mrf.mxu0
        %v1956 = vadd.f32 %v1734, %v1955
        %v1957 = vpop.f32.mrf.mxu0
        %v1958 = vadd.f32 %v1738, %v1957
        %v1959 = vpop.f32.mrf.mxu0
        %v1960 = vadd.f32 %v1734, %v1959
        %v1961 = vpop.f32.mrf.mxu0
        %v1962 = vadd.f32 %v1738, %v1961
        %1963 = vmatprep.mubr.bf16.mxu0 %v1640
        %1964 = vmatmul.mubr.bf16.gmra.mxu0 %v1639
        %v1965 = vpop.f32.mrf.mxu0
        %v1966 = vadd.f32 %v1734, %v1965
        %v1967 = vpop.f32.mrf.mxu0
        %v1968 = vadd.f32 %v1738, %v1967
        %v1969 = vpop.f32.mrf.mxu0
        %v1970 = vadd.f32 %v1734, %v1969
        %v1971 = vpop.f32.mrf.mxu0
        %v1972 = vadd.f32 %v1738, %v1971
        %1973 = vmatprep.mubr.bf16.mxu0 %v1642
        %1974 = vmatmul.mubr.bf16.gmra.mxu0 %v1641
        %v1975 = vpop.f32.mrf.mxu0
        %v1976 = vadd.f32 %v1734, %v1975
        %v1977 = vpop.f32.mrf.mxu0
        %v1978 = vadd.f32 %v1738, %v1977
        %v1979 = vpop.f32.mrf.mxu0
        %v1980 = vadd.f32 %v1734, %v1979
        %v1981 = vpop.f32.mrf.mxu0
        %v1982 = vadd.f32 %v1738, %v1981
        %1983 = vmatprep.mubr.bf16.mxu0 %v1644
        %1984 = vmatmul.mubr.bf16.gmra.mxu0 %v1643
        %v1985 = vpop.f32.mrf.mxu0
        %v1986 = vadd.f32 %v1734, %v1985
        %v1987 = vpop.f32.mrf.mxu0
        %v1988 = vadd.f32 %v1738, %v1987
        %v1989 = vpop.f32.mrf.mxu0
        %v1990 = vadd.f32 %v1734, %v1989
        %v1991 = vpop.f32.mrf.mxu0
        %v1992 = vadd.f32 %v1738, %v1991
        %1993 = vmatprep.mubr.bf16.mxu0 %v1646
        %1994 = vmatmul.mubr.bf16.gmra.mxu0 %v1645
        %v1995 = vpop.f32.mrf.mxu0
        %v1996 = vadd.f32 %v1734, %v1995
        %v1997 = vpop.f32.mrf.mxu0
        %v1998 = vadd.f32 %v1738, %v1997
        %v1999 = vpop.f32.mrf.mxu0
        %v2000 = vadd.f32 %v1734, %v1999
        %v2001 = vpop.f32.mrf.mxu0
        %v2002 = vadd.f32 %v1738, %v2001
        %2003 = vmatprep.mubr.bf16.mxu0 %v1648
        %2004 = vmatmul.mubr.bf16.gmra.mxu0 %v1647
        %v2005 = vpop.f32.mrf.mxu0
        %v2006 = vadd.f32 %v1734, %v2005
        %v2007 = vpop.f32.mrf.mxu0
        %v2008 = vadd.f32 %v1738, %v2007
        %v2009 = vpop.f32.mrf.mxu0
        %v2010 = vadd.f32 %v1734, %v2009
        %v2011 = vpop.f32.mrf.mxu0
        %v2012 = vadd.f32 %v1738, %v2011
        %2013 = vmatprep.mubr.bf16.mxu0 %v1650
        %2014 = vmatmul.mubr.bf16.gmra.mxu0 %v1649
        %v2015 = vpop.f32.mrf.mxu0
        %v2016 = vadd.f32 %v1734, %v2015
        %v2017 = vpop.f32.mrf.mxu0
        %v2018 = vadd.f32 %v1738, %v2017
        %v2019 = vpop.f32.mrf.mxu0
        %v2020 = vadd.f32 %v1734, %v2019
        %v2021 = vpop.f32.mrf.mxu0
        %v2022 = vadd.f32 %v1738, %v2021
        %2023 = vmatprep.mubr.bf16.mxu0 %v1652
        %2024 = vmatmul.mubr.bf16.gmra.mxu0 %v1651
        %v2025 = vpop.f32.mrf.mxu0
        %v2026 = vadd.f32 %v1734, %v2025
        %v2027 = vpop.f32.mrf.mxu0
        %v2028 = vadd.f32 %v1738, %v2027
        %v2029 = vpop.f32.mrf.mxu0
        %v2030 = vadd.f32 %v1734, %v2029
        %v2031 = vpop.f32.mrf.mxu0
        %v2032 = vadd.f32 %v1738, %v2031
        %2033 = vmatprep.mubr.bf16.mxu0 %v1654
        %2034 = vmatmul.mubr.bf16.gmra.mxu0 %v1653
        %v2035 = vpop.f32.mrf.mxu0
        %v2036 = vadd.f32 %v1734, %v2035
        %v2037 = vpop.f32.mrf.mxu0
        %v2038 = vadd.f32 %v1738, %v2037
        %v2039 = vpop.f32.mrf.mxu0
        %v2040 = vadd.f32 %v1734, %v2039
        %v2041 = vpop.f32.mrf.mxu0
        %v2042 = vadd.f32 %v1738, %v2041
        %2043 = vmatprep.mubr.bf16.mxu0 %v1656
        %2044 = vmatmul.mubr.bf16.gmra.mxu0 %v1655
        %v2045 = vpop.f32.mrf.mxu0
        %v2046 = vadd.f32 %v1734, %v2045
        %v2047 = vpop.f32.mrf.mxu0
        %v2048 = vadd.f32 %v1738, %v2047
        %v2049 = vpop.f32.mrf.mxu0
        %v2050 = vadd.f32 %v1734, %v2049
        %v2051 = vpop.f32.mrf.mxu0
        %v2052 = vadd.f32 %v1738, %v2051
        %2053 = vmatprep.mubr.bf16.mxu0 %v1658
        %2054 = vmatmul.mubr.bf16.gmra.mxu0 %v1657
        %v2055 = vpop.f32.mrf.mxu0
        %v2056 = vadd.f32 %v1734, %v2055
        %v2057 = vpop.f32.mrf.mxu0
        %v2058 = vadd.f32 %v1738, %v2057
        %v2059 = vpop.f32.mrf.mxu0
        %v2060 = vadd.f32 %v1734, %v2059
        %v2061 = vpop.f32.mrf.mxu0
        %v2062 = vadd.f32 %v1738, %v2061
        %2063 = vmatprep.mubr.bf16.mxu0 %v1660
        %2064 = vmatmul.mubr.bf16.gmra.mxu0 %v1659
        %v2065 = vpop.f32.mrf.mxu0
        %v2066 = vadd.f32 %v1734, %v2065
        %v2067 = vpop.f32.mrf.mxu0
        %v2068 = vadd.f32 %v1738, %v2067
        %v2069 = vpop.f32.mrf.mxu0
        %v2070 = vadd.f32 %v1734, %v2069
        %v2071 = vpop.f32.mrf.mxu0
        %v2072 = vadd.f32 %v1738, %v2071
        %2073 = vmatprep.mubr.bf16.mxu0 %v1662
        %2074 = vmatmul.mubr.bf16.gmra.mxu0 %v1661
        %v2075 = vpop.f32.mrf.mxu0
        %v2076 = vadd.f32 %v1734, %v2075
        %v2077 = vpop.f32.mrf.mxu0
        %v2078 = vadd.f32 %v1738, %v2077
        %v2079 = vpop.f32.mrf.mxu0
        %v2080 = vadd.f32 %v1734, %v2079
        %v2081 = vpop.f32.mrf.mxu0
        %v2082 = vadd.f32 %v1738, %v2081
        %2083 = vmatprep.mubr.bf16.mxu0 %v1664
        %2084 = vmatmul.mubr.bf16.gmra.mxu0 %v1663
        %v2085 = vpop.f32.mrf.mxu0
        %v2086 = vadd.f32 %v1734, %v2085
        %v2087 = vpop.f32.mrf.mxu0
        %v2088 = vadd.f32 %v1738, %v2087
        %v2089 = vpop.f32.mrf.mxu0
        %v2090 = vadd.f32 %v1734, %v2089
        %v2091 = vpop.f32.mrf.mxu0
        %v2092 = vadd.f32 %v1738, %v2091
        %2093 = vmatprep.mubr.bf16.mxu0 %v1666
        %2094 = vmatmul.mubr.bf16.gmra.mxu0 %v1665
        %v2095 = vpop.f32.mrf.mxu0
        %v2096 = vadd.f32 %v1734, %v2095
        %v2097 = vpop.f32.mrf.mxu0
        %v2098 = vadd.f32 %v1738, %v2097
        %v2099 = vpop.f32.mrf.mxu0
        %v2100 = vadd.f32 %v1734, %v2099
        %v2101 = vpop.f32.mrf.mxu0
        %v2102 = vadd.f32 %v1738, %v2101
        %2103 = vmatprep.mubr.bf16.mxu0 %v1668
        %2104 = vmatmul.mubr.bf16.gmra.mxu0 %v1667
        %v2105 = vpop.f32.mrf.mxu0
        %v2106 = vadd.f32 %v1734, %v2105
        %v2107 = vpop.f32.mrf.mxu0
        %v2108 = vadd.f32 %v1738, %v2107
        %v2109 = vpop.f32.mrf.mxu0
        %v2110 = vadd.f32 %v1734, %v2109
        %v2111 = vpop.f32.mrf.mxu0
        %v2112 = vadd.f32 %v1738, %v2111
        %2113 = vmatprep.mubr.bf16.mxu0 %v1670
        %2114 = vmatmul.mubr.bf16.gmra.mxu0 %v1669
        %v2115 = vpop.f32.mrf.mxu0
        %v2116 = vadd.f32 %v1734, %v2115
        %v2117 = vpop.f32.mrf.mxu0
        %v2118 = vadd.f32 %v1738, %v2117
        %v2119 = vpop.f32.mrf.mxu0
        %v2120 = vadd.f32 %v1734, %v2119
        %v2121 = vpop.f32.mrf.mxu0
        %v2122 = vadd.f32 %v1738, %v2121
        %2123 = vmatprep.mubr.bf16.mxu0 %v1672
        %2124 = vmatmul.mubr.bf16.gmra.mxu0 %v1671
        %v2125 = vpop.f32.mrf.mxu0
        %v2126 = vadd.f32 %v1734, %v2125
        %v2127 = vpop.f32.mrf.mxu0
        %v2128 = vadd.f32 %v1738, %v2127
        %v2129 = vpop.f32.mrf.mxu0
        %v2130 = vadd.f32 %v1734, %v2129
        %v2131 = vpop.f32.mrf.mxu0
        %v2132 = vadd.f32 %v1738, %v2131
        %2133 = vmatprep.mubr.bf16.mxu0 %v1674
        %2134 = vmatmul.mubr.bf16.gmra.mxu0 %v1673
        %v2135 = vpop.f32.mrf.mxu0
        %v2136 = vadd.f32 %v1734, %v2135
        %v2137 = vpop.f32.mrf.mxu0
        %v2138 = vadd.f32 %v1738, %v2137
        %v2139 = vpop.f32.mrf.mxu0
        %v2140 = vadd.f32 %v1734, %v2139
        %v2141 = vpop.f32.mrf.mxu0
        %v2142 = vadd.f32 %v1738, %v2141
        %2143 = vmatprep.mubr.bf16.mxu0 %v1676
        %2144 = vmatmul.mubr.bf16.gmra.mxu0 %v1675
        %v2145 = vpop.f32.mrf.mxu0
        %v2146 = vadd.f32 %v1734, %v2145
        %v2147 = vpop.f32.mrf.mxu0
        %v2148 = vadd.f32 %v1738, %v2147
        %v2149 = vpop.f32.mrf.mxu0
        %v2150 = vadd.f32 %v1734, %v2149
        %v2151 = vpop.f32.mrf.mxu0
        %v2152 = vadd.f32 %v1738, %v2151
        %2153 = vmatprep.mubr.bf16.mxu0 %v1678
        %2154 = vmatmul.mubr.bf16.gmra.mxu0 %v1677
        %v2155 = vpop.f32.mrf.mxu0
        %v2156 = vadd.f32 %v1734, %v2155
        %v2157 = vpop.f32.mrf.mxu0
        %v2158 = vadd.f32 %v1738, %v2157
        %v2159 = vpop.f32.mrf.mxu0
        %v2160 = vadd.f32 %v1734, %v2159
        %v2161 = vpop.f32.mrf.mxu0
        %v2162 = vadd.f32 %v1738, %v2161
        %2163 = vmatprep.mubr.bf16.mxu0 %v1680
        %2164 = vmatmul.mubr.bf16.gmra.mxu0 %v1679
        %v2165 = vpop.f32.mrf.mxu0
        %v2166 = vadd.f32 %v1734, %v2165
        %v2167 = vpop.f32.mrf.mxu0
        %v2168 = vadd.f32 %v1738, %v2167
        %v2169 = vpop.f32.mrf.mxu0
        %v2170 = vadd.f32 %v1734, %v2169
        %v2171 = vpop.f32.mrf.mxu0
        %v2172 = vadd.f32 %v1738, %v2171
        %2173 = vmatprep.mubr.bf16.mxu0 %v1682
        %2174 = vmatmul.mubr.bf16.gmra.mxu0 %v1681
        %v2175 = vpop.f32.mrf.mxu0
        %v2176 = vadd.f32 %v1734, %v2175
        %v2177 = vpop.f32.mrf.mxu0
        %v2178 = vadd.f32 %v1738, %v2177
        %v2179 = vpop.f32.mrf.mxu0
        %v2180 = vadd.f32 %v1734, %v2179
        %v2181 = vpop.f32.mrf.mxu0
        %v2182 = vadd.f32 %v1738, %v2181
        %2183 = vmatprep.mubr.bf16.mxu0 %v1684
        %2184 = vmatmul.mubr.bf16.gmra.mxu0 %v1683
        %v2185 = vpop.f32.mrf.mxu0
        %v2186 = vadd.f32 %v1734, %v2185
        %v2187 = vpop.f32.mrf.mxu0
        %v2188 = vadd.f32 %v1738, %v2187
        %v2189 = vpop.f32.mrf.mxu0
        %v2190 = vadd.f32 %v1734, %v2189
        %v2191 = vpop.f32.mrf.mxu0
        %v2192 = vadd.f32 %v1738, %v2191
        %2193 = vmatprep.mubr.bf16.mxu0 %v1686
        %2194 = vmatmul.mubr.bf16.gmra.mxu0 %v1685
        %v2195 = vpop.f32.mrf.mxu0
        %v2196 = vadd.f32 %v1734, %v2195
        %v2197 = vpop.f32.mrf.mxu0
        %v2198 = vadd.f32 %v1738, %v2197
        %v2199 = vpop.f32.mrf.mxu0
        %v2200 = vadd.f32 %v1734, %v2199
        %v2201 = vpop.f32.mrf.mxu0
        %v2202 = vadd.f32 %v1738, %v2201
        %2203 = vmatprep.mubr.bf16.mxu0 %v1688
        %2204 = vmatmul.mubr.bf16.gmra.mxu0 %v1687
        %v2205 = vpop.f32.mrf.mxu0
        %v2206 = vadd.f32 %v1734, %v2205
        %v2207 = vpop.f32.mrf.mxu0
        %v2208 = vadd.f32 %v1738, %v2207
        %v2209 = vpop.f32.mrf.mxu0
        %v2210 = vadd.f32 %v1734, %v2209
        %v2211 = vpop.f32.mrf.mxu0
        %v2212 = vadd.f32 %v1738, %v2211
        %2213 = vmatprep.mubr.bf16.mxu0 %v1690
        %2214 = vmatmul.mubr.bf16.gmra.mxu0 %v1689
        %v2215 = vpop.f32.mrf.mxu0
        %v2216 = vadd.f32 %v1734, %v2215
        %v2217 = vpop.f32.mrf.mxu0
        %v2218 = vadd.f32 %v1738, %v2217
        %v2219 = vpop.f32.mrf.mxu0
        %v2220 = vadd.f32 %v1734, %v2219
        %v2221 = vpop.f32.mrf.mxu0
        %v2222 = vadd.f32 %v1738, %v2221
        %2223 = vmatprep.mubr.bf16.mxu0 %v1692
        %2224 = vmatmul.mubr.bf16.gmra.mxu0 %v1691
        %v2225 = vpop.f32.mrf.mxu0
        %v2226 = vadd.f32 %v1734, %v2225
        %v2227 = vpop.f32.mrf.mxu0
        %v2228 = vadd.f32 %v1738, %v2227
        %v2229 = vpop.f32.mrf.mxu0
        %v2230 = vadd.f32 %v1734, %v2229
        %v2231 = vpop.f32.mrf.mxu0
        %v2232 = vadd.f32 %v1738, %v2231
        %2233 = vmatprep.mubr.bf16.mxu0 %v1694
        %2234 = vmatmul.mubr.bf16.gmra.mxu0 %v1693
        %v2235 = vpop.f32.mrf.mxu0
        %v2236 = vadd.f32 %v1734, %v2235
        %v2237 = vpop.f32.mrf.mxu0
        %v2238 = vadd.f32 %v1738, %v2237
        %v2239 = vpop.f32.mrf.mxu0
        %v2240 = vadd.f32 %v1734, %v2239
        %v2241 = vpop.f32.mrf.mxu0
        %v2242 = vadd.f32 %v1738, %v2241
        %2243 = vmatprep.mubr.bf16.mxu0 %v1696
        %2244 = vmatmul.mubr.bf16.gmra.mxu0 %v1695
        %v2245 = vpop.f32.mrf.mxu0
        %v2246 = vadd.f32 %v1734, %v2245
        %v2247 = vpop.f32.mrf.mxu0
        %v2248 = vadd.f32 %v1738, %v2247
        %v2249 = vpop.f32.mrf.mxu0
        %v2250 = vadd.f32 %v1734, %v2249
        %v2251 = vpop.f32.mrf.mxu0
        %v2252 = vadd.f32 %v1738, %v2251
        %2253 = vdwg.mxu0
        %v2254 = vmax.f32 %v1936, 0.0
        %v2255 = vmax.f32 %v1938, 0.0
        %v2256 = vmax.f32 %v1940, 0.0
        %v2257 = vmax.f32 %v1942, 0.0
        %v2258 = vmax.f32 %v1946, 0.0
        %v2259 = vmax.f32 %v1948, 0.0
        %v2260 = vmax.f32 %v1950, 0.0
        %v2261 = vmax.f32 %v1952, 0.0
        %v2262 = vmax.f32 %v1956, 0.0
        %v2263 = vmax.f32 %v1958, 0.0
        %v2264 = vmax.f32 %v1960, 0.0
        %v2265 = vmax.f32 %v1962, 0.0
        %v2266 = vmax.f32 %v1966, 0.0
        %v2267 = vmax.f32 %v1968, 0.0
        %v2268 = vmax.f32 %v1970, 0.0
        %v2269 = vmax.f32 %v1972, 0.0
        %v2270 = vmax.f32 %v1976, 0.0
        %v2271 = vmax.f32 %v1978, 0.0
        %v2272 = vmax.f32 %v1980, 0.0
        %v2273 = vmax.f32 %v1982, 0.0
        %v2274 = vmax.f32 %v1986, 0.0
        %v2275 = vmax.f32 %v1988, 0.0
        %v2276 = vmax.f32 %v1990, 0.0
        %v2277 = vmax.f32 %v1992, 0.0
        %v2278 = vmax.f32 %v1996, 0.0
        %v2279 = vmax.f32 %v1998, 0.0
        %v2280 = vmax.f32 %v2000, 0.0
        %v2281 = vmax.f32 %v2002, 0.0
        %v2282 = vmax.f32 %v2006, 0.0
        %v2283 = vmax.f32 %v2008, 0.0
        %v2284 = vmax.f32 %v2010, 0.0
        %v2285 = vmax.f32 %v2012, 0.0
        %v2286 = vmax.f32 %v2016, 0.0
        %v2287 = vmax.f32 %v2018, 0.0
        %v2288 = vmax.f32 %v2020, 0.0
        %v2289 = vmax.f32 %v2022, 0.0
        %v2290 = vmax.f32 %v2026, 0.0
        %v2291 = vmax.f32 %v2028, 0.0
        %v2292 = vmax.f32 %v2030, 0.0
        %v2293 = vmax.f32 %v2032, 0.0
        %v2294 = vmax.f32 %v2036, 0.0
        %v2295 = vmax.f32 %v2038, 0.0
        %v2296 = vmax.f32 %v2040, 0.0
        %v2297 = vmax.f32 %v2042, 0.0
        %v2298 = vmax.f32 %v2046, 0.0
        %v2299 = vmax.f32 %v2048, 0.0
        %v2300 = vmax.f32 %v2050, 0.0
        %v2301 = vmax.f32 %v2052, 0.0
        %v2302 = vmax.f32 %v2056, 0.0
        %v2303 = vmax.f32 %v2058, 0.0
        %v2304 = vmax.f32 %v2060, 0.0
        %v2305 = vmax.f32 %v2062, 0.0
        %v2306 = vmax.f32 %v2066, 0.0
        %v2307 = vmax.f32 %v2068, 0.0
        %v2308 = vmax.f32 %v2070, 0.0
        %v2309 = vmax.f32 %v2072, 0.0
        %v2310 = vmax.f32 %v2076, 0.0
        %v2311 = vmax.f32 %v2078, 0.0
        %v2312 = vmax.f32 %v2080, 0.0
        %v2313 = vmax.f32 %v2082, 0.0
        %v2314 = vmax.f32 %v2086, 0.0
        %v2315 = vmax.f32 %v2088, 0.0
        %v2316 = vmax.f32 %v2090, 0.0
        %v2317 = vmax.f32 %v2092, 0.0
        %v2318 = vmax.f32 %v2096, 0.0
        %v2319 = vmax.f32 %v2098, 0.0
        %v2320 = vmax.f32 %v2100, 0.0
        %v2321 = vmax.f32 %v2102, 0.0
        %v2322 = vmax.f32 %v2106, 0.0
        %v2323 = vmax.f32 %v2108, 0.0
        %v2324 = vmax.f32 %v2110, 0.0
        %v2325 = vmax.f32 %v2112, 0.0
        %v2326 = vmax.f32 %v2116, 0.0
        %v2327 = vmax.f32 %v2118, 0.0
        %v2328 = vmax.f32 %v2120, 0.0
        %v2329 = vmax.f32 %v2122, 0.0
        %v2330 = vmax.f32 %v2126, 0.0
        %v2331 = vmax.f32 %v2128, 0.0
        %v2332 = vmax.f32 %v2130, 0.0
        %v2333 = vmax.f32 %v2132, 0.0
        %v2334 = vmax.f32 %v2136, 0.0
        %v2335 = vmax.f32 %v2138, 0.0
        %v2336 = vmax.f32 %v2140, 0.0
        %v2337 = vmax.f32 %v2142, 0.0
        %v2338 = vmax.f32 %v2146, 0.0
        %v2339 = vmax.f32 %v2148, 0.0
        %v2340 = vmax.f32 %v2150, 0.0
        %v2341 = vmax.f32 %v2152, 0.0
        %v2342 = vmax.f32 %v2156, 0.0
        %v2343 = vmax.f32 %v2158, 0.0
        %v2344 = vmax.f32 %v2160, 0.0
        %v2345 = vmax.f32 %v2162, 0.0
        %v2346 = vmax.f32 %v2166, 0.0
        %v2347 = vmax.f32 %v2168, 0.0
        %v2348 = vmax.f32 %v2170, 0.0
        %v2349 = vmax.f32 %v2172, 0.0
        %v2350 = vmax.f32 %v2176, 0.0
        %v2351 = vmax.f32 %v2178, 0.0
        %v2352 = vmax.f32 %v2180, 0.0
        %v2353 = vmax.f32 %v2182, 0.0
        %v2354 = vmax.f32 %v2186, 0.0
        %v2355 = vmax.f32 %v2188, 0.0
        %v2356 = vmax.f32 %v2190, 0.0
        %v2357 = vmax.f32 %v2192, 0.0
        %v2358 = vmax.f32 %v2196, 0.0
        %v2359 = vmax.f32 %v2198, 0.0
        %v2360 = vmax.f32 %v2200, 0.0
        %v2361 = vmax.f32 %v2202, 0.0
        %v2362 = vmax.f32 %v2206, 0.0
        %v2363 = vmax.f32 %v2208, 0.0
        %v2364 = vmax.f32 %v2210, 0.0
        %v2365 = vmax.f32 %v2212, 0.0
        %v2366 = vmax.f32 %v2216, 0.0
        %v2367 = vmax.f32 %v2218, 0.0
        %v2368 = vmax.f32 %v2220, 0.0
        %v2369 = vmax.f32 %v2222, 0.0
        %v2370 = vmax.f32 %v2226, 0.0
        %v2371 = vmax.f32 %v2228, 0.0
        %v2372 = vmax.f32 %v2230, 0.0
        %v2373 = vmax.f32 %v2232, 0.0
        %v2374 = vmax.f32 %v2236, 0.0
        %v2375 = vmax.f32 %v2238, 0.0
        %v2376 = vmax.f32 %v2240, 0.0
        %v2377 = vmax.f32 %v2242, 0.0
        %v2378 = vmax.f32 %v2246, 0.0
        %v2379 = vmax.f32 %v2248, 0.0
        %v2380 = vmax.f32 %v2250, 0.0
        %v2381 = vmax.f32 %v2252, 0.0
        %v2382 = vpack.c.bf16 %v2256, %v2254
        %v2383 = vpack.c.bf16 %v2257, %v2255
        %v2384 = vpack.c.bf16 %v2260, %v2258
        %v2385 = vpack.c.bf16 %v2261, %v2259
        %v2386 = vpack.c.bf16 %v2264, %v2262
        %v2387 = vpack.c.bf16 %v2265, %v2263
        %v2388 = vpack.c.bf16 %v2268, %v2266
        %v2389 = vpack.c.bf16 %v2269, %v2267
        %v2390 = vpack.c.bf16 %v2272, %v2270
        %v2391 = vpack.c.bf16 %v2273, %v2271
        %v2392 = vpack.c.bf16 %v2276, %v2274
        %v2393 = vpack.c.bf16 %v2277, %v2275
        %v2394 = vpack.c.bf16 %v2280, %v2278
        %v2395 = vpack.c.bf16 %v2281, %v2279
        %v2396 = vpack.c.bf16 %v2284, %v2282
        %v2397 = vpack.c.bf16 %v2285, %v2283
        %v2398 = vpack.c.bf16 %v2288, %v2286
        %v2399 = vpack.c.bf16 %v2289, %v2287
        %v2400 = vpack.c.bf16 %v2292, %v2290
        %v2401 = vpack.c.bf16 %v2293, %v2291
        %v2402 = vpack.c.bf16 %v2296, %v2294
        %v2403 = vpack.c.bf16 %v2297, %v2295
        %v2404 = vpack.c.bf16 %v2300, %v2298
        %v2405 = vpack.c.bf16 %v2301, %v2299
        %v2406 = vpack.c.bf16 %v2304, %v2302
        %v2407 = vpack.c.bf16 %v2305, %v2303
        %v2408 = vpack.c.bf16 %v2308, %v2306
        %v2409 = vpack.c.bf16 %v2309, %v2307
        %v2410 = vpack.c.bf16 %v2312, %v2310
        %v2411 = vpack.c.bf16 %v2313, %v2311
        %v2412 = vpack.c.bf16 %v2316, %v2314
        %v2413 = vpack.c.bf16 %v2317, %v2315
        %v2414 = vpack.c.bf16 %v2320, %v2318
        %v2415 = vpack.c.bf16 %v2321, %v2319
        %v2416 = vpack.c.bf16 %v2324, %v2322
        %v2417 = vpack.c.bf16 %v2325, %v2323
        %v2418 = vpack.c.bf16 %v2328, %v2326
        %v2419 = vpack.c.bf16 %v2329, %v2327
        %v2420 = vpack.c.bf16 %v2332, %v2330
        %v2421 = vpack.c.bf16 %v2333, %v2331
        %v2422 = vpack.c.bf16 %v2336, %v2334
        %v2423 = vpack.c.bf16 %v2337, %v2335
        %v2424 = vpack.c.bf16 %v2340, %v2338
        %v2425 = vpack.c.bf16 %v2341, %v2339
        %v2426 = vpack.c.bf16 %v2344, %v2342
        %v2427 = vpack.c.bf16 %v2345, %v2343
        %v2428 = vpack.c.bf16 %v2348, %v2346
        %v2429 = vpack.c.bf16 %v2349, %v2347
        %v2430 = vpack.c.bf16 %v2352, %v2350
        %v2431 = vpack.c.bf16 %v2353, %v2351
        %v2432 = vpack.c.bf16 %v2356, %v2354
        %v2433 = vpack.c.bf16 %v2357, %v2355
        %v2434 = vpack.c.bf16 %v2360, %v2358
        %v2435 = vpack.c.bf16 %v2361, %v2359
        %v2436 = vpack.c.bf16 %v2364, %v2362
        %v2437 = vpack.c.bf16 %v2365, %v2363
        %v2438 = vpack.c.bf16 %v2368, %v2366
        %v2439 = vpack.c.bf16 %v2369, %v2367
        %v2440 = vpack.c.bf16 %v2372, %v2370
        %v2441 = vpack.c.bf16 %v2373, %v2371
        %v2442 = vpack.c.bf16 %v2376, %v2374
        %v2443 = vpack.c.bf16 %v2377, %v2375
        %v2444 = vpack.c.bf16 %v2380, %v2378
        %v2445 = vpack.c.bf16 %v2381, %v2379
        %v2446 = vld [vmem:[#allocation7] sm:$0xff]
        %v2447 = vld [vmem:[#allocation7 + $0x8] sm:$0xff]
        %v2448 = vld [vmem:[#allocation7 + $0x10] sm:$0xff]
        %v2449 = vld [vmem:[#allocation7 + $0x18] sm:$0xff]
        %v2450 = vld [vmem:[#allocation7 + $0x20] sm:$0xff]
        %v2451 = vld [vmem:[#allocation7 + $0x28] sm:$0xff]
        %v2452 = vld [vmem:[#allocation7 + $0x30] sm:$0xff]
        %v2453 = vld [vmem:[#allocation7 + $0x38] sm:$0xff]
        %v2454 = vld [vmem:[#allocation7 + $0x40] sm:$0xff]
        %v2455 = vld [vmem:[#allocation7 + $0x48] sm:$0xff]
        %v2456 = vld [vmem:[#allocation7 + $0x50] sm:$0xff]
        %v2457 = vld [vmem:[#allocation7 + $0x58] sm:$0xff]
        %v2458 = vld [vmem:[#allocation7 + $0x60] sm:$0xff]
        %v2459 = vld [vmem:[#allocation7 + $0x68] sm:$0xff]
        %v2460 = vld [vmem:[#allocation7 + $0x70] sm:$0xff]
        %v2461 = vld [vmem:[#allocation7 + $0x78] sm:$0xff]
        %v2462 = vld [vmem:[#allocation7 + $0x80] sm:$0xff]
        %v2463 = vld [vmem:[#allocation7 + $0x88] sm:$0xff]
        %v2464 = vld [vmem:[#allocation7 + $0x90] sm:$0xff]
        %v2465 = vld [vmem:[#allocation7 + $0x98] sm:$0xff]
        %v2466 = vld [vmem:[#allocation7 + $0xa0] sm:$0xff]
        %v2467 = vld [vmem:[#allocation7 + $0xa8] sm:$0xff]
        %v2468 = vld [vmem:[#allocation7 + $0xb0] sm:$0xff]
        %v2469 = vld [vmem:[#allocation7 + $0xb8] sm:$0xff]
        %v2470 = vld [vmem:[#allocation7 + $0xc0] sm:$0xff]
        %v2471 = vld [vmem:[#allocation7 + $0xc8] sm:$0xff]
        %v2472 = vld [vmem:[#allocation7 + $0xd0] sm:$0xff]
        %v2473 = vld [vmem:[#allocation7 + $0xd8] sm:$0xff]
        %v2474 = vld [vmem:[#allocation7 + $0xe0] sm:$0xff]
        %v2475 = vld [vmem:[#allocation7 + $0xe8] sm:$0xff]
        %v2476 = vld [vmem:[#allocation7 + $0xf0] sm:$0xff]
        %v2477 = vld [vmem:[#allocation7 + $0xf8] sm:$0xff]
        %v2478 = vld [vmem:[%s6] sm:$0x3]
        %v2480 = vlaneseq
        %v2481 = vshrl.u32 %v2480, 7
        %v2482 = vsub.s32 0, %v2481
        %v2483 = vrot.slane %v2478, %v2482
        %v2484 = vlaneseq
        %v2485 = vshrl.u32 %v2484, 7
        %v2486 = vsub.s32 1, %v2485
        %v2487 = vrot.slane %v2478, %v2486
        %v2522 = vunpack.c.l.b16 %v2446
        %v2523 = vunpack.c.h.b16 %v2446
        %v2524 = vunpack.c.l.b16 %v2447
        %v2525 = vunpack.c.h.b16 %v2447
        %v2526 = vunpack.c.l.b16 %v2448
        %v2527 = vunpack.c.h.b16 %v2448
        %v2528 = vunpack.c.l.b16 %v2449
        %v2529 = vunpack.c.h.b16 %v2449
        %v2530 = vunpack.c.l.b16 %v2450
        %v2531 = vunpack.c.h.b16 %v2450
        %v2532 = vunpack.c.l.b16 %v2451
        %v2533 = vunpack.c.h.b16 %v2451
        %v2534 = vunpack.c.l.b16 %v2452
        %v2535 = vunpack.c.h.b16 %v2452
        %v2536 = vunpack.c.l.b16 %v2453
        %v2537 = vunpack.c.h.b16 %v2453
        %v2538 = vunpack.c.l.b16 %v2454
        %v2539 = vunpack.c.h.b16 %v2454
        %v2540 = vunpack.c.l.b16 %v2455
        %v2541 = vunpack.c.h.b16 %v2455
        %v2542 = vunpack.c.l.b16 %v2456
        %v2543 = vunpack.c.h.b16 %v2456
        %v2544 = vunpack.c.l.b16 %v2457
        %v2545 = vunpack.c.h.b16 %v2457
        %v2546 = vunpack.c.l.b16 %v2458
        %v2547 = vunpack.c.h.b16 %v2458
        %v2548 = vunpack.c.l.b16 %v2459
        %v2549 = vunpack.c.h.b16 %v2459
        %v2550 = vunpack.c.l.b16 %v2460
        %v2551 = vunpack.c.h.b16 %v2460
        %v2552 = vunpack.c.l.b16 %v2461
        %v2553 = vunpack.c.h.b16 %v2461
        %v2554 = vunpack.c.l.b16 %v2462
        %v2555 = vunpack.c.h.b16 %v2462
        %v2556 = vunpack.c.l.b16 %v2463
        %v2557 = vunpack.c.h.b16 %v2463
        %v2558 = vunpack.c.l.b16 %v2464
        %v2559 = vunpack.c.h.b16 %v2464
        %v2560 = vunpack.c.l.b16 %v2465
        %v2561 = vunpack.c.h.b16 %v2465
        %v2562 = vunpack.c.l.b16 %v2466
        %v2563 = vunpack.c.h.b16 %v2466
        %v2564 = vunpack.c.l.b16 %v2467
        %v2565 = vunpack.c.h.b16 %v2467
        %v2566 = vunpack.c.l.b16 %v2468
        %v2567 = vunpack.c.h.b16 %v2468
        %v2568 = vunpack.c.l.b16 %v2469
        %v2569 = vunpack.c.h.b16 %v2469
        %v2570 = vunpack.c.l.b16 %v2470
        %v2571 = vunpack.c.h.b16 %v2470
        %v2572 = vunpack.c.l.b16 %v2471
        %v2573 = vunpack.c.h.b16 %v2471
        %v2574 = vunpack.c.l.b16 %v2472
        %v2575 = vunpack.c.h.b16 %v2472
        %v2576 = vunpack.c.l.b16 %v2473
        %v2577 = vunpack.c.h.b16 %v2473
        %v2578 = vunpack.c.l.b16 %v2474
        %v2579 = vunpack.c.h.b16 %v2474
        %v2580 = vunpack.c.l.b16 %v2475
        %v2581 = vunpack.c.h.b16 %v2475
        %v2582 = vunpack.c.l.b16 %v2476
        %v2583 = vunpack.c.h.b16 %v2476
        %v2584 = vunpack.c.l.b16 %v2477
        %v2585 = vunpack.c.h.b16 %v2477
        %v2586 = vpack.c.b16 %v2524, %v2522
        %v2587 = vpack.c.b16 %v2525, %v2523
        %v2588 = vpack.c.b16 %v2528, %v2526
        %v2589 = vpack.c.b16 %v2529, %v2527
        %v2590 = vpack.c.b16 %v2532, %v2530
        %v2591 = vpack.c.b16 %v2533, %v2531
        %v2592 = vpack.c.b16 %v2536, %v2534
        %v2593 = vpack.c.b16 %v2537, %v2535
        %v2594 = vpack.c.b16 %v2540, %v2538
        %v2595 = vpack.c.b16 %v2541, %v2539
        %v2596 = vpack.c.b16 %v2544, %v2542
        %v2597 = vpack.c.b16 %v2545, %v2543
        %v2598 = vpack.c.b16 %v2548, %v2546
        %v2599 = vpack.c.b16 %v2549, %v2547
        %v2600 = vpack.c.b16 %v2552, %v2550
        %v2601 = vpack.c.b16 %v2553, %v2551
        %v2602 = vpack.c.b16 %v2556, %v2554
        %v2603 = vpack.c.b16 %v2557, %v2555
        %v2604 = vpack.c.b16 %v2560, %v2558
        %v2605 = vpack.c.b16 %v2561, %v2559
        %v2606 = vpack.c.b16 %v2564, %v2562
        %v2607 = vpack.c.b16 %v2565, %v2563
        %v2608 = vpack.c.b16 %v2568, %v2566
        %v2609 = vpack.c.b16 %v2569, %v2567
        %v2610 = vpack.c.b16 %v2572, %v2570
        %v2611 = vpack.c.b16 %v2573, %v2571
        %v2612 = vpack.c.b16 %v2576, %v2574
        %v2613 = vpack.c.b16 %v2577, %v2575
        %v2614 = vpack.c.b16 %v2580, %v2578
        %v2615 = vpack.c.b16 %v2581, %v2579
        %v2616 = vpack.c.b16 %v2584, %v2582
        %v2617 = vpack.c.b16 %v2585, %v2583
        %2650 = vmatprep.subr.bf16.mxu0 %v2601
        %2651 = vmatpush1.bf16.msra.mxu0 %v2600
        %2652 = vmatprep.subr.bf16.mxu0 %v2599
        %2653 = vmatpush1.bf16.msra.mxu0 %v2598
        %2654 = vmatprep.subr.bf16.mxu0 %v2597
        %2655 = vmatpush1.bf16.msra.mxu0 %v2596
        %2656 = vmatprep.subr.bf16.mxu0 %v2595
        %2657 = vmatpush1.bf16.msra.mxu0 %v2594
        %2658 = vmatprep.subr.bf16.mxu0 %v2593
        %2659 = vmatpush1.bf16.msra.mxu0 %v2592
        %2660 = vmatprep.subr.bf16.mxu0 %v2591
        %2661 = vmatpush1.bf16.msra.mxu0 %v2590
        %2662 = vmatprep.subr.bf16.mxu0 %v2589
        %2663 = vmatpush1.bf16.msra.mxu0 %v2588
        %2664 = vmatprep.subr.bf16.mxu0 %v2587
        %2665 = vmatpush1.bf16.msra.mxu0 %v2586
        %2666 = vmatprep.subr.bf16.mxu0 %v2617
        %2667 = vmatpush2.bf16.msra.mxu0 %v2616
        %2668 = vmatprep.subr.bf16.mxu0 %v2615
        %2669 = vmatpush2.bf16.msra.mxu0 %v2614
        %2670 = vmatprep.subr.bf16.mxu0 %v2613
        %2671 = vmatpush2.bf16.msra.mxu0 %v2612
        %2672 = vmatprep.subr.bf16.mxu0 %v2611
        %2673 = vmatpush2.bf16.msra.mxu0 %v2610
        %2674 = vmatprep.subr.bf16.mxu0 %v2609
        %2675 = vmatpush2.bf16.msra.mxu0 %v2608
        %2676 = vmatprep.subr.bf16.mxu0 %v2607
        %2677 = vmatpush2.bf16.msra.mxu0 %v2606
        %2678 = vmatprep.subr.bf16.mxu0 %v2605
        %2679 = vmatpush2.bf16.msra.mxu0 %v2604
        %2680 = vmatprep.subr.bf16.mxu0 %v2603
        %2681 = vmatpush2.bf16.msra.mxu0 %v2602
        %2682 = vmatprep.mubr.bf16.mxu0 %v2383
        %2683 = vmatmul.mubr.bf16.gmra.mxu0 %v2382
        %v2684 = vpop.f32.mrf.mxu0
        %v2685 = vadd.f32 %v2483, %v2684
        %v2686 = vpop.f32.mrf.mxu0
        %v2687 = vadd.f32 %v2487, %v2686
        %v2688 = vpop.f32.mrf.mxu0
        %v2689 = vadd.f32 %v2483, %v2688
        %v2690 = vpop.f32.mrf.mxu0
        %v2691 = vadd.f32 %v2487, %v2690
        %2692 = vmatprep.mubr.bf16.mxu0 %v2385
        %2693 = vmatmul.mubr.bf16.gmra.mxu0 %v2384
        %v2694 = vpop.f32.mrf.mxu0
        %v2695 = vadd.f32 %v2483, %v2694
        %v2696 = vpop.f32.mrf.mxu0
        %v2697 = vadd.f32 %v2487, %v2696
        %v2698 = vpop.f32.mrf.mxu0
        %v2699 = vadd.f32 %v2483, %v2698
        %v2700 = vpop.f32.mrf.mxu0
        %v2701 = vadd.f32 %v2487, %v2700
        %2702 = vmatprep.mubr.bf16.mxu0 %v2387
        %2703 = vmatmul.mubr.bf16.gmra.mxu0 %v2386
        %v2704 = vpop.f32.mrf.mxu0
        %v2705 = vadd.f32 %v2483, %v2704
        %v2706 = vpop.f32.mrf.mxu0
        %v2707 = vadd.f32 %v2487, %v2706
        %v2708 = vpop.f32.mrf.mxu0
        %v2709 = vadd.f32 %v2483, %v2708
        %v2710 = vpop.f32.mrf.mxu0
        %v2711 = vadd.f32 %v2487, %v2710
        %2712 = vmatprep.mubr.bf16.mxu0 %v2389
        %2713 = vmatmul.mubr.bf16.gmra.mxu0 %v2388
        %v2714 = vpop.f32.mrf.mxu0
        %v2715 = vadd.f32 %v2483, %v2714
        %v2716 = vpop.f32.mrf.mxu0
        %v2717 = vadd.f32 %v2487, %v2716
        %v2718 = vpop.f32.mrf.mxu0
        %v2719 = vadd.f32 %v2483, %v2718
        %v2720 = vpop.f32.mrf.mxu0
        %v2721 = vadd.f32 %v2487, %v2720
        %2722 = vmatprep.mubr.bf16.mxu0 %v2391
        %2723 = vmatmul.mubr.bf16.gmra.mxu0 %v2390
        %v2724 = vpop.f32.mrf.mxu0
        %v2725 = vadd.f32 %v2483, %v2724
        %v2726 = vpop.f32.mrf.mxu0
        %v2727 = vadd.f32 %v2487, %v2726
        %v2728 = vpop.f32.mrf.mxu0
        %v2729 = vadd.f32 %v2483, %v2728
        %v2730 = vpop.f32.mrf.mxu0
        %v2731 = vadd.f32 %v2487, %v2730
        %2732 = vmatprep.mubr.bf16.mxu0 %v2393
        %2733 = vmatmul.mubr.bf16.gmra.mxu0 %v2392
        %v2734 = vpop.f32.mrf.mxu0
        %v2735 = vadd.f32 %v2483, %v2734
        %v2736 = vpop.f32.mrf.mxu0
        %v2737 = vadd.f32 %v2487, %v2736
        %v2738 = vpop.f32.mrf.mxu0
        %v2739 = vadd.f32 %v2483, %v2738
        %v2740 = vpop.f32.mrf.mxu0
        %v2741 = vadd.f32 %v2487, %v2740
        %2742 = vmatprep.mubr.bf16.mxu0 %v2395
        %2743 = vmatmul.mubr.bf16.gmra.mxu0 %v2394
        %v2744 = vpop.f32.mrf.mxu0
        %v2745 = vadd.f32 %v2483, %v2744
        %v2746 = vpop.f32.mrf.mxu0
        %v2747 = vadd.f32 %v2487, %v2746
        %v2748 = vpop.f32.mrf.mxu0
        %v2749 = vadd.f32 %v2483, %v2748
        %v2750 = vpop.f32.mrf.mxu0
        %v2751 = vadd.f32 %v2487, %v2750
        %2752 = vmatprep.mubr.bf16.mxu0 %v2397
        %2753 = vmatmul.mubr.bf16.gmra.mxu0 %v2396
        %v2754 = vpop.f32.mrf.mxu0
        %v2755 = vadd.f32 %v2483, %v2754
        %v2756 = vpop.f32.mrf.mxu0
        %v2757 = vadd.f32 %v2487, %v2756
        %v2758 = vpop.f32.mrf.mxu0
        %v2759 = vadd.f32 %v2483, %v2758
        %v2760 = vpop.f32.mrf.mxu0
        %v2761 = vadd.f32 %v2487, %v2760
        %2762 = vmatprep.mubr.bf16.mxu0 %v2399
        %2763 = vmatmul.mubr.bf16.gmra.mxu0 %v2398
        %v2764 = vpop.f32.mrf.mxu0
        %v2765 = vadd.f32 %v2483, %v2764
        %v2766 = vpop.f32.mrf.mxu0
        %v2767 = vadd.f32 %v2487, %v2766
        %v2768 = vpop.f32.mrf.mxu0
        %v2769 = vadd.f32 %v2483, %v2768
        %v2770 = vpop.f32.mrf.mxu0
        %v2771 = vadd.f32 %v2487, %v2770
        %2772 = vmatprep.mubr.bf16.mxu0 %v2401
        %2773 = vmatmul.mubr.bf16.gmra.mxu0 %v2400
        %v2774 = vpop.f32.mrf.mxu0
        %v2775 = vadd.f32 %v2483, %v2774
        %v2776 = vpop.f32.mrf.mxu0
        %v2777 = vadd.f32 %v2487, %v2776
        %v2778 = vpop.f32.mrf.mxu0
        %v2779 = vadd.f32 %v2483, %v2778
        %v2780 = vpop.f32.mrf.mxu0
        %v2781 = vadd.f32 %v2487, %v2780
        %2782 = vmatprep.mubr.bf16.mxu0 %v2403
        %2783 = vmatmul.mubr.bf16.gmra.mxu0 %v2402
        %v2784 = vpop.f32.mrf.mxu0
        %v2785 = vadd.f32 %v2483, %v2784
        %v2786 = vpop.f32.mrf.mxu0
        %v2787 = vadd.f32 %v2487, %v2786
        %v2788 = vpop.f32.mrf.mxu0
        %v2789 = vadd.f32 %v2483, %v2788
        %v2790 = vpop.f32.mrf.mxu0
        %v2791 = vadd.f32 %v2487, %v2790
        %2792 = vmatprep.mubr.bf16.mxu0 %v2405
        %2793 = vmatmul.mubr.bf16.gmra.mxu0 %v2404
        %v2794 = vpop.f32.mrf.mxu0
        %v2795 = vadd.f32 %v2483, %v2794
        %v2796 = vpop.f32.mrf.mxu0
        %v2797 = vadd.f32 %v2487, %v2796
        %v2798 = vpop.f32.mrf.mxu0
        %v2799 = vadd.f32 %v2483, %v2798
        %v2800 = vpop.f32.mrf.mxu0
        %v2801 = vadd.f32 %v2487, %v2800
        %2802 = vmatprep.mubr.bf16.mxu0 %v2407
        %2803 = vmatmul.mubr.bf16.gmra.mxu0 %v2406
        %v2804 = vpop.f32.mrf.mxu0
        %v2805 = vadd.f32 %v2483, %v2804
        %v2806 = vpop.f32.mrf.mxu0
        %v2807 = vadd.f32 %v2487, %v2806
        %v2808 = vpop.f32.mrf.mxu0
        %v2809 = vadd.f32 %v2483, %v2808
        %v2810 = vpop.f32.mrf.mxu0
        %v2811 = vadd.f32 %v2487, %v2810
        %2812 = vmatprep.mubr.bf16.mxu0 %v2409
        %2813 = vmatmul.mubr.bf16.gmra.mxu0 %v2408
        %v2814 = vpop.f32.mrf.mxu0
        %v2815 = vadd.f32 %v2483, %v2814
        %v2816 = vpop.f32.mrf.mxu0
        %v2817 = vadd.f32 %v2487, %v2816
        %v2818 = vpop.f32.mrf.mxu0
        %v2819 = vadd.f32 %v2483, %v2818
        %v2820 = vpop.f32.mrf.mxu0
        %v2821 = vadd.f32 %v2487, %v2820
        %2822 = vmatprep.mubr.bf16.mxu0 %v2411
        %2823 = vmatmul.mubr.bf16.gmra.mxu0 %v2410
        %v2824 = vpop.f32.mrf.mxu0
        %v2825 = vadd.f32 %v2483, %v2824
        %v2826 = vpop.f32.mrf.mxu0
        %v2827 = vadd.f32 %v2487, %v2826
        %v2828 = vpop.f32.mrf.mxu0
        %v2829 = vadd.f32 %v2483, %v2828
        %v2830 = vpop.f32.mrf.mxu0
        %v2831 = vadd.f32 %v2487, %v2830
        %2832 = vmatprep.mubr.bf16.mxu0 %v2413
        %2833 = vmatmul.mubr.bf16.gmra.mxu0 %v2412
        %v2834 = vpop.f32.mrf.mxu0
        %v2835 = vadd.f32 %v2483, %v2834
        %v2836 = vpop.f32.mrf.mxu0
        %v2837 = vadd.f32 %v2487, %v2836
        %v2838 = vpop.f32.mrf.mxu0
        %v2839 = vadd.f32 %v2483, %v2838
        %v2840 = vpop.f32.mrf.mxu0
        %v2841 = vadd.f32 %v2487, %v2840
        %2842 = vmatprep.mubr.bf16.mxu0 %v2415
        %2843 = vmatmul.mubr.bf16.gmra.mxu0 %v2414
        %v2844 = vpop.f32.mrf.mxu0
        %v2845 = vadd.f32 %v2483, %v2844
        %v2846 = vpop.f32.mrf.mxu0
        %v2847 = vadd.f32 %v2487, %v2846
        %v2848 = vpop.f32.mrf.mxu0
        %v2849 = vadd.f32 %v2483, %v2848
        %v2850 = vpop.f32.mrf.mxu0
        %v2851 = vadd.f32 %v2487, %v2850
        %2852 = vmatprep.mubr.bf16.mxu0 %v2417
        %2853 = vmatmul.mubr.bf16.gmra.mxu0 %v2416
        %v2854 = vpop.f32.mrf.mxu0
        %v2855 = vadd.f32 %v2483, %v2854
        %v2856 = vpop.f32.mrf.mxu0
        %v2857 = vadd.f32 %v2487, %v2856
        %v2858 = vpop.f32.mrf.mxu0
        %v2859 = vadd.f32 %v2483, %v2858
        %v2860 = vpop.f32.mrf.mxu0
        %v2861 = vadd.f32 %v2487, %v2860
        %2862 = vmatprep.mubr.bf16.mxu0 %v2419
        %2863 = vmatmul.mubr.bf16.gmra.mxu0 %v2418
        %v2864 = vpop.f32.mrf.mxu0
        %v2865 = vadd.f32 %v2483, %v2864
        %v2866 = vpop.f32.mrf.mxu0
        %v2867 = vadd.f32 %v2487, %v2866
        %v2868 = vpop.f32.mrf.mxu0
        %v2869 = vadd.f32 %v2483, %v2868
        %v2870 = vpop.f32.mrf.mxu0
        %v2871 = vadd.f32 %v2487, %v2870
        %2872 = vmatprep.mubr.bf16.mxu0 %v2421
        %2873 = vmatmul.mubr.bf16.gmra.mxu0 %v2420
        %v2874 = vpop.f32.mrf.mxu0
        %v2875 = vadd.f32 %v2483, %v2874
        %v2876 = vpop.f32.mrf.mxu0
        %v2877 = vadd.f32 %v2487, %v2876
        %v2878 = vpop.f32.mrf.mxu0
        %v2879 = vadd.f32 %v2483, %v2878
        %v2880 = vpop.f32.mrf.mxu0
        %v2881 = vadd.f32 %v2487, %v2880
        %2882 = vmatprep.mubr.bf16.mxu0 %v2423
        %2883 = vmatmul.mubr.bf16.gmra.mxu0 %v2422
        %v2884 = vpop.f32.mrf.mxu0
        %v2885 = vadd.f32 %v2483, %v2884
        %v2886 = vpop.f32.mrf.mxu0
        %v2887 = vadd.f32 %v2487, %v2886
        %v2888 = vpop.f32.mrf.mxu0
        %v2889 = vadd.f32 %v2483, %v2888
        %v2890 = vpop.f32.mrf.mxu0
        %v2891 = vadd.f32 %v2487, %v2890
        %2892 = vmatprep.mubr.bf16.mxu0 %v2425
        %2893 = vmatmul.mubr.bf16.gmra.mxu0 %v2424
        %v2894 = vpop.f32.mrf.mxu0
        %v2895 = vadd.f32 %v2483, %v2894
        %v2896 = vpop.f32.mrf.mxu0
        %v2897 = vadd.f32 %v2487, %v2896
        %v2898 = vpop.f32.mrf.mxu0
        %v2899 = vadd.f32 %v2483, %v2898
        %v2900 = vpop.f32.mrf.mxu0
        %v2901 = vadd.f32 %v2487, %v2900
        %2902 = vmatprep.mubr.bf16.mxu0 %v2427
        %2903 = vmatmul.mubr.bf16.gmra.mxu0 %v2426
        %v2904 = vpop.f32.mrf.mxu0
        %v2905 = vadd.f32 %v2483, %v2904
        %v2906 = vpop.f32.mrf.mxu0
        %v2907 = vadd.f32 %v2487, %v2906
        %v2908 = vpop.f32.mrf.mxu0
        %v2909 = vadd.f32 %v2483, %v2908
        %v2910 = vpop.f32.mrf.mxu0
        %v2911 = vadd.f32 %v2487, %v2910
        %2912 = vmatprep.mubr.bf16.mxu0 %v2429
        %2913 = vmatmul.mubr.bf16.gmra.mxu0 %v2428
        %v2914 = vpop.f32.mrf.mxu0
        %v2915 = vadd.f32 %v2483, %v2914
        %v2916 = vpop.f32.mrf.mxu0
        %v2917 = vadd.f32 %v2487, %v2916
        %v2918 = vpop.f32.mrf.mxu0
        %v2919 = vadd.f32 %v2483, %v2918
        %v2920 = vpop.f32.mrf.mxu0
        %v2921 = vadd.f32 %v2487, %v2920
        %2922 = vmatprep.mubr.bf16.mxu0 %v2431
        %2923 = vmatmul.mubr.bf16.gmra.mxu0 %v2430
        %v2924 = vpop.f32.mrf.mxu0
        %v2925 = vadd.f32 %v2483, %v2924
        %v2926 = vpop.f32.mrf.mxu0
        %v2927 = vadd.f32 %v2487, %v2926
        %v2928 = vpop.f32.mrf.mxu0
        %v2929 = vadd.f32 %v2483, %v2928
        %v2930 = vpop.f32.mrf.mxu0
        %v2931 = vadd.f32 %v2487, %v2930
        %2932 = vmatprep.mubr.bf16.mxu0 %v2433
        %2933 = vmatmul.mubr.bf16.gmra.mxu0 %v2432
        %v2934 = vpop.f32.mrf.mxu0
        %v2935 = vadd.f32 %v2483, %v2934
        %v2936 = vpop.f32.mrf.mxu0
        %v2937 = vadd.f32 %v2487, %v2936
        %v2938 = vpop.f32.mrf.mxu0
        %v2939 = vadd.f32 %v2483, %v2938
        %v2940 = vpop.f32.mrf.mxu0
        %v2941 = vadd.f32 %v2487, %v2940
        %2942 = vmatprep.mubr.bf16.mxu0 %v2435
        %2943 = vmatmul.mubr.bf16.gmra.mxu0 %v2434
        %v2944 = vpop.f32.mrf.mxu0
        %v2945 = vadd.f32 %v2483, %v2944
        %v2946 = vpop.f32.mrf.mxu0
        %v2947 = vadd.f32 %v2487, %v2946
        %v2948 = vpop.f32.mrf.mxu0
        %v2949 = vadd.f32 %v2483, %v2948
        %v2950 = vpop.f32.mrf.mxu0
        %v2951 = vadd.f32 %v2487, %v2950
        %2952 = vmatprep.mubr.bf16.mxu0 %v2437
        %2953 = vmatmul.mubr.bf16.gmra.mxu0 %v2436
        %v2954 = vpop.f32.mrf.mxu0
        %v2955 = vadd.f32 %v2483, %v2954
        %v2956 = vpop.f32.mrf.mxu0
        %v2957 = vadd.f32 %v2487, %v2956
        %v2958 = vpop.f32.mrf.mxu0
        %v2959 = vadd.f32 %v2483, %v2958
        %v2960 = vpop.f32.mrf.mxu0
        %v2961 = vadd.f32 %v2487, %v2960
        %2962 = vmatprep.mubr.bf16.mxu0 %v2439
        %2963 = vmatmul.mubr.bf16.gmra.mxu0 %v2438
        %v2964 = vpop.f32.mrf.mxu0
        %v2965 = vadd.f32 %v2483, %v2964
        %v2966 = vpop.f32.mrf.mxu0
        %v2967 = vadd.f32 %v2487, %v2966
        %v2968 = vpop.f32.mrf.mxu0
        %v2969 = vadd.f32 %v2483, %v2968
        %v2970 = vpop.f32.mrf.mxu0
        %v2971 = vadd.f32 %v2487, %v2970
        %2972 = vmatprep.mubr.bf16.mxu0 %v2441
        %2973 = vmatmul.mubr.bf16.gmra.mxu0 %v2440
        %v2974 = vpop.f32.mrf.mxu0
        %v2975 = vadd.f32 %v2483, %v2974
        %v2976 = vpop.f32.mrf.mxu0
        %v2977 = vadd.f32 %v2487, %v2976
        %v2978 = vpop.f32.mrf.mxu0
        %v2979 = vadd.f32 %v2483, %v2978
        %v2980 = vpop.f32.mrf.mxu0
        %v2981 = vadd.f32 %v2487, %v2980
        %2982 = vmatprep.mubr.bf16.mxu0 %v2443
        %2983 = vmatmul.mubr.bf16.gmra.mxu0 %v2442
        %v2984 = vpop.f32.mrf.mxu0
        %v2985 = vadd.f32 %v2483, %v2984
        %v2986 = vpop.f32.mrf.mxu0
        %v2987 = vadd.f32 %v2487, %v2986
        %v2988 = vpop.f32.mrf.mxu0
        %v2989 = vadd.f32 %v2483, %v2988
        %v2990 = vpop.f32.mrf.mxu0
        %v2991 = vadd.f32 %v2487, %v2990
        %2992 = vmatprep.mubr.bf16.mxu0 %v2445
        %2993 = vmatmul.mubr.bf16.gmra.mxu0 %v2444
        %v2994 = vpop.f32.mrf.mxu0
        %v2995 = vadd.f32 %v2483, %v2994
        %v2996 = vpop.f32.mrf.mxu0
        %v2997 = vadd.f32 %v2487, %v2996
        %v2998 = vpop.f32.mrf.mxu0
        %v2999 = vadd.f32 %v2483, %v2998
        %v3000 = vpop.f32.mrf.mxu0
        %v3001 = vadd.f32 %v2487, %v3000
        %3002 = vdwg.mxu0
        %v3003 = vmax.f32 %v2685, 0.0
        %v3004 = vmax.f32 %v2687, 0.0
        %v3005 = vmax.f32 %v2689, 0.0
        %v3006 = vmax.f32 %v2691, 0.0
        %v3007 = vmax.f32 %v2695, 0.0
        %v3008 = vmax.f32 %v2697, 0.0
        %v3009 = vmax.f32 %v2699, 0.0
        %v3010 = vmax.f32 %v2701, 0.0
        %v3011 = vmax.f32 %v2705, 0.0
        %v3012 = vmax.f32 %v2707, 0.0
        %v3013 = vmax.f32 %v2709, 0.0
        %v3014 = vmax.f32 %v2711, 0.0
        %v3015 = vmax.f32 %v2715, 0.0
        %v3016 = vmax.f32 %v2717, 0.0
        %v3017 = vmax.f32 %v2719, 0.0
        %v3018 = vmax.f32 %v2721, 0.0
        %v3019 = vmax.f32 %v2725, 0.0
        %v3020 = vmax.f32 %v2727, 0.0
        %v3021 = vmax.f32 %v2729, 0.0
        %v3022 = vmax.f32 %v2731, 0.0
        %v3023 = vmax.f32 %v2735, 0.0
        %v3024 = vmax.f32 %v2737, 0.0
        %v3025 = vmax.f32 %v2739, 0.0
        %v3026 = vmax.f32 %v2741, 0.0
        %v3027 = vmax.f32 %v2745, 0.0
        %v3028 = vmax.f32 %v2747, 0.0
        %v3029 = vmax.f32 %v2749, 0.0
        %v3030 = vmax.f32 %v2751, 0.0
        %v3031 = vmax.f32 %v2755, 0.0
        %v3032 = vmax.f32 %v2757, 0.0
        %v3033 = vmax.f32 %v2759, 0.0
        %v3034 = vmax.f32 %v2761, 0.0
        %v3035 = vmax.f32 %v2765, 0.0
        %v3036 = vmax.f32 %v2767, 0.0
        %v3037 = vmax.f32 %v2769, 0.0
        %v3038 = vmax.f32 %v2771, 0.0
        %v3039 = vmax.f32 %v2775, 0.0
        %v3040 = vmax.f32 %v2777, 0.0
        %v3041 = vmax.f32 %v2779, 0.0
        %v3042 = vmax.f32 %v2781, 0.0
        %v3043 = vmax.f32 %v2785, 0.0
        %v3044 = vmax.f32 %v2787, 0.0
        %v3045 = vmax.f32 %v2789, 0.0
        %v3046 = vmax.f32 %v2791, 0.0
        %v3047 = vmax.f32 %v2795, 0.0
        %v3048 = vmax.f32 %v2797, 0.0
        %v3049 = vmax.f32 %v2799, 0.0
        %v3050 = vmax.f32 %v2801, 0.0
        %v3051 = vmax.f32 %v2805, 0.0
        %v3052 = vmax.f32 %v2807, 0.0
        %v3053 = vmax.f32 %v2809, 0.0
        %v3054 = vmax.f32 %v2811, 0.0
        %v3055 = vmax.f32 %v2815, 0.0
        %v3056 = vmax.f32 %v2817, 0.0
        %v3057 = vmax.f32 %v2819, 0.0
        %v3058 = vmax.f32 %v2821, 0.0
        %v3059 = vmax.f32 %v2825, 0.0
        %v3060 = vmax.f32 %v2827, 0.0
        %v3061 = vmax.f32 %v2829, 0.0
        %v3062 = vmax.f32 %v2831, 0.0
        %v3063 = vmax.f32 %v2835, 0.0
        %v3064 = vmax.f32 %v2837, 0.0
        %v3065 = vmax.f32 %v2839, 0.0
        %v3066 = vmax.f32 %v2841, 0.0
        %v3067 = vmax.f32 %v2845, 0.0
        %v3068 = vmax.f32 %v2847, 0.0
        %v3069 = vmax.f32 %v2849, 0.0
        %v3070 = vmax.f32 %v2851, 0.0
        %v3071 = vmax.f32 %v2855, 0.0
        %v3072 = vmax.f32 %v2857, 0.0
        %v3073 = vmax.f32 %v2859, 0.0
        %v3074 = vmax.f32 %v2861, 0.0
        %v3075 = vmax.f32 %v2865, 0.0
        %v3076 = vmax.f32 %v2867, 0.0
        %v3077 = vmax.f32 %v2869, 0.0
        %v3078 = vmax.f32 %v2871, 0.0
        %v3079 = vmax.f32 %v2875, 0.0
        %v3080 = vmax.f32 %v2877, 0.0
        %v3081 = vmax.f32 %v2879, 0.0
        %v3082 = vmax.f32 %v2881, 0.0
        %v3083 = vmax.f32 %v2885, 0.0
        %v3084 = vmax.f32 %v2887, 0.0
        %v3085 = vmax.f32 %v2889, 0.0
        %v3086 = vmax.f32 %v2891, 0.0
        %v3087 = vmax.f32 %v2895, 0.0
        %v3088 = vmax.f32 %v2897, 0.0
        %v3089 = vmax.f32 %v2899, 0.0
        %v3090 = vmax.f32 %v2901, 0.0
        %v3091 = vmax.f32 %v2905, 0.0
        %v3092 = vmax.f32 %v2907, 0.0
        %v3093 = vmax.f32 %v2909, 0.0
        %v3094 = vmax.f32 %v2911, 0.0
        %v3095 = vmax.f32 %v2915, 0.0
        %v3096 = vmax.f32 %v2917, 0.0
        %v3097 = vmax.f32 %v2919, 0.0
        %v3098 = vmax.f32 %v2921, 0.0
        %v3099 = vmax.f32 %v2925, 0.0
        %v3100 = vmax.f32 %v2927, 0.0
        %v3101 = vmax.f32 %v2929, 0.0
        %v3102 = vmax.f32 %v2931, 0.0
        %v3103 = vmax.f32 %v2935, 0.0
        %v3104 = vmax.f32 %v2937, 0.0
        %v3105 = vmax.f32 %v2939, 0.0
        %v3106 = vmax.f32 %v2941, 0.0
        %v3107 = vmax.f32 %v2945, 0.0
        %v3108 = vmax.f32 %v2947, 0.0
        %v3109 = vmax.f32 %v2949, 0.0
        %v3110 = vmax.f32 %v2951, 0.0
        %v3111 = vmax.f32 %v2955, 0.0
        %v3112 = vmax.f32 %v2957, 0.0
        %v3113 = vmax.f32 %v2959, 0.0
        %v3114 = vmax.f32 %v2961, 0.0
        %v3115 = vmax.f32 %v2965, 0.0
        %v3116 = vmax.f32 %v2967, 0.0
        %v3117 = vmax.f32 %v2969, 0.0
        %v3118 = vmax.f32 %v2971, 0.0
        %v3119 = vmax.f32 %v2975, 0.0
        %v3120 = vmax.f32 %v2977, 0.0
        %v3121 = vmax.f32 %v2979, 0.0
        %v3122 = vmax.f32 %v2981, 0.0
        %v3123 = vmax.f32 %v2985, 0.0
        %v3124 = vmax.f32 %v2987, 0.0
        %v3125 = vmax.f32 %v2989, 0.0
        %v3126 = vmax.f32 %v2991, 0.0
        %v3127 = vmax.f32 %v2995, 0.0
        %v3128 = vmax.f32 %v2997, 0.0
        %v3129 = vmax.f32 %v2999, 0.0
        %v3130 = vmax.f32 %v3001, 0.0
        %v3131 = vpack.c.bf16 %v3005, %v3003
        %v3132 = vpack.c.bf16 %v3006, %v3004
        %v3133 = vpack.c.bf16 %v3009, %v3007
        %v3134 = vpack.c.bf16 %v3010, %v3008
        %v3135 = vpack.c.bf16 %v3013, %v3011
        %v3136 = vpack.c.bf16 %v3014, %v3012
        %v3137 = vpack.c.bf16 %v3017, %v3015
        %v3138 = vpack.c.bf16 %v3018, %v3016
        %v3139 = vpack.c.bf16 %v3021, %v3019
        %v3140 = vpack.c.bf16 %v3022, %v3020
        %v3141 = vpack.c.bf16 %v3025, %v3023
        %v3142 = vpack.c.bf16 %v3026, %v3024
        %v3143 = vpack.c.bf16 %v3029, %v3027
        %v3144 = vpack.c.bf16 %v3030, %v3028
        %v3145 = vpack.c.bf16 %v3033, %v3031
        %v3146 = vpack.c.bf16 %v3034, %v3032
        %v3147 = vpack.c.bf16 %v3037, %v3035
        %v3148 = vpack.c.bf16 %v3038, %v3036
        %v3149 = vpack.c.bf16 %v3041, %v3039
        %v3150 = vpack.c.bf16 %v3042, %v3040
        %v3151 = vpack.c.bf16 %v3045, %v3043
        %v3152 = vpack.c.bf16 %v3046, %v3044
        %v3153 = vpack.c.bf16 %v3049, %v3047
        %v3154 = vpack.c.bf16 %v3050, %v3048
        %v3155 = vpack.c.bf16 %v3053, %v3051
        %v3156 = vpack.c.bf16 %v3054, %v3052
        %v3157 = vpack.c.bf16 %v3057, %v3055
        %v3158 = vpack.c.bf16 %v3058, %v3056
        %v3159 = vpack.c.bf16 %v3061, %v3059
        %v3160 = vpack.c.bf16 %v3062, %v3060
        %v3161 = vpack.c.bf16 %v3065, %v3063
        %v3162 = vpack.c.bf16 %v3066, %v3064
        %v3163 = vpack.c.bf16 %v3069, %v3067
        %v3164 = vpack.c.bf16 %v3070, %v3068
        %v3165 = vpack.c.bf16 %v3073, %v3071
        %v3166 = vpack.c.bf16 %v3074, %v3072
        %v3167 = vpack.c.bf16 %v3077, %v3075
        %v3168 = vpack.c.bf16 %v3078, %v3076
        %v3169 = vpack.c.bf16 %v3081, %v3079
        %v3170 = vpack.c.bf16 %v3082, %v3080
        %v3171 = vpack.c.bf16 %v3085, %v3083
        %v3172 = vpack.c.bf16 %v3086, %v3084
        %v3173 = vpack.c.bf16 %v3089, %v3087
        %v3174 = vpack.c.bf16 %v3090, %v3088
        %v3175 = vpack.c.bf16 %v3093, %v3091
        %v3176 = vpack.c.bf16 %v3094, %v3092
        %v3177 = vpack.c.bf16 %v3097, %v3095
        %v3178 = vpack.c.bf16 %v3098, %v3096
        %v3179 = vpack.c.bf16 %v3101, %v3099
        %v3180 = vpack.c.bf16 %v3102, %v3100
        %v3181 = vpack.c.bf16 %v3105, %v3103
        %v3182 = vpack.c.bf16 %v3106, %v3104
        %v3183 = vpack.c.bf16 %v3109, %v3107
        %v3184 = vpack.c.bf16 %v3110, %v3108
        %v3185 = vpack.c.bf16 %v3113, %v3111
        %v3186 = vpack.c.bf16 %v3114, %v3112
        %v3187 = vpack.c.bf16 %v3117, %v3115
        %v3188 = vpack.c.bf16 %v3118, %v3116
        %v3189 = vpack.c.bf16 %v3121, %v3119
        %v3190 = vpack.c.bf16 %v3122, %v3120
        %v3191 = vpack.c.bf16 %v3125, %v3123
        %v3192 = vpack.c.bf16 %v3126, %v3124
        %v3193 = vpack.c.bf16 %v3129, %v3127
        %v3194 = vpack.c.bf16 %v3130, %v3128
        %v3195 = vld [vmem:[#allocation9] sm:$0xff]
        %v3196 = vld [vmem:[#allocation9 + $0x8] sm:$0xff]
        %v3197 = vld [vmem:[#allocation9 + $0x10] sm:$0xff]
        %v3198 = vld [vmem:[#allocation9 + $0x18] sm:$0xff]
        %v3199 = vld [vmem:[#allocation9 + $0x20] sm:$0xff]
        %v3200 = vld [vmem:[#allocation9 + $0x28] sm:$0xff]
        %v3201 = vld [vmem:[#allocation9 + $0x30] sm:$0xff]
        %v3202 = vld [vmem:[#allocation9 + $0x38] sm:$0xff]
        %v3203 = vld [vmem:[#allocation9 + $0x40] sm:$0xff]
        %v3204 = vld [vmem:[#allocation9 + $0x48] sm:$0xff]
        %v3205 = vld [vmem:[#allocation9 + $0x50] sm:$0xff]
        %v3206 = vld [vmem:[#allocation9 + $0x58] sm:$0xff]
        %v3207 = vld [vmem:[#allocation9 + $0x60] sm:$0xff]
        %v3208 = vld [vmem:[#allocation9 + $0x68] sm:$0xff]
        %v3209 = vld [vmem:[#allocation9 + $0x70] sm:$0xff]
        %v3210 = vld [vmem:[#allocation9 + $0x78] sm:$0xff]
        %v3211 = vld [vmem:[#allocation9 + $0x80] sm:$0xff]
        %v3212 = vld [vmem:[#allocation9 + $0x88] sm:$0xff]
        %v3213 = vld [vmem:[#allocation9 + $0x90] sm:$0xff]
        %v3214 = vld [vmem:[#allocation9 + $0x98] sm:$0xff]
        %v3215 = vld [vmem:[#allocation9 + $0xa0] sm:$0xff]
        %v3216 = vld [vmem:[#allocation9 + $0xa8] sm:$0xff]
        %v3217 = vld [vmem:[#allocation9 + $0xb0] sm:$0xff]
        %v3218 = vld [vmem:[#allocation9 + $0xb8] sm:$0xff]
        %v3219 = vld [vmem:[#allocation9 + $0xc0] sm:$0xff]
        %v3220 = vld [vmem:[#allocation9 + $0xc8] sm:$0xff]
        %v3221 = vld [vmem:[#allocation9 + $0xd0] sm:$0xff]
        %v3222 = vld [vmem:[#allocation9 + $0xd8] sm:$0xff]
        %v3223 = vld [vmem:[#allocation9 + $0xe0] sm:$0xff]
        %v3224 = vld [vmem:[#allocation9 + $0xe8] sm:$0xff]
        %v3225 = vld [vmem:[#allocation9 + $0xf0] sm:$0xff]
        %v3226 = vld [vmem:[#allocation9 + $0xf8] sm:$0xff]
        %v3227 = vld [vmem:[%s8] sm:$0x3]
        %v3229 = vlaneseq
        %v3230 = vshrl.u32 %v3229, 7
        %v3231 = vsub.s32 0, %v3230
        %v3232 = vrot.slane %v3227, %v3231
        %v3233 = vlaneseq
        %v3234 = vshrl.u32 %v3233, 7
        %v3235 = vsub.s32 1, %v3234
        %v3236 = vrot.slane %v3227, %v3235
        %v3271 = vunpack.c.l.b16 %v3195
        %v3272 = vunpack.c.h.b16 %v3195
        %v3273 = vunpack.c.l.b16 %v3196
        %v3274 = vunpack.c.h.b16 %v3196
        %v3275 = vunpack.c.l.b16 %v3197
        %v3276 = vunpack.c.h.b16 %v3197
        %v3277 = vunpack.c.l.b16 %v3198
        %v3278 = vunpack.c.h.b16 %v3198
        %v3279 = vunpack.c.l.b16 %v3199
        %v3280 = vunpack.c.h.b16 %v3199
        %v3281 = vunpack.c.l.b16 %v3200
        %v3282 = vunpack.c.h.b16 %v3200
        %v3283 = vunpack.c.l.b16 %v3201
        %v3284 = vunpack.c.h.b16 %v3201
        %v3285 = vunpack.c.l.b16 %v3202
        %v3286 = vunpack.c.h.b16 %v3202
        %v3287 = vunpack.c.l.b16 %v3203
        %v3288 = vunpack.c.h.b16 %v3203
        %v3289 = vunpack.c.l.b16 %v3204
        %v3290 = vunpack.c.h.b16 %v3204
        %v3291 = vunpack.c.l.b16 %v3205
        %v3292 = vunpack.c.h.b16 %v3205
        %v3293 = vunpack.c.l.b16 %v3206
        %v3294 = vunpack.c.h.b16 %v3206
        %v3295 = vunpack.c.l.b16 %v3207
        %v3296 = vunpack.c.h.b16 %v3207
        %v3297 = vunpack.c.l.b16 %v3208
        %v3298 = vunpack.c.h.b16 %v3208
        %v3299 = vunpack.c.l.b16 %v3209
        %v3300 = vunpack.c.h.b16 %v3209
        %v3301 = vunpack.c.l.b16 %v3210
        %v3302 = vunpack.c.h.b16 %v3210
        %v3303 = vunpack.c.l.b16 %v3211
        %v3304 = vunpack.c.h.b16 %v3211
        %v3305 = vunpack.c.l.b16 %v3212
        %v3306 = vunpack.c.h.b16 %v3212
        %v3307 = vunpack.c.l.b16 %v3213
        %v3308 = vunpack.c.h.b16 %v3213
        %v3309 = vunpack.c.l.b16 %v3214
        %v3310 = vunpack.c.h.b16 %v3214
        %v3311 = vunpack.c.l.b16 %v3215
        %v3312 = vunpack.c.h.b16 %v3215
        %v3313 = vunpack.c.l.b16 %v3216
        %v3314 = vunpack.c.h.b16 %v3216
        %v3315 = vunpack.c.l.b16 %v3217
        %v3316 = vunpack.c.h.b16 %v3217
        %v3317 = vunpack.c.l.b16 %v3218
        %v3318 = vunpack.c.h.b16 %v3218
        %v3319 = vunpack.c.l.b16 %v3219
        %v3320 = vunpack.c.h.b16 %v3219
        %v3321 = vunpack.c.l.b16 %v3220
        %v3322 = vunpack.c.h.b16 %v3220
        %v3323 = vunpack.c.l.b16 %v3221
        %v3324 = vunpack.c.h.b16 %v3221
        %v3325 = vunpack.c.l.b16 %v3222
        %v3326 = vunpack.c.h.b16 %v3222
        %v3327 = vunpack.c.l.b16 %v3223
        %v3328 = vunpack.c.h.b16 %v3223
        %v3329 = vunpack.c.l.b16 %v3224
        %v3330 = vunpack.c.h.b16 %v3224
        %v3331 = vunpack.c.l.b16 %v3225
        %v3332 = vunpack.c.h.b16 %v3225
        %v3333 = vunpack.c.l.b16 %v3226
        %v3334 = vunpack.c.h.b16 %v3226
        %v3335 = vpack.c.b16 %v3273, %v3271
        %v3336 = vpack.c.b16 %v3274, %v3272
        %v3337 = vpack.c.b16 %v3277, %v3275
        %v3338 = vpack.c.b16 %v3278, %v3276
        %v3339 = vpack.c.b16 %v3281, %v3279
        %v3340 = vpack.c.b16 %v3282, %v3280
        %v3341 = vpack.c.b16 %v3285, %v3283
        %v3342 = vpack.c.b16 %v3286, %v3284
        %v3343 = vpack.c.b16 %v3289, %v3287
        %v3344 = vpack.c.b16 %v3290, %v3288
        %v3345 = vpack.c.b16 %v3293, %v3291
        %v3346 = vpack.c.b16 %v3294, %v3292
        %v3347 = vpack.c.b16 %v3297, %v3295
        %v3348 = vpack.c.b16 %v3298, %v3296
        %v3349 = vpack.c.b16 %v3301, %v3299
        %v3350 = vpack.c.b16 %v3302, %v3300
        %v3351 = vpack.c.b16 %v3305, %v3303
        %v3352 = vpack.c.b16 %v3306, %v3304
        %v3353 = vpack.c.b16 %v3309, %v3307
        %v3354 = vpack.c.b16 %v3310, %v3308
        %v3355 = vpack.c.b16 %v3313, %v3311
        %v3356 = vpack.c.b16 %v3314, %v3312
        %v3357 = vpack.c.b16 %v3317, %v3315
        %v3358 = vpack.c.b16 %v3318, %v3316
        %v3359 = vpack.c.b16 %v3321, %v3319
        %v3360 = vpack.c.b16 %v3322, %v3320
        %v3361 = vpack.c.b16 %v3325, %v3323
        %v3362 = vpack.c.b16 %v3326, %v3324
        %v3363 = vpack.c.b16 %v3329, %v3327
        %v3364 = vpack.c.b16 %v3330, %v3328
        %v3365 = vpack.c.b16 %v3333, %v3331
        %v3366 = vpack.c.b16 %v3334, %v3332
        %3399 = vmatprep.subr.bf16.mxu0 %v3350
        %3400 = vmatpush1.bf16.msra.mxu0 %v3349
        %3401 = vmatprep.subr.bf16.mxu0 %v3348
        %3402 = vmatpush1.bf16.msra.mxu0 %v3347
        %3403 = vmatprep.subr.bf16.mxu0 %v3346
        %3404 = vmatpush1.bf16.msra.mxu0 %v3345
        %3405 = vmatprep.subr.bf16.mxu0 %v3344
        %3406 = vmatpush1.bf16.msra.mxu0 %v3343
        %3407 = vmatprep.subr.bf16.mxu0 %v3342
        %3408 = vmatpush1.bf16.msra.mxu0 %v3341
        %3409 = vmatprep.subr.bf16.mxu0 %v3340
        %3410 = vmatpush1.bf16.msra.mxu0 %v3339
        %3411 = vmatprep.subr.bf16.mxu0 %v3338
        %3412 = vmatpush1.bf16.msra.mxu0 %v3337
        %3413 = vmatprep.subr.bf16.mxu0 %v3336
        %3414 = vmatpush1.bf16.msra.mxu0 %v3335
        %3415 = vmatprep.subr.bf16.mxu0 %v3366
        %3416 = vmatpush2.bf16.msra.mxu0 %v3365
        %3417 = vmatprep.subr.bf16.mxu0 %v3364
        %3418 = vmatpush2.bf16.msra.mxu0 %v3363
        %3419 = vmatprep.subr.bf16.mxu0 %v3362
        %3420 = vmatpush2.bf16.msra.mxu0 %v3361
        %3421 = vmatprep.subr.bf16.mxu0 %v3360
        %3422 = vmatpush2.bf16.msra.mxu0 %v3359
        %3423 = vmatprep.subr.bf16.mxu0 %v3358
        %3424 = vmatpush2.bf16.msra.mxu0 %v3357
        %3425 = vmatprep.subr.bf16.mxu0 %v3356
        %3426 = vmatpush2.bf16.msra.mxu0 %v3355
        %3427 = vmatprep.subr.bf16.mxu0 %v3354
        %3428 = vmatpush2.bf16.msra.mxu0 %v3353
        %3429 = vmatprep.subr.bf16.mxu0 %v3352
        %3430 = vmatpush2.bf16.msra.mxu0 %v3351
        %3431 = vmatprep.mubr.bf16.mxu0 %v3132
        %3432 = vmatmul.mubr.bf16.gmra.mxu0 %v3131
        %v3433 = vpop.f32.mrf.mxu0
        %v3434 = vadd.f32 %v3232, %v3433
        %v3435 = vpop.f32.mrf.mxu0
        %v3436 = vadd.f32 %v3236, %v3435
        %v3437 = vpop.f32.mrf.mxu0
        %v3438 = vadd.f32 %v3232, %v3437
        %v3439 = vpop.f32.mrf.mxu0
        %v3440 = vadd.f32 %v3236, %v3439
        %3441 = vmatprep.mubr.bf16.mxu0 %v3134
        %3442 = vmatmul.mubr.bf16.gmra.mxu0 %v3133
        %v3443 = vpop.f32.mrf.mxu0
        %v3444 = vadd.f32 %v3232, %v3443
        %v3445 = vpop.f32.mrf.mxu0
        %v3446 = vadd.f32 %v3236, %v3445
        %v3447 = vpop.f32.mrf.mxu0
        %v3448 = vadd.f32 %v3232, %v3447
        %v3449 = vpop.f32.mrf.mxu0
        %v3450 = vadd.f32 %v3236, %v3449
        %3451 = vmatprep.mubr.bf16.mxu0 %v3136
        %3452 = vmatmul.mubr.bf16.gmra.mxu0 %v3135
        %v3453 = vpop.f32.mrf.mxu0
        %v3454 = vadd.f32 %v3232, %v3453
        %v3455 = vpop.f32.mrf.mxu0
        %v3456 = vadd.f32 %v3236, %v3455
        %v3457 = vpop.f32.mrf.mxu0
        %v3458 = vadd.f32 %v3232, %v3457
        %v3459 = vpop.f32.mrf.mxu0
        %v3460 = vadd.f32 %v3236, %v3459
        %3461 = vmatprep.mubr.bf16.mxu0 %v3138
        %3462 = vmatmul.mubr.bf16.gmra.mxu0 %v3137
        %v3463 = vpop.f32.mrf.mxu0
        %v3464 = vadd.f32 %v3232, %v3463
        %v3465 = vpop.f32.mrf.mxu0
        %v3466 = vadd.f32 %v3236, %v3465
        %v3467 = vpop.f32.mrf.mxu0
        %v3468 = vadd.f32 %v3232, %v3467
        %v3469 = vpop.f32.mrf.mxu0
        %v3470 = vadd.f32 %v3236, %v3469
        %3471 = vmatprep.mubr.bf16.mxu0 %v3140
        %3472 = vmatmul.mubr.bf16.gmra.mxu0 %v3139
        %v3473 = vpop.f32.mrf.mxu0
        %v3474 = vadd.f32 %v3232, %v3473
        %v3475 = vpop.f32.mrf.mxu0
        %v3476 = vadd.f32 %v3236, %v3475
        %v3477 = vpop.f32.mrf.mxu0
        %v3478 = vadd.f32 %v3232, %v3477
        %v3479 = vpop.f32.mrf.mxu0
        %v3480 = vadd.f32 %v3236, %v3479
        %3481 = vmatprep.mubr.bf16.mxu0 %v3142
        %3482 = vmatmul.mubr.bf16.gmra.mxu0 %v3141
        %v3483 = vpop.f32.mrf.mxu0
        %v3484 = vadd.f32 %v3232, %v3483
        %v3485 = vpop.f32.mrf.mxu0
        %v3486 = vadd.f32 %v3236, %v3485
        %v3487 = vpop.f32.mrf.mxu0
        %v3488 = vadd.f32 %v3232, %v3487
        %v3489 = vpop.f32.mrf.mxu0
        %v3490 = vadd.f32 %v3236, %v3489
        %3491 = vmatprep.mubr.bf16.mxu0 %v3144
        %3492 = vmatmul.mubr.bf16.gmra.mxu0 %v3143
        %v3493 = vpop.f32.mrf.mxu0
        %v3494 = vadd.f32 %v3232, %v3493
        %v3495 = vpop.f32.mrf.mxu0
        %v3496 = vadd.f32 %v3236, %v3495
        %v3497 = vpop.f32.mrf.mxu0
        %v3498 = vadd.f32 %v3232, %v3497
        %v3499 = vpop.f32.mrf.mxu0
        %v3500 = vadd.f32 %v3236, %v3499
        %3501 = vmatprep.mubr.bf16.mxu0 %v3146
        %3502 = vmatmul.mubr.bf16.gmra.mxu0 %v3145
        %v3503 = vpop.f32.mrf.mxu0
        %v3504 = vadd.f32 %v3232, %v3503
        %v3505 = vpop.f32.mrf.mxu0
        %v3506 = vadd.f32 %v3236, %v3505
        %v3507 = vpop.f32.mrf.mxu0
        %v3508 = vadd.f32 %v3232, %v3507
        %v3509 = vpop.f32.mrf.mxu0
        %v3510 = vadd.f32 %v3236, %v3509
        %3511 = vmatprep.mubr.bf16.mxu0 %v3148
        %3512 = vmatmul.mubr.bf16.gmra.mxu0 %v3147
        %v3513 = vpop.f32.mrf.mxu0
        %v3514 = vadd.f32 %v3232, %v3513
        %v3515 = vpop.f32.mrf.mxu0
        %v3516 = vadd.f32 %v3236, %v3515
        %v3517 = vpop.f32.mrf.mxu0
        %v3518 = vadd.f32 %v3232, %v3517
        %v3519 = vpop.f32.mrf.mxu0
        %v3520 = vadd.f32 %v3236, %v3519
        %3521 = vmatprep.mubr.bf16.mxu0 %v3150
        %3522 = vmatmul.mubr.bf16.gmra.mxu0 %v3149
        %v3523 = vpop.f32.mrf.mxu0
        %v3524 = vadd.f32 %v3232, %v3523
        %v3525 = vpop.f32.mrf.mxu0
        %v3526 = vadd.f32 %v3236, %v3525
        %v3527 = vpop.f32.mrf.mxu0
        %v3528 = vadd.f32 %v3232, %v3527
        %v3529 = vpop.f32.mrf.mxu0
        %v3530 = vadd.f32 %v3236, %v3529
        %3531 = vmatprep.mubr.bf16.mxu0 %v3152
        %3532 = vmatmul.mubr.bf16.gmra.mxu0 %v3151
        %v3533 = vpop.f32.mrf.mxu0
        %v3534 = vadd.f32 %v3232, %v3533
        %v3535 = vpop.f32.mrf.mxu0
        %v3536 = vadd.f32 %v3236, %v3535
        %v3537 = vpop.f32.mrf.mxu0
        %v3538 = vadd.f32 %v3232, %v3537
        %v3539 = vpop.f32.mrf.mxu0
        %v3540 = vadd.f32 %v3236, %v3539
        %3541 = vmatprep.mubr.bf16.mxu0 %v3154
        %3542 = vmatmul.mubr.bf16.gmra.mxu0 %v3153
        %v3543 = vpop.f32.mrf.mxu0
        %v3544 = vadd.f32 %v3232, %v3543
        %v3545 = vpop.f32.mrf.mxu0
        %v3546 = vadd.f32 %v3236, %v3545
        %v3547 = vpop.f32.mrf.mxu0
        %v3548 = vadd.f32 %v3232, %v3547
        %v3549 = vpop.f32.mrf.mxu0
        %v3550 = vadd.f32 %v3236, %v3549
        %3551 = vmatprep.mubr.bf16.mxu0 %v3156
        %3552 = vmatmul.mubr.bf16.gmra.mxu0 %v3155
        %v3553 = vpop.f32.mrf.mxu0
        %v3554 = vadd.f32 %v3232, %v3553
        %v3555 = vpop.f32.mrf.mxu0
        %v3556 = vadd.f32 %v3236, %v3555
        %v3557 = vpop.f32.mrf.mxu0
        %v3558 = vadd.f32 %v3232, %v3557
        %v3559 = vpop.f32.mrf.mxu0
        %v3560 = vadd.f32 %v3236, %v3559
        %3561 = vmatprep.mubr.bf16.mxu0 %v3158
        %3562 = vmatmul.mubr.bf16.gmra.mxu0 %v3157
        %v3563 = vpop.f32.mrf.mxu0
        %v3564 = vadd.f32 %v3232, %v3563
        %v3565 = vpop.f32.mrf.mxu0
        %v3566 = vadd.f32 %v3236, %v3565
        %v3567 = vpop.f32.mrf.mxu0
        %v3568 = vadd.f32 %v3232, %v3567
        %v3569 = vpop.f32.mrf.mxu0
        %v3570 = vadd.f32 %v3236, %v3569
        %3571 = vmatprep.mubr.bf16.mxu0 %v3160
        %3572 = vmatmul.mubr.bf16.gmra.mxu0 %v3159
        %v3573 = vpop.f32.mrf.mxu0
        %v3574 = vadd.f32 %v3232, %v3573
        %v3575 = vpop.f32.mrf.mxu0
        %v3576 = vadd.f32 %v3236, %v3575
        %v3577 = vpop.f32.mrf.mxu0
        %v3578 = vadd.f32 %v3232, %v3577
        %v3579 = vpop.f32.mrf.mxu0
        %v3580 = vadd.f32 %v3236, %v3579
        %3581 = vmatprep.mubr.bf16.mxu0 %v3162
        %3582 = vmatmul.mubr.bf16.gmra.mxu0 %v3161
        %v3583 = vpop.f32.mrf.mxu0
        %v3584 = vadd.f32 %v3232, %v3583
        %v3585 = vpop.f32.mrf.mxu0
        %v3586 = vadd.f32 %v3236, %v3585
        %v3587 = vpop.f32.mrf.mxu0
        %v3588 = vadd.f32 %v3232, %v3587
        %v3589 = vpop.f32.mrf.mxu0
        %v3590 = vadd.f32 %v3236, %v3589
        %3591 = vmatprep.mubr.bf16.mxu0 %v3164
        %3592 = vmatmul.mubr.bf16.gmra.mxu0 %v3163
        %v3593 = vpop.f32.mrf.mxu0
        %v3594 = vadd.f32 %v3232, %v3593
        %v3595 = vpop.f32.mrf.mxu0
        %v3596 = vadd.f32 %v3236, %v3595
        %v3597 = vpop.f32.mrf.mxu0
        %v3598 = vadd.f32 %v3232, %v3597
        %v3599 = vpop.f32.mrf.mxu0
        %v3600 = vadd.f32 %v3236, %v3599
        %3601 = vmatprep.mubr.bf16.mxu0 %v3166
        %3602 = vmatmul.mubr.bf16.gmra.mxu0 %v3165
        %v3603 = vpop.f32.mrf.mxu0
        %v3604 = vadd.f32 %v3232, %v3603
        %v3605 = vpop.f32.mrf.mxu0
        %v3606 = vadd.f32 %v3236, %v3605
        %v3607 = vpop.f32.mrf.mxu0
        %v3608 = vadd.f32 %v3232, %v3607
        %v3609 = vpop.f32.mrf.mxu0
        %v3610 = vadd.f32 %v3236, %v3609
        %3611 = vmatprep.mubr.bf16.mxu0 %v3168
        %3612 = vmatmul.mubr.bf16.gmra.mxu0 %v3167
        %v3613 = vpop.f32.mrf.mxu0
        %v3614 = vadd.f32 %v3232, %v3613
        %v3615 = vpop.f32.mrf.mxu0
        %v3616 = vadd.f32 %v3236, %v3615
        %v3617 = vpop.f32.mrf.mxu0
        %v3618 = vadd.f32 %v3232, %v3617
        %v3619 = vpop.f32.mrf.mxu0
        %v3620 = vadd.f32 %v3236, %v3619
        %3621 = vmatprep.mubr.bf16.mxu0 %v3170
        %3622 = vmatmul.mubr.bf16.gmra.mxu0 %v3169
        %v3623 = vpop.f32.mrf.mxu0
        %v3624 = vadd.f32 %v3232, %v3623
        %v3625 = vpop.f32.mrf.mxu0
        %v3626 = vadd.f32 %v3236, %v3625
        %v3627 = vpop.f32.mrf.mxu0
        %v3628 = vadd.f32 %v3232, %v3627
        %v3629 = vpop.f32.mrf.mxu0
        %v3630 = vadd.f32 %v3236, %v3629
        %3631 = vmatprep.mubr.bf16.mxu0 %v3172
        %3632 = vmatmul.mubr.bf16.gmra.mxu0 %v3171
        %v3633 = vpop.f32.mrf.mxu0
        %v3634 = vadd.f32 %v3232, %v3633
        %v3635 = vpop.f32.mrf.mxu0
        %v3636 = vadd.f32 %v3236, %v3635
        %v3637 = vpop.f32.mrf.mxu0
        %v3638 = vadd.f32 %v3232, %v3637
        %v3639 = vpop.f32.mrf.mxu0
        %v3640 = vadd.f32 %v3236, %v3639
        %3641 = vmatprep.mubr.bf16.mxu0 %v3174
        %3642 = vmatmul.mubr.bf16.gmra.mxu0 %v3173
        %v3643 = vpop.f32.mrf.mxu0
        %v3644 = vadd.f32 %v3232, %v3643
        %v3645 = vpop.f32.mrf.mxu0
        %v3646 = vadd.f32 %v3236, %v3645
        %v3647 = vpop.f32.mrf.mxu0
        %v3648 = vadd.f32 %v3232, %v3647
        %v3649 = vpop.f32.mrf.mxu0
        %v3650 = vadd.f32 %v3236, %v3649
        %3651 = vmatprep.mubr.bf16.mxu0 %v3176
        %3652 = vmatmul.mubr.bf16.gmra.mxu0 %v3175
        %v3653 = vpop.f32.mrf.mxu0
        %v3654 = vadd.f32 %v3232, %v3653
        %v3655 = vpop.f32.mrf.mxu0
        %v3656 = vadd.f32 %v3236, %v3655
        %v3657 = vpop.f32.mrf.mxu0
        %v3658 = vadd.f32 %v3232, %v3657
        %v3659 = vpop.f32.mrf.mxu0
        %v3660 = vadd.f32 %v3236, %v3659
        %3661 = vmatprep.mubr.bf16.mxu0 %v3178
        %3662 = vmatmul.mubr.bf16.gmra.mxu0 %v3177
        %v3663 = vpop.f32.mrf.mxu0
        %v3664 = vadd.f32 %v3232, %v3663
        %v3665 = vpop.f32.mrf.mxu0
        %v3666 = vadd.f32 %v3236, %v3665
        %v3667 = vpop.f32.mrf.mxu0
        %v3668 = vadd.f32 %v3232, %v3667
        %v3669 = vpop.f32.mrf.mxu0
        %v3670 = vadd.f32 %v3236, %v3669
        %3671 = vmatprep.mubr.bf16.mxu0 %v3180
        %3672 = vmatmul.mubr.bf16.gmra.mxu0 %v3179
        %v3673 = vpop.f32.mrf.mxu0
        %v3674 = vadd.f32 %v3232, %v3673
        %v3675 = vpop.f32.mrf.mxu0
        %v3676 = vadd.f32 %v3236, %v3675
        %v3677 = vpop.f32.mrf.mxu0
        %v3678 = vadd.f32 %v3232, %v3677
        %v3679 = vpop.f32.mrf.mxu0
        %v3680 = vadd.f32 %v3236, %v3679
        %3681 = vmatprep.mubr.bf16.mxu0 %v3182
        %3682 = vmatmul.mubr.bf16.gmra.mxu0 %v3181
        %v3683 = vpop.f32.mrf.mxu0
        %v3684 = vadd.f32 %v3232, %v3683
        %v3685 = vpop.f32.mrf.mxu0
        %v3686 = vadd.f32 %v3236, %v3685
        %v3687 = vpop.f32.mrf.mxu0
        %v3688 = vadd.f32 %v3232, %v3687
        %v3689 = vpop.f32.mrf.mxu0
        %v3690 = vadd.f32 %v3236, %v3689
        %3691 = vmatprep.mubr.bf16.mxu0 %v3184
        %3692 = vmatmul.mubr.bf16.gmra.mxu0 %v3183
        %v3693 = vpop.f32.mrf.mxu0
        %v3694 = vadd.f32 %v3232, %v3693
        %v3695 = vpop.f32.mrf.mxu0
        %v3696 = vadd.f32 %v3236, %v3695
        %v3697 = vpop.f32.mrf.mxu0
        %v3698 = vadd.f32 %v3232, %v3697
        %v3699 = vpop.f32.mrf.mxu0
        %v3700 = vadd.f32 %v3236, %v3699
        %3701 = vmatprep.mubr.bf16.mxu0 %v3186
        %3702 = vmatmul.mubr.bf16.gmra.mxu0 %v3185
        %v3703 = vpop.f32.mrf.mxu0
        %v3704 = vadd.f32 %v3232, %v3703
        %v3705 = vpop.f32.mrf.mxu0
        %v3706 = vadd.f32 %v3236, %v3705
        %v3707 = vpop.f32.mrf.mxu0
        %v3708 = vadd.f32 %v3232, %v3707
        %v3709 = vpop.f32.mrf.mxu0
        %v3710 = vadd.f32 %v3236, %v3709
        %3711 = vmatprep.mubr.bf16.mxu0 %v3188
        %3712 = vmatmul.mubr.bf16.gmra.mxu0 %v3187
        %v3713 = vpop.f32.mrf.mxu0
        %v3714 = vadd.f32 %v3232, %v3713
        %v3715 = vpop.f32.mrf.mxu0
        %v3716 = vadd.f32 %v3236, %v3715
        %v3717 = vpop.f32.mrf.mxu0
        %v3718 = vadd.f32 %v3232, %v3717
        %v3719 = vpop.f32.mrf.mxu0
        %v3720 = vadd.f32 %v3236, %v3719
        %3721 = vmatprep.mubr.bf16.mxu0 %v3190
        %3722 = vmatmul.mubr.bf16.gmra.mxu0 %v3189
        %v3723 = vpop.f32.mrf.mxu0
        %v3724 = vadd.f32 %v3232, %v3723
        %v3725 = vpop.f32.mrf.mxu0
        %v3726 = vadd.f32 %v3236, %v3725
        %v3727 = vpop.f32.mrf.mxu0
        %v3728 = vadd.f32 %v3232, %v3727
        %v3729 = vpop.f32.mrf.mxu0
        %v3730 = vadd.f32 %v3236, %v3729
        %3731 = vmatprep.mubr.bf16.mxu0 %v3192
        %3732 = vmatmul.mubr.bf16.gmra.mxu0 %v3191
        %v3733 = vpop.f32.mrf.mxu0
        %v3734 = vadd.f32 %v3232, %v3733
        %v3735 = vpop.f32.mrf.mxu0
        %v3736 = vadd.f32 %v3236, %v3735
        %v3737 = vpop.f32.mrf.mxu0
        %v3738 = vadd.f32 %v3232, %v3737
        %v3739 = vpop.f32.mrf.mxu0
        %v3740 = vadd.f32 %v3236, %v3739
        %3741 = vmatprep.mubr.bf16.mxu0 %v3194
        %3742 = vmatmul.mubr.bf16.gmra.mxu0 %v3193
        %v3743 = vpop.f32.mrf.mxu0
        %v3744 = vadd.f32 %v3232, %v3743
        %v3745 = vpop.f32.mrf.mxu0
        %v3746 = vadd.f32 %v3236, %v3745
        %v3747 = vpop.f32.mrf.mxu0
        %v3748 = vadd.f32 %v3232, %v3747
        %v3749 = vpop.f32.mrf.mxu0
        %v3750 = vadd.f32 %v3236, %v3749
        %3751 = vdwg.mxu0
        %v3752 = vmax.f32 %v3434, 0.0
        %v3753 = vmax.f32 %v3436, 0.0
        %v3754 = vmax.f32 %v3438, 0.0
        %v3755 = vmax.f32 %v3440, 0.0
        %v3756 = vmax.f32 %v3444, 0.0
        %v3757 = vmax.f32 %v3446, 0.0
        %v3758 = vmax.f32 %v3448, 0.0
        %v3759 = vmax.f32 %v3450, 0.0
        %v3760 = vmax.f32 %v3454, 0.0
        %v3761 = vmax.f32 %v3456, 0.0
        %v3762 = vmax.f32 %v3458, 0.0
        %v3763 = vmax.f32 %v3460, 0.0
        %v3764 = vmax.f32 %v3464, 0.0
        %v3765 = vmax.f32 %v3466, 0.0
        %v3766 = vmax.f32 %v3468, 0.0
        %v3767 = vmax.f32 %v3470, 0.0
        %v3768 = vmax.f32 %v3474, 0.0
        %v3769 = vmax.f32 %v3476, 0.0
        %v3770 = vmax.f32 %v3478, 0.0
        %v3771 = vmax.f32 %v3480, 0.0
        %v3772 = vmax.f32 %v3484, 0.0
        %v3773 = vmax.f32 %v3486, 0.0
        %v3774 = vmax.f32 %v3488, 0.0
        %v3775 = vmax.f32 %v3490, 0.0
        %v3776 = vmax.f32 %v3494, 0.0
        %v3777 = vmax.f32 %v3496, 0.0
        %v3778 = vmax.f32 %v3498, 0.0
        %v3779 = vmax.f32 %v3500, 0.0
        %v3780 = vmax.f32 %v3504, 0.0
        %v3781 = vmax.f32 %v3506, 0.0
        %v3782 = vmax.f32 %v3508, 0.0
        %v3783 = vmax.f32 %v3510, 0.0
        %v3784 = vmax.f32 %v3514, 0.0
        %v3785 = vmax.f32 %v3516, 0.0
        %v3786 = vmax.f32 %v3518, 0.0
        %v3787 = vmax.f32 %v3520, 0.0
        %v3788 = vmax.f32 %v3524, 0.0
        %v3789 = vmax.f32 %v3526, 0.0
        %v3790 = vmax.f32 %v3528, 0.0
        %v3791 = vmax.f32 %v3530, 0.0
        %v3792 = vmax.f32 %v3534, 0.0
        %v3793 = vmax.f32 %v3536, 0.0
        %v3794 = vmax.f32 %v3538, 0.0
        %v3795 = vmax.f32 %v3540, 0.0
        %v3796 = vmax.f32 %v3544, 0.0
        %v3797 = vmax.f32 %v3546, 0.0
        %v3798 = vmax.f32 %v3548, 0.0
        %v3799 = vmax.f32 %v3550, 0.0
        %v3800 = vmax.f32 %v3554, 0.0
        %v3801 = vmax.f32 %v3556, 0.0
        %v3802 = vmax.f32 %v3558, 0.0
        %v3803 = vmax.f32 %v3560, 0.0
        %v3804 = vmax.f32 %v3564, 0.0
        %v3805 = vmax.f32 %v3566, 0.0
        %v3806 = vmax.f32 %v3568, 0.0
        %v3807 = vmax.f32 %v3570, 0.0
        %v3808 = vmax.f32 %v3574, 0.0
        %v3809 = vmax.f32 %v3576, 0.0
        %v3810 = vmax.f32 %v3578, 0.0
        %v3811 = vmax.f32 %v3580, 0.0
        %v3812 = vmax.f32 %v3584, 0.0
        %v3813 = vmax.f32 %v3586, 0.0
        %v3814 = vmax.f32 %v3588, 0.0
        %v3815 = vmax.f32 %v3590, 0.0
        %v3816 = vmax.f32 %v3594, 0.0
        %v3817 = vmax.f32 %v3596, 0.0
        %v3818 = vmax.f32 %v3598, 0.0
        %v3819 = vmax.f32 %v3600, 0.0
        %v3820 = vmax.f32 %v3604, 0.0
        %v3821 = vmax.f32 %v3606, 0.0
        %v3822 = vmax.f32 %v3608, 0.0
        %v3823 = vmax.f32 %v3610, 0.0
        %v3824 = vmax.f32 %v3614, 0.0
        %v3825 = vmax.f32 %v3616, 0.0
        %v3826 = vmax.f32 %v3618, 0.0
        %v3827 = vmax.f32 %v3620, 0.0
        %v3828 = vmax.f32 %v3624, 0.0
        %v3829 = vmax.f32 %v3626, 0.0
        %v3830 = vmax.f32 %v3628, 0.0
        %v3831 = vmax.f32 %v3630, 0.0
        %v3832 = vmax.f32 %v3634, 0.0
        %v3833 = vmax.f32 %v3636, 0.0
        %v3834 = vmax.f32 %v3638, 0.0
        %v3835 = vmax.f32 %v3640, 0.0
        %v3836 = vmax.f32 %v3644, 0.0
        %v3837 = vmax.f32 %v3646, 0.0
        %v3838 = vmax.f32 %v3648, 0.0
        %v3839 = vmax.f32 %v3650, 0.0
        %v3840 = vmax.f32 %v3654, 0.0
        %v3841 = vmax.f32 %v3656, 0.0
        %v3842 = vmax.f32 %v3658, 0.0
        %v3843 = vmax.f32 %v3660, 0.0
        %v3844 = vmax.f32 %v3664, 0.0
        %v3845 = vmax.f32 %v3666, 0.0
        %v3846 = vmax.f32 %v3668, 0.0
        %v3847 = vmax.f32 %v3670, 0.0
        %v3848 = vmax.f32 %v3674, 0.0
        %v3849 = vmax.f32 %v3676, 0.0
        %v3850 = vmax.f32 %v3678, 0.0
        %v3851 = vmax.f32 %v3680, 0.0
        %v3852 = vmax.f32 %v3684, 0.0
        %v3853 = vmax.f32 %v3686, 0.0
        %v3854 = vmax.f32 %v3688, 0.0
        %v3855 = vmax.f32 %v3690, 0.0
        %v3856 = vmax.f32 %v3694, 0.0
        %v3857 = vmax.f32 %v3696, 0.0
        %v3858 = vmax.f32 %v3698, 0.0
        %v3859 = vmax.f32 %v3700, 0.0
        %v3860 = vmax.f32 %v3704, 0.0
        %v3861 = vmax.f32 %v3706, 0.0
        %v3862 = vmax.f32 %v3708, 0.0
        %v3863 = vmax.f32 %v3710, 0.0
        %v3864 = vmax.f32 %v3714, 0.0
        %v3865 = vmax.f32 %v3716, 0.0
        %v3866 = vmax.f32 %v3718, 0.0
        %v3867 = vmax.f32 %v3720, 0.0
        %v3868 = vmax.f32 %v3724, 0.0
        %v3869 = vmax.f32 %v3726, 0.0
        %v3870 = vmax.f32 %v3728, 0.0
        %v3871 = vmax.f32 %v3730, 0.0
        %v3872 = vmax.f32 %v3734, 0.0
        %v3873 = vmax.f32 %v3736, 0.0
        %v3874 = vmax.f32 %v3738, 0.0
        %v3875 = vmax.f32 %v3740, 0.0
        %v3876 = vmax.f32 %v3744, 0.0
        %v3877 = vmax.f32 %v3746, 0.0
        %v3878 = vmax.f32 %v3748, 0.0
        %v3879 = vmax.f32 %v3750, 0.0
        %v3880 = vld [vmem:[#allocation10] sm:$0xff]
        %v3881 = vld [vmem:[#allocation10 + $0x8] sm:$0xff]
        %v3882 = vld [vmem:[#allocation10 + $0x10] sm:$0xff]
        %v3883 = vld [vmem:[#allocation10 + $0x18] sm:$0xff]
        %v3884 = vld [vmem:[#allocation10 + $0x20] sm:$0xff]
        %v3885 = vld [vmem:[#allocation10 + $0x28] sm:$0xff]
        %v3886 = vld [vmem:[#allocation10 + $0x30] sm:$0xff]
        %v3887 = vld [vmem:[#allocation10 + $0x38] sm:$0xff]
        %v3888 = vld [vmem:[#allocation10 + $0x40] sm:$0xff]
        %v3889 = vld [vmem:[#allocation10 + $0x48] sm:$0xff]
        %v3890 = vld [vmem:[#allocation10 + $0x50] sm:$0xff]
        %v3891 = vld [vmem:[#allocation10 + $0x58] sm:$0xff]
        %v3892 = vld [vmem:[#allocation10 + $0x60] sm:$0xff]
        %v3893 = vld [vmem:[#allocation10 + $0x68] sm:$0xff]
        %v3894 = vld [vmem:[#allocation10 + $0x70] sm:$0xff]
        %v3895 = vld [vmem:[#allocation10 + $0x78] sm:$0xff]
        %v3896 = vpack.c.bf16 %v3754, %v3752
        %v3897 = vpack.c.bf16 %v3755, %v3753
        %v3898 = vpack.c.bf16 %v3758, %v3756
        %v3899 = vpack.c.bf16 %v3759, %v3757
        %v3900 = vpack.c.bf16 %v3762, %v3760
        %v3901 = vpack.c.bf16 %v3763, %v3761
        %v3902 = vpack.c.bf16 %v3766, %v3764
        %v3903 = vpack.c.bf16 %v3767, %v3765
        %v3904 = vpack.c.bf16 %v3770, %v3768
        %v3905 = vpack.c.bf16 %v3771, %v3769
        %v3906 = vpack.c.bf16 %v3774, %v3772
        %v3907 = vpack.c.bf16 %v3775, %v3773
        %v3908 = vpack.c.bf16 %v3778, %v3776
        %v3909 = vpack.c.bf16 %v3779, %v3777
        %v3910 = vpack.c.bf16 %v3782, %v3780
        %v3911 = vpack.c.bf16 %v3783, %v3781
        %v3912 = vpack.c.bf16 %v3786, %v3784
        %v3913 = vpack.c.bf16 %v3787, %v3785
        %v3914 = vpack.c.bf16 %v3790, %v3788
        %v3915 = vpack.c.bf16 %v3791, %v3789
        %v3916 = vpack.c.bf16 %v3794, %v3792
        %v3917 = vpack.c.bf16 %v3795, %v3793
        %v3918 = vpack.c.bf16 %v3798, %v3796
        %v3919 = vpack.c.bf16 %v3799, %v3797
        %v3920 = vpack.c.bf16 %v3802, %v3800
        %v3921 = vpack.c.bf16 %v3803, %v3801
        %v3922 = vpack.c.bf16 %v3806, %v3804
        %v3923 = vpack.c.bf16 %v3807, %v3805
        %v3924 = vpack.c.bf16 %v3810, %v3808
        %v3925 = vpack.c.bf16 %v3811, %v3809
        %v3926 = vpack.c.bf16 %v3814, %v3812
        %v3927 = vpack.c.bf16 %v3815, %v3813
        %v3928 = vpack.c.bf16 %v3818, %v3816
        %v3929 = vpack.c.bf16 %v3819, %v3817
        %v3930 = vpack.c.bf16 %v3822, %v3820
        %v3931 = vpack.c.bf16 %v3823, %v3821
        %v3932 = vpack.c.bf16 %v3826, %v3824
        %v3933 = vpack.c.bf16 %v3827, %v3825
        %v3934 = vpack.c.bf16 %v3830, %v3828
        %v3935 = vpack.c.bf16 %v3831, %v3829
        %v3936 = vpack.c.bf16 %v3834, %v3832
        %v3937 = vpack.c.bf16 %v3835, %v3833
        %v3938 = vpack.c.bf16 %v3838, %v3836
        %v3939 = vpack.c.bf16 %v3839, %v3837
        %v3940 = vpack.c.bf16 %v3842, %v3840
        %v3941 = vpack.c.bf16 %v3843, %v3841
        %v3942 = vpack.c.bf16 %v3846, %v3844
        %v3943 = vpack.c.bf16 %v3847, %v3845
        %v3944 = vpack.c.bf16 %v3850, %v3848
        %v3945 = vpack.c.bf16 %v3851, %v3849
        %v3946 = vpack.c.bf16 %v3854, %v3852
        %v3947 = vpack.c.bf16 %v3855, %v3853
        %v3948 = vpack.c.bf16 %v3858, %v3856
        %v3949 = vpack.c.bf16 %v3859, %v3857
        %v3950 = vpack.c.bf16 %v3862, %v3860
        %v3951 = vpack.c.bf16 %v3863, %v3861
        %v3952 = vpack.c.bf16 %v3866, %v3864
        %v3953 = vpack.c.bf16 %v3867, %v3865
        %v3954 = vpack.c.bf16 %v3870, %v3868
        %v3955 = vpack.c.bf16 %v3871, %v3869
        %v3956 = vpack.c.bf16 %v3874, %v3872
        %v3957 = vpack.c.bf16 %v3875, %v3873
        %v3958 = vpack.c.bf16 %v3878, %v3876
        %v3959 = vpack.c.bf16 %v3879, %v3877
        %v3960 = vld [vmem:[#allocation12] sm:$0xff]
        %v3961 = vld [vmem:[#allocation12 + $0x8] sm:$0xff]
        %v3962 = vld [vmem:[#allocation12 + $0x10] sm:$0xff]
        %v3963 = vld [vmem:[#allocation12 + $0x18] sm:$0xff]
        %v3964 = vld [vmem:[#allocation12 + $0x20] sm:$0xff]
        %v3965 = vld [vmem:[#allocation12 + $0x28] sm:$0xff]
        %v3966 = vld [vmem:[#allocation12 + $0x30] sm:$0xff]
        %v3967 = vld [vmem:[#allocation12 + $0x38] sm:$0xff]
        %v3968 = vld [vmem:[#allocation12 + $0x40] sm:$0xff]
        %v3969 = vld [vmem:[#allocation12 + $0x48] sm:$0xff]
        %v3970 = vld [vmem:[#allocation12 + $0x50] sm:$0xff]
        %v3971 = vld [vmem:[#allocation12 + $0x58] sm:$0xff]
        %v3972 = vld [vmem:[#allocation12 + $0x60] sm:$0xff]
        %v3973 = vld [vmem:[#allocation12 + $0x68] sm:$0xff]
        %v3974 = vld [vmem:[#allocation12 + $0x70] sm:$0xff]
        %v3975 = vld [vmem:[#allocation12 + $0x78] sm:$0xff]
        %v3976 = vld [vmem:[#allocation12 + $0x80] sm:$0xff]
        %v3977 = vld [vmem:[#allocation12 + $0x88] sm:$0xff]
        %v3978 = vld [vmem:[#allocation12 + $0x90] sm:$0xff]
        %v3979 = vld [vmem:[#allocation12 + $0x98] sm:$0xff]
        %v3980 = vld [vmem:[#allocation12 + $0xa0] sm:$0xff]
        %v3981 = vld [vmem:[#allocation12 + $0xa8] sm:$0xff]
        %v3982 = vld [vmem:[#allocation12 + $0xb0] sm:$0xff]
        %v3983 = vld [vmem:[#allocation12 + $0xb8] sm:$0xff]
        %v3984 = vld [vmem:[#allocation12 + $0xc0] sm:$0xff]
        %v3985 = vld [vmem:[#allocation12 + $0xc8] sm:$0xff]
        %v3986 = vld [vmem:[#allocation12 + $0xd0] sm:$0xff]
        %v3987 = vld [vmem:[#allocation12 + $0xd8] sm:$0xff]
        %v3988 = vld [vmem:[#allocation12 + $0xe0] sm:$0xff]
        %v3989 = vld [vmem:[#allocation12 + $0xe8] sm:$0xff]
        %v3990 = vld [vmem:[#allocation12 + $0xf0] sm:$0xff]
        %v3991 = vld [vmem:[#allocation12 + $0xf8] sm:$0xff]
        %v4024 = vunpack.c.l.b16 %v3960
        %v4025 = vunpack.c.h.b16 %v3960
        %v4026 = vunpack.c.l.b16 %v3961
        %v4027 = vunpack.c.h.b16 %v3961
        %v4028 = vunpack.c.l.b16 %v3962
        %v4029 = vunpack.c.h.b16 %v3962
        %v4030 = vunpack.c.l.b16 %v3963
        %v4031 = vunpack.c.h.b16 %v3963
        %v4032 = vunpack.c.l.b16 %v3964
        %v4033 = vunpack.c.h.b16 %v3964
        %v4034 = vunpack.c.l.b16 %v3965
        %v4035 = vunpack.c.h.b16 %v3965
        %v4036 = vunpack.c.l.b16 %v3966
        %v4037 = vunpack.c.h.b16 %v3966
        %v4038 = vunpack.c.l.b16 %v3967
        %v4039 = vunpack.c.h.b16 %v3967
        %v4040 = vunpack.c.l.b16 %v3968
        %v4041 = vunpack.c.h.b16 %v3968
        %v4042 = vunpack.c.l.b16 %v3969
        %v4043 = vunpack.c.h.b16 %v3969
        %v4044 = vunpack.c.l.b16 %v3970
        %v4045 = vunpack.c.h.b16 %v3970
        %v4046 = vunpack.c.l.b16 %v3971
        %v4047 = vunpack.c.h.b16 %v3971
        %v4048 = vunpack.c.l.b16 %v3972
        %v4049 = vunpack.c.h.b16 %v3972
        %v4050 = vunpack.c.l.b16 %v3973
        %v4051 = vunpack.c.h.b16 %v3973
        %v4052 = vunpack.c.l.b16 %v3974
        %v4053 = vunpack.c.h.b16 %v3974
        %v4054 = vunpack.c.l.b16 %v3975
        %v4055 = vunpack.c.h.b16 %v3975
        %v4056 = vunpack.c.l.b16 %v3976
        %v4057 = vunpack.c.h.b16 %v3976
        %v4058 = vunpack.c.l.b16 %v3977
        %v4059 = vunpack.c.h.b16 %v3977
        %v4060 = vunpack.c.l.b16 %v3978
        %v4061 = vunpack.c.h.b16 %v3978
        %v4062 = vunpack.c.l.b16 %v3979
        %v4063 = vunpack.c.h.b16 %v3979
        %v4064 = vunpack.c.l.b16 %v3980
        %v4065 = vunpack.c.h.b16 %v3980
        %v4066 = vunpack.c.l.b16 %v3981
        %v4067 = vunpack.c.h.b16 %v3981
        %v4068 = vunpack.c.l.b16 %v3982
        %v4069 = vunpack.c.h.b16 %v3982
        %v4070 = vunpack.c.l.b16 %v3983
        %v4071 = vunpack.c.h.b16 %v3983
        %v4072 = vunpack.c.l.b16 %v3984
        %v4073 = vunpack.c.h.b16 %v3984
        %v4074 = vunpack.c.l.b16 %v3985
        %v4075 = vunpack.c.h.b16 %v3985
        %v4076 = vunpack.c.l.b16 %v3986
        %v4077 = vunpack.c.h.b16 %v3986
        %v4078 = vunpack.c.l.b16 %v3987
        %v4079 = vunpack.c.h.b16 %v3987
        %v4080 = vunpack.c.l.b16 %v3988
        %v4081 = vunpack.c.h.b16 %v3988
        %v4082 = vunpack.c.l.b16 %v3989
        %v4083 = vunpack.c.h.b16 %v3989
        %v4084 = vunpack.c.l.b16 %v3990
        %v4085 = vunpack.c.h.b16 %v3990
        %v4086 = vunpack.c.l.b16 %v3991
        %v4087 = vunpack.c.h.b16 %v3991
        %v4088 = vpack.c.b16 %v4026, %v4024
        %v4089 = vpack.c.b16 %v4027, %v4025
        %v4090 = vpack.c.b16 %v4030, %v4028
        %v4091 = vpack.c.b16 %v4031, %v4029
        %v4092 = vpack.c.b16 %v4034, %v4032
        %v4093 = vpack.c.b16 %v4035, %v4033
        %v4094 = vpack.c.b16 %v4038, %v4036
        %v4095 = vpack.c.b16 %v4039, %v4037
        %v4096 = vpack.c.b16 %v4042, %v4040
        %v4097 = vpack.c.b16 %v4043, %v4041
        %v4098 = vpack.c.b16 %v4046, %v4044
        %v4099 = vpack.c.b16 %v4047, %v4045
        %v4100 = vpack.c.b16 %v4050, %v4048
        %v4101 = vpack.c.b16 %v4051, %v4049
        %v4102 = vpack.c.b16 %v4054, %v4052
        %v4103 = vpack.c.b16 %v4055, %v4053
        %v4104 = vpack.c.b16 %v4058, %v4056
        %v4105 = vpack.c.b16 %v4059, %v4057
        %v4106 = vpack.c.b16 %v4062, %v4060
        %v4107 = vpack.c.b16 %v4063, %v4061
        %v4108 = vpack.c.b16 %v4066, %v4064
        %v4109 = vpack.c.b16 %v4067, %v4065
        %v4110 = vpack.c.b16 %v4070, %v4068
        %v4111 = vpack.c.b16 %v4071, %v4069
        %v4112 = vpack.c.b16 %v4074, %v4072
        %v4113 = vpack.c.b16 %v4075, %v4073
        %v4114 = vpack.c.b16 %v4078, %v4076
        %v4115 = vpack.c.b16 %v4079, %v4077
        %v4116 = vpack.c.b16 %v4082, %v4080
        %v4117 = vpack.c.b16 %v4083, %v4081
        %v4118 = vpack.c.b16 %v4086, %v4084
        %v4119 = vpack.c.b16 %v4087, %v4085
        %4152 = vmatprep.subr.bf16.mxu0 %v4103
        %4153 = vmatpush1.bf16.msra.mxu0 %v4102
        %4154 = vmatprep.subr.bf16.mxu0 %v4101
        %4155 = vmatpush1.bf16.msra.mxu0 %v4100
        %4156 = vmatprep.subr.bf16.mxu0 %v4099
        %4157 = vmatpush1.bf16.msra.mxu0 %v4098
        %4158 = vmatprep.subr.bf16.mxu0 %v4097
        %4159 = vmatpush1.bf16.msra.mxu0 %v4096
        %4160 = vmatprep.subr.bf16.mxu0 %v4095
        %4161 = vmatpush1.bf16.msra.mxu0 %v4094
        %4162 = vmatprep.subr.bf16.mxu0 %v4093
        %4163 = vmatpush1.bf16.msra.mxu0 %v4092
        %4164 = vmatprep.subr.bf16.mxu0 %v4091
        %4165 = vmatpush1.bf16.msra.mxu0 %v4090
        %4166 = vmatprep.subr.bf16.mxu0 %v4089
        %4167 = vmatpush1.bf16.msra.mxu0 %v4088
        %4168 = vmatprep.subr.bf16.mxu0 %v4119
        %4169 = vmatpush2.bf16.msra.mxu0 %v4118
        %4170 = vmatprep.subr.bf16.mxu0 %v4117
        %4171 = vmatpush2.bf16.msra.mxu0 %v4116
        %4172 = vmatprep.subr.bf16.mxu0 %v4115
        %4173 = vmatpush2.bf16.msra.mxu0 %v4114
        %4174 = vmatprep.subr.bf16.mxu0 %v4113
        %4175 = vmatpush2.bf16.msra.mxu0 %v4112
        %4176 = vmatprep.subr.bf16.mxu0 %v4111
        %4177 = vmatpush2.bf16.msra.mxu0 %v4110
        %4178 = vmatprep.subr.bf16.mxu0 %v4109
        %4179 = vmatpush2.bf16.msra.mxu0 %v4108
        %4180 = vmatprep.subr.bf16.mxu0 %v4107
        %4181 = vmatpush2.bf16.msra.mxu0 %v4106
        %4182 = vmatprep.subr.bf16.mxu0 %v4105
        %4183 = vmatpush2.bf16.msra.mxu0 %v4104
        %4184 = vmatprep.mubr.bf16.mxu0 %v3897
        %4185 = vmatmul.mubr.bf16.gmra.mxu0 %v3896
        %v4186 = vpop.f32.mrf.mxu0
        %v4187 = vadd.f32 0.0, %v4186
        %v4188 = vpop.f32.mrf.mxu0
        %v4189 = vadd.f32 0.0, %v4188
        %v4190 = vpop.f32.mrf.mxu0
        %v4191 = vadd.f32 0.0, %v4190
        %v4192 = vpop.f32.mrf.mxu0
        %v4193 = vadd.f32 0.0, %v4192
        %4194 = vmatprep.mubr.bf16.mxu0 %v3899
        %4195 = vmatmul.mubr.bf16.gmra.mxu0 %v3898
        %v4196 = vpop.f32.mrf.mxu0
        %v4197 = vadd.f32 0.0, %v4196
        %v4198 = vpop.f32.mrf.mxu0
        %v4199 = vadd.f32 0.0, %v4198
        %v4200 = vpop.f32.mrf.mxu0
        %v4201 = vadd.f32 0.0, %v4200
        %v4202 = vpop.f32.mrf.mxu0
        %v4203 = vadd.f32 0.0, %v4202
        %4204 = vmatprep.mubr.bf16.mxu0 %v3901
        %4205 = vmatmul.mubr.bf16.gmra.mxu0 %v3900
        %v4206 = vpop.f32.mrf.mxu0
        %v4207 = vadd.f32 0.0, %v4206
        %v4208 = vpop.f32.mrf.mxu0
        %v4209 = vadd.f32 0.0, %v4208
        %v4210 = vpop.f32.mrf.mxu0
        %v4211 = vadd.f32 0.0, %v4210
        %v4212 = vpop.f32.mrf.mxu0
        %v4213 = vadd.f32 0.0, %v4212
        %4214 = vmatprep.mubr.bf16.mxu0 %v3903
        %4215 = vmatmul.mubr.bf16.gmra.mxu0 %v3902
        %v4216 = vpop.f32.mrf.mxu0
        %v4217 = vadd.f32 0.0, %v4216
        %v4218 = vpop.f32.mrf.mxu0
        %v4219 = vadd.f32 0.0, %v4218
        %v4220 = vpop.f32.mrf.mxu0
        %v4221 = vadd.f32 0.0, %v4220
        %v4222 = vpop.f32.mrf.mxu0
        %v4223 = vadd.f32 0.0, %v4222
        %4224 = vmatprep.mubr.bf16.mxu0 %v3905
        %4225 = vmatmul.mubr.bf16.gmra.mxu0 %v3904
        %v4226 = vpop.f32.mrf.mxu0
        %v4227 = vadd.f32 0.0, %v4226
        %v4228 = vpop.f32.mrf.mxu0
        %v4229 = vadd.f32 0.0, %v4228
        %v4230 = vpop.f32.mrf.mxu0
        %v4231 = vadd.f32 0.0, %v4230
        %v4232 = vpop.f32.mrf.mxu0
        %v4233 = vadd.f32 0.0, %v4232
        %4234 = vmatprep.mubr.bf16.mxu0 %v3907
        %4235 = vmatmul.mubr.bf16.gmra.mxu0 %v3906
        %v4236 = vpop.f32.mrf.mxu0
        %v4237 = vadd.f32 0.0, %v4236
        %v4238 = vpop.f32.mrf.mxu0
        %v4239 = vadd.f32 0.0, %v4238
        %v4240 = vpop.f32.mrf.mxu0
        %v4241 = vadd.f32 0.0, %v4240
        %v4242 = vpop.f32.mrf.mxu0
        %v4243 = vadd.f32 0.0, %v4242
        %4244 = vmatprep.mubr.bf16.mxu0 %v3909
        %4245 = vmatmul.mubr.bf16.gmra.mxu0 %v3908
        %v4246 = vpop.f32.mrf.mxu0
        %v4247 = vadd.f32 0.0, %v4246
        %v4248 = vpop.f32.mrf.mxu0
        %v4249 = vadd.f32 0.0, %v4248
        %v4250 = vpop.f32.mrf.mxu0
        %v4251 = vadd.f32 0.0, %v4250
        %v4252 = vpop.f32.mrf.mxu0
        %v4253 = vadd.f32 0.0, %v4252
        %4254 = vmatprep.mubr.bf16.mxu0 %v3911
        %4255 = vmatmul.mubr.bf16.gmra.mxu0 %v3910
        %v4256 = vpop.f32.mrf.mxu0
        %v4257 = vadd.f32 0.0, %v4256
        %v4258 = vpop.f32.mrf.mxu0
        %v4259 = vadd.f32 0.0, %v4258
        %v4260 = vpop.f32.mrf.mxu0
        %v4261 = vadd.f32 0.0, %v4260
        %v4262 = vpop.f32.mrf.mxu0
        %v4263 = vadd.f32 0.0, %v4262
        %4264 = vmatprep.mubr.bf16.mxu0 %v3913
        %4265 = vmatmul.mubr.bf16.gmra.mxu0 %v3912
        %v4266 = vpop.f32.mrf.mxu0
        %v4267 = vadd.f32 0.0, %v4266
        %v4268 = vpop.f32.mrf.mxu0
        %v4269 = vadd.f32 0.0, %v4268
        %v4270 = vpop.f32.mrf.mxu0
        %v4271 = vadd.f32 0.0, %v4270
        %v4272 = vpop.f32.mrf.mxu0
        %v4273 = vadd.f32 0.0, %v4272
        %4274 = vmatprep.mubr.bf16.mxu0 %v3915
        %4275 = vmatmul.mubr.bf16.gmra.mxu0 %v3914
        %v4276 = vpop.f32.mrf.mxu0
        %v4277 = vadd.f32 0.0, %v4276
        %v4278 = vpop.f32.mrf.mxu0
        %v4279 = vadd.f32 0.0, %v4278
        %v4280 = vpop.f32.mrf.mxu0
        %v4281 = vadd.f32 0.0, %v4280
        %v4282 = vpop.f32.mrf.mxu0
        %v4283 = vadd.f32 0.0, %v4282
        %4284 = vmatprep.mubr.bf16.mxu0 %v3917
        %4285 = vmatmul.mubr.bf16.gmra.mxu0 %v3916
        %v4286 = vpop.f32.mrf.mxu0
        %v4287 = vadd.f32 0.0, %v4286
        %v4288 = vpop.f32.mrf.mxu0
        %v4289 = vadd.f32 0.0, %v4288
        %v4290 = vpop.f32.mrf.mxu0
        %v4291 = vadd.f32 0.0, %v4290
        %v4292 = vpop.f32.mrf.mxu0
        %v4293 = vadd.f32 0.0, %v4292
        %4294 = vmatprep.mubr.bf16.mxu0 %v3919
        %4295 = vmatmul.mubr.bf16.gmra.mxu0 %v3918
        %v4296 = vpop.f32.mrf.mxu0
        %v4297 = vadd.f32 0.0, %v4296
        %v4298 = vpop.f32.mrf.mxu0
        %v4299 = vadd.f32 0.0, %v4298
        %v4300 = vpop.f32.mrf.mxu0
        %v4301 = vadd.f32 0.0, %v4300
        %v4302 = vpop.f32.mrf.mxu0
        %v4303 = vadd.f32 0.0, %v4302
        %4304 = vmatprep.mubr.bf16.mxu0 %v3921
        %4305 = vmatmul.mubr.bf16.gmra.mxu0 %v3920
        %v4306 = vpop.f32.mrf.mxu0
        %v4307 = vadd.f32 0.0, %v4306
        %v4308 = vpop.f32.mrf.mxu0
        %v4309 = vadd.f32 0.0, %v4308
        %v4310 = vpop.f32.mrf.mxu0
        %v4311 = vadd.f32 0.0, %v4310
        %v4312 = vpop.f32.mrf.mxu0
        %v4313 = vadd.f32 0.0, %v4312
        %4314 = vmatprep.mubr.bf16.mxu0 %v3923
        %4315 = vmatmul.mubr.bf16.gmra.mxu0 %v3922
        %v4316 = vpop.f32.mrf.mxu0
        %v4317 = vadd.f32 0.0, %v4316
        %v4318 = vpop.f32.mrf.mxu0
        %v4319 = vadd.f32 0.0, %v4318
        %v4320 = vpop.f32.mrf.mxu0
        %v4321 = vadd.f32 0.0, %v4320
        %v4322 = vpop.f32.mrf.mxu0
        %v4323 = vadd.f32 0.0, %v4322
        %4324 = vmatprep.mubr.bf16.mxu0 %v3925
        %4325 = vmatmul.mubr.bf16.gmra.mxu0 %v3924
        %v4326 = vpop.f32.mrf.mxu0
        %v4327 = vadd.f32 0.0, %v4326
        %v4328 = vpop.f32.mrf.mxu0
        %v4329 = vadd.f32 0.0, %v4328
        %v4330 = vpop.f32.mrf.mxu0
        %v4331 = vadd.f32 0.0, %v4330
        %v4332 = vpop.f32.mrf.mxu0
        %v4333 = vadd.f32 0.0, %v4332
        %4334 = vmatprep.mubr.bf16.mxu0 %v3927
        %4335 = vmatmul.mubr.bf16.gmra.mxu0 %v3926
        %v4336 = vpop.f32.mrf.mxu0
        %v4337 = vadd.f32 0.0, %v4336
        %v4338 = vpop.f32.mrf.mxu0
        %v4339 = vadd.f32 0.0, %v4338
        %v4340 = vpop.f32.mrf.mxu0
        %v4341 = vadd.f32 0.0, %v4340
        %v4342 = vpop.f32.mrf.mxu0
        %v4343 = vadd.f32 0.0, %v4342
        %4344 = vmatprep.mubr.bf16.mxu0 %v3929
        %4345 = vmatmul.mubr.bf16.gmra.mxu0 %v3928
        %v4346 = vpop.f32.mrf.mxu0
        %v4347 = vadd.f32 0.0, %v4346
        %v4348 = vpop.f32.mrf.mxu0
        %v4349 = vadd.f32 0.0, %v4348
        %v4350 = vpop.f32.mrf.mxu0
        %v4351 = vadd.f32 0.0, %v4350
        %v4352 = vpop.f32.mrf.mxu0
        %v4353 = vadd.f32 0.0, %v4352
        %4354 = vmatprep.mubr.bf16.mxu0 %v3931
        %4355 = vmatmul.mubr.bf16.gmra.mxu0 %v3930
        %v4356 = vpop.f32.mrf.mxu0
        %v4357 = vadd.f32 0.0, %v4356
        %v4358 = vpop.f32.mrf.mxu0
        %v4359 = vadd.f32 0.0, %v4358
        %v4360 = vpop.f32.mrf.mxu0
        %v4361 = vadd.f32 0.0, %v4360
        %v4362 = vpop.f32.mrf.mxu0
        %v4363 = vadd.f32 0.0, %v4362
        %4364 = vmatprep.mubr.bf16.mxu0 %v3933
        %4365 = vmatmul.mubr.bf16.gmra.mxu0 %v3932
        %v4366 = vpop.f32.mrf.mxu0
        %v4367 = vadd.f32 0.0, %v4366
        %v4368 = vpop.f32.mrf.mxu0
        %v4369 = vadd.f32 0.0, %v4368
        %v4370 = vpop.f32.mrf.mxu0
        %v4371 = vadd.f32 0.0, %v4370
        %v4372 = vpop.f32.mrf.mxu0
        %v4373 = vadd.f32 0.0, %v4372
        %4374 = vmatprep.mubr.bf16.mxu0 %v3935
        %4375 = vmatmul.mubr.bf16.gmra.mxu0 %v3934
        %v4376 = vpop.f32.mrf.mxu0
        %v4377 = vadd.f32 0.0, %v4376
        %v4378 = vpop.f32.mrf.mxu0
        %v4379 = vadd.f32 0.0, %v4378
        %v4380 = vpop.f32.mrf.mxu0
        %v4381 = vadd.f32 0.0, %v4380
        %v4382 = vpop.f32.mrf.mxu0
        %v4383 = vadd.f32 0.0, %v4382
        %4384 = vmatprep.mubr.bf16.mxu0 %v3937
        %4385 = vmatmul.mubr.bf16.gmra.mxu0 %v3936
        %v4386 = vpop.f32.mrf.mxu0
        %v4387 = vadd.f32 0.0, %v4386
        %v4388 = vpop.f32.mrf.mxu0
        %v4389 = vadd.f32 0.0, %v4388
        %v4390 = vpop.f32.mrf.mxu0
        %v4391 = vadd.f32 0.0, %v4390
        %v4392 = vpop.f32.mrf.mxu0
        %v4393 = vadd.f32 0.0, %v4392
        %4394 = vmatprep.mubr.bf16.mxu0 %v3939
        %4395 = vmatmul.mubr.bf16.gmra.mxu0 %v3938
        %v4396 = vpop.f32.mrf.mxu0
        %v4397 = vadd.f32 0.0, %v4396
        %v4398 = vpop.f32.mrf.mxu0
        %v4399 = vadd.f32 0.0, %v4398
        %v4400 = vpop.f32.mrf.mxu0
        %v4401 = vadd.f32 0.0, %v4400
        %v4402 = vpop.f32.mrf.mxu0
        %v4403 = vadd.f32 0.0, %v4402
        %4404 = vmatprep.mubr.bf16.mxu0 %v3941
        %4405 = vmatmul.mubr.bf16.gmra.mxu0 %v3940
        %v4406 = vpop.f32.mrf.mxu0
        %v4407 = vadd.f32 0.0, %v4406
        %v4408 = vpop.f32.mrf.mxu0
        %v4409 = vadd.f32 0.0, %v4408
        %v4410 = vpop.f32.mrf.mxu0
        %v4411 = vadd.f32 0.0, %v4410
        %v4412 = vpop.f32.mrf.mxu0
        %v4413 = vadd.f32 0.0, %v4412
        %4414 = vmatprep.mubr.bf16.mxu0 %v3943
        %4415 = vmatmul.mubr.bf16.gmra.mxu0 %v3942
        %v4416 = vpop.f32.mrf.mxu0
        %v4417 = vadd.f32 0.0, %v4416
        %v4418 = vpop.f32.mrf.mxu0
        %v4419 = vadd.f32 0.0, %v4418
        %v4420 = vpop.f32.mrf.mxu0
        %v4421 = vadd.f32 0.0, %v4420
        %v4422 = vpop.f32.mrf.mxu0
        %v4423 = vadd.f32 0.0, %v4422
        %4424 = vmatprep.mubr.bf16.mxu0 %v3945
        %4425 = vmatmul.mubr.bf16.gmra.mxu0 %v3944
        %v4426 = vpop.f32.mrf.mxu0
        %v4427 = vadd.f32 0.0, %v4426
        %v4428 = vpop.f32.mrf.mxu0
        %v4429 = vadd.f32 0.0, %v4428
        %v4430 = vpop.f32.mrf.mxu0
        %v4431 = vadd.f32 0.0, %v4430
        %v4432 = vpop.f32.mrf.mxu0
        %v4433 = vadd.f32 0.0, %v4432
        %4434 = vmatprep.mubr.bf16.mxu0 %v3947
        %4435 = vmatmul.mubr.bf16.gmra.mxu0 %v3946
        %v4436 = vpop.f32.mrf.mxu0
        %v4437 = vadd.f32 0.0, %v4436
        %v4438 = vpop.f32.mrf.mxu0
        %v4439 = vadd.f32 0.0, %v4438
        %v4440 = vpop.f32.mrf.mxu0
        %v4441 = vadd.f32 0.0, %v4440
        %v4442 = vpop.f32.mrf.mxu0
        %v4443 = vadd.f32 0.0, %v4442
        %4444 = vmatprep.mubr.bf16.mxu0 %v3949
        %4445 = vmatmul.mubr.bf16.gmra.mxu0 %v3948
        %v4446 = vpop.f32.mrf.mxu0
        %v4447 = vadd.f32 0.0, %v4446
        %v4448 = vpop.f32.mrf.mxu0
        %v4449 = vadd.f32 0.0, %v4448
        %v4450 = vpop.f32.mrf.mxu0
        %v4451 = vadd.f32 0.0, %v4450
        %v4452 = vpop.f32.mrf.mxu0
        %v4453 = vadd.f32 0.0, %v4452
        %4454 = vmatprep.mubr.bf16.mxu0 %v3951
        %4455 = vmatmul.mubr.bf16.gmra.mxu0 %v3950
        %v4456 = vpop.f32.mrf.mxu0
        %v4457 = vadd.f32 0.0, %v4456
        %v4458 = vpop.f32.mrf.mxu0
        %v4459 = vadd.f32 0.0, %v4458
        %v4460 = vpop.f32.mrf.mxu0
        %v4461 = vadd.f32 0.0, %v4460
        %v4462 = vpop.f32.mrf.mxu0
        %v4463 = vadd.f32 0.0, %v4462
        %4464 = vmatprep.mubr.bf16.mxu0 %v3953
        %4465 = vmatmul.mubr.bf16.gmra.mxu0 %v3952
        %v4466 = vpop.f32.mrf.mxu0
        %v4467 = vadd.f32 0.0, %v4466
        %v4468 = vpop.f32.mrf.mxu0
        %v4469 = vadd.f32 0.0, %v4468
        %v4470 = vpop.f32.mrf.mxu0
        %v4471 = vadd.f32 0.0, %v4470
        %v4472 = vpop.f32.mrf.mxu0
        %v4473 = vadd.f32 0.0, %v4472
        %4474 = vmatprep.mubr.bf16.mxu0 %v3955
        %4475 = vmatmul.mubr.bf16.gmra.mxu0 %v3954
        %v4476 = vpop.f32.mrf.mxu0
        %v4477 = vadd.f32 0.0, %v4476
        %v4478 = vpop.f32.mrf.mxu0
        %v4479 = vadd.f32 0.0, %v4478
        %v4480 = vpop.f32.mrf.mxu0
        %v4481 = vadd.f32 0.0, %v4480
        %v4482 = vpop.f32.mrf.mxu0
        %v4483 = vadd.f32 0.0, %v4482
        %4484 = vmatprep.mubr.bf16.mxu0 %v3957
        %4485 = vmatmul.mubr.bf16.gmra.mxu0 %v3956
        %v4486 = vpop.f32.mrf.mxu0
        %v4487 = vadd.f32 0.0, %v4486
        %v4488 = vpop.f32.mrf.mxu0
        %v4489 = vadd.f32 0.0, %v4488
        %v4490 = vpop.f32.mrf.mxu0
        %v4491 = vadd.f32 0.0, %v4490
        %v4492 = vpop.f32.mrf.mxu0
        %v4493 = vadd.f32 0.0, %v4492
        %4494 = vmatprep.mubr.bf16.mxu0 %v3959
        %4495 = vmatmul.mubr.bf16.gmra.mxu0 %v3958
        %v4496 = vpop.f32.mrf.mxu0
        %v4497 = vadd.f32 0.0, %v4496
        %v4498 = vpop.f32.mrf.mxu0
        %v4499 = vadd.f32 0.0, %v4498
        %v4500 = vpop.f32.mrf.mxu0
        %v4501 = vadd.f32 0.0, %v4500
        %v4502 = vpop.f32.mrf.mxu0
        %v4503 = vadd.f32 0.0, %v4502
        %4504 = vdwg.mxu0
        %v4521 = vunpack.c.l.b16 %v3880
        %v4522 = vunpack.c.h.b16 %v3880
        %v4523 = vunpack.c.l.b16 %v3881
        %v4524 = vunpack.c.h.b16 %v3881
        %v4525 = vunpack.c.l.b16 %v3882
        %v4526 = vunpack.c.h.b16 %v3882
        %v4527 = vunpack.c.l.b16 %v3883
        %v4528 = vunpack.c.h.b16 %v3883
        %v4529 = vunpack.c.l.b16 %v3884
        %v4530 = vunpack.c.h.b16 %v3884
        %v4531 = vunpack.c.l.b16 %v3885
        %v4532 = vunpack.c.h.b16 %v3885
        %v4533 = vunpack.c.l.b16 %v3886
        %v4534 = vunpack.c.h.b16 %v3886
        %v4535 = vunpack.c.l.b16 %v3887
        %v4536 = vunpack.c.h.b16 %v3887
        %v4537 = vunpack.c.l.b16 %v3888
        %v4538 = vunpack.c.h.b16 %v3888
        %v4539 = vunpack.c.l.b16 %v3889
        %v4540 = vunpack.c.h.b16 %v3889
        %v4541 = vunpack.c.l.b16 %v3890
        %v4542 = vunpack.c.h.b16 %v3890
        %v4543 = vunpack.c.l.b16 %v3891
        %v4544 = vunpack.c.h.b16 %v3891
        %v4545 = vunpack.c.l.b16 %v3892
        %v4546 = vunpack.c.h.b16 %v3892
        %v4547 = vunpack.c.l.b16 %v3893
        %v4548 = vunpack.c.h.b16 %v3893
        %v4549 = vunpack.c.l.b16 %v3894
        %v4550 = vunpack.c.h.b16 %v3894
        %v4551 = vunpack.c.l.b16 %v3895
        %v4552 = vunpack.c.h.b16 %v3895
        %v4553 = vpack.c.b16 %v4523, %v4521
        %v4554 = vpack.c.b16 %v4524, %v4522
        %v4555 = vpack.c.b16 %v4527, %v4525
        %v4556 = vpack.c.b16 %v4528, %v4526
        %v4557 = vpack.c.b16 %v4531, %v4529
        %v4558 = vpack.c.b16 %v4532, %v4530
        %v4559 = vpack.c.b16 %v4535, %v4533
        %v4560 = vpack.c.b16 %v4536, %v4534
        %v4561 = vpack.c.b16 %v4539, %v4537
        %v4562 = vpack.c.b16 %v4540, %v4538
        %v4563 = vpack.c.b16 %v4543, %v4541
        %v4564 = vpack.c.b16 %v4544, %v4542
        %v4565 = vpack.c.b16 %v4547, %v4545
        %v4566 = vpack.c.b16 %v4548, %v4546
        %v4567 = vpack.c.b16 %v4551, %v4549
        %v4568 = vpack.c.b16 %v4552, %v4550
        %4585 = vmatprep.subr.bf16.mxu0 %v4568
        %4586 = vmatpush1.bf16.msra.mxu0 %v4567
        %4587 = vmatprep.subr.bf16.mxu0 %v4566
        %4588 = vmatpush1.bf16.msra.mxu0 %v4565
        %4589 = vmatprep.subr.bf16.mxu0 %v4564
        %4590 = vmatpush1.bf16.msra.mxu0 %v4563
        %4591 = vmatprep.subr.bf16.mxu0 %v4562
        %4592 = vmatpush1.bf16.msra.mxu0 %v4561
        %4593 = vmatprep.subr.bf16.mxu0 %v4560
        %4594 = vmatpush1.bf16.msra.mxu0 %v4559
        %4595 = vmatprep.subr.bf16.mxu0 %v4558
        %4596 = vmatpush1.bf16.msra.mxu0 %v4557
        %4597 = vmatprep.subr.bf16.mxu0 %v4556
        %4598 = vmatpush1.bf16.msra.mxu0 %v4555
        %4599 = vmatprep.subr.bf16.mxu0 %v4554
        %4600 = vmatpush1.bf16.msra.mxu0 %v4553
        %4601 = vmatprep.subr.bf16.mxu0 0
        %4602 = vmatpush2.bf16.msra.mxu0 0
        %4603 = vmatprep.subr.bf16.mxu0 0
        %4604 = vmatpush2.bf16.msra.mxu0 0
        %4605 = vmatprep.subr.bf16.mxu0 0
        %4606 = vmatpush2.bf16.msra.mxu0 0
        %4607 = vmatprep.subr.bf16.mxu0 0
        %4608 = vmatpush2.bf16.msra.mxu0 0
        %4609 = vmatprep.subr.bf16.mxu0 0
        %4610 = vmatpush2.bf16.msra.mxu0 0
        %4611 = vmatprep.subr.bf16.mxu0 0
        %4612 = vmatpush2.bf16.msra.mxu0 0
        %4613 = vmatprep.subr.bf16.mxu0 0
        %4614 = vmatpush2.bf16.msra.mxu0 0
        %4615 = vmatprep.subr.bf16.mxu0 0
        %4616 = vmatpush2.bf16.msra.mxu0 0
        %4617 = vmatprep.mubr.bf16.mxu0 0
        %4618 = vmatmul.mubr.bf16.gmra.mxu0 %v1012
        %v4619 = vpop.f32.mrf.mxu0
        %v4620 = vadd.f32 %v4187, %v4619
        %v4621 = vpop.f32.mrf.mxu0
        %v4622 = vadd.f32 %v4189, %v4621
        %v4623 = vpop.f32.mrf.mxu0
        %v4624 = vadd.f32 %v4191, %v4623
        %v4625 = vpop.f32.mrf.mxu0
        %v4626 = vadd.f32 %v4193, %v4625
        %4627 = vmatprep.mubr.bf16.mxu0 0
        %4628 = vmatmul.mubr.bf16.gmra.mxu0 %v1013
        %v4629 = vpop.f32.mrf.mxu0
        %v4630 = vadd.f32 %v4197, %v4629
        %v4631 = vpop.f32.mrf.mxu0
        %v4632 = vadd.f32 %v4199, %v4631
        %v4633 = vpop.f32.mrf.mxu0
        %v4634 = vadd.f32 %v4201, %v4633
        %v4635 = vpop.f32.mrf.mxu0
        %v4636 = vadd.f32 %v4203, %v4635
        %4637 = vmatprep.mubr.bf16.mxu0 0
        %4638 = vmatmul.mubr.bf16.gmra.mxu0 %v1014
        %v4639 = vpop.f32.mrf.mxu0
        %v4640 = vadd.f32 %v4207, %v4639
        %v4641 = vpop.f32.mrf.mxu0
        %v4642 = vadd.f32 %v4209, %v4641
        %v4643 = vpop.f32.mrf.mxu0
        %v4644 = vadd.f32 %v4211, %v4643
        %v4645 = vpop.f32.mrf.mxu0
        %v4646 = vadd.f32 %v4213, %v4645
        %4647 = vmatprep.mubr.bf16.mxu0 0
        %4648 = vmatmul.mubr.bf16.gmra.mxu0 %v1015
        %v4649 = vpop.f32.mrf.mxu0
        %v4650 = vadd.f32 %v4217, %v4649
        %v4651 = vpop.f32.mrf.mxu0
        %v4652 = vadd.f32 %v4219, %v4651
        %v4653 = vpop.f32.mrf.mxu0
        %v4654 = vadd.f32 %v4221, %v4653
        %v4655 = vpop.f32.mrf.mxu0
        %v4656 = vadd.f32 %v4223, %v4655
        %4657 = vmatprep.mubr.bf16.mxu0 0
        %4658 = vmatmul.mubr.bf16.gmra.mxu0 %v1016
        %v4659 = vpop.f32.mrf.mxu0
        %v4660 = vadd.f32 %v4227, %v4659
        %v4661 = vpop.f32.mrf.mxu0
        %v4662 = vadd.f32 %v4229, %v4661
        %v4663 = vpop.f32.mrf.mxu0
        %v4664 = vadd.f32 %v4231, %v4663
        %v4665 = vpop.f32.mrf.mxu0
        %v4666 = vadd.f32 %v4233, %v4665
        %4667 = vmatprep.mubr.bf16.mxu0 0
        %4668 = vmatmul.mubr.bf16.gmra.mxu0 %v1017
        %v4669 = vpop.f32.mrf.mxu0
        %v4670 = vadd.f32 %v4237, %v4669
        %v4671 = vpop.f32.mrf.mxu0
        %v4672 = vadd.f32 %v4239, %v4671
        %v4673 = vpop.f32.mrf.mxu0
        %v4674 = vadd.f32 %v4241, %v4673
        %v4675 = vpop.f32.mrf.mxu0
        %v4676 = vadd.f32 %v4243, %v4675
        %4677 = vmatprep.mubr.bf16.mxu0 0
        %4678 = vmatmul.mubr.bf16.gmra.mxu0 %v1018
        %v4679 = vpop.f32.mrf.mxu0
        %v4680 = vadd.f32 %v4247, %v4679
        %v4681 = vpop.f32.mrf.mxu0
        %v4682 = vadd.f32 %v4249, %v4681
        %v4683 = vpop.f32.mrf.mxu0
        %v4684 = vadd.f32 %v4251, %v4683
        %v4685 = vpop.f32.mrf.mxu0
        %v4686 = vadd.f32 %v4253, %v4685
        %4687 = vmatprep.mubr.bf16.mxu0 0
        %4688 = vmatmul.mubr.bf16.gmra.mxu0 %v1019
        %v4689 = vpop.f32.mrf.mxu0
        %v4690 = vadd.f32 %v4257, %v4689
        %v4691 = vpop.f32.mrf.mxu0
        %v4692 = vadd.f32 %v4259, %v4691
        %v4693 = vpop.f32.mrf.mxu0
        %v4694 = vadd.f32 %v4261, %v4693
        %v4695 = vpop.f32.mrf.mxu0
        %v4696 = vadd.f32 %v4263, %v4695
        %4697 = vmatprep.mubr.bf16.mxu0 0
        %4698 = vmatmul.mubr.bf16.gmra.mxu0 %v1020
        %v4699 = vpop.f32.mrf.mxu0
        %v4700 = vadd.f32 %v4267, %v4699
        %v4701 = vpop.f32.mrf.mxu0
        %v4702 = vadd.f32 %v4269, %v4701
        %v4703 = vpop.f32.mrf.mxu0
        %v4704 = vadd.f32 %v4271, %v4703
        %v4705 = vpop.f32.mrf.mxu0
        %v4706 = vadd.f32 %v4273, %v4705
        %4707 = vmatprep.mubr.bf16.mxu0 0
        %4708 = vmatmul.mubr.bf16.gmra.mxu0 %v1021
        %v4709 = vpop.f32.mrf.mxu0
        %v4710 = vadd.f32 %v4277, %v4709
        %v4711 = vpop.f32.mrf.mxu0
        %v4712 = vadd.f32 %v4279, %v4711
        %v4713 = vpop.f32.mrf.mxu0
        %v4714 = vadd.f32 %v4281, %v4713
        %v4715 = vpop.f32.mrf.mxu0
        %v4716 = vadd.f32 %v4283, %v4715
        %4717 = vmatprep.mubr.bf16.mxu0 0
        %4718 = vmatmul.mubr.bf16.gmra.mxu0 %v1022
        %v4719 = vpop.f32.mrf.mxu0
        %v4720 = vadd.f32 %v4287, %v4719
        %v4721 = vpop.f32.mrf.mxu0
        %v4722 = vadd.f32 %v4289, %v4721
        %v4723 = vpop.f32.mrf.mxu0
        %v4724 = vadd.f32 %v4291, %v4723
        %v4725 = vpop.f32.mrf.mxu0
        %v4726 = vadd.f32 %v4293, %v4725
        %4727 = vmatprep.mubr.bf16.mxu0 0
        %4728 = vmatmul.mubr.bf16.gmra.mxu0 %v1023
        %v4729 = vpop.f32.mrf.mxu0
        %v4730 = vadd.f32 %v4297, %v4729
        %v4731 = vpop.f32.mrf.mxu0
        %v4732 = vadd.f32 %v4299, %v4731
        %v4733 = vpop.f32.mrf.mxu0
        %v4734 = vadd.f32 %v4301, %v4733
        %v4735 = vpop.f32.mrf.mxu0
        %v4736 = vadd.f32 %v4303, %v4735
        %4737 = vmatprep.mubr.bf16.mxu0 0
        %4738 = vmatmul.mubr.bf16.gmra.mxu0 %v1024
        %v4739 = vpop.f32.mrf.mxu0
        %v4740 = vadd.f32 %v4307, %v4739
        %v4741 = vpop.f32.mrf.mxu0
        %v4742 = vadd.f32 %v4309, %v4741
        %v4743 = vpop.f32.mrf.mxu0
        %v4744 = vadd.f32 %v4311, %v4743
        %v4745 = vpop.f32.mrf.mxu0
        %v4746 = vadd.f32 %v4313, %v4745
        %4747 = vmatprep.mubr.bf16.mxu0 0
        %4748 = vmatmul.mubr.bf16.gmra.mxu0 %v1025
        %v4749 = vpop.f32.mrf.mxu0
        %v4750 = vadd.f32 %v4317, %v4749
        %v4751 = vpop.f32.mrf.mxu0
        %v4752 = vadd.f32 %v4319, %v4751
        %v4753 = vpop.f32.mrf.mxu0
        %v4754 = vadd.f32 %v4321, %v4753
        %v4755 = vpop.f32.mrf.mxu0
        %v4756 = vadd.f32 %v4323, %v4755
        %4757 = vmatprep.mubr.bf16.mxu0 0
        %4758 = vmatmul.mubr.bf16.gmra.mxu0 %v1026
        %v4759 = vpop.f32.mrf.mxu0
        %v4760 = vadd.f32 %v4327, %v4759
        %v4761 = vpop.f32.mrf.mxu0
        %v4762 = vadd.f32 %v4329, %v4761
        %v4763 = vpop.f32.mrf.mxu0
        %v4764 = vadd.f32 %v4331, %v4763
        %v4765 = vpop.f32.mrf.mxu0
        %v4766 = vadd.f32 %v4333, %v4765
        %4767 = vmatprep.mubr.bf16.mxu0 0
        %4768 = vmatmul.mubr.bf16.gmra.mxu0 %v1027
        %v4769 = vpop.f32.mrf.mxu0
        %v4770 = vadd.f32 %v4337, %v4769
        %v4771 = vpop.f32.mrf.mxu0
        %v4772 = vadd.f32 %v4339, %v4771
        %v4773 = vpop.f32.mrf.mxu0
        %v4774 = vadd.f32 %v4341, %v4773
        %v4775 = vpop.f32.mrf.mxu0
        %v4776 = vadd.f32 %v4343, %v4775
        %4777 = vmatprep.mubr.bf16.mxu0 0
        %4778 = vmatmul.mubr.bf16.gmra.mxu0 %v1028
        %v4779 = vpop.f32.mrf.mxu0
        %v4780 = vadd.f32 %v4347, %v4779
        %v4781 = vpop.f32.mrf.mxu0
        %v4782 = vadd.f32 %v4349, %v4781
        %v4783 = vpop.f32.mrf.mxu0
        %v4784 = vadd.f32 %v4351, %v4783
        %v4785 = vpop.f32.mrf.mxu0
        %v4786 = vadd.f32 %v4353, %v4785
        %4787 = vmatprep.mubr.bf16.mxu0 0
        %4788 = vmatmul.mubr.bf16.gmra.mxu0 %v1029
        %v4789 = vpop.f32.mrf.mxu0
        %v4790 = vadd.f32 %v4357, %v4789
        %v4791 = vpop.f32.mrf.mxu0
        %v4792 = vadd.f32 %v4359, %v4791
        %v4793 = vpop.f32.mrf.mxu0
        %v4794 = vadd.f32 %v4361, %v4793
        %v4795 = vpop.f32.mrf.mxu0
        %v4796 = vadd.f32 %v4363, %v4795
        %4797 = vmatprep.mubr.bf16.mxu0 0
        %4798 = vmatmul.mubr.bf16.gmra.mxu0 %v1030
        %v4799 = vpop.f32.mrf.mxu0
        %v4800 = vadd.f32 %v4367, %v4799
        %v4801 = vpop.f32.mrf.mxu0
        %v4802 = vadd.f32 %v4369, %v4801
        %v4803 = vpop.f32.mrf.mxu0
        %v4804 = vadd.f32 %v4371, %v4803
        %v4805 = vpop.f32.mrf.mxu0
        %v4806 = vadd.f32 %v4373, %v4805
        %4807 = vmatprep.mubr.bf16.mxu0 0
        %4808 = vmatmul.mubr.bf16.gmra.mxu0 %v1031
        %v4809 = vpop.f32.mrf.mxu0
        %v4810 = vadd.f32 %v4377, %v4809
        %v4811 = vpop.f32.mrf.mxu0
        %v4812 = vadd.f32 %v4379, %v4811
        %v4813 = vpop.f32.mrf.mxu0
        %v4814 = vadd.f32 %v4381, %v4813
        %v4815 = vpop.f32.mrf.mxu0
        %v4816 = vadd.f32 %v4383, %v4815
        %4817 = vmatprep.mubr.bf16.mxu0 0
        %4818 = vmatmul.mubr.bf16.gmra.mxu0 %v1032
        %v4819 = vpop.f32.mrf.mxu0
        %v4820 = vadd.f32 %v4387, %v4819
        %v4821 = vpop.f32.mrf.mxu0
        %v4822 = vadd.f32 %v4389, %v4821
        %v4823 = vpop.f32.mrf.mxu0
        %v4824 = vadd.f32 %v4391, %v4823
        %v4825 = vpop.f32.mrf.mxu0
        %v4826 = vadd.f32 %v4393, %v4825
        %4827 = vmatprep.mubr.bf16.mxu0 0
        %4828 = vmatmul.mubr.bf16.gmra.mxu0 %v1033
        %v4829 = vpop.f32.mrf.mxu0
        %v4830 = vadd.f32 %v4397, %v4829
        %v4831 = vpop.f32.mrf.mxu0
        %v4832 = vadd.f32 %v4399, %v4831
        %v4833 = vpop.f32.mrf.mxu0
        %v4834 = vadd.f32 %v4401, %v4833
        %v4835 = vpop.f32.mrf.mxu0
        %v4836 = vadd.f32 %v4403, %v4835
        %4837 = vmatprep.mubr.bf16.mxu0 0
        %4838 = vmatmul.mubr.bf16.gmra.mxu0 %v1034
        %v4839 = vpop.f32.mrf.mxu0
        %v4840 = vadd.f32 %v4407, %v4839
        %v4841 = vpop.f32.mrf.mxu0
        %v4842 = vadd.f32 %v4409, %v4841
        %v4843 = vpop.f32.mrf.mxu0
        %v4844 = vadd.f32 %v4411, %v4843
        %v4845 = vpop.f32.mrf.mxu0
        %v4846 = vadd.f32 %v4413, %v4845
        %4847 = vmatprep.mubr.bf16.mxu0 0
        %4848 = vmatmul.mubr.bf16.gmra.mxu0 %v1035
        %v4849 = vpop.f32.mrf.mxu0
        %v4850 = vadd.f32 %v4417, %v4849
        %v4851 = vpop.f32.mrf.mxu0
        %v4852 = vadd.f32 %v4419, %v4851
        %v4853 = vpop.f32.mrf.mxu0
        %v4854 = vadd.f32 %v4421, %v4853
        %v4855 = vpop.f32.mrf.mxu0
        %v4856 = vadd.f32 %v4423, %v4855
        %4857 = vmatprep.mubr.bf16.mxu0 0
        %4858 = vmatmul.mubr.bf16.gmra.mxu0 %v1036
        %v4859 = vpop.f32.mrf.mxu0
        %v4860 = vadd.f32 %v4427, %v4859
        %v4861 = vpop.f32.mrf.mxu0
        %v4862 = vadd.f32 %v4429, %v4861
        %v4863 = vpop.f32.mrf.mxu0
        %v4864 = vadd.f32 %v4431, %v4863
        %v4865 = vpop.f32.mrf.mxu0
        %v4866 = vadd.f32 %v4433, %v4865
        %4867 = vmatprep.mubr.bf16.mxu0 0
        %4868 = vmatmul.mubr.bf16.gmra.mxu0 %v1037
        %v4869 = vpop.f32.mrf.mxu0
        %v4870 = vadd.f32 %v4437, %v4869
        %v4871 = vpop.f32.mrf.mxu0
        %v4872 = vadd.f32 %v4439, %v4871
        %v4873 = vpop.f32.mrf.mxu0
        %v4874 = vadd.f32 %v4441, %v4873
        %v4875 = vpop.f32.mrf.mxu0
        %v4876 = vadd.f32 %v4443, %v4875
        %4877 = vmatprep.mubr.bf16.mxu0 0
        %4878 = vmatmul.mubr.bf16.gmra.mxu0 %v1038
        %v4879 = vpop.f32.mrf.mxu0
        %v4880 = vadd.f32 %v4447, %v4879
        %v4881 = vpop.f32.mrf.mxu0
        %v4882 = vadd.f32 %v4449, %v4881
        %v4883 = vpop.f32.mrf.mxu0
        %v4884 = vadd.f32 %v4451, %v4883
        %v4885 = vpop.f32.mrf.mxu0
        %v4886 = vadd.f32 %v4453, %v4885
        %4887 = vmatprep.mubr.bf16.mxu0 0
        %4888 = vmatmul.mubr.bf16.gmra.mxu0 %v1039
        %v4889 = vpop.f32.mrf.mxu0
        %v4890 = vadd.f32 %v4457, %v4889
        %v4891 = vpop.f32.mrf.mxu0
        %v4892 = vadd.f32 %v4459, %v4891
        %v4893 = vpop.f32.mrf.mxu0
        %v4894 = vadd.f32 %v4461, %v4893
        %v4895 = vpop.f32.mrf.mxu0
        %v4896 = vadd.f32 %v4463, %v4895
        %4897 = vmatprep.mubr.bf16.mxu0 0
        %4898 = vmatmul.mubr.bf16.gmra.mxu0 %v1040
        %v4899 = vpop.f32.mrf.mxu0
        %v4900 = vadd.f32 %v4467, %v4899
        %v4901 = vpop.f32.mrf.mxu0
        %v4902 = vadd.f32 %v4469, %v4901
        %v4903 = vpop.f32.mrf.mxu0
        %v4904 = vadd.f32 %v4471, %v4903
        %v4905 = vpop.f32.mrf.mxu0
        %v4906 = vadd.f32 %v4473, %v4905
        %4907 = vmatprep.mubr.bf16.mxu0 0
        %4908 = vmatmul.mubr.bf16.gmra.mxu0 %v1041
        %v4909 = vpop.f32.mrf.mxu0
        %v4910 = vadd.f32 %v4477, %v4909
        %v4911 = vpop.f32.mrf.mxu0
        %v4912 = vadd.f32 %v4479, %v4911
        %v4913 = vpop.f32.mrf.mxu0
        %v4914 = vadd.f32 %v4481, %v4913
        %v4915 = vpop.f32.mrf.mxu0
        %v4916 = vadd.f32 %v4483, %v4915
        %4917 = vmatprep.mubr.bf16.mxu0 0
        %4918 = vmatmul.mubr.bf16.gmra.mxu0 %v1042
        %v4919 = vpop.f32.mrf.mxu0
        %v4920 = vadd.f32 %v4487, %v4919
        %v4921 = vpop.f32.mrf.mxu0
        %v4922 = vadd.f32 %v4489, %v4921
        %v4923 = vpop.f32.mrf.mxu0
        %v4924 = vadd.f32 %v4491, %v4923
        %v4925 = vpop.f32.mrf.mxu0
        %v4926 = vadd.f32 %v4493, %v4925
        %4927 = vmatprep.mubr.bf16.mxu0 0
        %4928 = vmatmul.mubr.bf16.gmra.mxu0 %v1043
        %v4929 = vpop.f32.mrf.mxu0
        %v4930 = vadd.f32 %v4497, %v4929
        %v4931 = vpop.f32.mrf.mxu0
        %v4932 = vadd.f32 %v4499, %v4931
        %v4933 = vpop.f32.mrf.mxu0
        %v4934 = vadd.f32 %v4501, %v4933
        %v4935 = vpop.f32.mrf.mxu0
        %v4936 = vadd.f32 %v4503, %v4935
        %4937 = vdwg.mxu0
        %v4938 = vld [vmem:[%s11] sm:$0x3]
        %v4940 = vlaneseq
        %v4941 = vshrl.u32 %v4940, 7
        %v4942 = vsub.s32 0, %v4941
        %v4943 = vrot.slane %v4938, %v4942
        %v4944 = vlaneseq
        %v4945 = vshrl.u32 %v4944, 7
        %v4946 = vsub.s32 1, %v4945
        %v4947 = vrot.slane %v4938, %v4946
        %v4950 = vadd.f32 %v4620, %v4943
        %v4951 = vadd.f32 %v4622, %v4947
        %v4952 = vadd.f32 %v4624, %v4943
        %v4953 = vadd.f32 %v4626, %v4947
        %v4954 = vadd.f32 %v4630, %v4943
        %v4955 = vadd.f32 %v4632, %v4947
        %v4956 = vadd.f32 %v4634, %v4943
        %v4957 = vadd.f32 %v4636, %v4947
        %v4958 = vadd.f32 %v4640, %v4943
        %v4959 = vadd.f32 %v4642, %v4947
        %v4960 = vadd.f32 %v4644, %v4943
        %v4961 = vadd.f32 %v4646, %v4947
        %v4962 = vadd.f32 %v4650, %v4943
        %v4963 = vadd.f32 %v4652, %v4947
        %v4964 = vadd.f32 %v4654, %v4943
        %v4965 = vadd.f32 %v4656, %v4947
        %v4966 = vadd.f32 %v4660, %v4943
        %v4967 = vadd.f32 %v4662, %v4947
        %v4968 = vadd.f32 %v4664, %v4943
        %v4969 = vadd.f32 %v4666, %v4947
        %v4970 = vadd.f32 %v4670, %v4943
        %v4971 = vadd.f32 %v4672, %v4947
        %v4972 = vadd.f32 %v4674, %v4943
        %v4973 = vadd.f32 %v4676, %v4947
        %v4974 = vadd.f32 %v4680, %v4943
        %v4975 = vadd.f32 %v4682, %v4947
        %v4976 = vadd.f32 %v4684, %v4943
        %v4977 = vadd.f32 %v4686, %v4947
        %v4978 = vadd.f32 %v4690, %v4943
        %v4979 = vadd.f32 %v4692, %v4947
        %v4980 = vadd.f32 %v4694, %v4943
        %v4981 = vadd.f32 %v4696, %v4947
        %v4982 = vadd.f32 %v4700, %v4943
        %v4983 = vadd.f32 %v4702, %v4947
        %v4984 = vadd.f32 %v4704, %v4943
        %v4985 = vadd.f32 %v4706, %v4947
        %v4986 = vadd.f32 %v4710, %v4943
        %v4987 = vadd.f32 %v4712, %v4947
        %v4988 = vadd.f32 %v4714, %v4943
        %v4989 = vadd.f32 %v4716, %v4947
        %v4990 = vadd.f32 %v4720, %v4943
        %v4991 = vadd.f32 %v4722, %v4947
        %v4992 = vadd.f32 %v4724, %v4943
        %v4993 = vadd.f32 %v4726, %v4947
        %v4994 = vadd.f32 %v4730, %v4943
        %v4995 = vadd.f32 %v4732, %v4947
        %v4996 = vadd.f32 %v4734, %v4943
        %v4997 = vadd.f32 %v4736, %v4947
        %v4998 = vadd.f32 %v4740, %v4943
        %v4999 = vadd.f32 %v4742, %v4947
        %v5000 = vadd.f32 %v4744, %v4943
        %v5001 = vadd.f32 %v4746, %v4947
        %v5002 = vadd.f32 %v4750, %v4943
        %v5003 = vadd.f32 %v4752, %v4947
        %v5004 = vadd.f32 %v4754, %v4943
        %v5005 = vadd.f32 %v4756, %v4947
        %v5006 = vadd.f32 %v4760, %v4943
        %v5007 = vadd.f32 %v4762, %v4947
        %v5008 = vadd.f32 %v4764, %v4943
        %v5009 = vadd.f32 %v4766, %v4947
        %v5010 = vadd.f32 %v4770, %v4943
        %v5011 = vadd.f32 %v4772, %v4947
        %v5012 = vadd.f32 %v4774, %v4943
        %v5013 = vadd.f32 %v4776, %v4947
        %v5014 = vadd.f32 %v4780, %v4943
        %v5015 = vadd.f32 %v4782, %v4947
        %v5016 = vadd.f32 %v4784, %v4943
        %v5017 = vadd.f32 %v4786, %v4947
        %v5018 = vadd.f32 %v4790, %v4943
        %v5019 = vadd.f32 %v4792, %v4947
        %v5020 = vadd.f32 %v4794, %v4943
        %v5021 = vadd.f32 %v4796, %v4947
        %v5022 = vadd.f32 %v4800, %v4943
        %v5023 = vadd.f32 %v4802, %v4947
        %v5024 = vadd.f32 %v4804, %v4943
        %v5025 = vadd.f32 %v4806, %v4947
        %v5026 = vadd.f32 %v4810, %v4943
        %v5027 = vadd.f32 %v4812, %v4947
        %v5028 = vadd.f32 %v4814, %v4943
        %v5029 = vadd.f32 %v4816, %v4947
        %v5030 = vadd.f32 %v4820, %v4943
        %v5031 = vadd.f32 %v4822, %v4947
        %v5032 = vadd.f32 %v4824, %v4943
        %v5033 = vadd.f32 %v4826, %v4947
        %v5034 = vadd.f32 %v4830, %v4943
        %v5035 = vadd.f32 %v4832, %v4947
        %v5036 = vadd.f32 %v4834, %v4943
        %v5037 = vadd.f32 %v4836, %v4947
        %v5038 = vadd.f32 %v4840, %v4943
        %v5039 = vadd.f32 %v4842, %v4947
        %v5040 = vadd.f32 %v4844, %v4943
        %v5041 = vadd.f32 %v4846, %v4947
        %v5042 = vadd.f32 %v4850, %v4943
        %v5043 = vadd.f32 %v4852, %v4947
        %v5044 = vadd.f32 %v4854, %v4943
        %v5045 = vadd.f32 %v4856, %v4947
        %v5046 = vadd.f32 %v4860, %v4943
        %v5047 = vadd.f32 %v4862, %v4947
        %v5048 = vadd.f32 %v4864, %v4943
        %v5049 = vadd.f32 %v4866, %v4947
        %v5050 = vadd.f32 %v4870, %v4943
        %v5051 = vadd.f32 %v4872, %v4947
        %v5052 = vadd.f32 %v4874, %v4943
        %v5053 = vadd.f32 %v4876, %v4947
        %v5054 = vadd.f32 %v4880, %v4943
        %v5055 = vadd.f32 %v4882, %v4947
        %v5056 = vadd.f32 %v4884, %v4943
        %v5057 = vadd.f32 %v4886, %v4947
        %v5058 = vadd.f32 %v4890, %v4943
        %v5059 = vadd.f32 %v4892, %v4947
        %v5060 = vadd.f32 %v4894, %v4943
        %v5061 = vadd.f32 %v4896, %v4947
        %v5062 = vadd.f32 %v4900, %v4943
        %v5063 = vadd.f32 %v4902, %v4947
        %v5064 = vadd.f32 %v4904, %v4943
        %v5065 = vadd.f32 %v4906, %v4947
        %v5066 = vadd.f32 %v4910, %v4943
        %v5067 = vadd.f32 %v4912, %v4947
        %v5068 = vadd.f32 %v4914, %v4943
        %v5069 = vadd.f32 %v4916, %v4947
        %v5070 = vadd.f32 %v4920, %v4943
        %v5071 = vadd.f32 %v4922, %v4947
        %v5072 = vadd.f32 %v4924, %v4943
        %v5073 = vadd.f32 %v4926, %v4947
        %v5074 = vadd.f32 %v4930, %v4943
        %v5075 = vadd.f32 %v4932, %v4947
        %v5076 = vadd.f32 %v4934, %v4943
        %v5077 = vadd.f32 %v4936, %v4947
        %v5078 = vmax.f32 %v4950, 0.0
        %v5079 = vmax.f32 %v4951, 0.0
        %v5080 = vmax.f32 %v4952, 0.0
        %v5081 = vmax.f32 %v4953, 0.0
        %v5082 = vmax.f32 %v4954, 0.0
        %v5083 = vmax.f32 %v4955, 0.0
        %v5084 = vmax.f32 %v4956, 0.0
        %v5085 = vmax.f32 %v4957, 0.0
        %v5086 = vmax.f32 %v4958, 0.0
        %v5087 = vmax.f32 %v4959, 0.0
        %v5088 = vmax.f32 %v4960, 0.0
        %v5089 = vmax.f32 %v4961, 0.0
        %v5090 = vmax.f32 %v4962, 0.0
        %v5091 = vmax.f32 %v4963, 0.0
        %v5092 = vmax.f32 %v4964, 0.0
        %v5093 = vmax.f32 %v4965, 0.0
        %v5094 = vmax.f32 %v4966, 0.0
        %v5095 = vmax.f32 %v4967, 0.0
        %v5096 = vmax.f32 %v4968, 0.0
        %v5097 = vmax.f32 %v4969, 0.0
        %v5098 = vmax.f32 %v4970, 0.0
        %v5099 = vmax.f32 %v4971, 0.0
        %v5100 = vmax.f32 %v4972, 0.0
        %v5101 = vmax.f32 %v4973, 0.0
        %v5102 = vmax.f32 %v4974, 0.0
        %v5103 = vmax.f32 %v4975, 0.0
        %v5104 = vmax.f32 %v4976, 0.0
        %v5105 = vmax.f32 %v4977, 0.0
        %v5106 = vmax.f32 %v4978, 0.0
        %v5107 = vmax.f32 %v4979, 0.0
        %v5108 = vmax.f32 %v4980, 0.0
        %v5109 = vmax.f32 %v4981, 0.0
        %v5110 = vmax.f32 %v4982, 0.0
        %v5111 = vmax.f32 %v4983, 0.0
        %v5112 = vmax.f32 %v4984, 0.0
        %v5113 = vmax.f32 %v4985, 0.0
        %v5114 = vmax.f32 %v4986, 0.0
        %v5115 = vmax.f32 %v4987, 0.0
        %v5116 = vmax.f32 %v4988, 0.0
        %v5117 = vmax.f32 %v4989, 0.0
        %v5118 = vmax.f32 %v4990, 0.0
        %v5119 = vmax.f32 %v4991, 0.0
        %v5120 = vmax.f32 %v4992, 0.0
        %v5121 = vmax.f32 %v4993, 0.0
        %v5122 = vmax.f32 %v4994, 0.0
        %v5123 = vmax.f32 %v4995, 0.0
        %v5124 = vmax.f32 %v4996, 0.0
        %v5125 = vmax.f32 %v4997, 0.0
        %v5126 = vmax.f32 %v4998, 0.0
        %v5127 = vmax.f32 %v4999, 0.0
        %v5128 = vmax.f32 %v5000, 0.0
        %v5129 = vmax.f32 %v5001, 0.0
        %v5130 = vmax.f32 %v5002, 0.0
        %v5131 = vmax.f32 %v5003, 0.0
        %v5132 = vmax.f32 %v5004, 0.0
        %v5133 = vmax.f32 %v5005, 0.0
        %v5134 = vmax.f32 %v5006, 0.0
        %v5135 = vmax.f32 %v5007, 0.0
        %v5136 = vmax.f32 %v5008, 0.0
        %v5137 = vmax.f32 %v5009, 0.0
        %v5138 = vmax.f32 %v5010, 0.0
        %v5139 = vmax.f32 %v5011, 0.0
        %v5140 = vmax.f32 %v5012, 0.0
        %v5141 = vmax.f32 %v5013, 0.0
        %v5142 = vmax.f32 %v5014, 0.0
        %v5143 = vmax.f32 %v5015, 0.0
        %v5144 = vmax.f32 %v5016, 0.0
        %v5145 = vmax.f32 %v5017, 0.0
        %v5146 = vmax.f32 %v5018, 0.0
        %v5147 = vmax.f32 %v5019, 0.0
        %v5148 = vmax.f32 %v5020, 0.0
        %v5149 = vmax.f32 %v5021, 0.0
        %v5150 = vmax.f32 %v5022, 0.0
        %v5151 = vmax.f32 %v5023, 0.0
        %v5152 = vmax.f32 %v5024, 0.0
        %v5153 = vmax.f32 %v5025, 0.0
        %v5154 = vmax.f32 %v5026, 0.0
        %v5155 = vmax.f32 %v5027, 0.0
        %v5156 = vmax.f32 %v5028, 0.0
        %v5157 = vmax.f32 %v5029, 0.0
        %v5158 = vmax.f32 %v5030, 0.0
        %v5159 = vmax.f32 %v5031, 0.0
        %v5160 = vmax.f32 %v5032, 0.0
        %v5161 = vmax.f32 %v5033, 0.0
        %v5162 = vmax.f32 %v5034, 0.0
        %v5163 = vmax.f32 %v5035, 0.0
        %v5164 = vmax.f32 %v5036, 0.0
        %v5165 = vmax.f32 %v5037, 0.0
        %v5166 = vmax.f32 %v5038, 0.0
        %v5167 = vmax.f32 %v5039, 0.0
        %v5168 = vmax.f32 %v5040, 0.0
        %v5169 = vmax.f32 %v5041, 0.0
        %v5170 = vmax.f32 %v5042, 0.0
        %v5171 = vmax.f32 %v5043, 0.0
        %v5172 = vmax.f32 %v5044, 0.0
        %v5173 = vmax.f32 %v5045, 0.0
        %v5174 = vmax.f32 %v5046, 0.0
        %v5175 = vmax.f32 %v5047, 0.0
        %v5176 = vmax.f32 %v5048, 0.0
        %v5177 = vmax.f32 %v5049, 0.0
        %v5178 = vmax.f32 %v5050, 0.0
        %v5179 = vmax.f32 %v5051, 0.0
        %v5180 = vmax.f32 %v5052, 0.0
        %v5181 = vmax.f32 %v5053, 0.0
        %v5182 = vmax.f32 %v5054, 0.0
        %v5183 = vmax.f32 %v5055, 0.0
        %v5184 = vmax.f32 %v5056, 0.0
        %v5185 = vmax.f32 %v5057, 0.0
        %v5186 = vmax.f32 %v5058, 0.0
        %v5187 = vmax.f32 %v5059, 0.0
        %v5188 = vmax.f32 %v5060, 0.0
        %v5189 = vmax.f32 %v5061, 0.0
        %v5190 = vmax.f32 %v5062, 0.0
        %v5191 = vmax.f32 %v5063, 0.0
        %v5192 = vmax.f32 %v5064, 0.0
        %v5193 = vmax.f32 %v5065, 0.0
        %v5194 = vmax.f32 %v5066, 0.0
        %v5195 = vmax.f32 %v5067, 0.0
        %v5196 = vmax.f32 %v5068, 0.0
        %v5197 = vmax.f32 %v5069, 0.0
        %v5198 = vmax.f32 %v5070, 0.0
        %v5199 = vmax.f32 %v5071, 0.0
        %v5200 = vmax.f32 %v5072, 0.0
        %v5201 = vmax.f32 %v5073, 0.0
        %v5202 = vmax.f32 %v5074, 0.0
        %v5203 = vmax.f32 %v5075, 0.0
        %v5204 = vmax.f32 %v5076, 0.0
        %v5205 = vmax.f32 %v5077, 0.0
        %v5206 = vpack.c.bf16 %v5080, %v5078
        %v5207 = vpack.c.bf16 %v5081, %v5079
        %v5208 = vpack.c.bf16 %v5084, %v5082
        %v5209 = vpack.c.bf16 %v5085, %v5083
        %v5210 = vpack.c.bf16 %v5088, %v5086
        %v5211 = vpack.c.bf16 %v5089, %v5087
        %v5212 = vpack.c.bf16 %v5092, %v5090
        %v5213 = vpack.c.bf16 %v5093, %v5091
        %v5214 = vpack.c.bf16 %v5096, %v5094
        %v5215 = vpack.c.bf16 %v5097, %v5095
        %v5216 = vpack.c.bf16 %v5100, %v5098
        %v5217 = vpack.c.bf16 %v5101, %v5099
        %v5218 = vpack.c.bf16 %v5104, %v5102
        %v5219 = vpack.c.bf16 %v5105, %v5103
        %v5220 = vpack.c.bf16 %v5108, %v5106
        %v5221 = vpack.c.bf16 %v5109, %v5107
        %v5222 = vpack.c.bf16 %v5112, %v5110
        %v5223 = vpack.c.bf16 %v5113, %v5111
        %v5224 = vpack.c.bf16 %v5116, %v5114
        %v5225 = vpack.c.bf16 %v5117, %v5115
        %v5226 = vpack.c.bf16 %v5120, %v5118
        %v5227 = vpack.c.bf16 %v5121, %v5119
        %v5228 = vpack.c.bf16 %v5124, %v5122
        %v5229 = vpack.c.bf16 %v5125, %v5123
        %v5230 = vpack.c.bf16 %v5128, %v5126
        %v5231 = vpack.c.bf16 %v5129, %v5127
        %v5232 = vpack.c.bf16 %v5132, %v5130
        %v5233 = vpack.c.bf16 %v5133, %v5131
        %v5234 = vpack.c.bf16 %v5136, %v5134
        %v5235 = vpack.c.bf16 %v5137, %v5135
        %v5236 = vpack.c.bf16 %v5140, %v5138
        %v5237 = vpack.c.bf16 %v5141, %v5139
        %v5238 = vpack.c.bf16 %v5144, %v5142
        %v5239 = vpack.c.bf16 %v5145, %v5143
        %v5240 = vpack.c.bf16 %v5148, %v5146
        %v5241 = vpack.c.bf16 %v5149, %v5147
        %v5242 = vpack.c.bf16 %v5152, %v5150
        %v5243 = vpack.c.bf16 %v5153, %v5151
        %v5244 = vpack.c.bf16 %v5156, %v5154
        %v5245 = vpack.c.bf16 %v5157, %v5155
        %v5246 = vpack.c.bf16 %v5160, %v5158
        %v5247 = vpack.c.bf16 %v5161, %v5159
        %v5248 = vpack.c.bf16 %v5164, %v5162
        %v5249 = vpack.c.bf16 %v5165, %v5163
        %v5250 = vpack.c.bf16 %v5168, %v5166
        %v5251 = vpack.c.bf16 %v5169, %v5167
        %v5252 = vpack.c.bf16 %v5172, %v5170
        %v5253 = vpack.c.bf16 %v5173, %v5171
        %v5254 = vpack.c.bf16 %v5176, %v5174
        %v5255 = vpack.c.bf16 %v5177, %v5175
        %v5256 = vpack.c.bf16 %v5180, %v5178
        %v5257 = vpack.c.bf16 %v5181, %v5179
        %v5258 = vpack.c.bf16 %v5184, %v5182
        %v5259 = vpack.c.bf16 %v5185, %v5183
        %v5260 = vpack.c.bf16 %v5188, %v5186
        %v5261 = vpack.c.bf16 %v5189, %v5187
        %v5262 = vpack.c.bf16 %v5192, %v5190
        %v5263 = vpack.c.bf16 %v5193, %v5191
        %v5264 = vpack.c.bf16 %v5196, %v5194
        %v5265 = vpack.c.bf16 %v5197, %v5195
        %v5266 = vpack.c.bf16 %v5200, %v5198
        %v5267 = vpack.c.bf16 %v5201, %v5199
        %v5268 = vpack.c.bf16 %v5204, %v5202
        %v5269 = vpack.c.bf16 %v5205, %v5203
        %v5270 = vld [vmem:[#allocation13] sm:$0xff]
        %v5271 = vld [vmem:[#allocation13 + $0x8] sm:$0xff]
        %v5272 = vld [vmem:[#allocation13 + $0x10] sm:$0xff]
        %v5273 = vld [vmem:[#allocation13 + $0x18] sm:$0xff]
        %v5274 = vld [vmem:[#allocation13 + $0x20] sm:$0xff]
        %v5275 = vld [vmem:[#allocation13 + $0x28] sm:$0xff]
        %v5276 = vld [vmem:[#allocation13 + $0x30] sm:$0xff]
        %v5277 = vld [vmem:[#allocation13 + $0x38] sm:$0xff]
        %v5278 = vld [vmem:[#allocation13 + $0x40] sm:$0xff]
        %v5279 = vld [vmem:[#allocation13 + $0x48] sm:$0xff]
        %v5280 = vld [vmem:[#allocation13 + $0x50] sm:$0xff]
        %v5281 = vld [vmem:[#allocation13 + $0x58] sm:$0xff]
        %v5282 = vld [vmem:[#allocation13 + $0x60] sm:$0xff]
        %v5283 = vld [vmem:[#allocation13 + $0x68] sm:$0xff]
        %v5284 = vld [vmem:[#allocation13 + $0x70] sm:$0xff]
        %v5285 = vld [vmem:[#allocation13 + $0x78] sm:$0xff]
        %v5286 = vld [vmem:[#allocation13 + $0x80] sm:$0xff]
        %v5287 = vld [vmem:[#allocation13 + $0x88] sm:$0xff]
        %v5288 = vld [vmem:[#allocation13 + $0x90] sm:$0xff]
        %v5289 = vld [vmem:[#allocation13 + $0x98] sm:$0xff]
        %v5290 = vld [vmem:[#allocation13 + $0xa0] sm:$0xff]
        %v5291 = vld [vmem:[#allocation13 + $0xa8] sm:$0xff]
        %v5292 = vld [vmem:[#allocation13 + $0xb0] sm:$0xff]
        %v5293 = vld [vmem:[#allocation13 + $0xb8] sm:$0xff]
        %v5294 = vld [vmem:[#allocation13 + $0xc0] sm:$0xff]
        %v5295 = vld [vmem:[#allocation13 + $0xc8] sm:$0xff]
        %v5296 = vld [vmem:[#allocation13 + $0xd0] sm:$0xff]
        %v5297 = vld [vmem:[#allocation13 + $0xd8] sm:$0xff]
        %v5298 = vld [vmem:[#allocation13 + $0xe0] sm:$0xff]
        %v5299 = vld [vmem:[#allocation13 + $0xe8] sm:$0xff]
        %v5300 = vld [vmem:[#allocation13 + $0xf0] sm:$0xff]
        %v5301 = vld [vmem:[#allocation13 + $0xf8] sm:$0xff]
        %v5302 = vld [vmem:[%s13] sm:$0x3]
        %v5304 = vlaneseq
        %v5305 = vshrl.u32 %v5304, 7
        %v5306 = vsub.s32 0, %v5305
        %v5307 = vrot.slane %v5302, %v5306
        %v5308 = vlaneseq
        %v5309 = vshrl.u32 %v5308, 7
        %v5310 = vsub.s32 1, %v5309
        %v5311 = vrot.slane %v5302, %v5310
        %v5346 = vunpack.c.l.b16 %v5270
        %v5347 = vunpack.c.h.b16 %v5270
        %v5348 = vunpack.c.l.b16 %v5271
        %v5349 = vunpack.c.h.b16 %v5271
        %v5350 = vunpack.c.l.b16 %v5272
        %v5351 = vunpack.c.h.b16 %v5272
        %v5352 = vunpack.c.l.b16 %v5273
        %v5353 = vunpack.c.h.b16 %v5273
        %v5354 = vunpack.c.l.b16 %v5274
        %v5355 = vunpack.c.h.b16 %v5274
        %v5356 = vunpack.c.l.b16 %v5275
        %v5357 = vunpack.c.h.b16 %v5275
        %v5358 = vunpack.c.l.b16 %v5276
        %v5359 = vunpack.c.h.b16 %v5276
        %v5360 = vunpack.c.l.b16 %v5277
        %v5361 = vunpack.c.h.b16 %v5277
        %v5362 = vunpack.c.l.b16 %v5278
        %v5363 = vunpack.c.h.b16 %v5278
        %v5364 = vunpack.c.l.b16 %v5279
        %v5365 = vunpack.c.h.b16 %v5279
        %v5366 = vunpack.c.l.b16 %v5280
        %v5367 = vunpack.c.h.b16 %v5280
        %v5368 = vunpack.c.l.b16 %v5281
        %v5369 = vunpack.c.h.b16 %v5281
        %v5370 = vunpack.c.l.b16 %v5282
        %v5371 = vunpack.c.h.b16 %v5282
        %v5372 = vunpack.c.l.b16 %v5283
        %v5373 = vunpack.c.h.b16 %v5283
        %v5374 = vunpack.c.l.b16 %v5284
        %v5375 = vunpack.c.h.b16 %v5284
        %v5376 = vunpack.c.l.b16 %v5285
        %v5377 = vunpack.c.h.b16 %v5285
        %v5378 = vunpack.c.l.b16 %v5286
        %v5379 = vunpack.c.h.b16 %v5286
        %v5380 = vunpack.c.l.b16 %v5287
        %v5381 = vunpack.c.h.b16 %v5287
        %v5382 = vunpack.c.l.b16 %v5288
        %v5383 = vunpack.c.h.b16 %v5288
        %v5384 = vunpack.c.l.b16 %v5289
        %v5385 = vunpack.c.h.b16 %v5289
        %v5386 = vunpack.c.l.b16 %v5290
        %v5387 = vunpack.c.h.b16 %v5290
        %v5388 = vunpack.c.l.b16 %v5291
        %v5389 = vunpack.c.h.b16 %v5291
        %v5390 = vunpack.c.l.b16 %v5292
        %v5391 = vunpack.c.h.b16 %v5292
        %v5392 = vunpack.c.l.b16 %v5293
        %v5393 = vunpack.c.h.b16 %v5293
        %v5394 = vunpack.c.l.b16 %v5294
        %v5395 = vunpack.c.h.b16 %v5294
        %v5396 = vunpack.c.l.b16 %v5295
        %v5397 = vunpack.c.h.b16 %v5295
        %v5398 = vunpack.c.l.b16 %v5296
        %v5399 = vunpack.c.h.b16 %v5296
        %v5400 = vunpack.c.l.b16 %v5297
        %v5401 = vunpack.c.h.b16 %v5297
        %v5402 = vunpack.c.l.b16 %v5298
        %v5403 = vunpack.c.h.b16 %v5298
        %v5404 = vunpack.c.l.b16 %v5299
        %v5405 = vunpack.c.h.b16 %v5299
        %v5406 = vunpack.c.l.b16 %v5300
        %v5407 = vunpack.c.h.b16 %v5300
        %v5408 = vunpack.c.l.b16 %v5301
        %v5409 = vunpack.c.h.b16 %v5301
        %v5410 = vpack.c.b16 %v5348, %v5346
        %v5411 = vpack.c.b16 %v5349, %v5347
        %v5412 = vpack.c.b16 %v5352, %v5350
        %v5413 = vpack.c.b16 %v5353, %v5351
        %v5414 = vpack.c.b16 %v5356, %v5354
        %v5415 = vpack.c.b16 %v5357, %v5355
        %v5416 = vpack.c.b16 %v5360, %v5358
        %v5417 = vpack.c.b16 %v5361, %v5359
        %v5418 = vpack.c.b16 %v5364, %v5362
        %v5419 = vpack.c.b16 %v5365, %v5363
        %v5420 = vpack.c.b16 %v5368, %v5366
        %v5421 = vpack.c.b16 %v5369, %v5367
        %v5422 = vpack.c.b16 %v5372, %v5370
        %v5423 = vpack.c.b16 %v5373, %v5371
        %v5424 = vpack.c.b16 %v5376, %v5374
        %v5425 = vpack.c.b16 %v5377, %v5375
        %v5426 = vpack.c.b16 %v5380, %v5378
        %v5427 = vpack.c.b16 %v5381, %v5379
        %v5428 = vpack.c.b16 %v5384, %v5382
        %v5429 = vpack.c.b16 %v5385, %v5383
        %v5430 = vpack.c.b16 %v5388, %v5386
        %v5431 = vpack.c.b16 %v5389, %v5387
        %v5432 = vpack.c.b16 %v5392, %v5390
        %v5433 = vpack.c.b16 %v5393, %v5391
        %v5434 = vpack.c.b16 %v5396, %v5394
        %v5435 = vpack.c.b16 %v5397, %v5395
        %v5436 = vpack.c.b16 %v5400, %v5398
        %v5437 = vpack.c.b16 %v5401, %v5399
        %v5438 = vpack.c.b16 %v5404, %v5402
        %v5439 = vpack.c.b16 %v5405, %v5403
        %v5440 = vpack.c.b16 %v5408, %v5406
        %v5441 = vpack.c.b16 %v5409, %v5407
        %5474 = vmatprep.subr.bf16.mxu0 %v5425
        %5475 = vmatpush1.bf16.msra.mxu0 %v5424
        %5476 = vmatprep.subr.bf16.mxu0 %v5423
        %5477 = vmatpush1.bf16.msra.mxu0 %v5422
        %5478 = vmatprep.subr.bf16.mxu0 %v5421
        %5479 = vmatpush1.bf16.msra.mxu0 %v5420
        %5480 = vmatprep.subr.bf16.mxu0 %v5419
        %5481 = vmatpush1.bf16.msra.mxu0 %v5418
        %5482 = vmatprep.subr.bf16.mxu0 %v5417
        %5483 = vmatpush1.bf16.msra.mxu0 %v5416
        %5484 = vmatprep.subr.bf16.mxu0 %v5415
        %5485 = vmatpush1.bf16.msra.mxu0 %v5414
        %5486 = vmatprep.subr.bf16.mxu0 %v5413
        %5487 = vmatpush1.bf16.msra.mxu0 %v5412
        %5488 = vmatprep.subr.bf16.mxu0 %v5411
        %5489 = vmatpush1.bf16.msra.mxu0 %v5410
        %5490 = vmatprep.subr.bf16.mxu0 %v5441
        %5491 = vmatpush2.bf16.msra.mxu0 %v5440
        %5492 = vmatprep.subr.bf16.mxu0 %v5439
        %5493 = vmatpush2.bf16.msra.mxu0 %v5438
        %5494 = vmatprep.subr.bf16.mxu0 %v5437
        %5495 = vmatpush2.bf16.msra.mxu0 %v5436
        %5496 = vmatprep.subr.bf16.mxu0 %v5435
        %5497 = vmatpush2.bf16.msra.mxu0 %v5434
        %5498 = vmatprep.subr.bf16.mxu0 %v5433
        %5499 = vmatpush2.bf16.msra.mxu0 %v5432
        %5500 = vmatprep.subr.bf16.mxu0 %v5431
        %5501 = vmatpush2.bf16.msra.mxu0 %v5430
        %5502 = vmatprep.subr.bf16.mxu0 %v5429
        %5503 = vmatpush2.bf16.msra.mxu0 %v5428
        %5504 = vmatprep.subr.bf16.mxu0 %v5427
        %5505 = vmatpush2.bf16.msra.mxu0 %v5426
        %5506 = vmatprep.mubr.bf16.mxu0 %v5207
        %5507 = vmatmul.mubr.bf16.gmra.mxu0 %v5206
        %v5508 = vpop.f32.mrf.mxu0
        %v5509 = vadd.f32 %v5307, %v5508
        %v5510 = vpop.f32.mrf.mxu0
        %v5511 = vadd.f32 %v5311, %v5510
        %v5512 = vpop.f32.mrf.mxu0
        %v5513 = vadd.f32 %v5307, %v5512
        %v5514 = vpop.f32.mrf.mxu0
        %v5515 = vadd.f32 %v5311, %v5514
        %5516 = vmatprep.mubr.bf16.mxu0 %v5209
        %5517 = vmatmul.mubr.bf16.gmra.mxu0 %v5208
        %v5518 = vpop.f32.mrf.mxu0
        %v5519 = vadd.f32 %v5307, %v5518
        %v5520 = vpop.f32.mrf.mxu0
        %v5521 = vadd.f32 %v5311, %v5520
        %v5522 = vpop.f32.mrf.mxu0
        %v5523 = vadd.f32 %v5307, %v5522
        %v5524 = vpop.f32.mrf.mxu0
        %v5525 = vadd.f32 %v5311, %v5524
        %5526 = vmatprep.mubr.bf16.mxu0 %v5211
        %5527 = vmatmul.mubr.bf16.gmra.mxu0 %v5210
        %v5528 = vpop.f32.mrf.mxu0
        %v5529 = vadd.f32 %v5307, %v5528
        %v5530 = vpop.f32.mrf.mxu0
        %v5531 = vadd.f32 %v5311, %v5530
        %v5532 = vpop.f32.mrf.mxu0
        %v5533 = vadd.f32 %v5307, %v5532
        %v5534 = vpop.f32.mrf.mxu0
        %v5535 = vadd.f32 %v5311, %v5534
        %5536 = vmatprep.mubr.bf16.mxu0 %v5213
        %5537 = vmatmul.mubr.bf16.gmra.mxu0 %v5212
        %v5538 = vpop.f32.mrf.mxu0
        %v5539 = vadd.f32 %v5307, %v5538
        %v5540 = vpop.f32.mrf.mxu0
        %v5541 = vadd.f32 %v5311, %v5540
        %v5542 = vpop.f32.mrf.mxu0
        %v5543 = vadd.f32 %v5307, %v5542
        %v5544 = vpop.f32.mrf.mxu0
        %v5545 = vadd.f32 %v5311, %v5544
        %5546 = vmatprep.mubr.bf16.mxu0 %v5215
        %5547 = vmatmul.mubr.bf16.gmra.mxu0 %v5214
        %v5548 = vpop.f32.mrf.mxu0
        %v5549 = vadd.f32 %v5307, %v5548
        %v5550 = vpop.f32.mrf.mxu0
        %v5551 = vadd.f32 %v5311, %v5550
        %v5552 = vpop.f32.mrf.mxu0
        %v5553 = vadd.f32 %v5307, %v5552
        %v5554 = vpop.f32.mrf.mxu0
        %v5555 = vadd.f32 %v5311, %v5554
        %5556 = vmatprep.mubr.bf16.mxu0 %v5217
        %5557 = vmatmul.mubr.bf16.gmra.mxu0 %v5216
        %v5558 = vpop.f32.mrf.mxu0
        %v5559 = vadd.f32 %v5307, %v5558
        %v5560 = vpop.f32.mrf.mxu0
        %v5561 = vadd.f32 %v5311, %v5560
        %v5562 = vpop.f32.mrf.mxu0
        %v5563 = vadd.f32 %v5307, %v5562
        %v5564 = vpop.f32.mrf.mxu0
        %v5565 = vadd.f32 %v5311, %v5564
        %5566 = vmatprep.mubr.bf16.mxu0 %v5219
        %5567 = vmatmul.mubr.bf16.gmra.mxu0 %v5218
        %v5568 = vpop.f32.mrf.mxu0
        %v5569 = vadd.f32 %v5307, %v5568
        %v5570 = vpop.f32.mrf.mxu0
        %v5571 = vadd.f32 %v5311, %v5570
        %v5572 = vpop.f32.mrf.mxu0
        %v5573 = vadd.f32 %v5307, %v5572
        %v5574 = vpop.f32.mrf.mxu0
        %v5575 = vadd.f32 %v5311, %v5574
        %5576 = vmatprep.mubr.bf16.mxu0 %v5221
        %5577 = vmatmul.mubr.bf16.gmra.mxu0 %v5220
        %v5578 = vpop.f32.mrf.mxu0
        %v5579 = vadd.f32 %v5307, %v5578
        %v5580 = vpop.f32.mrf.mxu0
        %v5581 = vadd.f32 %v5311, %v5580
        %v5582 = vpop.f32.mrf.mxu0
        %v5583 = vadd.f32 %v5307, %v5582
        %v5584 = vpop.f32.mrf.mxu0
        %v5585 = vadd.f32 %v5311, %v5584
        %5586 = vmatprep.mubr.bf16.mxu0 %v5223
        %5587 = vmatmul.mubr.bf16.gmra.mxu0 %v5222
        %v5588 = vpop.f32.mrf.mxu0
        %v5589 = vadd.f32 %v5307, %v5588
        %v5590 = vpop.f32.mrf.mxu0
        %v5591 = vadd.f32 %v5311, %v5590
        %v5592 = vpop.f32.mrf.mxu0
        %v5593 = vadd.f32 %v5307, %v5592
        %v5594 = vpop.f32.mrf.mxu0
        %v5595 = vadd.f32 %v5311, %v5594
        %5596 = vmatprep.mubr.bf16.mxu0 %v5225
        %5597 = vmatmul.mubr.bf16.gmra.mxu0 %v5224
        %v5598 = vpop.f32.mrf.mxu0
        %v5599 = vadd.f32 %v5307, %v5598
        %v5600 = vpop.f32.mrf.mxu0
        %v5601 = vadd.f32 %v5311, %v5600
        %v5602 = vpop.f32.mrf.mxu0
        %v5603 = vadd.f32 %v5307, %v5602
        %v5604 = vpop.f32.mrf.mxu0
        %v5605 = vadd.f32 %v5311, %v5604
        %5606 = vmatprep.mubr.bf16.mxu0 %v5227
        %5607 = vmatmul.mubr.bf16.gmra.mxu0 %v5226
        %v5608 = vpop.f32.mrf.mxu0
        %v5609 = vadd.f32 %v5307, %v5608
        %v5610 = vpop.f32.mrf.mxu0
        %v5611 = vadd.f32 %v5311, %v5610
        %v5612 = vpop.f32.mrf.mxu0
        %v5613 = vadd.f32 %v5307, %v5612
        %v5614 = vpop.f32.mrf.mxu0
        %v5615 = vadd.f32 %v5311, %v5614
        %5616 = vmatprep.mubr.bf16.mxu0 %v5229
        %5617 = vmatmul.mubr.bf16.gmra.mxu0 %v5228
        %v5618 = vpop.f32.mrf.mxu0
        %v5619 = vadd.f32 %v5307, %v5618
        %v5620 = vpop.f32.mrf.mxu0
        %v5621 = vadd.f32 %v5311, %v5620
        %v5622 = vpop.f32.mrf.mxu0
        %v5623 = vadd.f32 %v5307, %v5622
        %v5624 = vpop.f32.mrf.mxu0
        %v5625 = vadd.f32 %v5311, %v5624
        %5626 = vmatprep.mubr.bf16.mxu0 %v5231
        %5627 = vmatmul.mubr.bf16.gmra.mxu0 %v5230
        %v5628 = vpop.f32.mrf.mxu0
        %v5629 = vadd.f32 %v5307, %v5628
        %v5630 = vpop.f32.mrf.mxu0
        %v5631 = vadd.f32 %v5311, %v5630
        %v5632 = vpop.f32.mrf.mxu0
        %v5633 = vadd.f32 %v5307, %v5632
        %v5634 = vpop.f32.mrf.mxu0
        %v5635 = vadd.f32 %v5311, %v5634
        %5636 = vmatprep.mubr.bf16.mxu0 %v5233
        %5637 = vmatmul.mubr.bf16.gmra.mxu0 %v5232
        %v5638 = vpop.f32.mrf.mxu0
        %v5639 = vadd.f32 %v5307, %v5638
        %v5640 = vpop.f32.mrf.mxu0
        %v5641 = vadd.f32 %v5311, %v5640
        %v5642 = vpop.f32.mrf.mxu0
        %v5643 = vadd.f32 %v5307, %v5642
        %v5644 = vpop.f32.mrf.mxu0
        %v5645 = vadd.f32 %v5311, %v5644
        %5646 = vmatprep.mubr.bf16.mxu0 %v5235
        %5647 = vmatmul.mubr.bf16.gmra.mxu0 %v5234
        %v5648 = vpop.f32.mrf.mxu0
        %v5649 = vadd.f32 %v5307, %v5648
        %v5650 = vpop.f32.mrf.mxu0
        %v5651 = vadd.f32 %v5311, %v5650
        %v5652 = vpop.f32.mrf.mxu0
        %v5653 = vadd.f32 %v5307, %v5652
        %v5654 = vpop.f32.mrf.mxu0
        %v5655 = vadd.f32 %v5311, %v5654
        %5656 = vmatprep.mubr.bf16.mxu0 %v5237
        %5657 = vmatmul.mubr.bf16.gmra.mxu0 %v5236
        %v5658 = vpop.f32.mrf.mxu0
        %v5659 = vadd.f32 %v5307, %v5658
        %v5660 = vpop.f32.mrf.mxu0
        %v5661 = vadd.f32 %v5311, %v5660
        %v5662 = vpop.f32.mrf.mxu0
        %v5663 = vadd.f32 %v5307, %v5662
        %v5664 = vpop.f32.mrf.mxu0
        %v5665 = vadd.f32 %v5311, %v5664
        %5666 = vmatprep.mubr.bf16.mxu0 %v5239
        %5667 = vmatmul.mubr.bf16.gmra.mxu0 %v5238
        %v5668 = vpop.f32.mrf.mxu0
        %v5669 = vadd.f32 %v5307, %v5668
        %v5670 = vpop.f32.mrf.mxu0
        %v5671 = vadd.f32 %v5311, %v5670
        %v5672 = vpop.f32.mrf.mxu0
        %v5673 = vadd.f32 %v5307, %v5672
        %v5674 = vpop.f32.mrf.mxu0
        %v5675 = vadd.f32 %v5311, %v5674
        %5676 = vmatprep.mubr.bf16.mxu0 %v5241
        %5677 = vmatmul.mubr.bf16.gmra.mxu0 %v5240
        %v5678 = vpop.f32.mrf.mxu0
        %v5679 = vadd.f32 %v5307, %v5678
        %v5680 = vpop.f32.mrf.mxu0
        %v5681 = vadd.f32 %v5311, %v5680
        %v5682 = vpop.f32.mrf.mxu0
        %v5683 = vadd.f32 %v5307, %v5682
        %v5684 = vpop.f32.mrf.mxu0
        %v5685 = vadd.f32 %v5311, %v5684
        %5686 = vmatprep.mubr.bf16.mxu0 %v5243
        %5687 = vmatmul.mubr.bf16.gmra.mxu0 %v5242
        %v5688 = vpop.f32.mrf.mxu0
        %v5689 = vadd.f32 %v5307, %v5688
        %v5690 = vpop.f32.mrf.mxu0
        %v5691 = vadd.f32 %v5311, %v5690
        %v5692 = vpop.f32.mrf.mxu0
        %v5693 = vadd.f32 %v5307, %v5692
        %v5694 = vpop.f32.mrf.mxu0
        %v5695 = vadd.f32 %v5311, %v5694
        %5696 = vmatprep.mubr.bf16.mxu0 %v5245
        %5697 = vmatmul.mubr.bf16.gmra.mxu0 %v5244
        %v5698 = vpop.f32.mrf.mxu0
        %v5699 = vadd.f32 %v5307, %v5698
        %v5700 = vpop.f32.mrf.mxu0
        %v5701 = vadd.f32 %v5311, %v5700
        %v5702 = vpop.f32.mrf.mxu0
        %v5703 = vadd.f32 %v5307, %v5702
        %v5704 = vpop.f32.mrf.mxu0
        %v5705 = vadd.f32 %v5311, %v5704
        %5706 = vmatprep.mubr.bf16.mxu0 %v5247
        %5707 = vmatmul.mubr.bf16.gmra.mxu0 %v5246
        %v5708 = vpop.f32.mrf.mxu0
        %v5709 = vadd.f32 %v5307, %v5708
        %v5710 = vpop.f32.mrf.mxu0
        %v5711 = vadd.f32 %v5311, %v5710
        %v5712 = vpop.f32.mrf.mxu0
        %v5713 = vadd.f32 %v5307, %v5712
        %v5714 = vpop.f32.mrf.mxu0
        %v5715 = vadd.f32 %v5311, %v5714
        %5716 = vmatprep.mubr.bf16.mxu0 %v5249
        %5717 = vmatmul.mubr.bf16.gmra.mxu0 %v5248
        %v5718 = vpop.f32.mrf.mxu0
        %v5719 = vadd.f32 %v5307, %v5718
        %v5720 = vpop.f32.mrf.mxu0
        %v5721 = vadd.f32 %v5311, %v5720
        %v5722 = vpop.f32.mrf.mxu0
        %v5723 = vadd.f32 %v5307, %v5722
        %v5724 = vpop.f32.mrf.mxu0
        %v5725 = vadd.f32 %v5311, %v5724
        %5726 = vmatprep.mubr.bf16.mxu0 %v5251
        %5727 = vmatmul.mubr.bf16.gmra.mxu0 %v5250
        %v5728 = vpop.f32.mrf.mxu0
        %v5729 = vadd.f32 %v5307, %v5728
        %v5730 = vpop.f32.mrf.mxu0
        %v5731 = vadd.f32 %v5311, %v5730
        %v5732 = vpop.f32.mrf.mxu0
        %v5733 = vadd.f32 %v5307, %v5732
        %v5734 = vpop.f32.mrf.mxu0
        %v5735 = vadd.f32 %v5311, %v5734
        %5736 = vmatprep.mubr.bf16.mxu0 %v5253
        %5737 = vmatmul.mubr.bf16.gmra.mxu0 %v5252
        %v5738 = vpop.f32.mrf.mxu0
        %v5739 = vadd.f32 %v5307, %v5738
        %v5740 = vpop.f32.mrf.mxu0
        %v5741 = vadd.f32 %v5311, %v5740
        %v5742 = vpop.f32.mrf.mxu0
        %v5743 = vadd.f32 %v5307, %v5742
        %v5744 = vpop.f32.mrf.mxu0
        %v5745 = vadd.f32 %v5311, %v5744
        %5746 = vmatprep.mubr.bf16.mxu0 %v5255
        %5747 = vmatmul.mubr.bf16.gmra.mxu0 %v5254
        %v5748 = vpop.f32.mrf.mxu0
        %v5749 = vadd.f32 %v5307, %v5748
        %v5750 = vpop.f32.mrf.mxu0
        %v5751 = vadd.f32 %v5311, %v5750
        %v5752 = vpop.f32.mrf.mxu0
        %v5753 = vadd.f32 %v5307, %v5752
        %v5754 = vpop.f32.mrf.mxu0
        %v5755 = vadd.f32 %v5311, %v5754
        %5756 = vmatprep.mubr.bf16.mxu0 %v5257
        %5757 = vmatmul.mubr.bf16.gmra.mxu0 %v5256
        %v5758 = vpop.f32.mrf.mxu0
        %v5759 = vadd.f32 %v5307, %v5758
        %v5760 = vpop.f32.mrf.mxu0
        %v5761 = vadd.f32 %v5311, %v5760
        %v5762 = vpop.f32.mrf.mxu0
        %v5763 = vadd.f32 %v5307, %v5762
        %v5764 = vpop.f32.mrf.mxu0
        %v5765 = vadd.f32 %v5311, %v5764
        %5766 = vmatprep.mubr.bf16.mxu0 %v5259
        %5767 = vmatmul.mubr.bf16.gmra.mxu0 %v5258
        %v5768 = vpop.f32.mrf.mxu0
        %v5769 = vadd.f32 %v5307, %v5768
        %v5770 = vpop.f32.mrf.mxu0
        %v5771 = vadd.f32 %v5311, %v5770
        %v5772 = vpop.f32.mrf.mxu0
        %v5773 = vadd.f32 %v5307, %v5772
        %v5774 = vpop.f32.mrf.mxu0
        %v5775 = vadd.f32 %v5311, %v5774
        %5776 = vmatprep.mubr.bf16.mxu0 %v5261
        %5777 = vmatmul.mubr.bf16.gmra.mxu0 %v5260
        %v5778 = vpop.f32.mrf.mxu0
        %v5779 = vadd.f32 %v5307, %v5778
        %v5780 = vpop.f32.mrf.mxu0
        %v5781 = vadd.f32 %v5311, %v5780
        %v5782 = vpop.f32.mrf.mxu0
        %v5783 = vadd.f32 %v5307, %v5782
        %v5784 = vpop.f32.mrf.mxu0
        %v5785 = vadd.f32 %v5311, %v5784
        %5786 = vmatprep.mubr.bf16.mxu0 %v5263
        %5787 = vmatmul.mubr.bf16.gmra.mxu0 %v5262
        %v5788 = vpop.f32.mrf.mxu0
        %v5789 = vadd.f32 %v5307, %v5788
        %v5790 = vpop.f32.mrf.mxu0
        %v5791 = vadd.f32 %v5311, %v5790
        %v5792 = vpop.f32.mrf.mxu0
        %v5793 = vadd.f32 %v5307, %v5792
        %v5794 = vpop.f32.mrf.mxu0
        %v5795 = vadd.f32 %v5311, %v5794
        %5796 = vmatprep.mubr.bf16.mxu0 %v5265
        %5797 = vmatmul.mubr.bf16.gmra.mxu0 %v5264
        %v5798 = vpop.f32.mrf.mxu0
        %v5799 = vadd.f32 %v5307, %v5798
        %v5800 = vpop.f32.mrf.mxu0
        %v5801 = vadd.f32 %v5311, %v5800
        %v5802 = vpop.f32.mrf.mxu0
        %v5803 = vadd.f32 %v5307, %v5802
        %v5804 = vpop.f32.mrf.mxu0
        %v5805 = vadd.f32 %v5311, %v5804
        %5806 = vmatprep.mubr.bf16.mxu0 %v5267
        %5807 = vmatmul.mubr.bf16.gmra.mxu0 %v5266
        %v5808 = vpop.f32.mrf.mxu0
        %v5809 = vadd.f32 %v5307, %v5808
        %v5810 = vpop.f32.mrf.mxu0
        %v5811 = vadd.f32 %v5311, %v5810
        %v5812 = vpop.f32.mrf.mxu0
        %v5813 = vadd.f32 %v5307, %v5812
        %v5814 = vpop.f32.mrf.mxu0
        %v5815 = vadd.f32 %v5311, %v5814
        %5816 = vmatprep.mubr.bf16.mxu0 %v5269
        %5817 = vmatmul.mubr.bf16.gmra.mxu0 %v5268
        %v5818 = vpop.f32.mrf.mxu0
        %v5819 = vadd.f32 %v5307, %v5818
        %v5820 = vpop.f32.mrf.mxu0
        %v5821 = vadd.f32 %v5311, %v5820
        %v5822 = vpop.f32.mrf.mxu0
        %v5823 = vadd.f32 %v5307, %v5822
        %v5824 = vpop.f32.mrf.mxu0
        %v5825 = vadd.f32 %v5311, %v5824
        %5826 = vdwg.mxu0
        %v5827 = vmax.f32 %v5509, 0.0
        %v5828 = vmax.f32 %v5511, 0.0
        %v5829 = vmax.f32 %v5513, 0.0
        %v5830 = vmax.f32 %v5515, 0.0
        %v5831 = vmax.f32 %v5519, 0.0
        %v5832 = vmax.f32 %v5521, 0.0
        %v5833 = vmax.f32 %v5523, 0.0
        %v5834 = vmax.f32 %v5525, 0.0
        %v5835 = vmax.f32 %v5529, 0.0
        %v5836 = vmax.f32 %v5531, 0.0
        %v5837 = vmax.f32 %v5533, 0.0
        %v5838 = vmax.f32 %v5535, 0.0
        %v5839 = vmax.f32 %v5539, 0.0
        %v5840 = vmax.f32 %v5541, 0.0
        %v5841 = vmax.f32 %v5543, 0.0
        %v5842 = vmax.f32 %v5545, 0.0
        %v5843 = vmax.f32 %v5549, 0.0
        %v5844 = vmax.f32 %v5551, 0.0
        %v5845 = vmax.f32 %v5553, 0.0
        %v5846 = vmax.f32 %v5555, 0.0
        %v5847 = vmax.f32 %v5559, 0.0
        %v5848 = vmax.f32 %v5561, 0.0
        %v5849 = vmax.f32 %v5563, 0.0
        %v5850 = vmax.f32 %v5565, 0.0
        %v5851 = vmax.f32 %v5569, 0.0
        %v5852 = vmax.f32 %v5571, 0.0
        %v5853 = vmax.f32 %v5573, 0.0
        %v5854 = vmax.f32 %v5575, 0.0
        %v5855 = vmax.f32 %v5579, 0.0
        %v5856 = vmax.f32 %v5581, 0.0
        %v5857 = vmax.f32 %v5583, 0.0
        %v5858 = vmax.f32 %v5585, 0.0
        %v5859 = vmax.f32 %v5589, 0.0
        %v5860 = vmax.f32 %v5591, 0.0
        %v5861 = vmax.f32 %v5593, 0.0
        %v5862 = vmax.f32 %v5595, 0.0
        %v5863 = vmax.f32 %v5599, 0.0
        %v5864 = vmax.f32 %v5601, 0.0
        %v5865 = vmax.f32 %v5603, 0.0
        %v5866 = vmax.f32 %v5605, 0.0
        %v5867 = vmax.f32 %v5609, 0.0
        %v5868 = vmax.f32 %v5611, 0.0
        %v5869 = vmax.f32 %v5613, 0.0
        %v5870 = vmax.f32 %v5615, 0.0
        %v5871 = vmax.f32 %v5619, 0.0
        %v5872 = vmax.f32 %v5621, 0.0
        %v5873 = vmax.f32 %v5623, 0.0
        %v5874 = vmax.f32 %v5625, 0.0
        %v5875 = vmax.f32 %v5629, 0.0
        %v5876 = vmax.f32 %v5631, 0.0
        %v5877 = vmax.f32 %v5633, 0.0
        %v5878 = vmax.f32 %v5635, 0.0
        %v5879 = vmax.f32 %v5639, 0.0
        %v5880 = vmax.f32 %v5641, 0.0
        %v5881 = vmax.f32 %v5643, 0.0
        %v5882 = vmax.f32 %v5645, 0.0
        %v5883 = vmax.f32 %v5649, 0.0
        %v5884 = vmax.f32 %v5651, 0.0
        %v5885 = vmax.f32 %v5653, 0.0
        %v5886 = vmax.f32 %v5655, 0.0
        %v5887 = vmax.f32 %v5659, 0.0
        %v5888 = vmax.f32 %v5661, 0.0
        %v5889 = vmax.f32 %v5663, 0.0
        %v5890 = vmax.f32 %v5665, 0.0
        %v5891 = vmax.f32 %v5669, 0.0
        %v5892 = vmax.f32 %v5671, 0.0
        %v5893 = vmax.f32 %v5673, 0.0
        %v5894 = vmax.f32 %v5675, 0.0
        %v5895 = vmax.f32 %v5679, 0.0
        %v5896 = vmax.f32 %v5681, 0.0
        %v5897 = vmax.f32 %v5683, 0.0
        %v5898 = vmax.f32 %v5685, 0.0
        %v5899 = vmax.f32 %v5689, 0.0
        %v5900 = vmax.f32 %v5691, 0.0
        %v5901 = vmax.f32 %v5693, 0.0
        %v5902 = vmax.f32 %v5695, 0.0
        %v5903 = vmax.f32 %v5699, 0.0
        %v5904 = vmax.f32 %v5701, 0.0
        %v5905 = vmax.f32 %v5703, 0.0
        %v5906 = vmax.f32 %v5705, 0.0
        %v5907 = vmax.f32 %v5709, 0.0
        %v5908 = vmax.f32 %v5711, 0.0
        %v5909 = vmax.f32 %v5713, 0.0
        %v5910 = vmax.f32 %v5715, 0.0
        %v5911 = vmax.f32 %v5719, 0.0
        %v5912 = vmax.f32 %v5721, 0.0
        %v5913 = vmax.f32 %v5723, 0.0
        %v5914 = vmax.f32 %v5725, 0.0
        %v5915 = vmax.f32 %v5729, 0.0
        %v5916 = vmax.f32 %v5731, 0.0
        %v5917 = vmax.f32 %v5733, 0.0
        %v5918 = vmax.f32 %v5735, 0.0
        %v5919 = vmax.f32 %v5739, 0.0
        %v5920 = vmax.f32 %v5741, 0.0
        %v5921 = vmax.f32 %v5743, 0.0
        %v5922 = vmax.f32 %v5745, 0.0
        %v5923 = vmax.f32 %v5749, 0.0
        %v5924 = vmax.f32 %v5751, 0.0
        %v5925 = vmax.f32 %v5753, 0.0
        %v5926 = vmax.f32 %v5755, 0.0
        %v5927 = vmax.f32 %v5759, 0.0
        %v5928 = vmax.f32 %v5761, 0.0
        %v5929 = vmax.f32 %v5763, 0.0
        %v5930 = vmax.f32 %v5765, 0.0
        %v5931 = vmax.f32 %v5769, 0.0
        %v5932 = vmax.f32 %v5771, 0.0
        %v5933 = vmax.f32 %v5773, 0.0
        %v5934 = vmax.f32 %v5775, 0.0
        %v5935 = vmax.f32 %v5779, 0.0
        %v5936 = vmax.f32 %v5781, 0.0
        %v5937 = vmax.f32 %v5783, 0.0
        %v5938 = vmax.f32 %v5785, 0.0
        %v5939 = vmax.f32 %v5789, 0.0
        %v5940 = vmax.f32 %v5791, 0.0
        %v5941 = vmax.f32 %v5793, 0.0
        %v5942 = vmax.f32 %v5795, 0.0
        %v5943 = vmax.f32 %v5799, 0.0
        %v5944 = vmax.f32 %v5801, 0.0
        %v5945 = vmax.f32 %v5803, 0.0
        %v5946 = vmax.f32 %v5805, 0.0
        %v5947 = vmax.f32 %v5809, 0.0
        %v5948 = vmax.f32 %v5811, 0.0
        %v5949 = vmax.f32 %v5813, 0.0
        %v5950 = vmax.f32 %v5815, 0.0
        %v5951 = vmax.f32 %v5819, 0.0
        %v5952 = vmax.f32 %v5821, 0.0
        %v5953 = vmax.f32 %v5823, 0.0
        %v5954 = vmax.f32 %v5825, 0.0
        %v5955 = vpack.c.bf16 %v5829, %v5827
        %v5956 = vpack.c.bf16 %v5830, %v5828
        %v5957 = vpack.c.bf16 %v5833, %v5831
        %v5958 = vpack.c.bf16 %v5834, %v5832
        %v5959 = vpack.c.bf16 %v5837, %v5835
        %v5960 = vpack.c.bf16 %v5838, %v5836
        %v5961 = vpack.c.bf16 %v5841, %v5839
        %v5962 = vpack.c.bf16 %v5842, %v5840
        %v5963 = vpack.c.bf16 %v5845, %v5843
        %v5964 = vpack.c.bf16 %v5846, %v5844
        %v5965 = vpack.c.bf16 %v5849, %v5847
        %v5966 = vpack.c.bf16 %v5850, %v5848
        %v5967 = vpack.c.bf16 %v5853, %v5851
        %v5968 = vpack.c.bf16 %v5854, %v5852
        %v5969 = vpack.c.bf16 %v5857, %v5855
        %v5970 = vpack.c.bf16 %v5858, %v5856
        %v5971 = vpack.c.bf16 %v5861, %v5859
        %v5972 = vpack.c.bf16 %v5862, %v5860
        %v5973 = vpack.c.bf16 %v5865, %v5863
        %v5974 = vpack.c.bf16 %v5866, %v5864
        %v5975 = vpack.c.bf16 %v5869, %v5867
        %v5976 = vpack.c.bf16 %v5870, %v5868
        %v5977 = vpack.c.bf16 %v5873, %v5871
        %v5978 = vpack.c.bf16 %v5874, %v5872
        %v5979 = vpack.c.bf16 %v5877, %v5875
        %v5980 = vpack.c.bf16 %v5878, %v5876
        %v5981 = vpack.c.bf16 %v5881, %v5879
        %v5982 = vpack.c.bf16 %v5882, %v5880
        %v5983 = vpack.c.bf16 %v5885, %v5883
        %v5984 = vpack.c.bf16 %v5886, %v5884
        %v5985 = vpack.c.bf16 %v5889, %v5887
        %v5986 = vpack.c.bf16 %v5890, %v5888
        %v5987 = vpack.c.bf16 %v5893, %v5891
        %v5988 = vpack.c.bf16 %v5894, %v5892
        %v5989 = vpack.c.bf16 %v5897, %v5895
        %v5990 = vpack.c.bf16 %v5898, %v5896
        %v5991 = vpack.c.bf16 %v5901, %v5899
        %v5992 = vpack.c.bf16 %v5902, %v5900
        %v5993 = vpack.c.bf16 %v5905, %v5903
        %v5994 = vpack.c.bf16 %v5906, %v5904
        %v5995 = vpack.c.bf16 %v5909, %v5907
        %v5996 = vpack.c.bf16 %v5910, %v5908
        %v5997 = vpack.c.bf16 %v5913, %v5911
        %v5998 = vpack.c.bf16 %v5914, %v5912
        %v5999 = vpack.c.bf16 %v5917, %v5915
        %v6000 = vpack.c.bf16 %v5918, %v5916
        %v6001 = vpack.c.bf16 %v5921, %v5919
        %v6002 = vpack.c.bf16 %v5922, %v5920
        %v6003 = vpack.c.bf16 %v5925, %v5923
        %v6004 = vpack.c.bf16 %v5926, %v5924
        %v6005 = vpack.c.bf16 %v5929, %v5927
        %v6006 = vpack.c.bf16 %v5930, %v5928
        %v6007 = vpack.c.bf16 %v5933, %v5931
        %v6008 = vpack.c.bf16 %v5934, %v5932
        %v6009 = vpack.c.bf16 %v5937, %v5935
        %v6010 = vpack.c.bf16 %v5938, %v5936
        %v6011 = vpack.c.bf16 %v5941, %v5939
        %v6012 = vpack.c.bf16 %v5942, %v5940
        %v6013 = vpack.c.bf16 %v5945, %v5943
        %v6014 = vpack.c.bf16 %v5946, %v5944
        %v6015 = vpack.c.bf16 %v5949, %v5947
        %v6016 = vpack.c.bf16 %v5950, %v5948
        %v6017 = vpack.c.bf16 %v5953, %v5951
        %v6018 = vpack.c.bf16 %v5954, %v5952
        %v6019 = vld [vmem:[#allocation15] sm:$0xff]
        %v6020 = vld [vmem:[#allocation15 + $0x8] sm:$0xff]
        %v6021 = vld [vmem:[#allocation15 + $0x10] sm:$0xff]
        %v6022 = vld [vmem:[#allocation15 + $0x18] sm:$0xff]
        %v6023 = vld [vmem:[#allocation15 + $0x20] sm:$0xff]
        %v6024 = vld [vmem:[#allocation15 + $0x28] sm:$0xff]
        %v6025 = vld [vmem:[#allocation15 + $0x30] sm:$0xff]
        %v6026 = vld [vmem:[#allocation15 + $0x38] sm:$0xff]
        %v6027 = vld [vmem:[#allocation15 + $0x40] sm:$0xff]
        %v6028 = vld [vmem:[#allocation15 + $0x48] sm:$0xff]
        %v6029 = vld [vmem:[#allocation15 + $0x50] sm:$0xff]
        %v6030 = vld [vmem:[#allocation15 + $0x58] sm:$0xff]
        %v6031 = vld [vmem:[#allocation15 + $0x60] sm:$0xff]
        %v6032 = vld [vmem:[#allocation15 + $0x68] sm:$0xff]
        %v6033 = vld [vmem:[#allocation15 + $0x70] sm:$0xff]
        %v6034 = vld [vmem:[#allocation15 + $0x78] sm:$0xff]
        %v6035 = vld [vmem:[#allocation15 + $0x80] sm:$0xff]
        %v6036 = vld [vmem:[#allocation15 + $0x88] sm:$0xff]
        %v6037 = vld [vmem:[#allocation15 + $0x90] sm:$0xff]
        %v6038 = vld [vmem:[#allocation15 + $0x98] sm:$0xff]
        %v6039 = vld [vmem:[#allocation15 + $0xa0] sm:$0xff]
        %v6040 = vld [vmem:[#allocation15 + $0xa8] sm:$0xff]
        %v6041 = vld [vmem:[#allocation15 + $0xb0] sm:$0xff]
        %v6042 = vld [vmem:[#allocation15 + $0xb8] sm:$0xff]
        %v6043 = vld [vmem:[#allocation15 + $0xc0] sm:$0xff]
        %v6044 = vld [vmem:[#allocation15 + $0xc8] sm:$0xff]
        %v6045 = vld [vmem:[#allocation15 + $0xd0] sm:$0xff]
        %v6046 = vld [vmem:[#allocation15 + $0xd8] sm:$0xff]
        %v6047 = vld [vmem:[#allocation15 + $0xe0] sm:$0xff]
        %v6048 = vld [vmem:[#allocation15 + $0xe8] sm:$0xff]
        %v6049 = vld [vmem:[#allocation15 + $0xf0] sm:$0xff]
        %v6050 = vld [vmem:[#allocation15 + $0xf8] sm:$0xff]
        %v6051 = vld [vmem:[%s15] sm:$0x3]
        %v6053 = vlaneseq
        %v6054 = vshrl.u32 %v6053, 7
        %v6055 = vsub.s32 0, %v6054
        %v6056 = vrot.slane %v6051, %v6055
        %v6057 = vlaneseq
        %v6058 = vshrl.u32 %v6057, 7
        %v6059 = vsub.s32 1, %v6058
        %v6060 = vrot.slane %v6051, %v6059
        %v6095 = vunpack.c.l.b16 %v6019
        %v6096 = vunpack.c.h.b16 %v6019
        %v6097 = vunpack.c.l.b16 %v6020
        %v6098 = vunpack.c.h.b16 %v6020
        %v6099 = vunpack.c.l.b16 %v6021
        %v6100 = vunpack.c.h.b16 %v6021
        %v6101 = vunpack.c.l.b16 %v6022
        %v6102 = vunpack.c.h.b16 %v6022
        %v6103 = vunpack.c.l.b16 %v6023
        %v6104 = vunpack.c.h.b16 %v6023
        %v6105 = vunpack.c.l.b16 %v6024
        %v6106 = vunpack.c.h.b16 %v6024
        %v6107 = vunpack.c.l.b16 %v6025
        %v6108 = vunpack.c.h.b16 %v6025
        %v6109 = vunpack.c.l.b16 %v6026
        %v6110 = vunpack.c.h.b16 %v6026
        %v6111 = vunpack.c.l.b16 %v6027
        %v6112 = vunpack.c.h.b16 %v6027
        %v6113 = vunpack.c.l.b16 %v6028
        %v6114 = vunpack.c.h.b16 %v6028
        %v6115 = vunpack.c.l.b16 %v6029
        %v6116 = vunpack.c.h.b16 %v6029
        %v6117 = vunpack.c.l.b16 %v6030
        %v6118 = vunpack.c.h.b16 %v6030
        %v6119 = vunpack.c.l.b16 %v6031
        %v6120 = vunpack.c.h.b16 %v6031
        %v6121 = vunpack.c.l.b16 %v6032
        %v6122 = vunpack.c.h.b16 %v6032
        %v6123 = vunpack.c.l.b16 %v6033
        %v6124 = vunpack.c.h.b16 %v6033
        %v6125 = vunpack.c.l.b16 %v6034
        %v6126 = vunpack.c.h.b16 %v6034
        %v6127 = vunpack.c.l.b16 %v6035
        %v6128 = vunpack.c.h.b16 %v6035
        %v6129 = vunpack.c.l.b16 %v6036
        %v6130 = vunpack.c.h.b16 %v6036
        %v6131 = vunpack.c.l.b16 %v6037
        %v6132 = vunpack.c.h.b16 %v6037
        %v6133 = vunpack.c.l.b16 %v6038
        %v6134 = vunpack.c.h.b16 %v6038
        %v6135 = vunpack.c.l.b16 %v6039
        %v6136 = vunpack.c.h.b16 %v6039
        %v6137 = vunpack.c.l.b16 %v6040
        %v6138 = vunpack.c.h.b16 %v6040
        %v6139 = vunpack.c.l.b16 %v6041
        %v6140 = vunpack.c.h.b16 %v6041
        %v6141 = vunpack.c.l.b16 %v6042
        %v6142 = vunpack.c.h.b16 %v6042
        %v6143 = vunpack.c.l.b16 %v6043
        %v6144 = vunpack.c.h.b16 %v6043
        %v6145 = vunpack.c.l.b16 %v6044
        %v6146 = vunpack.c.h.b16 %v6044
        %v6147 = vunpack.c.l.b16 %v6045
        %v6148 = vunpack.c.h.b16 %v6045
        %v6149 = vunpack.c.l.b16 %v6046
        %v6150 = vunpack.c.h.b16 %v6046
        %v6151 = vunpack.c.l.b16 %v6047
        %v6152 = vunpack.c.h.b16 %v6047
        %v6153 = vunpack.c.l.b16 %v6048
        %v6154 = vunpack.c.h.b16 %v6048
        %v6155 = vunpack.c.l.b16 %v6049
        %v6156 = vunpack.c.h.b16 %v6049
        %v6157 = vunpack.c.l.b16 %v6050
        %v6158 = vunpack.c.h.b16 %v6050
        %v6159 = vpack.c.b16 %v6097, %v6095
        %v6160 = vpack.c.b16 %v6098, %v6096
        %v6161 = vpack.c.b16 %v6101, %v6099
        %v6162 = vpack.c.b16 %v6102, %v6100
        %v6163 = vpack.c.b16 %v6105, %v6103
        %v6164 = vpack.c.b16 %v6106, %v6104
        %v6165 = vpack.c.b16 %v6109, %v6107
        %v6166 = vpack.c.b16 %v6110, %v6108
        %v6167 = vpack.c.b16 %v6113, %v6111
        %v6168 = vpack.c.b16 %v6114, %v6112
        %v6169 = vpack.c.b16 %v6117, %v6115
        %v6170 = vpack.c.b16 %v6118, %v6116
        %v6171 = vpack.c.b16 %v6121, %v6119
        %v6172 = vpack.c.b16 %v6122, %v6120
        %v6173 = vpack.c.b16 %v6125, %v6123
        %v6174 = vpack.c.b16 %v6126, %v6124
        %v6175 = vpack.c.b16 %v6129, %v6127
        %v6176 = vpack.c.b16 %v6130, %v6128
        %v6177 = vpack.c.b16 %v6133, %v6131
        %v6178 = vpack.c.b16 %v6134, %v6132
        %v6179 = vpack.c.b16 %v6137, %v6135
        %v6180 = vpack.c.b16 %v6138, %v6136
        %v6181 = vpack.c.b16 %v6141, %v6139
        %v6182 = vpack.c.b16 %v6142, %v6140
        %v6183 = vpack.c.b16 %v6145, %v6143
        %v6184 = vpack.c.b16 %v6146, %v6144
        %v6185 = vpack.c.b16 %v6149, %v6147
        %v6186 = vpack.c.b16 %v6150, %v6148
        %v6187 = vpack.c.b16 %v6153, %v6151
        %v6188 = vpack.c.b16 %v6154, %v6152
        %v6189 = vpack.c.b16 %v6157, %v6155
        %v6190 = vpack.c.b16 %v6158, %v6156
        %6223 = vmatprep.subr.bf16.mxu0 %v6174
        %6224 = vmatpush1.bf16.msra.mxu0 %v6173
        %6225 = vmatprep.subr.bf16.mxu0 %v6172
        %6226 = vmatpush1.bf16.msra.mxu0 %v6171
        %6227 = vmatprep.subr.bf16.mxu0 %v6170
        %6228 = vmatpush1.bf16.msra.mxu0 %v6169
        %6229 = vmatprep.subr.bf16.mxu0 %v6168
        %6230 = vmatpush1.bf16.msra.mxu0 %v6167
        %6231 = vmatprep.subr.bf16.mxu0 %v6166
        %6232 = vmatpush1.bf16.msra.mxu0 %v6165
        %6233 = vmatprep.subr.bf16.mxu0 %v6164
        %6234 = vmatpush1.bf16.msra.mxu0 %v6163
        %6235 = vmatprep.subr.bf16.mxu0 %v6162
        %6236 = vmatpush1.bf16.msra.mxu0 %v6161
        %6237 = vmatprep.subr.bf16.mxu0 %v6160
        %6238 = vmatpush1.bf16.msra.mxu0 %v6159
        %6239 = vmatprep.subr.bf16.mxu0 %v6190
        %6240 = vmatpush2.bf16.msra.mxu0 %v6189
        %6241 = vmatprep.subr.bf16.mxu0 %v6188
        %6242 = vmatpush2.bf16.msra.mxu0 %v6187
        %6243 = vmatprep.subr.bf16.mxu0 %v6186
        %6244 = vmatpush2.bf16.msra.mxu0 %v6185
        %6245 = vmatprep.subr.bf16.mxu0 %v6184
        %6246 = vmatpush2.bf16.msra.mxu0 %v6183
        %6247 = vmatprep.subr.bf16.mxu0 %v6182
        %6248 = vmatpush2.bf16.msra.mxu0 %v6181
        %6249 = vmatprep.subr.bf16.mxu0 %v6180
        %6250 = vmatpush2.bf16.msra.mxu0 %v6179
        %6251 = vmatprep.subr.bf16.mxu0 %v6178
        %6252 = vmatpush2.bf16.msra.mxu0 %v6177
        %6253 = vmatprep.subr.bf16.mxu0 %v6176
        %6254 = vmatpush2.bf16.msra.mxu0 %v6175
        %6255 = vmatprep.mubr.bf16.mxu0 %v5956
        %6256 = vmatmul.mubr.bf16.gmra.mxu0 %v5955
        %v6257 = vpop.f32.mrf.mxu0
        %v6258 = vadd.f32 %v6056, %v6257
        %v6259 = vpop.f32.mrf.mxu0
        %v6260 = vadd.f32 %v6060, %v6259
        %v6261 = vpop.f32.mrf.mxu0
        %v6262 = vadd.f32 %v6056, %v6261
        %v6263 = vpop.f32.mrf.mxu0
        %v6264 = vadd.f32 %v6060, %v6263
        %6265 = vmatprep.mubr.bf16.mxu0 %v5958
        %6266 = vmatmul.mubr.bf16.gmra.mxu0 %v5957
        %v6267 = vpop.f32.mrf.mxu0
        %v6268 = vadd.f32 %v6056, %v6267
        %v6269 = vpop.f32.mrf.mxu0
        %v6270 = vadd.f32 %v6060, %v6269
        %v6271 = vpop.f32.mrf.mxu0
        %v6272 = vadd.f32 %v6056, %v6271
        %v6273 = vpop.f32.mrf.mxu0
        %v6274 = vadd.f32 %v6060, %v6273
        %6275 = vmatprep.mubr.bf16.mxu0 %v5960
        %6276 = vmatmul.mubr.bf16.gmra.mxu0 %v5959
        %v6277 = vpop.f32.mrf.mxu0
        %v6278 = vadd.f32 %v6056, %v6277
        %v6279 = vpop.f32.mrf.mxu0
        %v6280 = vadd.f32 %v6060, %v6279
        %v6281 = vpop.f32.mrf.mxu0
        %v6282 = vadd.f32 %v6056, %v6281
        %v6283 = vpop.f32.mrf.mxu0
        %v6284 = vadd.f32 %v6060, %v6283
        %6285 = vmatprep.mubr.bf16.mxu0 %v5962
        %6286 = vmatmul.mubr.bf16.gmra.mxu0 %v5961
        %v6287 = vpop.f32.mrf.mxu0
        %v6288 = vadd.f32 %v6056, %v6287
        %v6289 = vpop.f32.mrf.mxu0
        %v6290 = vadd.f32 %v6060, %v6289
        %v6291 = vpop.f32.mrf.mxu0
        %v6292 = vadd.f32 %v6056, %v6291
        %v6293 = vpop.f32.mrf.mxu0
        %v6294 = vadd.f32 %v6060, %v6293
        %6295 = vmatprep.mubr.bf16.mxu0 %v5964
        %6296 = vmatmul.mubr.bf16.gmra.mxu0 %v5963
        %v6297 = vpop.f32.mrf.mxu0
        %v6298 = vadd.f32 %v6056, %v6297
        %v6299 = vpop.f32.mrf.mxu0
        %v6300 = vadd.f32 %v6060, %v6299
        %v6301 = vpop.f32.mrf.mxu0
        %v6302 = vadd.f32 %v6056, %v6301
        %v6303 = vpop.f32.mrf.mxu0
        %v6304 = vadd.f32 %v6060, %v6303
        %6305 = vmatprep.mubr.bf16.mxu0 %v5966
        %6306 = vmatmul.mubr.bf16.gmra.mxu0 %v5965
        %v6307 = vpop.f32.mrf.mxu0
        %v6308 = vadd.f32 %v6056, %v6307
        %v6309 = vpop.f32.mrf.mxu0
        %v6310 = vadd.f32 %v6060, %v6309
        %v6311 = vpop.f32.mrf.mxu0
        %v6312 = vadd.f32 %v6056, %v6311
        %v6313 = vpop.f32.mrf.mxu0
        %v6314 = vadd.f32 %v6060, %v6313
        %6315 = vmatprep.mubr.bf16.mxu0 %v5968
        %6316 = vmatmul.mubr.bf16.gmra.mxu0 %v5967
        %v6317 = vpop.f32.mrf.mxu0
        %v6318 = vadd.f32 %v6056, %v6317
        %v6319 = vpop.f32.mrf.mxu0
        %v6320 = vadd.f32 %v6060, %v6319
        %v6321 = vpop.f32.mrf.mxu0
        %v6322 = vadd.f32 %v6056, %v6321
        %v6323 = vpop.f32.mrf.mxu0
        %v6324 = vadd.f32 %v6060, %v6323
        %6325 = vmatprep.mubr.bf16.mxu0 %v5970
        %6326 = vmatmul.mubr.bf16.gmra.mxu0 %v5969
        %v6327 = vpop.f32.mrf.mxu0
        %v6328 = vadd.f32 %v6056, %v6327
        %v6329 = vpop.f32.mrf.mxu0
        %v6330 = vadd.f32 %v6060, %v6329
        %v6331 = vpop.f32.mrf.mxu0
        %v6332 = vadd.f32 %v6056, %v6331
        %v6333 = vpop.f32.mrf.mxu0
        %v6334 = vadd.f32 %v6060, %v6333
        %6335 = vmatprep.mubr.bf16.mxu0 %v5972
        %6336 = vmatmul.mubr.bf16.gmra.mxu0 %v5971
        %v6337 = vpop.f32.mrf.mxu0
        %v6338 = vadd.f32 %v6056, %v6337
        %v6339 = vpop.f32.mrf.mxu0
        %v6340 = vadd.f32 %v6060, %v6339
        %v6341 = vpop.f32.mrf.mxu0
        %v6342 = vadd.f32 %v6056, %v6341
        %v6343 = vpop.f32.mrf.mxu0
        %v6344 = vadd.f32 %v6060, %v6343
        %6345 = vmatprep.mubr.bf16.mxu0 %v5974
        %6346 = vmatmul.mubr.bf16.gmra.mxu0 %v5973
        %v6347 = vpop.f32.mrf.mxu0
        %v6348 = vadd.f32 %v6056, %v6347
        %v6349 = vpop.f32.mrf.mxu0
        %v6350 = vadd.f32 %v6060, %v6349
        %v6351 = vpop.f32.mrf.mxu0
        %v6352 = vadd.f32 %v6056, %v6351
        %v6353 = vpop.f32.mrf.mxu0
        %v6354 = vadd.f32 %v6060, %v6353
        %6355 = vmatprep.mubr.bf16.mxu0 %v5976
        %6356 = vmatmul.mubr.bf16.gmra.mxu0 %v5975
        %v6357 = vpop.f32.mrf.mxu0
        %v6358 = vadd.f32 %v6056, %v6357
        %v6359 = vpop.f32.mrf.mxu0
        %v6360 = vadd.f32 %v6060, %v6359
        %v6361 = vpop.f32.mrf.mxu0
        %v6362 = vadd.f32 %v6056, %v6361
        %v6363 = vpop.f32.mrf.mxu0
        %v6364 = vadd.f32 %v6060, %v6363
        %6365 = vmatprep.mubr.bf16.mxu0 %v5978
        %6366 = vmatmul.mubr.bf16.gmra.mxu0 %v5977
        %v6367 = vpop.f32.mrf.mxu0
        %v6368 = vadd.f32 %v6056, %v6367
        %v6369 = vpop.f32.mrf.mxu0
        %v6370 = vadd.f32 %v6060, %v6369
        %v6371 = vpop.f32.mrf.mxu0
        %v6372 = vadd.f32 %v6056, %v6371
        %v6373 = vpop.f32.mrf.mxu0
        %v6374 = vadd.f32 %v6060, %v6373
        %6375 = vmatprep.mubr.bf16.mxu0 %v5980
        %6376 = vmatmul.mubr.bf16.gmra.mxu0 %v5979
        %v6377 = vpop.f32.mrf.mxu0
        %v6378 = vadd.f32 %v6056, %v6377
        %v6379 = vpop.f32.mrf.mxu0
        %v6380 = vadd.f32 %v6060, %v6379
        %v6381 = vpop.f32.mrf.mxu0
        %v6382 = vadd.f32 %v6056, %v6381
        %v6383 = vpop.f32.mrf.mxu0
        %v6384 = vadd.f32 %v6060, %v6383
        %6385 = vmatprep.mubr.bf16.mxu0 %v5982
        %6386 = vmatmul.mubr.bf16.gmra.mxu0 %v5981
        %v6387 = vpop.f32.mrf.mxu0
        %v6388 = vadd.f32 %v6056, %v6387
        %v6389 = vpop.f32.mrf.mxu0
        %v6390 = vadd.f32 %v6060, %v6389
        %v6391 = vpop.f32.mrf.mxu0
        %v6392 = vadd.f32 %v6056, %v6391
        %v6393 = vpop.f32.mrf.mxu0
        %v6394 = vadd.f32 %v6060, %v6393
        %6395 = vmatprep.mubr.bf16.mxu0 %v5984
        %6396 = vmatmul.mubr.bf16.gmra.mxu0 %v5983
        %v6397 = vpop.f32.mrf.mxu0
        %v6398 = vadd.f32 %v6056, %v6397
        %v6399 = vpop.f32.mrf.mxu0
        %v6400 = vadd.f32 %v6060, %v6399
        %v6401 = vpop.f32.mrf.mxu0
        %v6402 = vadd.f32 %v6056, %v6401
        %v6403 = vpop.f32.mrf.mxu0
        %v6404 = vadd.f32 %v6060, %v6403
        %6405 = vmatprep.mubr.bf16.mxu0 %v5986
        %6406 = vmatmul.mubr.bf16.gmra.mxu0 %v5985
        %v6407 = vpop.f32.mrf.mxu0
        %v6408 = vadd.f32 %v6056, %v6407
        %v6409 = vpop.f32.mrf.mxu0
        %v6410 = vadd.f32 %v6060, %v6409
        %v6411 = vpop.f32.mrf.mxu0
        %v6412 = vadd.f32 %v6056, %v6411
        %v6413 = vpop.f32.mrf.mxu0
        %v6414 = vadd.f32 %v6060, %v6413
        %6415 = vmatprep.mubr.bf16.mxu0 %v5988
        %6416 = vmatmul.mubr.bf16.gmra.mxu0 %v5987
        %v6417 = vpop.f32.mrf.mxu0
        %v6418 = vadd.f32 %v6056, %v6417
        %v6419 = vpop.f32.mrf.mxu0
        %v6420 = vadd.f32 %v6060, %v6419
        %v6421 = vpop.f32.mrf.mxu0
        %v6422 = vadd.f32 %v6056, %v6421
        %v6423 = vpop.f32.mrf.mxu0
        %v6424 = vadd.f32 %v6060, %v6423
        %6425 = vmatprep.mubr.bf16.mxu0 %v5990
        %6426 = vmatmul.mubr.bf16.gmra.mxu0 %v5989
        %v6427 = vpop.f32.mrf.mxu0
        %v6428 = vadd.f32 %v6056, %v6427
        %v6429 = vpop.f32.mrf.mxu0
        %v6430 = vadd.f32 %v6060, %v6429
        %v6431 = vpop.f32.mrf.mxu0
        %v6432 = vadd.f32 %v6056, %v6431
        %v6433 = vpop.f32.mrf.mxu0
        %v6434 = vadd.f32 %v6060, %v6433
        %6435 = vmatprep.mubr.bf16.mxu0 %v5992
        %6436 = vmatmul.mubr.bf16.gmra.mxu0 %v5991
        %v6437 = vpop.f32.mrf.mxu0
        %v6438 = vadd.f32 %v6056, %v6437
        %v6439 = vpop.f32.mrf.mxu0
        %v6440 = vadd.f32 %v6060, %v6439
        %v6441 = vpop.f32.mrf.mxu0
        %v6442 = vadd.f32 %v6056, %v6441
        %v6443 = vpop.f32.mrf.mxu0
        %v6444 = vadd.f32 %v6060, %v6443
        %6445 = vmatprep.mubr.bf16.mxu0 %v5994
        %6446 = vmatmul.mubr.bf16.gmra.mxu0 %v5993
        %v6447 = vpop.f32.mrf.mxu0
        %v6448 = vadd.f32 %v6056, %v6447
        %v6449 = vpop.f32.mrf.mxu0
        %v6450 = vadd.f32 %v6060, %v6449
        %v6451 = vpop.f32.mrf.mxu0
        %v6452 = vadd.f32 %v6056, %v6451
        %v6453 = vpop.f32.mrf.mxu0
        %v6454 = vadd.f32 %v6060, %v6453
        %6455 = vmatprep.mubr.bf16.mxu0 %v5996
        %6456 = vmatmul.mubr.bf16.gmra.mxu0 %v5995
        %v6457 = vpop.f32.mrf.mxu0
        %v6458 = vadd.f32 %v6056, %v6457
        %v6459 = vpop.f32.mrf.mxu0
        %v6460 = vadd.f32 %v6060, %v6459
        %v6461 = vpop.f32.mrf.mxu0
        %v6462 = vadd.f32 %v6056, %v6461
        %v6463 = vpop.f32.mrf.mxu0
        %v6464 = vadd.f32 %v6060, %v6463
        %6465 = vmatprep.mubr.bf16.mxu0 %v5998
        %6466 = vmatmul.mubr.bf16.gmra.mxu0 %v5997
        %v6467 = vpop.f32.mrf.mxu0
        %v6468 = vadd.f32 %v6056, %v6467
        %v6469 = vpop.f32.mrf.mxu0
        %v6470 = vadd.f32 %v6060, %v6469
        %v6471 = vpop.f32.mrf.mxu0
        %v6472 = vadd.f32 %v6056, %v6471
        %v6473 = vpop.f32.mrf.mxu0
        %v6474 = vadd.f32 %v6060, %v6473
        %6475 = vmatprep.mubr.bf16.mxu0 %v6000
        %6476 = vmatmul.mubr.bf16.gmra.mxu0 %v5999
        %v6477 = vpop.f32.mrf.mxu0
        %v6478 = vadd.f32 %v6056, %v6477
        %v6479 = vpop.f32.mrf.mxu0
        %v6480 = vadd.f32 %v6060, %v6479
        %v6481 = vpop.f32.mrf.mxu0
        %v6482 = vadd.f32 %v6056, %v6481
        %v6483 = vpop.f32.mrf.mxu0
        %v6484 = vadd.f32 %v6060, %v6483
        %6485 = vmatprep.mubr.bf16.mxu0 %v6002
        %6486 = vmatmul.mubr.bf16.gmra.mxu0 %v6001
        %v6487 = vpop.f32.mrf.mxu0
        %v6488 = vadd.f32 %v6056, %v6487
        %v6489 = vpop.f32.mrf.mxu0
        %v6490 = vadd.f32 %v6060, %v6489
        %v6491 = vpop.f32.mrf.mxu0
        %v6492 = vadd.f32 %v6056, %v6491
        %v6493 = vpop.f32.mrf.mxu0
        %v6494 = vadd.f32 %v6060, %v6493
        %6495 = vmatprep.mubr.bf16.mxu0 %v6004
        %6496 = vmatmul.mubr.bf16.gmra.mxu0 %v6003
        %v6497 = vpop.f32.mrf.mxu0
        %v6498 = vadd.f32 %v6056, %v6497
        %v6499 = vpop.f32.mrf.mxu0
        %v6500 = vadd.f32 %v6060, %v6499
        %v6501 = vpop.f32.mrf.mxu0
        %v6502 = vadd.f32 %v6056, %v6501
        %v6503 = vpop.f32.mrf.mxu0
        %v6504 = vadd.f32 %v6060, %v6503
        %6505 = vmatprep.mubr.bf16.mxu0 %v6006
        %6506 = vmatmul.mubr.bf16.gmra.mxu0 %v6005
        %v6507 = vpop.f32.mrf.mxu0
        %v6508 = vadd.f32 %v6056, %v6507
        %v6509 = vpop.f32.mrf.mxu0
        %v6510 = vadd.f32 %v6060, %v6509
        %v6511 = vpop.f32.mrf.mxu0
        %v6512 = vadd.f32 %v6056, %v6511
        %v6513 = vpop.f32.mrf.mxu0
        %v6514 = vadd.f32 %v6060, %v6513
        %6515 = vmatprep.mubr.bf16.mxu0 %v6008
        %6516 = vmatmul.mubr.bf16.gmra.mxu0 %v6007
        %v6517 = vpop.f32.mrf.mxu0
        %v6518 = vadd.f32 %v6056, %v6517
        %v6519 = vpop.f32.mrf.mxu0
        %v6520 = vadd.f32 %v6060, %v6519
        %v6521 = vpop.f32.mrf.mxu0
        %v6522 = vadd.f32 %v6056, %v6521
        %v6523 = vpop.f32.mrf.mxu0
        %v6524 = vadd.f32 %v6060, %v6523
        %6525 = vmatprep.mubr.bf16.mxu0 %v6010
        %6526 = vmatmul.mubr.bf16.gmra.mxu0 %v6009
        %v6527 = vpop.f32.mrf.mxu0
        %v6528 = vadd.f32 %v6056, %v6527
        %v6529 = vpop.f32.mrf.mxu0
        %v6530 = vadd.f32 %v6060, %v6529
        %v6531 = vpop.f32.mrf.mxu0
        %v6532 = vadd.f32 %v6056, %v6531
        %v6533 = vpop.f32.mrf.mxu0
        %v6534 = vadd.f32 %v6060, %v6533
        %6535 = vmatprep.mubr.bf16.mxu0 %v6012
        %6536 = vmatmul.mubr.bf16.gmra.mxu0 %v6011
        %v6537 = vpop.f32.mrf.mxu0
        %v6538 = vadd.f32 %v6056, %v6537
        %v6539 = vpop.f32.mrf.mxu0
        %v6540 = vadd.f32 %v6060, %v6539
        %v6541 = vpop.f32.mrf.mxu0
        %v6542 = vadd.f32 %v6056, %v6541
        %v6543 = vpop.f32.mrf.mxu0
        %v6544 = vadd.f32 %v6060, %v6543
        %6545 = vmatprep.mubr.bf16.mxu0 %v6014
        %6546 = vmatmul.mubr.bf16.gmra.mxu0 %v6013
        %v6547 = vpop.f32.mrf.mxu0
        %v6548 = vadd.f32 %v6056, %v6547
        %v6549 = vpop.f32.mrf.mxu0
        %v6550 = vadd.f32 %v6060, %v6549
        %v6551 = vpop.f32.mrf.mxu0
        %v6552 = vadd.f32 %v6056, %v6551
        %v6553 = vpop.f32.mrf.mxu0
        %v6554 = vadd.f32 %v6060, %v6553
        %6555 = vmatprep.mubr.bf16.mxu0 %v6016
        %6556 = vmatmul.mubr.bf16.gmra.mxu0 %v6015
        %v6557 = vpop.f32.mrf.mxu0
        %v6558 = vadd.f32 %v6056, %v6557
        %v6559 = vpop.f32.mrf.mxu0
        %v6560 = vadd.f32 %v6060, %v6559
        %v6561 = vpop.f32.mrf.mxu0
        %v6562 = vadd.f32 %v6056, %v6561
        %v6563 = vpop.f32.mrf.mxu0
        %v6564 = vadd.f32 %v6060, %v6563
        %6565 = vmatprep.mubr.bf16.mxu0 %v6018
        %6566 = vmatmul.mubr.bf16.gmra.mxu0 %v6017
        %v6567 = vpop.f32.mrf.mxu0
        %v6568 = vadd.f32 %v6056, %v6567
        %v6569 = vpop.f32.mrf.mxu0
        %v6570 = vadd.f32 %v6060, %v6569
        %v6571 = vpop.f32.mrf.mxu0
        %v6572 = vadd.f32 %v6056, %v6571
        %v6573 = vpop.f32.mrf.mxu0
        %v6574 = vadd.f32 %v6060, %v6573
        %6575 = vdwg.mxu0
        %v6576 = vmax.f32 %v6258, 0.0
        %v6577 = vmax.f32 %v6260, 0.0
        %v6578 = vmax.f32 %v6262, 0.0
        %v6579 = vmax.f32 %v6264, 0.0
        %v6580 = vmax.f32 %v6268, 0.0
        %v6581 = vmax.f32 %v6270, 0.0
        %v6582 = vmax.f32 %v6272, 0.0
        %v6583 = vmax.f32 %v6274, 0.0
        %v6584 = vmax.f32 %v6278, 0.0
        %v6585 = vmax.f32 %v6280, 0.0
        %v6586 = vmax.f32 %v6282, 0.0
        %v6587 = vmax.f32 %v6284, 0.0
        %v6588 = vmax.f32 %v6288, 0.0
        %v6589 = vmax.f32 %v6290, 0.0
        %v6590 = vmax.f32 %v6292, 0.0
        %v6591 = vmax.f32 %v6294, 0.0
        %v6592 = vmax.f32 %v6298, 0.0
        %v6593 = vmax.f32 %v6300, 0.0
        %v6594 = vmax.f32 %v6302, 0.0
        %v6595 = vmax.f32 %v6304, 0.0
        %v6596 = vmax.f32 %v6308, 0.0
        %v6597 = vmax.f32 %v6310, 0.0
        %v6598 = vmax.f32 %v6312, 0.0
        %v6599 = vmax.f32 %v6314, 0.0
        %v6600 = vmax.f32 %v6318, 0.0
        %v6601 = vmax.f32 %v6320, 0.0
        %v6602 = vmax.f32 %v6322, 0.0
        %v6603 = vmax.f32 %v6324, 0.0
        %v6604 = vmax.f32 %v6328, 0.0
        %v6605 = vmax.f32 %v6330, 0.0
        %v6606 = vmax.f32 %v6332, 0.0
        %v6607 = vmax.f32 %v6334, 0.0
        %v6608 = vmax.f32 %v6338, 0.0
        %v6609 = vmax.f32 %v6340, 0.0
        %v6610 = vmax.f32 %v6342, 0.0
        %v6611 = vmax.f32 %v6344, 0.0
        %v6612 = vmax.f32 %v6348, 0.0
        %v6613 = vmax.f32 %v6350, 0.0
        %v6614 = vmax.f32 %v6352, 0.0
        %v6615 = vmax.f32 %v6354, 0.0
        %v6616 = vmax.f32 %v6358, 0.0
        %v6617 = vmax.f32 %v6360, 0.0
        %v6618 = vmax.f32 %v6362, 0.0
        %v6619 = vmax.f32 %v6364, 0.0
        %v6620 = vmax.f32 %v6368, 0.0
        %v6621 = vmax.f32 %v6370, 0.0
        %v6622 = vmax.f32 %v6372, 0.0
        %v6623 = vmax.f32 %v6374, 0.0
        %v6624 = vmax.f32 %v6378, 0.0
        %v6625 = vmax.f32 %v6380, 0.0
        %v6626 = vmax.f32 %v6382, 0.0
        %v6627 = vmax.f32 %v6384, 0.0
        %v6628 = vmax.f32 %v6388, 0.0
        %v6629 = vmax.f32 %v6390, 0.0
        %v6630 = vmax.f32 %v6392, 0.0
        %v6631 = vmax.f32 %v6394, 0.0
        %v6632 = vmax.f32 %v6398, 0.0
        %v6633 = vmax.f32 %v6400, 0.0
        %v6634 = vmax.f32 %v6402, 0.0
        %v6635 = vmax.f32 %v6404, 0.0
        %v6636 = vmax.f32 %v6408, 0.0
        %v6637 = vmax.f32 %v6410, 0.0
        %v6638 = vmax.f32 %v6412, 0.0
        %v6639 = vmax.f32 %v6414, 0.0
        %v6640 = vmax.f32 %v6418, 0.0
        %v6641 = vmax.f32 %v6420, 0.0
        %v6642 = vmax.f32 %v6422, 0.0
        %v6643 = vmax.f32 %v6424, 0.0
        %v6644 = vmax.f32 %v6428, 0.0
        %v6645 = vmax.f32 %v6430, 0.0
        %v6646 = vmax.f32 %v6432, 0.0
        %v6647 = vmax.f32 %v6434, 0.0
        %v6648 = vmax.f32 %v6438, 0.0
        %v6649 = vmax.f32 %v6440, 0.0
        %v6650 = vmax.f32 %v6442, 0.0
        %v6651 = vmax.f32 %v6444, 0.0
        %v6652 = vmax.f32 %v6448, 0.0
        %v6653 = vmax.f32 %v6450, 0.0
        %v6654 = vmax.f32 %v6452, 0.0
        %v6655 = vmax.f32 %v6454, 0.0
        %v6656 = vmax.f32 %v6458, 0.0
        %v6657 = vmax.f32 %v6460, 0.0
        %v6658 = vmax.f32 %v6462, 0.0
        %v6659 = vmax.f32 %v6464, 0.0
        %v6660 = vmax.f32 %v6468, 0.0
        %v6661 = vmax.f32 %v6470, 0.0
        %v6662 = vmax.f32 %v6472, 0.0
        %v6663 = vmax.f32 %v6474, 0.0
        %v6664 = vmax.f32 %v6478, 0.0
        %v6665 = vmax.f32 %v6480, 0.0
        %v6666 = vmax.f32 %v6482, 0.0
        %v6667 = vmax.f32 %v6484, 0.0
        %v6668 = vmax.f32 %v6488, 0.0
        %v6669 = vmax.f32 %v6490, 0.0
        %v6670 = vmax.f32 %v6492, 0.0
        %v6671 = vmax.f32 %v6494, 0.0
        %v6672 = vmax.f32 %v6498, 0.0
        %v6673 = vmax.f32 %v6500, 0.0
        %v6674 = vmax.f32 %v6502, 0.0
        %v6675 = vmax.f32 %v6504, 0.0
        %v6676 = vmax.f32 %v6508, 0.0
        %v6677 = vmax.f32 %v6510, 0.0
        %v6678 = vmax.f32 %v6512, 0.0
        %v6679 = vmax.f32 %v6514, 0.0
        %v6680 = vmax.f32 %v6518, 0.0
        %v6681 = vmax.f32 %v6520, 0.0
        %v6682 = vmax.f32 %v6522, 0.0
        %v6683 = vmax.f32 %v6524, 0.0
        %v6684 = vmax.f32 %v6528, 0.0
        %v6685 = vmax.f32 %v6530, 0.0
        %v6686 = vmax.f32 %v6532, 0.0
        %v6687 = vmax.f32 %v6534, 0.0
        %v6688 = vmax.f32 %v6538, 0.0
        %v6689 = vmax.f32 %v6540, 0.0
        %v6690 = vmax.f32 %v6542, 0.0
        %v6691 = vmax.f32 %v6544, 0.0
        %v6692 = vmax.f32 %v6548, 0.0
        %v6693 = vmax.f32 %v6550, 0.0
        %v6694 = vmax.f32 %v6552, 0.0
        %v6695 = vmax.f32 %v6554, 0.0
        %v6696 = vmax.f32 %v6558, 0.0
        %v6697 = vmax.f32 %v6560, 0.0
        %v6698 = vmax.f32 %v6562, 0.0
        %v6699 = vmax.f32 %v6564, 0.0
        %v6700 = vmax.f32 %v6568, 0.0
        %v6701 = vmax.f32 %v6570, 0.0
        %v6702 = vmax.f32 %v6572, 0.0
        %v6703 = vmax.f32 %v6574, 0.0
        %v6704 = vpack.c.bf16 %v6578, %v6576
        %v6705 = vpack.c.bf16 %v6579, %v6577
        %v6706 = vpack.c.bf16 %v6582, %v6580
        %v6707 = vpack.c.bf16 %v6583, %v6581
        %v6708 = vpack.c.bf16 %v6586, %v6584
        %v6709 = vpack.c.bf16 %v6587, %v6585
        %v6710 = vpack.c.bf16 %v6590, %v6588
        %v6711 = vpack.c.bf16 %v6591, %v6589
        %v6712 = vpack.c.bf16 %v6594, %v6592
        %v6713 = vpack.c.bf16 %v6595, %v6593
        %v6714 = vpack.c.bf16 %v6598, %v6596
        %v6715 = vpack.c.bf16 %v6599, %v6597
        %v6716 = vpack.c.bf16 %v6602, %v6600
        %v6717 = vpack.c.bf16 %v6603, %v6601
        %v6718 = vpack.c.bf16 %v6606, %v6604
        %v6719 = vpack.c.bf16 %v6607, %v6605
        %v6720 = vpack.c.bf16 %v6610, %v6608
        %v6721 = vpack.c.bf16 %v6611, %v6609
        %v6722 = vpack.c.bf16 %v6614, %v6612
        %v6723 = vpack.c.bf16 %v6615, %v6613
        %v6724 = vpack.c.bf16 %v6618, %v6616
        %v6725 = vpack.c.bf16 %v6619, %v6617
        %v6726 = vpack.c.bf16 %v6622, %v6620
        %v6727 = vpack.c.bf16 %v6623, %v6621
        %v6728 = vpack.c.bf16 %v6626, %v6624
        %v6729 = vpack.c.bf16 %v6627, %v6625
        %v6730 = vpack.c.bf16 %v6630, %v6628
        %v6731 = vpack.c.bf16 %v6631, %v6629
        %v6732 = vpack.c.bf16 %v6634, %v6632
        %v6733 = vpack.c.bf16 %v6635, %v6633
        %v6734 = vpack.c.bf16 %v6638, %v6636
        %v6735 = vpack.c.bf16 %v6639, %v6637
        %v6736 = vpack.c.bf16 %v6642, %v6640
        %v6737 = vpack.c.bf16 %v6643, %v6641
        %v6738 = vpack.c.bf16 %v6646, %v6644
        %v6739 = vpack.c.bf16 %v6647, %v6645
        %v6740 = vpack.c.bf16 %v6650, %v6648
        %v6741 = vpack.c.bf16 %v6651, %v6649
        %v6742 = vpack.c.bf16 %v6654, %v6652
        %v6743 = vpack.c.bf16 %v6655, %v6653
        %v6744 = vpack.c.bf16 %v6658, %v6656
        %v6745 = vpack.c.bf16 %v6659, %v6657
        %v6746 = vpack.c.bf16 %v6662, %v6660
        %v6747 = vpack.c.bf16 %v6663, %v6661
        %v6748 = vpack.c.bf16 %v6666, %v6664
        %v6749 = vpack.c.bf16 %v6667, %v6665
        %v6750 = vpack.c.bf16 %v6670, %v6668
        %v6751 = vpack.c.bf16 %v6671, %v6669
        %v6752 = vpack.c.bf16 %v6674, %v6672
        %v6753 = vpack.c.bf16 %v6675, %v6673
        %v6754 = vpack.c.bf16 %v6678, %v6676
        %v6755 = vpack.c.bf16 %v6679, %v6677
        %v6756 = vpack.c.bf16 %v6682, %v6680
        %v6757 = vpack.c.bf16 %v6683, %v6681
        %v6758 = vpack.c.bf16 %v6686, %v6684
        %v6759 = vpack.c.bf16 %v6687, %v6685
        %v6760 = vpack.c.bf16 %v6690, %v6688
        %v6761 = vpack.c.bf16 %v6691, %v6689
        %v6762 = vpack.c.bf16 %v6694, %v6692
        %v6763 = vpack.c.bf16 %v6695, %v6693
        %v6764 = vpack.c.bf16 %v6698, %v6696
        %v6765 = vpack.c.bf16 %v6699, %v6697
        %v6766 = vpack.c.bf16 %v6702, %v6700
        %v6767 = vpack.c.bf16 %v6703, %v6701
        %v6768 = vld [vmem:[#allocation16] sm:$0xff]
        %v6769 = vld [vmem:[#allocation16 + $0x8] sm:$0xff]
        %v6770 = vld [vmem:[#allocation16 + $0x10] sm:$0xff]
        %v6771 = vld [vmem:[#allocation16 + $0x18] sm:$0xff]
        %v6772 = vld [vmem:[#allocation16 + $0x20] sm:$0xff]
        %v6773 = vld [vmem:[#allocation16 + $0x28] sm:$0xff]
        %v6774 = vld [vmem:[#allocation16 + $0x30] sm:$0xff]
        %v6775 = vld [vmem:[#allocation16 + $0x38] sm:$0xff]
        %v6776 = vld [vmem:[#allocation16 + $0x40] sm:$0xff]
        %v6777 = vld [vmem:[#allocation16 + $0x48] sm:$0xff]
        %v6778 = vld [vmem:[#allocation16 + $0x50] sm:$0xff]
        %v6779 = vld [vmem:[#allocation16 + $0x58] sm:$0xff]
        %v6780 = vld [vmem:[#allocation16 + $0x60] sm:$0xff]
        %v6781 = vld [vmem:[#allocation16 + $0x68] sm:$0xff]
        %v6782 = vld [vmem:[#allocation16 + $0x70] sm:$0xff]
        %v6783 = vld [vmem:[#allocation16 + $0x78] sm:$0xff]
        %v6784 = vld [vmem:[#allocation16 + $0x80] sm:$0xff]
        %v6785 = vld [vmem:[#allocation16 + $0x88] sm:$0xff]
        %v6786 = vld [vmem:[#allocation16 + $0x90] sm:$0xff]
        %v6787 = vld [vmem:[#allocation16 + $0x98] sm:$0xff]
        %v6788 = vld [vmem:[#allocation16 + $0xa0] sm:$0xff]
        %v6789 = vld [vmem:[#allocation16 + $0xa8] sm:$0xff]
        %v6790 = vld [vmem:[#allocation16 + $0xb0] sm:$0xff]
        %v6791 = vld [vmem:[#allocation16 + $0xb8] sm:$0xff]
        %v6792 = vld [vmem:[#allocation16 + $0xc0] sm:$0xff]
        %v6793 = vld [vmem:[#allocation16 + $0xc8] sm:$0xff]
        %v6794 = vld [vmem:[#allocation16 + $0xd0] sm:$0xff]
        %v6795 = vld [vmem:[#allocation16 + $0xd8] sm:$0xff]
        %v6796 = vld [vmem:[#allocation16 + $0xe0] sm:$0xff]
        %v6797 = vld [vmem:[#allocation16 + $0xe8] sm:$0xff]
        %v6798 = vld [vmem:[#allocation16 + $0xf0] sm:$0xff]
        %v6799 = vld [vmem:[#allocation16 + $0xf8] sm:$0xff]
        %v6800 = vld [vmem:[%s17] sm:$0x3]
        %v6802 = vlaneseq
        %v6803 = vshrl.u32 %v6802, 7
        %v6804 = vsub.s32 0, %v6803
        %v6805 = vrot.slane %v6800, %v6804
        %v6806 = vlaneseq
        %v6807 = vshrl.u32 %v6806, 7
        %v6808 = vsub.s32 1, %v6807
        %v6809 = vrot.slane %v6800, %v6808
        %v6844 = vunpack.c.l.b16 %v6768
        %v6845 = vunpack.c.h.b16 %v6768
        %v6846 = vunpack.c.l.b16 %v6769
        %v6847 = vunpack.c.h.b16 %v6769
        %v6848 = vunpack.c.l.b16 %v6770
        %v6849 = vunpack.c.h.b16 %v6770
        %v6850 = vunpack.c.l.b16 %v6771
        %v6851 = vunpack.c.h.b16 %v6771
        %v6852 = vunpack.c.l.b16 %v6772
        %v6853 = vunpack.c.h.b16 %v6772
        %v6854 = vunpack.c.l.b16 %v6773
        %v6855 = vunpack.c.h.b16 %v6773
        %v6856 = vunpack.c.l.b16 %v6774
        %v6857 = vunpack.c.h.b16 %v6774
        %v6858 = vunpack.c.l.b16 %v6775
        %v6859 = vunpack.c.h.b16 %v6775
        %v6860 = vunpack.c.l.b16 %v6776
        %v6861 = vunpack.c.h.b16 %v6776
        %v6862 = vunpack.c.l.b16 %v6777
        %v6863 = vunpack.c.h.b16 %v6777
        %v6864 = vunpack.c.l.b16 %v6778
        %v6865 = vunpack.c.h.b16 %v6778
        %v6866 = vunpack.c.l.b16 %v6779
        %v6867 = vunpack.c.h.b16 %v6779
        %v6868 = vunpack.c.l.b16 %v6780
        %v6869 = vunpack.c.h.b16 %v6780
        %v6870 = vunpack.c.l.b16 %v6781
        %v6871 = vunpack.c.h.b16 %v6781
        %v6872 = vunpack.c.l.b16 %v6782
        %v6873 = vunpack.c.h.b16 %v6782
        %v6874 = vunpack.c.l.b16 %v6783
        %v6875 = vunpack.c.h.b16 %v6783
        %v6876 = vunpack.c.l.b16 %v6784
        %v6877 = vunpack.c.h.b16 %v6784
        %v6878 = vunpack.c.l.b16 %v6785
        %v6879 = vunpack.c.h.b16 %v6785
        %v6880 = vunpack.c.l.b16 %v6786
        %v6881 = vunpack.c.h.b16 %v6786
        %v6882 = vunpack.c.l.b16 %v6787
        %v6883 = vunpack.c.h.b16 %v6787
        %v6884 = vunpack.c.l.b16 %v6788
        %v6885 = vunpack.c.h.b16 %v6788
        %v6886 = vunpack.c.l.b16 %v6789
        %v6887 = vunpack.c.h.b16 %v6789
        %v6888 = vunpack.c.l.b16 %v6790
        %v6889 = vunpack.c.h.b16 %v6790
        %v6890 = vunpack.c.l.b16 %v6791
        %v6891 = vunpack.c.h.b16 %v6791
        %v6892 = vunpack.c.l.b16 %v6792
        %v6893 = vunpack.c.h.b16 %v6792
        %v6894 = vunpack.c.l.b16 %v6793
        %v6895 = vunpack.c.h.b16 %v6793
        %v6896 = vunpack.c.l.b16 %v6794
        %v6897 = vunpack.c.h.b16 %v6794
        %v6898 = vunpack.c.l.b16 %v6795
        %v6899 = vunpack.c.h.b16 %v6795
        %v6900 = vunpack.c.l.b16 %v6796
        %v6901 = vunpack.c.h.b16 %v6796
        %v6902 = vunpack.c.l.b16 %v6797
        %v6903 = vunpack.c.h.b16 %v6797
        %v6904 = vunpack.c.l.b16 %v6798
        %v6905 = vunpack.c.h.b16 %v6798
        %v6906 = vunpack.c.l.b16 %v6799
        %v6907 = vunpack.c.h.b16 %v6799
        %v6908 = vpack.c.b16 %v6846, %v6844
        %v6909 = vpack.c.b16 %v6847, %v6845
        %v6910 = vpack.c.b16 %v6850, %v6848
        %v6911 = vpack.c.b16 %v6851, %v6849
        %v6912 = vpack.c.b16 %v6854, %v6852
        %v6913 = vpack.c.b16 %v6855, %v6853
        %v6914 = vpack.c.b16 %v6858, %v6856
        %v6915 = vpack.c.b16 %v6859, %v6857
        %v6916 = vpack.c.b16 %v6862, %v6860
        %v6917 = vpack.c.b16 %v6863, %v6861
        %v6918 = vpack.c.b16 %v6866, %v6864
        %v6919 = vpack.c.b16 %v6867, %v6865
        %v6920 = vpack.c.b16 %v6870, %v6868
        %v6921 = vpack.c.b16 %v6871, %v6869
        %v6922 = vpack.c.b16 %v6874, %v6872
        %v6923 = vpack.c.b16 %v6875, %v6873
        %v6924 = vpack.c.b16 %v6878, %v6876
        %v6925 = vpack.c.b16 %v6879, %v6877
        %v6926 = vpack.c.b16 %v6882, %v6880
        %v6927 = vpack.c.b16 %v6883, %v6881
        %v6928 = vpack.c.b16 %v6886, %v6884
        %v6929 = vpack.c.b16 %v6887, %v6885
        %v6930 = vpack.c.b16 %v6890, %v6888
        %v6931 = vpack.c.b16 %v6891, %v6889
        %v6932 = vpack.c.b16 %v6894, %v6892
        %v6933 = vpack.c.b16 %v6895, %v6893
        %v6934 = vpack.c.b16 %v6898, %v6896
        %v6935 = vpack.c.b16 %v6899, %v6897
        %v6936 = vpack.c.b16 %v6902, %v6900
        %v6937 = vpack.c.b16 %v6903, %v6901
        %v6938 = vpack.c.b16 %v6906, %v6904
        %v6939 = vpack.c.b16 %v6907, %v6905
        %6972 = vmatprep.subr.bf16.mxu0 %v6923
        %6973 = vmatpush1.bf16.msra.mxu0 %v6922
        %6974 = vmatprep.subr.bf16.mxu0 %v6921
        %6975 = vmatpush1.bf16.msra.mxu0 %v6920
        %6976 = vmatprep.subr.bf16.mxu0 %v6919
        %6977 = vmatpush1.bf16.msra.mxu0 %v6918
        %6978 = vmatprep.subr.bf16.mxu0 %v6917
        %6979 = vmatpush1.bf16.msra.mxu0 %v6916
        %6980 = vmatprep.subr.bf16.mxu0 %v6915
        %6981 = vmatpush1.bf16.msra.mxu0 %v6914
        %6982 = vmatprep.subr.bf16.mxu0 %v6913
        %6983 = vmatpush1.bf16.msra.mxu0 %v6912
        %6984 = vmatprep.subr.bf16.mxu0 %v6911
        %6985 = vmatpush1.bf16.msra.mxu0 %v6910
        %6986 = vmatprep.subr.bf16.mxu0 %v6909
        %6987 = vmatpush1.bf16.msra.mxu0 %v6908
        %6988 = vmatprep.subr.bf16.mxu0 %v6939
        %6989 = vmatpush2.bf16.msra.mxu0 %v6938
        %6990 = vmatprep.subr.bf16.mxu0 %v6937
        %6991 = vmatpush2.bf16.msra.mxu0 %v6936
        %6992 = vmatprep.subr.bf16.mxu0 %v6935
        %6993 = vmatpush2.bf16.msra.mxu0 %v6934
        %6994 = vmatprep.subr.bf16.mxu0 %v6933
        %6995 = vmatpush2.bf16.msra.mxu0 %v6932
        %6996 = vmatprep.subr.bf16.mxu0 %v6931
        %6997 = vmatpush2.bf16.msra.mxu0 %v6930
        %6998 = vmatprep.subr.bf16.mxu0 %v6929
        %6999 = vmatpush2.bf16.msra.mxu0 %v6928
        %7000 = vmatprep.subr.bf16.mxu0 %v6927
        %7001 = vmatpush2.bf16.msra.mxu0 %v6926
        %7002 = vmatprep.subr.bf16.mxu0 %v6925
        %7003 = vmatpush2.bf16.msra.mxu0 %v6924
        %7004 = vmatprep.mubr.bf16.mxu0 %v6705
        %7005 = vmatmul.mubr.bf16.gmra.mxu0 %v6704
        %v7006 = vpop.f32.mrf.mxu0
        %v7007 = vadd.f32 %v6805, %v7006
        %v7008 = vpop.f32.mrf.mxu0
        %v7009 = vadd.f32 %v6809, %v7008
        %v7010 = vpop.f32.mrf.mxu0
        %v7011 = vadd.f32 %v6805, %v7010
        %v7012 = vpop.f32.mrf.mxu0
        %v7013 = vadd.f32 %v6809, %v7012
        %7014 = vmatprep.mubr.bf16.mxu0 %v6707
        %7015 = vmatmul.mubr.bf16.gmra.mxu0 %v6706
        %v7016 = vpop.f32.mrf.mxu0
        %v7017 = vadd.f32 %v6805, %v7016
        %v7018 = vpop.f32.mrf.mxu0
        %v7019 = vadd.f32 %v6809, %v7018
        %v7020 = vpop.f32.mrf.mxu0
        %v7021 = vadd.f32 %v6805, %v7020
        %v7022 = vpop.f32.mrf.mxu0
        %v7023 = vadd.f32 %v6809, %v7022
        %7024 = vmatprep.mubr.bf16.mxu0 %v6709
        %7025 = vmatmul.mubr.bf16.gmra.mxu0 %v6708
        %v7026 = vpop.f32.mrf.mxu0
        %v7027 = vadd.f32 %v6805, %v7026
        %v7028 = vpop.f32.mrf.mxu0
        %v7029 = vadd.f32 %v6809, %v7028
        %v7030 = vpop.f32.mrf.mxu0
        %v7031 = vadd.f32 %v6805, %v7030
        %v7032 = vpop.f32.mrf.mxu0
        %v7033 = vadd.f32 %v6809, %v7032
        %7034 = vmatprep.mubr.bf16.mxu0 %v6711
        %7035 = vmatmul.mubr.bf16.gmra.mxu0 %v6710
        %v7036 = vpop.f32.mrf.mxu0
        %v7037 = vadd.f32 %v6805, %v7036
        %v7038 = vpop.f32.mrf.mxu0
        %v7039 = vadd.f32 %v6809, %v7038
        %v7040 = vpop.f32.mrf.mxu0
        %v7041 = vadd.f32 %v6805, %v7040
        %v7042 = vpop.f32.mrf.mxu0
        %v7043 = vadd.f32 %v6809, %v7042
        %7044 = vmatprep.mubr.bf16.mxu0 %v6713
        %7045 = vmatmul.mubr.bf16.gmra.mxu0 %v6712
        %v7046 = vpop.f32.mrf.mxu0
        %v7047 = vadd.f32 %v6805, %v7046
        %v7048 = vpop.f32.mrf.mxu0
        %v7049 = vadd.f32 %v6809, %v7048
        %v7050 = vpop.f32.mrf.mxu0
        %v7051 = vadd.f32 %v6805, %v7050
        %v7052 = vpop.f32.mrf.mxu0
        %v7053 = vadd.f32 %v6809, %v7052
        %7054 = vmatprep.mubr.bf16.mxu0 %v6715
        %7055 = vmatmul.mubr.bf16.gmra.mxu0 %v6714
        %v7056 = vpop.f32.mrf.mxu0
        %v7057 = vadd.f32 %v6805, %v7056
        %v7058 = vpop.f32.mrf.mxu0
        %v7059 = vadd.f32 %v6809, %v7058
        %v7060 = vpop.f32.mrf.mxu0
        %v7061 = vadd.f32 %v6805, %v7060
        %v7062 = vpop.f32.mrf.mxu0
        %v7063 = vadd.f32 %v6809, %v7062
        %7064 = vmatprep.mubr.bf16.mxu0 %v6717
        %7065 = vmatmul.mubr.bf16.gmra.mxu0 %v6716
        %v7066 = vpop.f32.mrf.mxu0
        %v7067 = vadd.f32 %v6805, %v7066
        %v7068 = vpop.f32.mrf.mxu0
        %v7069 = vadd.f32 %v6809, %v7068
        %v7070 = vpop.f32.mrf.mxu0
        %v7071 = vadd.f32 %v6805, %v7070
        %v7072 = vpop.f32.mrf.mxu0
        %v7073 = vadd.f32 %v6809, %v7072
        %7074 = vmatprep.mubr.bf16.mxu0 %v6719
        %7075 = vmatmul.mubr.bf16.gmra.mxu0 %v6718
        %v7076 = vpop.f32.mrf.mxu0
        %v7077 = vadd.f32 %v6805, %v7076
        %v7078 = vpop.f32.mrf.mxu0
        %v7079 = vadd.f32 %v6809, %v7078
        %v7080 = vpop.f32.mrf.mxu0
        %v7081 = vadd.f32 %v6805, %v7080
        %v7082 = vpop.f32.mrf.mxu0
        %v7083 = vadd.f32 %v6809, %v7082
        %7084 = vmatprep.mubr.bf16.mxu0 %v6721
        %7085 = vmatmul.mubr.bf16.gmra.mxu0 %v6720
        %v7086 = vpop.f32.mrf.mxu0
        %v7087 = vadd.f32 %v6805, %v7086
        %v7088 = vpop.f32.mrf.mxu0
        %v7089 = vadd.f32 %v6809, %v7088
        %v7090 = vpop.f32.mrf.mxu0
        %v7091 = vadd.f32 %v6805, %v7090
        %v7092 = vpop.f32.mrf.mxu0
        %v7093 = vadd.f32 %v6809, %v7092
        %7094 = vmatprep.mubr.bf16.mxu0 %v6723
        %7095 = vmatmul.mubr.bf16.gmra.mxu0 %v6722
        %v7096 = vpop.f32.mrf.mxu0
        %v7097 = vadd.f32 %v6805, %v7096
        %v7098 = vpop.f32.mrf.mxu0
        %v7099 = vadd.f32 %v6809, %v7098
        %v7100 = vpop.f32.mrf.mxu0
        %v7101 = vadd.f32 %v6805, %v7100
        %v7102 = vpop.f32.mrf.mxu0
        %v7103 = vadd.f32 %v6809, %v7102
        %7104 = vmatprep.mubr.bf16.mxu0 %v6725
        %7105 = vmatmul.mubr.bf16.gmra.mxu0 %v6724
        %v7106 = vpop.f32.mrf.mxu0
        %v7107 = vadd.f32 %v6805, %v7106
        %v7108 = vpop.f32.mrf.mxu0
        %v7109 = vadd.f32 %v6809, %v7108
        %v7110 = vpop.f32.mrf.mxu0
        %v7111 = vadd.f32 %v6805, %v7110
        %v7112 = vpop.f32.mrf.mxu0
        %v7113 = vadd.f32 %v6809, %v7112
        %7114 = vmatprep.mubr.bf16.mxu0 %v6727
        %7115 = vmatmul.mubr.bf16.gmra.mxu0 %v6726
        %v7116 = vpop.f32.mrf.mxu0
        %v7117 = vadd.f32 %v6805, %v7116
        %v7118 = vpop.f32.mrf.mxu0
        %v7119 = vadd.f32 %v6809, %v7118
        %v7120 = vpop.f32.mrf.mxu0
        %v7121 = vadd.f32 %v6805, %v7120
        %v7122 = vpop.f32.mrf.mxu0
        %v7123 = vadd.f32 %v6809, %v7122
        %7124 = vmatprep.mubr.bf16.mxu0 %v6729
        %7125 = vmatmul.mubr.bf16.gmra.mxu0 %v6728
        %v7126 = vpop.f32.mrf.mxu0
        %v7127 = vadd.f32 %v6805, %v7126
        %v7128 = vpop.f32.mrf.mxu0
        %v7129 = vadd.f32 %v6809, %v7128
        %v7130 = vpop.f32.mrf.mxu0
        %v7131 = vadd.f32 %v6805, %v7130
        %v7132 = vpop.f32.mrf.mxu0
        %v7133 = vadd.f32 %v6809, %v7132
        %7134 = vmatprep.mubr.bf16.mxu0 %v6731
        %7135 = vmatmul.mubr.bf16.gmra.mxu0 %v6730
        %v7136 = vpop.f32.mrf.mxu0
        %v7137 = vadd.f32 %v6805, %v7136
        %v7138 = vpop.f32.mrf.mxu0
        %v7139 = vadd.f32 %v6809, %v7138
        %v7140 = vpop.f32.mrf.mxu0
        %v7141 = vadd.f32 %v6805, %v7140
        %v7142 = vpop.f32.mrf.mxu0
        %v7143 = vadd.f32 %v6809, %v7142
        %7144 = vmatprep.mubr.bf16.mxu0 %v6733
        %7145 = vmatmul.mubr.bf16.gmra.mxu0 %v6732
        %v7146 = vpop.f32.mrf.mxu0
        %v7147 = vadd.f32 %v6805, %v7146
        %v7148 = vpop.f32.mrf.mxu0
        %v7149 = vadd.f32 %v6809, %v7148
        %v7150 = vpop.f32.mrf.mxu0
        %v7151 = vadd.f32 %v6805, %v7150
        %v7152 = vpop.f32.mrf.mxu0
        %v7153 = vadd.f32 %v6809, %v7152
        %7154 = vmatprep.mubr.bf16.mxu0 %v6735
        %7155 = vmatmul.mubr.bf16.gmra.mxu0 %v6734
        %v7156 = vpop.f32.mrf.mxu0
        %v7157 = vadd.f32 %v6805, %v7156
        %v7158 = vpop.f32.mrf.mxu0
        %v7159 = vadd.f32 %v6809, %v7158
        %v7160 = vpop.f32.mrf.mxu0
        %v7161 = vadd.f32 %v6805, %v7160
        %v7162 = vpop.f32.mrf.mxu0
        %v7163 = vadd.f32 %v6809, %v7162
        %7164 = vmatprep.mubr.bf16.mxu0 %v6737
        %7165 = vmatmul.mubr.bf16.gmra.mxu0 %v6736
        %v7166 = vpop.f32.mrf.mxu0
        %v7167 = vadd.f32 %v6805, %v7166
        %v7168 = vpop.f32.mrf.mxu0
        %v7169 = vadd.f32 %v6809, %v7168
        %v7170 = vpop.f32.mrf.mxu0
        %v7171 = vadd.f32 %v6805, %v7170
        %v7172 = vpop.f32.mrf.mxu0
        %v7173 = vadd.f32 %v6809, %v7172
        %7174 = vmatprep.mubr.bf16.mxu0 %v6739
        %7175 = vmatmul.mubr.bf16.gmra.mxu0 %v6738
        %v7176 = vpop.f32.mrf.mxu0
        %v7177 = vadd.f32 %v6805, %v7176
        %v7178 = vpop.f32.mrf.mxu0
        %v7179 = vadd.f32 %v6809, %v7178
        %v7180 = vpop.f32.mrf.mxu0
        %v7181 = vadd.f32 %v6805, %v7180
        %v7182 = vpop.f32.mrf.mxu0
        %v7183 = vadd.f32 %v6809, %v7182
        %7184 = vmatprep.mubr.bf16.mxu0 %v6741
        %7185 = vmatmul.mubr.bf16.gmra.mxu0 %v6740
        %v7186 = vpop.f32.mrf.mxu0
        %v7187 = vadd.f32 %v6805, %v7186
        %v7188 = vpop.f32.mrf.mxu0
        %v7189 = vadd.f32 %v6809, %v7188
        %v7190 = vpop.f32.mrf.mxu0
        %v7191 = vadd.f32 %v6805, %v7190
        %v7192 = vpop.f32.mrf.mxu0
        %v7193 = vadd.f32 %v6809, %v7192
        %7194 = vmatprep.mubr.bf16.mxu0 %v6743
        %7195 = vmatmul.mubr.bf16.gmra.mxu0 %v6742
        %v7196 = vpop.f32.mrf.mxu0
        %v7197 = vadd.f32 %v6805, %v7196
        %v7198 = vpop.f32.mrf.mxu0
        %v7199 = vadd.f32 %v6809, %v7198
        %v7200 = vpop.f32.mrf.mxu0
        %v7201 = vadd.f32 %v6805, %v7200
        %v7202 = vpop.f32.mrf.mxu0
        %v7203 = vadd.f32 %v6809, %v7202
        %7204 = vmatprep.mubr.bf16.mxu0 %v6745
        %7205 = vmatmul.mubr.bf16.gmra.mxu0 %v6744
        %v7206 = vpop.f32.mrf.mxu0
        %v7207 = vadd.f32 %v6805, %v7206
        %v7208 = vpop.f32.mrf.mxu0
        %v7209 = vadd.f32 %v6809, %v7208
        %v7210 = vpop.f32.mrf.mxu0
        %v7211 = vadd.f32 %v6805, %v7210
        %v7212 = vpop.f32.mrf.mxu0
        %v7213 = vadd.f32 %v6809, %v7212
        %7214 = vmatprep.mubr.bf16.mxu0 %v6747
        %7215 = vmatmul.mubr.bf16.gmra.mxu0 %v6746
        %v7216 = vpop.f32.mrf.mxu0
        %v7217 = vadd.f32 %v6805, %v7216
        %v7218 = vpop.f32.mrf.mxu0
        %v7219 = vadd.f32 %v6809, %v7218
        %v7220 = vpop.f32.mrf.mxu0
        %v7221 = vadd.f32 %v6805, %v7220
        %v7222 = vpop.f32.mrf.mxu0
        %v7223 = vadd.f32 %v6809, %v7222
        %7224 = vmatprep.mubr.bf16.mxu0 %v6749
        %7225 = vmatmul.mubr.bf16.gmra.mxu0 %v6748
        %v7226 = vpop.f32.mrf.mxu0
        %v7227 = vadd.f32 %v6805, %v7226
        %v7228 = vpop.f32.mrf.mxu0
        %v7229 = vadd.f32 %v6809, %v7228
        %v7230 = vpop.f32.mrf.mxu0
        %v7231 = vadd.f32 %v6805, %v7230
        %v7232 = vpop.f32.mrf.mxu0
        %v7233 = vadd.f32 %v6809, %v7232
        %7234 = vmatprep.mubr.bf16.mxu0 %v6751
        %7235 = vmatmul.mubr.bf16.gmra.mxu0 %v6750
        %v7236 = vpop.f32.mrf.mxu0
        %v7237 = vadd.f32 %v6805, %v7236
        %v7238 = vpop.f32.mrf.mxu0
        %v7239 = vadd.f32 %v6809, %v7238
        %v7240 = vpop.f32.mrf.mxu0
        %v7241 = vadd.f32 %v6805, %v7240
        %v7242 = vpop.f32.mrf.mxu0
        %v7243 = vadd.f32 %v6809, %v7242
        %7244 = vmatprep.mubr.bf16.mxu0 %v6753
        %7245 = vmatmul.mubr.bf16.gmra.mxu0 %v6752
        %v7246 = vpop.f32.mrf.mxu0
        %v7247 = vadd.f32 %v6805, %v7246
        %v7248 = vpop.f32.mrf.mxu0
        %v7249 = vadd.f32 %v6809, %v7248
        %v7250 = vpop.f32.mrf.mxu0
        %v7251 = vadd.f32 %v6805, %v7250
        %v7252 = vpop.f32.mrf.mxu0
        %v7253 = vadd.f32 %v6809, %v7252
        %7254 = vmatprep.mubr.bf16.mxu0 %v6755
        %7255 = vmatmul.mubr.bf16.gmra.mxu0 %v6754
        %v7256 = vpop.f32.mrf.mxu0
        %v7257 = vadd.f32 %v6805, %v7256
        %v7258 = vpop.f32.mrf.mxu0
        %v7259 = vadd.f32 %v6809, %v7258
        %v7260 = vpop.f32.mrf.mxu0
        %v7261 = vadd.f32 %v6805, %v7260
        %v7262 = vpop.f32.mrf.mxu0
        %v7263 = vadd.f32 %v6809, %v7262
        %7264 = vmatprep.mubr.bf16.mxu0 %v6757
        %7265 = vmatmul.mubr.bf16.gmra.mxu0 %v6756
        %v7266 = vpop.f32.mrf.mxu0
        %v7267 = vadd.f32 %v6805, %v7266
        %v7268 = vpop.f32.mrf.mxu0
        %v7269 = vadd.f32 %v6809, %v7268
        %v7270 = vpop.f32.mrf.mxu0
        %v7271 = vadd.f32 %v6805, %v7270
        %v7272 = vpop.f32.mrf.mxu0
        %v7273 = vadd.f32 %v6809, %v7272
        %7274 = vmatprep.mubr.bf16.mxu0 %v6759
        %7275 = vmatmul.mubr.bf16.gmra.mxu0 %v6758
        %v7276 = vpop.f32.mrf.mxu0
        %v7277 = vadd.f32 %v6805, %v7276
        %v7278 = vpop.f32.mrf.mxu0
        %v7279 = vadd.f32 %v6809, %v7278
        %v7280 = vpop.f32.mrf.mxu0
        %v7281 = vadd.f32 %v6805, %v7280
        %v7282 = vpop.f32.mrf.mxu0
        %v7283 = vadd.f32 %v6809, %v7282
        %7284 = vmatprep.mubr.bf16.mxu0 %v6761
        %7285 = vmatmul.mubr.bf16.gmra.mxu0 %v6760
        %v7286 = vpop.f32.mrf.mxu0
        %v7287 = vadd.f32 %v6805, %v7286
        %v7288 = vpop.f32.mrf.mxu0
        %v7289 = vadd.f32 %v6809, %v7288
        %v7290 = vpop.f32.mrf.mxu0
        %v7291 = vadd.f32 %v6805, %v7290
        %v7292 = vpop.f32.mrf.mxu0
        %v7293 = vadd.f32 %v6809, %v7292
        %7294 = vmatprep.mubr.bf16.mxu0 %v6763
        %7295 = vmatmul.mubr.bf16.gmra.mxu0 %v6762
        %v7296 = vpop.f32.mrf.mxu0
        %v7297 = vadd.f32 %v6805, %v7296
        %v7298 = vpop.f32.mrf.mxu0
        %v7299 = vadd.f32 %v6809, %v7298
        %v7300 = vpop.f32.mrf.mxu0
        %v7301 = vadd.f32 %v6805, %v7300
        %v7302 = vpop.f32.mrf.mxu0
        %v7303 = vadd.f32 %v6809, %v7302
        %7304 = vmatprep.mubr.bf16.mxu0 %v6765
        %7305 = vmatmul.mubr.bf16.gmra.mxu0 %v6764
        %v7306 = vpop.f32.mrf.mxu0
        %v7307 = vadd.f32 %v6805, %v7306
        %v7308 = vpop.f32.mrf.mxu0
        %v7309 = vadd.f32 %v6809, %v7308
        %v7310 = vpop.f32.mrf.mxu0
        %v7311 = vadd.f32 %v6805, %v7310
        %v7312 = vpop.f32.mrf.mxu0
        %v7313 = vadd.f32 %v6809, %v7312
        %7314 = vmatprep.mubr.bf16.mxu0 %v6767
        %7315 = vmatmul.mubr.bf16.gmra.mxu0 %v6766
        %v7316 = vpop.f32.mrf.mxu0
        %v7317 = vadd.f32 %v6805, %v7316
        %v7318 = vpop.f32.mrf.mxu0
        %v7319 = vadd.f32 %v6809, %v7318
        %v7320 = vpop.f32.mrf.mxu0
        %v7321 = vadd.f32 %v6805, %v7320
        %v7322 = vpop.f32.mrf.mxu0
        %v7323 = vadd.f32 %v6809, %v7322
        %7324 = vdwg.mxu0
        %v7325 = vmax.f32 %v7007, 0.0
        %v7326 = vmax.f32 %v7009, 0.0
        %v7327 = vmax.f32 %v7011, 0.0
        %v7328 = vmax.f32 %v7013, 0.0
        %v7329 = vmax.f32 %v7017, 0.0
        %v7330 = vmax.f32 %v7019, 0.0
        %v7331 = vmax.f32 %v7021, 0.0
        %v7332 = vmax.f32 %v7023, 0.0
        %v7333 = vmax.f32 %v7027, 0.0
        %v7334 = vmax.f32 %v7029, 0.0
        %v7335 = vmax.f32 %v7031, 0.0
        %v7336 = vmax.f32 %v7033, 0.0
        %v7337 = vmax.f32 %v7037, 0.0
        %v7338 = vmax.f32 %v7039, 0.0
        %v7339 = vmax.f32 %v7041, 0.0
        %v7340 = vmax.f32 %v7043, 0.0
        %v7341 = vmax.f32 %v7047, 0.0
        %v7342 = vmax.f32 %v7049, 0.0
        %v7343 = vmax.f32 %v7051, 0.0
        %v7344 = vmax.f32 %v7053, 0.0
        %v7345 = vmax.f32 %v7057, 0.0
        %v7346 = vmax.f32 %v7059, 0.0
        %v7347 = vmax.f32 %v7061, 0.0
        %v7348 = vmax.f32 %v7063, 0.0
        %v7349 = vmax.f32 %v7067, 0.0
        %v7350 = vmax.f32 %v7069, 0.0
        %v7351 = vmax.f32 %v7071, 0.0
        %v7352 = vmax.f32 %v7073, 0.0
        %v7353 = vmax.f32 %v7077, 0.0
        %v7354 = vmax.f32 %v7079, 0.0
        %v7355 = vmax.f32 %v7081, 0.0
        %v7356 = vmax.f32 %v7083, 0.0
        %v7357 = vmax.f32 %v7087, 0.0
        %v7358 = vmax.f32 %v7089, 0.0
        %v7359 = vmax.f32 %v7091, 0.0
        %v7360 = vmax.f32 %v7093, 0.0
        %v7361 = vmax.f32 %v7097, 0.0
        %v7362 = vmax.f32 %v7099, 0.0
        %v7363 = vmax.f32 %v7101, 0.0
        %v7364 = vmax.f32 %v7103, 0.0
        %v7365 = vmax.f32 %v7107, 0.0
        %v7366 = vmax.f32 %v7109, 0.0
        %v7367 = vmax.f32 %v7111, 0.0
        %v7368 = vmax.f32 %v7113, 0.0
        %v7369 = vmax.f32 %v7117, 0.0
        %v7370 = vmax.f32 %v7119, 0.0
        %v7371 = vmax.f32 %v7121, 0.0
        %v7372 = vmax.f32 %v7123, 0.0
        %v7373 = vmax.f32 %v7127, 0.0
        %v7374 = vmax.f32 %v7129, 0.0
        %v7375 = vmax.f32 %v7131, 0.0
        %v7376 = vmax.f32 %v7133, 0.0
        %v7377 = vmax.f32 %v7137, 0.0
        %v7378 = vmax.f32 %v7139, 0.0
        %v7379 = vmax.f32 %v7141, 0.0
        %v7380 = vmax.f32 %v7143, 0.0
        %v7381 = vmax.f32 %v7147, 0.0
        %v7382 = vmax.f32 %v7149, 0.0
        %v7383 = vmax.f32 %v7151, 0.0
        %v7384 = vmax.f32 %v7153, 0.0
        %v7385 = vmax.f32 %v7157, 0.0
        %v7386 = vmax.f32 %v7159, 0.0
        %v7387 = vmax.f32 %v7161, 0.0
        %v7388 = vmax.f32 %v7163, 0.0
        %v7389 = vmax.f32 %v7167, 0.0
        %v7390 = vmax.f32 %v7169, 0.0
        %v7391 = vmax.f32 %v7171, 0.0
        %v7392 = vmax.f32 %v7173, 0.0
        %v7393 = vmax.f32 %v7177, 0.0
        %v7394 = vmax.f32 %v7179, 0.0
        %v7395 = vmax.f32 %v7181, 0.0
        %v7396 = vmax.f32 %v7183, 0.0
        %v7397 = vmax.f32 %v7187, 0.0
        %v7398 = vmax.f32 %v7189, 0.0
        %v7399 = vmax.f32 %v7191, 0.0
        %v7400 = vmax.f32 %v7193, 0.0
        %v7401 = vmax.f32 %v7197, 0.0
        %v7402 = vmax.f32 %v7199, 0.0
        %v7403 = vmax.f32 %v7201, 0.0
        %v7404 = vmax.f32 %v7203, 0.0
        %v7405 = vmax.f32 %v7207, 0.0
        %v7406 = vmax.f32 %v7209, 0.0
        %v7407 = vmax.f32 %v7211, 0.0
        %v7408 = vmax.f32 %v7213, 0.0
        %v7409 = vmax.f32 %v7217, 0.0
        %v7410 = vmax.f32 %v7219, 0.0
        %v7411 = vmax.f32 %v7221, 0.0
        %v7412 = vmax.f32 %v7223, 0.0
        %v7413 = vmax.f32 %v7227, 0.0
        %v7414 = vmax.f32 %v7229, 0.0
        %v7415 = vmax.f32 %v7231, 0.0
        %v7416 = vmax.f32 %v7233, 0.0
        %v7417 = vmax.f32 %v7237, 0.0
        %v7418 = vmax.f32 %v7239, 0.0
        %v7419 = vmax.f32 %v7241, 0.0
        %v7420 = vmax.f32 %v7243, 0.0
        %v7421 = vmax.f32 %v7247, 0.0
        %v7422 = vmax.f32 %v7249, 0.0
        %v7423 = vmax.f32 %v7251, 0.0
        %v7424 = vmax.f32 %v7253, 0.0
        %v7425 = vmax.f32 %v7257, 0.0
        %v7426 = vmax.f32 %v7259, 0.0
        %v7427 = vmax.f32 %v7261, 0.0
        %v7428 = vmax.f32 %v7263, 0.0
        %v7429 = vmax.f32 %v7267, 0.0
        %v7430 = vmax.f32 %v7269, 0.0
        %v7431 = vmax.f32 %v7271, 0.0
        %v7432 = vmax.f32 %v7273, 0.0
        %v7433 = vmax.f32 %v7277, 0.0
        %v7434 = vmax.f32 %v7279, 0.0
        %v7435 = vmax.f32 %v7281, 0.0
        %v7436 = vmax.f32 %v7283, 0.0
        %v7437 = vmax.f32 %v7287, 0.0
        %v7438 = vmax.f32 %v7289, 0.0
        %v7439 = vmax.f32 %v7291, 0.0
        %v7440 = vmax.f32 %v7293, 0.0
        %v7441 = vmax.f32 %v7297, 0.0
        %v7442 = vmax.f32 %v7299, 0.0
        %v7443 = vmax.f32 %v7301, 0.0
        %v7444 = vmax.f32 %v7303, 0.0
        %v7445 = vmax.f32 %v7307, 0.0
        %v7446 = vmax.f32 %v7309, 0.0
        %v7447 = vmax.f32 %v7311, 0.0
        %v7448 = vmax.f32 %v7313, 0.0
        %v7449 = vmax.f32 %v7317, 0.0
        %v7450 = vmax.f32 %v7319, 0.0
        %v7451 = vmax.f32 %v7321, 0.0
        %v7452 = vmax.f32 %v7323, 0.0
        %v7453 = vpack.c.bf16 %v7327, %v7325
        %v7454 = vpack.c.bf16 %v7328, %v7326
        %v7455 = vpack.c.bf16 %v7331, %v7329
        %v7456 = vpack.c.bf16 %v7332, %v7330
        %v7457 = vpack.c.bf16 %v7335, %v7333
        %v7458 = vpack.c.bf16 %v7336, %v7334
        %v7459 = vpack.c.bf16 %v7339, %v7337
        %v7460 = vpack.c.bf16 %v7340, %v7338
        %v7461 = vpack.c.bf16 %v7343, %v7341
        %v7462 = vpack.c.bf16 %v7344, %v7342
        %v7463 = vpack.c.bf16 %v7347, %v7345
        %v7464 = vpack.c.bf16 %v7348, %v7346
        %v7465 = vpack.c.bf16 %v7351, %v7349
        %v7466 = vpack.c.bf16 %v7352, %v7350
        %v7467 = vpack.c.bf16 %v7355, %v7353
        %v7468 = vpack.c.bf16 %v7356, %v7354
        %v7469 = vpack.c.bf16 %v7359, %v7357
        %v7470 = vpack.c.bf16 %v7360, %v7358
        %v7471 = vpack.c.bf16 %v7363, %v7361
        %v7472 = vpack.c.bf16 %v7364, %v7362
        %v7473 = vpack.c.bf16 %v7367, %v7365
        %v7474 = vpack.c.bf16 %v7368, %v7366
        %v7475 = vpack.c.bf16 %v7371, %v7369
        %v7476 = vpack.c.bf16 %v7372, %v7370
        %v7477 = vpack.c.bf16 %v7375, %v7373
        %v7478 = vpack.c.bf16 %v7376, %v7374
        %v7479 = vpack.c.bf16 %v7379, %v7377
        %v7480 = vpack.c.bf16 %v7380, %v7378
        %v7481 = vpack.c.bf16 %v7383, %v7381
        %v7482 = vpack.c.bf16 %v7384, %v7382
        %v7483 = vpack.c.bf16 %v7387, %v7385
        %v7484 = vpack.c.bf16 %v7388, %v7386
        %v7485 = vpack.c.bf16 %v7391, %v7389
        %v7486 = vpack.c.bf16 %v7392, %v7390
        %v7487 = vpack.c.bf16 %v7395, %v7393
        %v7488 = vpack.c.bf16 %v7396, %v7394
        %v7489 = vpack.c.bf16 %v7399, %v7397
        %v7490 = vpack.c.bf16 %v7400, %v7398
        %v7491 = vpack.c.bf16 %v7403, %v7401
        %v7492 = vpack.c.bf16 %v7404, %v7402
        %v7493 = vpack.c.bf16 %v7407, %v7405
        %v7494 = vpack.c.bf16 %v7408, %v7406
        %v7495 = vpack.c.bf16 %v7411, %v7409
        %v7496 = vpack.c.bf16 %v7412, %v7410
        %v7497 = vpack.c.bf16 %v7415, %v7413
        %v7498 = vpack.c.bf16 %v7416, %v7414
        %v7499 = vpack.c.bf16 %v7419, %v7417
        %v7500 = vpack.c.bf16 %v7420, %v7418
        %v7501 = vpack.c.bf16 %v7423, %v7421
        %v7502 = vpack.c.bf16 %v7424, %v7422
        %v7503 = vpack.c.bf16 %v7427, %v7425
        %v7504 = vpack.c.bf16 %v7428, %v7426
        %v7505 = vpack.c.bf16 %v7431, %v7429
        %v7506 = vpack.c.bf16 %v7432, %v7430
        %v7507 = vpack.c.bf16 %v7435, %v7433
        %v7508 = vpack.c.bf16 %v7436, %v7434
        %v7509 = vpack.c.bf16 %v7439, %v7437
        %v7510 = vpack.c.bf16 %v7440, %v7438
        %v7511 = vpack.c.bf16 %v7443, %v7441
        %v7512 = vpack.c.bf16 %v7444, %v7442
        %v7513 = vpack.c.bf16 %v7447, %v7445
        %v7514 = vpack.c.bf16 %v7448, %v7446
        %v7515 = vpack.c.bf16 %v7451, %v7449
        %v7516 = vpack.c.bf16 %v7452, %v7450
        %v7517 = vld [vmem:[#allocation18] sm:$0xff]
        %v7518 = vld [vmem:[#allocation18 + $0x8] sm:$0xf]
        %v7519 = vld [vmem:[#allocation18 + $0xc] sm:$0xff]
        %v7520 = vld [vmem:[#allocation18 + $0x14] sm:$0xf]
        %v7521 = vld [vmem:[#allocation18 + $0x18] sm:$0xff]
        %v7522 = vld [vmem:[#allocation18 + $0x20] sm:$0xf]
        %v7523 = vld [vmem:[#allocation18 + $0x24] sm:$0xff]
        %v7524 = vld [vmem:[#allocation18 + $0x2c] sm:$0xf]
        %v7525 = vld [vmem:[#allocation18 + $0x30] sm:$0xff]
        %v7526 = vld [vmem:[#allocation18 + $0x38] sm:$0xf]
        %v7527 = vld [vmem:[#allocation18 + $0x3c] sm:$0xff]
        %v7528 = vld [vmem:[#allocation18 + $0x44] sm:$0xf]
        %v7529 = vld [vmem:[#allocation18 + $0x48] sm:$0xff]
        %v7530 = vld [vmem:[#allocation18 + $0x50] sm:$0xf]
        %v7531 = vld [vmem:[#allocation18 + $0x54] sm:$0xff]
        %v7532 = vld [vmem:[#allocation18 + $0x5c] sm:$0xf]
        %v7533 = vld [vmem:[#allocation18 + $0x60] sm:$0xff]
        %v7534 = vld [vmem:[#allocation18 + $0x68] sm:$0xf]
        %v7535 = vld [vmem:[#allocation18 + $0x6c] sm:$0xff]
        %v7536 = vld [vmem:[#allocation18 + $0x74] sm:$0xf]
        %v7537 = vld [vmem:[#allocation18 + $0x78] sm:$0xff]
        %v7538 = vld [vmem:[#allocation18 + $0x80] sm:$0xf]
        %v7539 = vld [vmem:[#allocation18 + $0x84] sm:$0xff]
        %v7540 = vld [vmem:[#allocation18 + $0x8c] sm:$0xf]
        %v7541 = vld [vmem:[#allocation18 + $0x90] sm:$0xff]
        %v7542 = vld [vmem:[#allocation18 + $0x98] sm:$0xf]
        %v7543 = vld [vmem:[#allocation18 + $0x9c] sm:$0xff]
        %v7544 = vld [vmem:[#allocation18 + $0xa4] sm:$0xf]
        %v7545 = vld [vmem:[#allocation18 + $0xa8] sm:$0xff]
        %v7546 = vld [vmem:[#allocation18 + $0xb0] sm:$0xf]
        %v7547 = vld [vmem:[#allocation18 + $0xb4] sm:$0xff]
        %v7548 = vld [vmem:[#allocation18 + $0xbc] sm:$0xf]
        %v7549 = vld [vmem:[#allocation18 + $0xc0] sm:$0xff]
        %v7550 = vld [vmem:[#allocation18 + $0xc8] sm:$0xf]
        %v7551 = vld [vmem:[#allocation18 + $0xcc] sm:$0xff]
        %v7552 = vld [vmem:[#allocation18 + $0xd4] sm:$0xf]
        %v7553 = vld [vmem:[#allocation18 + $0xd8] sm:$0xff]
        %v7554 = vld [vmem:[#allocation18 + $0xe0] sm:$0xf]
        %v7555 = vld [vmem:[#allocation18 + $0xe4] sm:$0xff]
        %v7556 = vld [vmem:[#allocation18 + $0xec] sm:$0xf]
        %v7557 = vld [vmem:[#allocation18 + $0xf0] sm:$0xff]
        %v7558 = vld [vmem:[#allocation18 + $0xf8] sm:$0xf]
        %v7559 = vld [vmem:[#allocation18 + $0xfc] sm:$0xff]
        %v7560 = vld [vmem:[#allocation18 + $0x104] sm:$0xf]
        %v7561 = vld [vmem:[#allocation18 + $0x108] sm:$0xff]
        %v7562 = vld [vmem:[#allocation18 + $0x110] sm:$0xf]
        %v7563 = vld [vmem:[#allocation18 + $0x114] sm:$0xff]
        %v7564 = vld [vmem:[#allocation18 + $0x11c] sm:$0xf]
        %v7565 = vld [vmem:[#allocation18 + $0x120] sm:$0xff]
        %v7566 = vld [vmem:[#allocation18 + $0x128] sm:$0xf]
        %v7567 = vld [vmem:[#allocation18 + $0x12c] sm:$0xff]
        %v7568 = vld [vmem:[#allocation18 + $0x134] sm:$0xf]
        %v7569 = vld [vmem:[#allocation18 + $0x138] sm:$0xff]
        %v7570 = vld [vmem:[#allocation18 + $0x140] sm:$0xf]
        %v7571 = vld [vmem:[#allocation18 + $0x144] sm:$0xff]
        %v7572 = vld [vmem:[#allocation18 + $0x14c] sm:$0xf]
        %v7573 = vld [vmem:[#allocation18 + $0x150] sm:$0xff]
        %v7574 = vld [vmem:[#allocation18 + $0x158] sm:$0xf]
        %v7575 = vld [vmem:[#allocation18 + $0x15c] sm:$0xff]
        %v7576 = vld [vmem:[#allocation18 + $0x164] sm:$0xf]
        %v7577 = vld [vmem:[#allocation18 + $0x168] sm:$0xff]
        %v7578 = vld [vmem:[#allocation18 + $0x170] sm:$0xf]
        %v7579 = vld [vmem:[#allocation18 + $0x174] sm:$0xff]
        %v7580 = vld [vmem:[#allocation18 + $0x17c] sm:$0xf]
        %v7581 = vld [vmem:[%s19] sm:$0x7]
        %v7583 = vlaneseq
        %v7584 = vshrl.u32 %v7583, 7
        %v7585 = vsub.s32 0, %v7584
        %v7586 = vrot.slane %v7581, %v7585
        %v7587 = vlaneseq
        %v7588 = vshrl.u32 %v7587, 7
        %v7589 = vsub.s32 1, %v7588
        %v7590 = vrot.slane %v7581, %v7589
        %v7591 = vlaneseq
        %v7592 = vshrl.u32 %v7591, 7
        %v7593 = vsub.s32 2, %v7592
        %v7594 = vrot.slane %v7581, %v7593
        %v7662 = vunpack.c.l.b16 %v7517
        %v7663 = vunpack.c.h.b16 %v7517
        %v7664 = vunpack.c.l.b16 %v7518
        %v7665 = vunpack.c.l.b16 %v7519
        %v7666 = vunpack.c.h.b16 %v7519
        %v7667 = vunpack.c.l.b16 %v7520
        %v7668 = vunpack.c.l.b16 %v7521
        %v7669 = vunpack.c.h.b16 %v7521
        %v7670 = vunpack.c.l.b16 %v7522
        %v7671 = vunpack.c.l.b16 %v7523
        %v7672 = vunpack.c.h.b16 %v7523
        %v7673 = vunpack.c.l.b16 %v7524
        %v7674 = vunpack.c.l.b16 %v7525
        %v7675 = vunpack.c.h.b16 %v7525
        %v7676 = vunpack.c.l.b16 %v7526
        %v7677 = vunpack.c.l.b16 %v7527
        %v7678 = vunpack.c.h.b16 %v7527
        %v7679 = vunpack.c.l.b16 %v7528
        %v7680 = vunpack.c.l.b16 %v7529
        %v7681 = vunpack.c.h.b16 %v7529
        %v7682 = vunpack.c.l.b16 %v7530
        %v7683 = vunpack.c.l.b16 %v7531
        %v7684 = vunpack.c.h.b16 %v7531
        %v7685 = vunpack.c.l.b16 %v7532
        %v7686 = vunpack.c.l.b16 %v7533
        %v7687 = vunpack.c.h.b16 %v7533
        %v7688 = vunpack.c.l.b16 %v7534
        %v7689 = vunpack.c.l.b16 %v7535
        %v7690 = vunpack.c.h.b16 %v7535
        %v7691 = vunpack.c.l.b16 %v7536
        %v7692 = vunpack.c.l.b16 %v7537
        %v7693 = vunpack.c.h.b16 %v7537
        %v7694 = vunpack.c.l.b16 %v7538
        %v7695 = vunpack.c.l.b16 %v7539
        %v7696 = vunpack.c.h.b16 %v7539
        %v7697 = vunpack.c.l.b16 %v7540
        %v7698 = vunpack.c.l.b16 %v7541
        %v7699 = vunpack.c.h.b16 %v7541
        %v7700 = vunpack.c.l.b16 %v7542
        %v7701 = vunpack.c.l.b16 %v7543
        %v7702 = vunpack.c.h.b16 %v7543
        %v7703 = vunpack.c.l.b16 %v7544
        %v7704 = vunpack.c.l.b16 %v7545
        %v7705 = vunpack.c.h.b16 %v7545
        %v7706 = vunpack.c.l.b16 %v7546
        %v7707 = vunpack.c.l.b16 %v7547
        %v7708 = vunpack.c.h.b16 %v7547
        %v7709 = vunpack.c.l.b16 %v7548
        %v7710 = vunpack.c.l.b16 %v7549
        %v7711 = vunpack.c.h.b16 %v7549
        %v7712 = vunpack.c.l.b16 %v7550
        %v7713 = vunpack.c.l.b16 %v7551
        %v7714 = vunpack.c.h.b16 %v7551
        %v7715 = vunpack.c.l.b16 %v7552
        %v7716 = vunpack.c.l.b16 %v7553
        %v7717 = vunpack.c.h.b16 %v7553
        %v7718 = vunpack.c.l.b16 %v7554
        %v7719 = vunpack.c.l.b16 %v7555
        %v7720 = vunpack.c.h.b16 %v7555
        %v7721 = vunpack.c.l.b16 %v7556
        %v7722 = vunpack.c.l.b16 %v7557
        %v7723 = vunpack.c.h.b16 %v7557
        %v7724 = vunpack.c.l.b16 %v7558
        %v7725 = vunpack.c.l.b16 %v7559
        %v7726 = vunpack.c.h.b16 %v7559
        %v7727 = vunpack.c.l.b16 %v7560
        %v7728 = vunpack.c.l.b16 %v7561
        %v7729 = vunpack.c.h.b16 %v7561
        %v7730 = vunpack.c.l.b16 %v7562
        %v7731 = vunpack.c.l.b16 %v7563
        %v7732 = vunpack.c.h.b16 %v7563
        %v7733 = vunpack.c.l.b16 %v7564
        %v7734 = vunpack.c.l.b16 %v7565
        %v7735 = vunpack.c.h.b16 %v7565
        %v7736 = vunpack.c.l.b16 %v7566
        %v7737 = vunpack.c.l.b16 %v7567
        %v7738 = vunpack.c.h.b16 %v7567
        %v7739 = vunpack.c.l.b16 %v7568
        %v7740 = vunpack.c.l.b16 %v7569
        %v7741 = vunpack.c.h.b16 %v7569
        %v7742 = vunpack.c.l.b16 %v7570
        %v7743 = vunpack.c.l.b16 %v7571
        %v7744 = vunpack.c.h.b16 %v7571
        %v7745 = vunpack.c.l.b16 %v7572
        %v7746 = vunpack.c.l.b16 %v7573
        %v7747 = vunpack.c.h.b16 %v7573
        %v7748 = vunpack.c.l.b16 %v7574
        %v7749 = vunpack.c.l.b16 %v7575
        %v7750 = vunpack.c.h.b16 %v7575
        %v7751 = vunpack.c.l.b16 %v7576
        %v7752 = vunpack.c.l.b16 %v7577
        %v7753 = vunpack.c.h.b16 %v7577
        %v7754 = vunpack.c.l.b16 %v7578
        %v7755 = vunpack.c.l.b16 %v7579
        %v7756 = vunpack.c.h.b16 %v7579
        %v7757 = vunpack.c.l.b16 %v7580
        %v7758 = vpack.c.b16 %v7665, %v7662
        %v7759 = vpack.c.b16 %v7666, %v7663
        %v7760 = vpack.c.b16 %v7667, %v7664
        %v7761 = vpack.c.b16 %v7671, %v7668
        %v7762 = vpack.c.b16 %v7672, %v7669
        %v7763 = vpack.c.b16 %v7673, %v7670
        %v7764 = vpack.c.b16 %v7677, %v7674
        %v7765 = vpack.c.b16 %v7678, %v7675
        %v7766 = vpack.c.b16 %v7679, %v7676
        %v7767 = vpack.c.b16 %v7683, %v7680
        %v7768 = vpack.c.b16 %v7684, %v7681
        %v7769 = vpack.c.b16 %v7685, %v7682
        %v7770 = vpack.c.b16 %v7689, %v7686
        %v7771 = vpack.c.b16 %v7690, %v7687
        %v7772 = vpack.c.b16 %v7691, %v7688
        %v7773 = vpack.c.b16 %v7695, %v7692
        %v7774 = vpack.c.b16 %v7696, %v7693
        %v7775 = vpack.c.b16 %v7697, %v7694
        %v7776 = vpack.c.b16 %v7701, %v7698
        %v7777 = vpack.c.b16 %v7702, %v7699
        %v7778 = vpack.c.b16 %v7703, %v7700
        %v7779 = vpack.c.b16 %v7707, %v7704
        %v7780 = vpack.c.b16 %v7708, %v7705
        %v7781 = vpack.c.b16 %v7709, %v7706
        %v7782 = vpack.c.b16 %v7713, %v7710
        %v7783 = vpack.c.b16 %v7714, %v7711
        %v7784 = vpack.c.b16 %v7715, %v7712
        %v7785 = vpack.c.b16 %v7719, %v7716
        %v7786 = vpack.c.b16 %v7720, %v7717
        %v7787 = vpack.c.b16 %v7721, %v7718
        %v7788 = vpack.c.b16 %v7725, %v7722
        %v7789 = vpack.c.b16 %v7726, %v7723
        %v7790 = vpack.c.b16 %v7727, %v7724
        %v7791 = vpack.c.b16 %v7731, %v7728
        %v7792 = vpack.c.b16 %v7732, %v7729
        %v7793 = vpack.c.b16 %v7733, %v7730
        %v7794 = vpack.c.b16 %v7737, %v7734
        %v7795 = vpack.c.b16 %v7738, %v7735
        %v7796 = vpack.c.b16 %v7739, %v7736
        %v7797 = vpack.c.b16 %v7743, %v7740
        %v7798 = vpack.c.b16 %v7744, %v7741
        %v7799 = vpack.c.b16 %v7745, %v7742
        %v7800 = vpack.c.b16 %v7749, %v7746
        %v7801 = vpack.c.b16 %v7750, %v7747
        %v7802 = vpack.c.b16 %v7751, %v7748
        %v7803 = vpack.c.b16 %v7755, %v7752
        %v7804 = vpack.c.b16 %v7756, %v7753
        %v7805 = vpack.c.b16 %v7757, %v7754
        %7854 = vmatprep.subr.bf16.mxu0 %v7780
        %7855 = vmatpush1.bf16.msra.mxu0 %v7779
        %7856 = vmatprep.subr.bf16.mxu0 %v7777
        %7857 = vmatpush1.bf16.msra.mxu0 %v7776
        %7858 = vmatprep.subr.bf16.mxu0 %v7774
        %7859 = vmatpush1.bf16.msra.mxu0 %v7773
        %7860 = vmatprep.subr.bf16.mxu0 %v7771
        %7861 = vmatpush1.bf16.msra.mxu0 %v7770
        %7862 = vmatprep.subr.bf16.mxu0 %v7768
        %7863 = vmatpush1.bf16.msra.mxu0 %v7767
        %7864 = vmatprep.subr.bf16.mxu0 %v7765
        %7865 = vmatpush1.bf16.msra.mxu0 %v7764
        %7866 = vmatprep.subr.bf16.mxu0 %v7762
        %7867 = vmatpush1.bf16.msra.mxu0 %v7761
        %7868 = vmatprep.subr.bf16.mxu0 %v7759
        %7869 = vmatpush1.bf16.msra.mxu0 %v7758
        %7870 = vmatprep.subr.bf16.mxu0 %v7804
        %7871 = vmatpush2.bf16.msra.mxu0 %v7803
        %7872 = vmatprep.subr.bf16.mxu0 %v7801
        %7873 = vmatpush2.bf16.msra.mxu0 %v7800
        %7874 = vmatprep.subr.bf16.mxu0 %v7798
        %7875 = vmatpush2.bf16.msra.mxu0 %v7797
        %7876 = vmatprep.subr.bf16.mxu0 %v7795
        %7877 = vmatpush2.bf16.msra.mxu0 %v7794
        %7878 = vmatprep.subr.bf16.mxu0 %v7792
        %7879 = vmatpush2.bf16.msra.mxu0 %v7791
        %7880 = vmatprep.subr.bf16.mxu0 %v7789
        %7881 = vmatpush2.bf16.msra.mxu0 %v7788
        %7882 = vmatprep.subr.bf16.mxu0 %v7786
        %7883 = vmatpush2.bf16.msra.mxu0 %v7785
        %7884 = vmatprep.subr.bf16.mxu0 %v7783
        %7885 = vmatpush2.bf16.msra.mxu0 %v7782
        %7886 = vmatprep.mubr.bf16.mxu0 %v7454
        %7887 = vmatmul.mubr.bf16.gmra.mxu0 %v7453
        %v7888 = vpop.f32.mrf.mxu0
        %v7889 = vadd.f32 %v7586, %v7888
        %v7890 = vpop.f32.mrf.mxu0
        %v7891 = vadd.f32 %v7590, %v7890
        %v7892 = vpop.f32.mrf.mxu0
        %v7893 = vadd.f32 %v7586, %v7892
        %v7894 = vpop.f32.mrf.mxu0
        %v7895 = vadd.f32 %v7590, %v7894
        %7896 = vmatprep.mubr.bf16.mxu0 %v7456
        %7897 = vmatmul.mubr.bf16.gmra.mxu0 %v7455
        %v7898 = vpop.f32.mrf.mxu0
        %v7899 = vadd.f32 %v7586, %v7898
        %v7900 = vpop.f32.mrf.mxu0
        %v7901 = vadd.f32 %v7590, %v7900
        %v7902 = vpop.f32.mrf.mxu0
        %v7903 = vadd.f32 %v7586, %v7902
        %v7904 = vpop.f32.mrf.mxu0
        %v7905 = vadd.f32 %v7590, %v7904
        %7906 = vmatprep.mubr.bf16.mxu0 %v7458
        %7907 = vmatmul.mubr.bf16.gmra.mxu0 %v7457
        %v7908 = vpop.f32.mrf.mxu0
        %v7909 = vadd.f32 %v7586, %v7908
        %v7910 = vpop.f32.mrf.mxu0
        %v7911 = vadd.f32 %v7590, %v7910
        %v7912 = vpop.f32.mrf.mxu0
        %v7913 = vadd.f32 %v7586, %v7912
        %v7914 = vpop.f32.mrf.mxu0
        %v7915 = vadd.f32 %v7590, %v7914
        %7916 = vmatprep.mubr.bf16.mxu0 %v7460
        %7917 = vmatmul.mubr.bf16.gmra.mxu0 %v7459
        %v7918 = vpop.f32.mrf.mxu0
        %v7919 = vadd.f32 %v7586, %v7918
        %v7920 = vpop.f32.mrf.mxu0
        %v7921 = vadd.f32 %v7590, %v7920
        %v7922 = vpop.f32.mrf.mxu0
        %v7923 = vadd.f32 %v7586, %v7922
        %v7924 = vpop.f32.mrf.mxu0
        %v7925 = vadd.f32 %v7590, %v7924
        %7926 = vmatprep.mubr.bf16.mxu0 %v7462
        %7927 = vmatmul.mubr.bf16.gmra.mxu0 %v7461
        %v7928 = vpop.f32.mrf.mxu0
        %v7929 = vadd.f32 %v7586, %v7928
        %v7930 = vpop.f32.mrf.mxu0
        %v7931 = vadd.f32 %v7590, %v7930
        %v7932 = vpop.f32.mrf.mxu0
        %v7933 = vadd.f32 %v7586, %v7932
        %v7934 = vpop.f32.mrf.mxu0
        %v7935 = vadd.f32 %v7590, %v7934
        %7936 = vmatprep.mubr.bf16.mxu0 %v7464
        %7937 = vmatmul.mubr.bf16.gmra.mxu0 %v7463
        %v7938 = vpop.f32.mrf.mxu0
        %v7939 = vadd.f32 %v7586, %v7938
        %v7940 = vpop.f32.mrf.mxu0
        %v7941 = vadd.f32 %v7590, %v7940
        %v7942 = vpop.f32.mrf.mxu0
        %v7943 = vadd.f32 %v7586, %v7942
        %v7944 = vpop.f32.mrf.mxu0
        %v7945 = vadd.f32 %v7590, %v7944
        %7946 = vmatprep.mubr.bf16.mxu0 %v7466
        %7947 = vmatmul.mubr.bf16.gmra.mxu0 %v7465
        %v7948 = vpop.f32.mrf.mxu0
        %v7949 = vadd.f32 %v7586, %v7948
        %v7950 = vpop.f32.mrf.mxu0
        %v7951 = vadd.f32 %v7590, %v7950
        %v7952 = vpop.f32.mrf.mxu0
        %v7953 = vadd.f32 %v7586, %v7952
        %v7954 = vpop.f32.mrf.mxu0
        %v7955 = vadd.f32 %v7590, %v7954
        %7956 = vmatprep.mubr.bf16.mxu0 %v7468
        %7957 = vmatmul.mubr.bf16.gmra.mxu0 %v7467
        %v7958 = vpop.f32.mrf.mxu0
        %v7959 = vadd.f32 %v7586, %v7958
        %v7960 = vpop.f32.mrf.mxu0
        %v7961 = vadd.f32 %v7590, %v7960
        %v7962 = vpop.f32.mrf.mxu0
        %v7963 = vadd.f32 %v7586, %v7962
        %v7964 = vpop.f32.mrf.mxu0
        %v7965 = vadd.f32 %v7590, %v7964
        %7966 = vmatprep.mubr.bf16.mxu0 %v7470
        %7967 = vmatmul.mubr.bf16.gmra.mxu0 %v7469
        %v7968 = vpop.f32.mrf.mxu0
        %v7969 = vadd.f32 %v7586, %v7968
        %v7970 = vpop.f32.mrf.mxu0
        %v7971 = vadd.f32 %v7590, %v7970
        %v7972 = vpop.f32.mrf.mxu0
        %v7973 = vadd.f32 %v7586, %v7972
        %v7974 = vpop.f32.mrf.mxu0
        %v7975 = vadd.f32 %v7590, %v7974
        %7976 = vmatprep.mubr.bf16.mxu0 %v7472
        %7977 = vmatmul.mubr.bf16.gmra.mxu0 %v7471
        %v7978 = vpop.f32.mrf.mxu0
        %v7979 = vadd.f32 %v7586, %v7978
        %v7980 = vpop.f32.mrf.mxu0
        %v7981 = vadd.f32 %v7590, %v7980
        %v7982 = vpop.f32.mrf.mxu0
        %v7983 = vadd.f32 %v7586, %v7982
        %v7984 = vpop.f32.mrf.mxu0
        %v7985 = vadd.f32 %v7590, %v7984
        %7986 = vmatprep.mubr.bf16.mxu0 %v7474
        %7987 = vmatmul.mubr.bf16.gmra.mxu0 %v7473
        %v7988 = vpop.f32.mrf.mxu0
        %v7989 = vadd.f32 %v7586, %v7988
        %v7990 = vpop.f32.mrf.mxu0
        %v7991 = vadd.f32 %v7590, %v7990
        %v7992 = vpop.f32.mrf.mxu0
        %v7993 = vadd.f32 %v7586, %v7992
        %v7994 = vpop.f32.mrf.mxu0
        %v7995 = vadd.f32 %v7590, %v7994
        %7996 = vmatprep.mubr.bf16.mxu0 %v7476
        %7997 = vmatmul.mubr.bf16.gmra.mxu0 %v7475
        %v7998 = vpop.f32.mrf.mxu0
        %v7999 = vadd.f32 %v7586, %v7998
        %v8000 = vpop.f32.mrf.mxu0
        %v8001 = vadd.f32 %v7590, %v8000
        %v8002 = vpop.f32.mrf.mxu0
        %v8003 = vadd.f32 %v7586, %v8002
        %v8004 = vpop.f32.mrf.mxu0
        %v8005 = vadd.f32 %v7590, %v8004
        %8006 = vmatprep.mubr.bf16.mxu0 %v7478
        %8007 = vmatmul.mubr.bf16.gmra.mxu0 %v7477
        %v8008 = vpop.f32.mrf.mxu0
        %v8009 = vadd.f32 %v7586, %v8008
        %v8010 = vpop.f32.mrf.mxu0
        %v8011 = vadd.f32 %v7590, %v8010
        %v8012 = vpop.f32.mrf.mxu0
        %v8013 = vadd.f32 %v7586, %v8012
        %v8014 = vpop.f32.mrf.mxu0
        %v8015 = vadd.f32 %v7590, %v8014
        %8016 = vmatprep.mubr.bf16.mxu0 %v7480
        %8017 = vmatmul.mubr.bf16.gmra.mxu0 %v7479
        %v8018 = vpop.f32.mrf.mxu0
        %v8019 = vadd.f32 %v7586, %v8018
        %v8020 = vpop.f32.mrf.mxu0
        %v8021 = vadd.f32 %v7590, %v8020
        %v8022 = vpop.f32.mrf.mxu0
        %v8023 = vadd.f32 %v7586, %v8022
        %v8024 = vpop.f32.mrf.mxu0
        %v8025 = vadd.f32 %v7590, %v8024
        %8026 = vmatprep.mubr.bf16.mxu0 %v7482
        %8027 = vmatmul.mubr.bf16.gmra.mxu0 %v7481
        %v8028 = vpop.f32.mrf.mxu0
        %v8029 = vadd.f32 %v7586, %v8028
        %v8030 = vpop.f32.mrf.mxu0
        %v8031 = vadd.f32 %v7590, %v8030
        %v8032 = vpop.f32.mrf.mxu0
        %v8033 = vadd.f32 %v7586, %v8032
        %v8034 = vpop.f32.mrf.mxu0
        %v8035 = vadd.f32 %v7590, %v8034
        %8036 = vmatprep.mubr.bf16.mxu0 %v7484
        %8037 = vmatmul.mubr.bf16.gmra.mxu0 %v7483
        %v8038 = vpop.f32.mrf.mxu0
        %v8039 = vadd.f32 %v7586, %v8038
        %v8040 = vpop.f32.mrf.mxu0
        %v8041 = vadd.f32 %v7590, %v8040
        %v8042 = vpop.f32.mrf.mxu0
        %v8043 = vadd.f32 %v7586, %v8042
        %v8044 = vpop.f32.mrf.mxu0
        %v8045 = vadd.f32 %v7590, %v8044
        %8046 = vmatprep.mubr.bf16.mxu0 %v7486
        %8047 = vmatmul.mubr.bf16.gmra.mxu0 %v7485
        %v8048 = vpop.f32.mrf.mxu0
        %v8049 = vadd.f32 %v7586, %v8048
        %v8050 = vpop.f32.mrf.mxu0
        %v8051 = vadd.f32 %v7590, %v8050
        %v8052 = vpop.f32.mrf.mxu0
        %v8053 = vadd.f32 %v7586, %v8052
        %v8054 = vpop.f32.mrf.mxu0
        %v8055 = vadd.f32 %v7590, %v8054
        %8056 = vmatprep.mubr.bf16.mxu0 %v7488
        %8057 = vmatmul.mubr.bf16.gmra.mxu0 %v7487
        %v8058 = vpop.f32.mrf.mxu0
        %v8059 = vadd.f32 %v7586, %v8058
        %v8060 = vpop.f32.mrf.mxu0
        %v8061 = vadd.f32 %v7590, %v8060
        %v8062 = vpop.f32.mrf.mxu0
        %v8063 = vadd.f32 %v7586, %v8062
        %v8064 = vpop.f32.mrf.mxu0
        %v8065 = vadd.f32 %v7590, %v8064
        %8066 = vmatprep.mubr.bf16.mxu0 %v7490
        %8067 = vmatmul.mubr.bf16.gmra.mxu0 %v7489
        %v8068 = vpop.f32.mrf.mxu0
        %v8069 = vadd.f32 %v7586, %v8068
        %v8070 = vpop.f32.mrf.mxu0
        %v8071 = vadd.f32 %v7590, %v8070
        %v8072 = vpop.f32.mrf.mxu0
        %v8073 = vadd.f32 %v7586, %v8072
        %v8074 = vpop.f32.mrf.mxu0
        %v8075 = vadd.f32 %v7590, %v8074
        %8076 = vmatprep.mubr.bf16.mxu0 %v7492
        %8077 = vmatmul.mubr.bf16.gmra.mxu0 %v7491
        %v8078 = vpop.f32.mrf.mxu0
        %v8079 = vadd.f32 %v7586, %v8078
        %v8080 = vpop.f32.mrf.mxu0
        %v8081 = vadd.f32 %v7590, %v8080
        %v8082 = vpop.f32.mrf.mxu0
        %v8083 = vadd.f32 %v7586, %v8082
        %v8084 = vpop.f32.mrf.mxu0
        %v8085 = vadd.f32 %v7590, %v8084
        %8086 = vmatprep.mubr.bf16.mxu0 %v7494
        %8087 = vmatmul.mubr.bf16.gmra.mxu0 %v7493
        %v8088 = vpop.f32.mrf.mxu0
        %v8089 = vadd.f32 %v7586, %v8088
        %v8090 = vpop.f32.mrf.mxu0
        %v8091 = vadd.f32 %v7590, %v8090
        %v8092 = vpop.f32.mrf.mxu0
        %v8093 = vadd.f32 %v7586, %v8092
        %v8094 = vpop.f32.mrf.mxu0
        %v8095 = vadd.f32 %v7590, %v8094
        %8096 = vmatprep.mubr.bf16.mxu0 %v7496
        %8097 = vmatmul.mubr.bf16.gmra.mxu0 %v7495
        %v8098 = vpop.f32.mrf.mxu0
        %v8099 = vadd.f32 %v7586, %v8098
        %v8100 = vpop.f32.mrf.mxu0
        %v8101 = vadd.f32 %v7590, %v8100
        %v8102 = vpop.f32.mrf.mxu0
        %v8103 = vadd.f32 %v7586, %v8102
        %v8104 = vpop.f32.mrf.mxu0
        %v8105 = vadd.f32 %v7590, %v8104
        %8106 = vmatprep.mubr.bf16.mxu0 %v7498
        %8107 = vmatmul.mubr.bf16.gmra.mxu0 %v7497
        %v8108 = vpop.f32.mrf.mxu0
        %v8109 = vadd.f32 %v7586, %v8108
        %v8110 = vpop.f32.mrf.mxu0
        %v8111 = vadd.f32 %v7590, %v8110
        %v8112 = vpop.f32.mrf.mxu0
        %v8113 = vadd.f32 %v7586, %v8112
        %v8114 = vpop.f32.mrf.mxu0
        %v8115 = vadd.f32 %v7590, %v8114
        %8116 = vmatprep.mubr.bf16.mxu0 %v7500
        %8117 = vmatmul.mubr.bf16.gmra.mxu0 %v7499
        %v8118 = vpop.f32.mrf.mxu0
        %v8119 = vadd.f32 %v7586, %v8118
        %v8120 = vpop.f32.mrf.mxu0
        %v8121 = vadd.f32 %v7590, %v8120
        %v8122 = vpop.f32.mrf.mxu0
        %v8123 = vadd.f32 %v7586, %v8122
        %v8124 = vpop.f32.mrf.mxu0
        %v8125 = vadd.f32 %v7590, %v8124
        %8126 = vmatprep.mubr.bf16.mxu0 %v7502
        %8127 = vmatmul.mubr.bf16.gmra.mxu0 %v7501
        %v8128 = vpop.f32.mrf.mxu0
        %v8129 = vadd.f32 %v7586, %v8128
        %v8130 = vpop.f32.mrf.mxu0
        %v8131 = vadd.f32 %v7590, %v8130
        %v8132 = vpop.f32.mrf.mxu0
        %v8133 = vadd.f32 %v7586, %v8132
        %v8134 = vpop.f32.mrf.mxu0
        %v8135 = vadd.f32 %v7590, %v8134
        %8136 = vmatprep.mubr.bf16.mxu0 %v7504
        %8137 = vmatmul.mubr.bf16.gmra.mxu0 %v7503
        %v8138 = vpop.f32.mrf.mxu0
        %v8139 = vadd.f32 %v7586, %v8138
        %v8140 = vpop.f32.mrf.mxu0
        %v8141 = vadd.f32 %v7590, %v8140
        %v8142 = vpop.f32.mrf.mxu0
        %v8143 = vadd.f32 %v7586, %v8142
        %v8144 = vpop.f32.mrf.mxu0
        %v8145 = vadd.f32 %v7590, %v8144
        %8146 = vmatprep.mubr.bf16.mxu0 %v7506
        %8147 = vmatmul.mubr.bf16.gmra.mxu0 %v7505
        %v8148 = vpop.f32.mrf.mxu0
        %v8149 = vadd.f32 %v7586, %v8148
        %v8150 = vpop.f32.mrf.mxu0
        %v8151 = vadd.f32 %v7590, %v8150
        %v8152 = vpop.f32.mrf.mxu0
        %v8153 = vadd.f32 %v7586, %v8152
        %v8154 = vpop.f32.mrf.mxu0
        %v8155 = vadd.f32 %v7590, %v8154
        %8156 = vmatprep.mubr.bf16.mxu0 %v7508
        %8157 = vmatmul.mubr.bf16.gmra.mxu0 %v7507
        %v8158 = vpop.f32.mrf.mxu0
        %v8159 = vadd.f32 %v7586, %v8158
        %v8160 = vpop.f32.mrf.mxu0
        %v8161 = vadd.f32 %v7590, %v8160
        %v8162 = vpop.f32.mrf.mxu0
        %v8163 = vadd.f32 %v7586, %v8162
        %v8164 = vpop.f32.mrf.mxu0
        %v8165 = vadd.f32 %v7590, %v8164
        %8166 = vmatprep.mubr.bf16.mxu0 %v7510
        %8167 = vmatmul.mubr.bf16.gmra.mxu0 %v7509
        %v8168 = vpop.f32.mrf.mxu0
        %v8169 = vadd.f32 %v7586, %v8168
        %v8170 = vpop.f32.mrf.mxu0
        %v8171 = vadd.f32 %v7590, %v8170
        %v8172 = vpop.f32.mrf.mxu0
        %v8173 = vadd.f32 %v7586, %v8172
        %v8174 = vpop.f32.mrf.mxu0
        %v8175 = vadd.f32 %v7590, %v8174
        %8176 = vmatprep.mubr.bf16.mxu0 %v7512
        %8177 = vmatmul.mubr.bf16.gmra.mxu0 %v7511
        %v8178 = vpop.f32.mrf.mxu0
        %v8179 = vadd.f32 %v7586, %v8178
        %v8180 = vpop.f32.mrf.mxu0
        %v8181 = vadd.f32 %v7590, %v8180
        %v8182 = vpop.f32.mrf.mxu0
        %v8183 = vadd.f32 %v7586, %v8182
        %v8184 = vpop.f32.mrf.mxu0
        %v8185 = vadd.f32 %v7590, %v8184
        %8186 = vmatprep.mubr.bf16.mxu0 %v7514
        %8187 = vmatmul.mubr.bf16.gmra.mxu0 %v7513
        %v8188 = vpop.f32.mrf.mxu0
        %v8189 = vadd.f32 %v7586, %v8188
        %v8190 = vpop.f32.mrf.mxu0
        %v8191 = vadd.f32 %v7590, %v8190
        %v8192 = vpop.f32.mrf.mxu0
        %v8193 = vadd.f32 %v7586, %v8192
        %v8194 = vpop.f32.mrf.mxu0
        %v8195 = vadd.f32 %v7590, %v8194
        %8196 = vmatprep.mubr.bf16.mxu0 %v7516
        %8197 = vmatmul.mubr.bf16.gmra.mxu0 %v7515
        %v8198 = vpop.f32.mrf.mxu0
        %v8199 = vadd.f32 %v7586, %v8198
        %v8200 = vpop.f32.mrf.mxu0
        %v8201 = vadd.f32 %v7590, %v8200
        %v8202 = vpop.f32.mrf.mxu0
        %v8203 = vadd.f32 %v7586, %v8202
        %v8204 = vpop.f32.mrf.mxu0
        %v8205 = vadd.f32 %v7590, %v8204
        %8206 = vdwg.mxu0
        %8207 = vmatprep.subr.bf16.mxu0 0
        %8208 = vmatpush1.bf16.msra.mxu0 %v7781
        %8209 = vmatprep.subr.bf16.mxu0 0
        %8210 = vmatpush1.bf16.msra.mxu0 %v7778
        %8211 = vmatprep.subr.bf16.mxu0 0
        %8212 = vmatpush1.bf16.msra.mxu0 %v7775
        %8213 = vmatprep.subr.bf16.mxu0 0
        %8214 = vmatpush1.bf16.msra.mxu0 %v7772
        %8215 = vmatprep.subr.bf16.mxu0 0
        %8216 = vmatpush1.bf16.msra.mxu0 %v7769
        %8217 = vmatprep.subr.bf16.mxu0 0
        %8218 = vmatpush1.bf16.msra.mxu0 %v7766
        %8219 = vmatprep.subr.bf16.mxu0 0
        %8220 = vmatpush1.bf16.msra.mxu0 %v7763
        %8221 = vmatprep.subr.bf16.mxu0 0
        %8222 = vmatpush1.bf16.msra.mxu0 %v7760
        %8223 = vmatprep.subr.bf16.mxu0 0
        %8224 = vmatpush2.bf16.msra.mxu0 %v7805
        %8225 = vmatprep.subr.bf16.mxu0 0
        %8226 = vmatpush2.bf16.msra.mxu0 %v7802
        %8227 = vmatprep.subr.bf16.mxu0 0
        %8228 = vmatpush2.bf16.msra.mxu0 %v7799
        %8229 = vmatprep.subr.bf16.mxu0 0
        %8230 = vmatpush2.bf16.msra.mxu0 %v7796
        %8231 = vmatprep.subr.bf16.mxu0 0
        %8232 = vmatpush2.bf16.msra.mxu0 %v7793
        %8233 = vmatprep.subr.bf16.mxu0 0
        %8234 = vmatpush2.bf16.msra.mxu0 %v7790
        %8235 = vmatprep.subr.bf16.mxu0 0
        %8236 = vmatpush2.bf16.msra.mxu0 %v7787
        %8237 = vmatprep.subr.bf16.mxu0 0
        %8238 = vmatpush2.bf16.msra.mxu0 %v7784
        %8239 = vmatprep.mubr.bf16.mxu0 %v7454
        %8240 = vmatmul.mubr.bf16.gmra.mxu0 %v7453
        %v8241 = vpop.f32.mrf.mxu0
        %v8242 = vadd.f32 %v7594, %v8241
        %v8243 = vpop.f32.mrf.mxu0
        %v8244 = vpop.f32.mrf.mxu0
        %v8245 = vadd.f32 %v7594, %v8244
        %v8246 = vpop.f32.mrf.mxu0
        %8247 = vmatprep.mubr.bf16.mxu0 %v7456
        %8248 = vmatmul.mubr.bf16.gmra.mxu0 %v7455
        %v8249 = vpop.f32.mrf.mxu0
        %v8250 = vadd.f32 %v7594, %v8249
        %v8251 = vpop.f32.mrf.mxu0
        %v8252 = vpop.f32.mrf.mxu0
        %v8253 = vadd.f32 %v7594, %v8252
        %v8254 = vpop.f32.mrf.mxu0
        %8255 = vmatprep.mubr.bf16.mxu0 %v7458
        %8256 = vmatmul.mubr.bf16.gmra.mxu0 %v7457
        %v8257 = vpop.f32.mrf.mxu0
        %v8258 = vadd.f32 %v7594, %v8257
        %v8259 = vpop.f32.mrf.mxu0
        %v8260 = vpop.f32.mrf.mxu0
        %v8261 = vadd.f32 %v7594, %v8260
        %v8262 = vpop.f32.mrf.mxu0
        %8263 = vmatprep.mubr.bf16.mxu0 %v7460
        %8264 = vmatmul.mubr.bf16.gmra.mxu0 %v7459
        %v8265 = vpop.f32.mrf.mxu0
        %v8266 = vadd.f32 %v7594, %v8265
        %v8267 = vpop.f32.mrf.mxu0
        %v8268 = vpop.f32.mrf.mxu0
        %v8269 = vadd.f32 %v7594, %v8268
        %v8270 = vpop.f32.mrf.mxu0
        %8271 = vmatprep.mubr.bf16.mxu0 %v7462
        %8272 = vmatmul.mubr.bf16.gmra.mxu0 %v7461
        %v8273 = vpop.f32.mrf.mxu0
        %v8274 = vadd.f32 %v7594, %v8273
        %v8275 = vpop.f32.mrf.mxu0
        %v8276 = vpop.f32.mrf.mxu0
        %v8277 = vadd.f32 %v7594, %v8276
        %v8278 = vpop.f32.mrf.mxu0
        %8279 = vmatprep.mubr.bf16.mxu0 %v7464
        %8280 = vmatmul.mubr.bf16.gmra.mxu0 %v7463
        %v8281 = vpop.f32.mrf.mxu0
        %v8282 = vadd.f32 %v7594, %v8281
        %v8283 = vpop.f32.mrf.mxu0
        %v8284 = vpop.f32.mrf.mxu0
        %v8285 = vadd.f32 %v7594, %v8284
        %v8286 = vpop.f32.mrf.mxu0
        %8287 = vmatprep.mubr.bf16.mxu0 %v7466
        %8288 = vmatmul.mubr.bf16.gmra.mxu0 %v7465
        %v8289 = vpop.f32.mrf.mxu0
        %v8290 = vadd.f32 %v7594, %v8289
        %v8291 = vpop.f32.mrf.mxu0
        %v8292 = vpop.f32.mrf.mxu0
        %v8293 = vadd.f32 %v7594, %v8292
        %v8294 = vpop.f32.mrf.mxu0
        %8295 = vmatprep.mubr.bf16.mxu0 %v7468
        %8296 = vmatmul.mubr.bf16.gmra.mxu0 %v7467
        %v8297 = vpop.f32.mrf.mxu0
        %v8298 = vadd.f32 %v7594, %v8297
        %v8299 = vpop.f32.mrf.mxu0
        %v8300 = vpop.f32.mrf.mxu0
        %v8301 = vadd.f32 %v7594, %v8300
        %v8302 = vpop.f32.mrf.mxu0
        %8303 = vmatprep.mubr.bf16.mxu0 %v7470
        %8304 = vmatmul.mubr.bf16.gmra.mxu0 %v7469
        %v8305 = vpop.f32.mrf.mxu0
        %v8306 = vadd.f32 %v7594, %v8305
        %v8307 = vpop.f32.mrf.mxu0
        %v8308 = vpop.f32.mrf.mxu0
        %v8309 = vadd.f32 %v7594, %v8308
        %v8310 = vpop.f32.mrf.mxu0
        %8311 = vmatprep.mubr.bf16.mxu0 %v7472
        %8312 = vmatmul.mubr.bf16.gmra.mxu0 %v7471
        %v8313 = vpop.f32.mrf.mxu0
        %v8314 = vadd.f32 %v7594, %v8313
        %v8315 = vpop.f32.mrf.mxu0
        %v8316 = vpop.f32.mrf.mxu0
        %v8317 = vadd.f32 %v7594, %v8316
        %v8318 = vpop.f32.mrf.mxu0
        %8319 = vmatprep.mubr.bf16.mxu0 %v7474
        %8320 = vmatmul.mubr.bf16.gmra.mxu0 %v7473
        %v8321 = vpop.f32.mrf.mxu0
        %v8322 = vadd.f32 %v7594, %v8321
        %v8323 = vpop.f32.mrf.mxu0
        %v8324 = vpop.f32.mrf.mxu0
        %v8325 = vadd.f32 %v7594, %v8324
        %v8326 = vpop.f32.mrf.mxu0
        %8327 = vmatprep.mubr.bf16.mxu0 %v7476
        %8328 = vmatmul.mubr.bf16.gmra.mxu0 %v7475
        %v8329 = vpop.f32.mrf.mxu0
        %v8330 = vadd.f32 %v7594, %v8329
        %v8331 = vpop.f32.mrf.mxu0
        %v8332 = vpop.f32.mrf.mxu0
        %v8333 = vadd.f32 %v7594, %v8332
        %v8334 = vpop.f32.mrf.mxu0
        %8335 = vmatprep.mubr.bf16.mxu0 %v7478
        %8336 = vmatmul.mubr.bf16.gmra.mxu0 %v7477
        %v8337 = vpop.f32.mrf.mxu0
        %v8338 = vadd.f32 %v7594, %v8337
        %v8339 = vpop.f32.mrf.mxu0
        %v8340 = vpop.f32.mrf.mxu0
        %v8341 = vadd.f32 %v7594, %v8340
        %v8342 = vpop.f32.mrf.mxu0
        %8343 = vmatprep.mubr.bf16.mxu0 %v7480
        %8344 = vmatmul.mubr.bf16.gmra.mxu0 %v7479
        %v8345 = vpop.f32.mrf.mxu0
        %v8346 = vadd.f32 %v7594, %v8345
        %v8347 = vpop.f32.mrf.mxu0
        %v8348 = vpop.f32.mrf.mxu0
        %v8349 = vadd.f32 %v7594, %v8348
        %v8350 = vpop.f32.mrf.mxu0
        %8351 = vmatprep.mubr.bf16.mxu0 %v7482
        %8352 = vmatmul.mubr.bf16.gmra.mxu0 %v7481
        %v8353 = vpop.f32.mrf.mxu0
        %v8354 = vadd.f32 %v7594, %v8353
        %v8355 = vpop.f32.mrf.mxu0
        %v8356 = vpop.f32.mrf.mxu0
        %v8357 = vadd.f32 %v7594, %v8356
        %v8358 = vpop.f32.mrf.mxu0
        %8359 = vmatprep.mubr.bf16.mxu0 %v7484
        %8360 = vmatmul.mubr.bf16.gmra.mxu0 %v7483
        %v8361 = vpop.f32.mrf.mxu0
        %v8362 = vadd.f32 %v7594, %v8361
        %v8363 = vpop.f32.mrf.mxu0
        %v8364 = vpop.f32.mrf.mxu0
        %v8365 = vadd.f32 %v7594, %v8364
        %v8366 = vpop.f32.mrf.mxu0
        %8367 = vmatprep.mubr.bf16.mxu0 %v7486
        %8368 = vmatmul.mubr.bf16.gmra.mxu0 %v7485
        %v8369 = vpop.f32.mrf.mxu0
        %v8370 = vadd.f32 %v7594, %v8369
        %v8371 = vpop.f32.mrf.mxu0
        %v8372 = vpop.f32.mrf.mxu0
        %v8373 = vadd.f32 %v7594, %v8372
        %v8374 = vpop.f32.mrf.mxu0
        %8375 = vmatprep.mubr.bf16.mxu0 %v7488
        %8376 = vmatmul.mubr.bf16.gmra.mxu0 %v7487
        %v8377 = vpop.f32.mrf.mxu0
        %v8378 = vadd.f32 %v7594, %v8377
        %v8379 = vpop.f32.mrf.mxu0
        %v8380 = vpop.f32.mrf.mxu0
        %v8381 = vadd.f32 %v7594, %v8380
        %v8382 = vpop.f32.mrf.mxu0
        %8383 = vmatprep.mubr.bf16.mxu0 %v7490
        %8384 = vmatmul.mubr.bf16.gmra.mxu0 %v7489
        %v8385 = vpop.f32.mrf.mxu0
        %v8386 = vadd.f32 %v7594, %v8385
        %v8387 = vpop.f32.mrf.mxu0
        %v8388 = vpop.f32.mrf.mxu0
        %v8389 = vadd.f32 %v7594, %v8388
        %v8390 = vpop.f32.mrf.mxu0
        %8391 = vmatprep.mubr.bf16.mxu0 %v7492
        %8392 = vmatmul.mubr.bf16.gmra.mxu0 %v7491
        %v8393 = vpop.f32.mrf.mxu0
        %v8394 = vadd.f32 %v7594, %v8393
        %v8395 = vpop.f32.mrf.mxu0
        %v8396 = vpop.f32.mrf.mxu0
        %v8397 = vadd.f32 %v7594, %v8396
        %v8398 = vpop.f32.mrf.mxu0
        %8399 = vmatprep.mubr.bf16.mxu0 %v7494
        %8400 = vmatmul.mubr.bf16.gmra.mxu0 %v7493
        %v8401 = vpop.f32.mrf.mxu0
        %v8402 = vadd.f32 %v7594, %v8401
        %v8403 = vpop.f32.mrf.mxu0
        %v8404 = vpop.f32.mrf.mxu0
        %v8405 = vadd.f32 %v7594, %v8404
        %v8406 = vpop.f32.mrf.mxu0
        %8407 = vmatprep.mubr.bf16.mxu0 %v7496
        %8408 = vmatmul.mubr.bf16.gmra.mxu0 %v7495
        %v8409 = vpop.f32.mrf.mxu0
        %v8410 = vadd.f32 %v7594, %v8409
        %v8411 = vpop.f32.mrf.mxu0
        %v8412 = vpop.f32.mrf.mxu0
        %v8413 = vadd.f32 %v7594, %v8412
        %v8414 = vpop.f32.mrf.mxu0
        %8415 = vmatprep.mubr.bf16.mxu0 %v7498
        %8416 = vmatmul.mubr.bf16.gmra.mxu0 %v7497
        %v8417 = vpop.f32.mrf.mxu0
        %v8418 = vadd.f32 %v7594, %v8417
        %v8419 = vpop.f32.mrf.mxu0
        %v8420 = vpop.f32.mrf.mxu0
        %v8421 = vadd.f32 %v7594, %v8420
        %v8422 = vpop.f32.mrf.mxu0
        %8423 = vmatprep.mubr.bf16.mxu0 %v7500
        %8424 = vmatmul.mubr.bf16.gmra.mxu0 %v7499
        %v8425 = vpop.f32.mrf.mxu0
        %v8426 = vadd.f32 %v7594, %v8425
        %v8427 = vpop.f32.mrf.mxu0
        %v8428 = vpop.f32.mrf.mxu0
        %v8429 = vadd.f32 %v7594, %v8428
        %v8430 = vpop.f32.mrf.mxu0
        %8431 = vmatprep.mubr.bf16.mxu0 %v7502
        %8432 = vmatmul.mubr.bf16.gmra.mxu0 %v7501
        %v8433 = vpop.f32.mrf.mxu0
        %v8434 = vadd.f32 %v7594, %v8433
        %v8435 = vpop.f32.mrf.mxu0
        %v8436 = vpop.f32.mrf.mxu0
        %v8437 = vadd.f32 %v7594, %v8436
        %v8438 = vpop.f32.mrf.mxu0
        %8439 = vmatprep.mubr.bf16.mxu0 %v7504
        %8440 = vmatmul.mubr.bf16.gmra.mxu0 %v7503
        %v8441 = vpop.f32.mrf.mxu0
        %v8442 = vadd.f32 %v7594, %v8441
        %v8443 = vpop.f32.mrf.mxu0
        %v8444 = vpop.f32.mrf.mxu0
        %v8445 = vadd.f32 %v7594, %v8444
        %v8446 = vpop.f32.mrf.mxu0
        %8447 = vmatprep.mubr.bf16.mxu0 %v7506
        %8448 = vmatmul.mubr.bf16.gmra.mxu0 %v7505
        %v8449 = vpop.f32.mrf.mxu0
        %v8450 = vadd.f32 %v7594, %v8449
        %v8451 = vpop.f32.mrf.mxu0
        %v8452 = vpop.f32.mrf.mxu0
        %v8453 = vadd.f32 %v7594, %v8452
        %v8454 = vpop.f32.mrf.mxu0
        %8455 = vmatprep.mubr.bf16.mxu0 %v7508
        %8456 = vmatmul.mubr.bf16.gmra.mxu0 %v7507
        %v8457 = vpop.f32.mrf.mxu0
        %v8458 = vadd.f32 %v7594, %v8457
        %v8459 = vpop.f32.mrf.mxu0
        %v8460 = vpop.f32.mrf.mxu0
        %v8461 = vadd.f32 %v7594, %v8460
        %v8462 = vpop.f32.mrf.mxu0
        %8463 = vmatprep.mubr.bf16.mxu0 %v7510
        %8464 = vmatmul.mubr.bf16.gmra.mxu0 %v7509
        %v8465 = vpop.f32.mrf.mxu0
        %v8466 = vadd.f32 %v7594, %v8465
        %v8467 = vpop.f32.mrf.mxu0
        %v8468 = vpop.f32.mrf.mxu0
        %v8469 = vadd.f32 %v7594, %v8468
        %v8470 = vpop.f32.mrf.mxu0
        %8471 = vmatprep.mubr.bf16.mxu0 %v7512
        %8472 = vmatmul.mubr.bf16.gmra.mxu0 %v7511
        %v8473 = vpop.f32.mrf.mxu0
        %v8474 = vadd.f32 %v7594, %v8473
        %v8475 = vpop.f32.mrf.mxu0
        %v8476 = vpop.f32.mrf.mxu0
        %v8477 = vadd.f32 %v7594, %v8476
        %v8478 = vpop.f32.mrf.mxu0
        %8479 = vmatprep.mubr.bf16.mxu0 %v7514
        %8480 = vmatmul.mubr.bf16.gmra.mxu0 %v7513
        %v8481 = vpop.f32.mrf.mxu0
        %v8482 = vadd.f32 %v7594, %v8481
        %v8483 = vpop.f32.mrf.mxu0
        %v8484 = vpop.f32.mrf.mxu0
        %v8485 = vadd.f32 %v7594, %v8484
        %v8486 = vpop.f32.mrf.mxu0
        %8487 = vmatprep.mubr.bf16.mxu0 %v7516
        %8488 = vmatmul.mubr.bf16.gmra.mxu0 %v7515
        %v8489 = vpop.f32.mrf.mxu0
        %v8490 = vadd.f32 %v7594, %v8489
        %v8491 = vpop.f32.mrf.mxu0
        %v8492 = vpop.f32.mrf.mxu0
        %v8493 = vadd.f32 %v7594, %v8492
        %v8494 = vpop.f32.mrf.mxu0
        %8495 = vdwg.mxu0
        %v8496 = vld [vmem:[%s20] sm:$0xf]
        %v8497 = vld [vmem:[%s20 + $0x4] sm:$0xf]
        %v8498 = vld [vmem:[%s20 + $0x8] sm:$0xf]
        %v8499 = vld [vmem:[%s20 + $0xc] sm:$0xf]
        %v8500 = vld [vmem:[%s20 + $0x10] sm:$0xf]
        %v8501 = vld [vmem:[%s20 + $0x14] sm:$0xf]
        %v8502 = vld [vmem:[%s20 + $0x18] sm:$0xf]
        %v8503 = vld [vmem:[%s20 + $0x1c] sm:$0xf]
        %v8504 = vld [vmem:[%s20 + $0x20] sm:$0xf]
        %v8505 = vld [vmem:[%s20 + $0x24] sm:$0xf]
        %v8506 = vld [vmem:[%s20 + $0x28] sm:$0xf]
        %v8507 = vld [vmem:[%s20 + $0x2c] sm:$0xf]
        %v8508 = vld [vmem:[%s20 + $0x30] sm:$0xf]
        %v8509 = vld [vmem:[%s20 + $0x34] sm:$0xf]
        %v8510 = vld [vmem:[%s20 + $0x38] sm:$0xf]
        %v8511 = vld [vmem:[%s20 + $0x3c] sm:$0xf]
        %v8512 = vpack.c.bf16 %v7893, %v7889
        %v8513 = vpack.c.bf16 %v7895, %v7891
        %v8514 = vpack.c.bf16 %v7903, %v7899
        %v8515 = vpack.c.bf16 %v7905, %v7901
        %v8516 = vpack.c.bf16 %v7913, %v7909
        %v8517 = vpack.c.bf16 %v7915, %v7911
        %v8518 = vpack.c.bf16 %v7923, %v7919
        %v8519 = vpack.c.bf16 %v7925, %v7921
        %v8520 = vpack.c.bf16 %v7933, %v7929
        %v8521 = vpack.c.bf16 %v7935, %v7931
        %v8522 = vpack.c.bf16 %v7943, %v7939
        %v8523 = vpack.c.bf16 %v7945, %v7941
        %v8524 = vpack.c.bf16 %v7953, %v7949
        %v8525 = vpack.c.bf16 %v7955, %v7951
        %v8526 = vpack.c.bf16 %v7963, %v7959
        %v8527 = vpack.c.bf16 %v7965, %v7961
        %v8528 = vpack.c.bf16 %v7973, %v7969
        %v8529 = vpack.c.bf16 %v7975, %v7971
        %v8530 = vpack.c.bf16 %v7983, %v7979
        %v8531 = vpack.c.bf16 %v7985, %v7981
        %v8532 = vpack.c.bf16 %v7993, %v7989
        %v8533 = vpack.c.bf16 %v7995, %v7991
        %v8534 = vpack.c.bf16 %v8003, %v7999
        %v8535 = vpack.c.bf16 %v8005, %v8001
        %v8536 = vpack.c.bf16 %v8013, %v8009
        %v8537 = vpack.c.bf16 %v8015, %v8011
        %v8538 = vpack.c.bf16 %v8023, %v8019
        %v8539 = vpack.c.bf16 %v8025, %v8021
        %v8540 = vpack.c.bf16 %v8033, %v8029
        %v8541 = vpack.c.bf16 %v8035, %v8031
        %v8542 = vpack.c.bf16 %v8043, %v8039
        %v8543 = vpack.c.bf16 %v8045, %v8041
        %v8544 = vpack.c.bf16 %v8053, %v8049
        %v8545 = vpack.c.bf16 %v8055, %v8051
        %v8546 = vpack.c.bf16 %v8063, %v8059
        %v8547 = vpack.c.bf16 %v8065, %v8061
        %v8548 = vpack.c.bf16 %v8073, %v8069
        %v8549 = vpack.c.bf16 %v8075, %v8071
        %v8550 = vpack.c.bf16 %v8083, %v8079
        %v8551 = vpack.c.bf16 %v8085, %v8081
        %v8552 = vpack.c.bf16 %v8093, %v8089
        %v8553 = vpack.c.bf16 %v8095, %v8091
        %v8554 = vpack.c.bf16 %v8103, %v8099
        %v8555 = vpack.c.bf16 %v8105, %v8101
        %v8556 = vpack.c.bf16 %v8113, %v8109
        %v8557 = vpack.c.bf16 %v8115, %v8111
        %v8558 = vpack.c.bf16 %v8123, %v8119
        %v8559 = vpack.c.bf16 %v8125, %v8121
        %v8560 = vpack.c.bf16 %v8133, %v8129
        %v8561 = vpack.c.bf16 %v8135, %v8131
        %v8562 = vpack.c.bf16 %v8143, %v8139
        %v8563 = vpack.c.bf16 %v8145, %v8141
        %v8564 = vpack.c.bf16 %v8153, %v8149
        %v8565 = vpack.c.bf16 %v8155, %v8151
        %v8566 = vpack.c.bf16 %v8163, %v8159
        %v8567 = vpack.c.bf16 %v8165, %v8161
        %v8568 = vpack.c.bf16 %v8173, %v8169
        %v8569 = vpack.c.bf16 %v8175, %v8171
        %v8570 = vpack.c.bf16 %v8183, %v8179
        %v8571 = vpack.c.bf16 %v8185, %v8181
        %v8572 = vpack.c.bf16 %v8193, %v8189
        %v8573 = vpack.c.bf16 %v8195, %v8191
        %v8574 = vpack.c.bf16 %v8203, %v8199
        %v8575 = vpack.c.bf16 %v8205, %v8201
        %v8576 = vld [vmem:[#allocation19] sm:$0xf]
        %v8577 = vld [vmem:[#allocation19 + $0x4] sm:$0xf]
        %v8578 = vld [vmem:[#allocation19 + $0x8] sm:$0xf]
        %v8579 = vld [vmem:[#allocation19 + $0xc] sm:$0xf]
        %v8580 = vld [vmem:[#allocation19 + $0x10] sm:$0xf]
        %v8581 = vld [vmem:[#allocation19 + $0x14] sm:$0xf]
        %v8582 = vld [vmem:[#allocation19 + $0x18] sm:$0xf]
        %v8583 = vld [vmem:[#allocation19 + $0x1c] sm:$0xf]
        %v8584 = vld [vmem:[#allocation19 + $0x20] sm:$0xf]
        %v8585 = vld [vmem:[#allocation19 + $0x24] sm:$0xf]
        %v8586 = vld [vmem:[#allocation19 + $0x28] sm:$0xf]
        %v8587 = vld [vmem:[#allocation19 + $0x2c] sm:$0xf]
        %v8588 = vld [vmem:[#allocation19 + $0x30] sm:$0xf]
        %v8589 = vld [vmem:[#allocation19 + $0x34] sm:$0xf]
        %v8590 = vld [vmem:[#allocation19 + $0x38] sm:$0xf]
        %v8591 = vld [vmem:[#allocation19 + $0x3c] sm:$0xf]
        %v8592 = vld [vmem:[#allocation19 + $0x40] sm:$0xf]
        %v8593 = vld [vmem:[#allocation19 + $0x44] sm:$0xf]
        %v8594 = vld [vmem:[#allocation19 + $0x48] sm:$0xf]
        %v8595 = vld [vmem:[#allocation19 + $0x4c] sm:$0xf]
        %v8596 = vld [vmem:[#allocation19 + $0x50] sm:$0xf]
        %v8597 = vld [vmem:[#allocation19 + $0x54] sm:$0xf]
        %v8598 = vld [vmem:[#allocation19 + $0x58] sm:$0xf]
        %v8599 = vld [vmem:[#allocation19 + $0x5c] sm:$0xf]
        %v8600 = vld [vmem:[#allocation19 + $0x60] sm:$0xf]
        %v8601 = vld [vmem:[#allocation19 + $0x64] sm:$0xf]
        %v8602 = vld [vmem:[#allocation19 + $0x68] sm:$0xf]
        %v8603 = vld [vmem:[#allocation19 + $0x6c] sm:$0xf]
        %v8604 = vld [vmem:[#allocation19 + $0x70] sm:$0xf]
        %v8605 = vld [vmem:[#allocation19 + $0x74] sm:$0xf]
        %v8606 = vld [vmem:[#allocation19 + $0x78] sm:$0xf]
        %v8607 = vld [vmem:[#allocation19 + $0x7c] sm:$0xf]
        %v8640 = vunpack.c.l.b16 %v8576
        %v8641 = vunpack.c.l.b16 %v8577
        %v8642 = vunpack.c.l.b16 %v8578
        %v8643 = vunpack.c.l.b16 %v8579
        %v8644 = vunpack.c.l.b16 %v8580
        %v8645 = vunpack.c.l.b16 %v8581
        %v8646 = vunpack.c.l.b16 %v8582
        %v8647 = vunpack.c.l.b16 %v8583
        %v8648 = vunpack.c.l.b16 %v8584
        %v8649 = vunpack.c.l.b16 %v8585
        %v8650 = vunpack.c.l.b16 %v8586
        %v8651 = vunpack.c.l.b16 %v8587
        %v8652 = vunpack.c.l.b16 %v8588
        %v8653 = vunpack.c.l.b16 %v8589
        %v8654 = vunpack.c.l.b16 %v8590
        %v8655 = vunpack.c.l.b16 %v8591
        %v8656 = vunpack.c.l.b16 %v8592
        %v8657 = vunpack.c.l.b16 %v8593
        %v8658 = vunpack.c.l.b16 %v8594
        %v8659 = vunpack.c.l.b16 %v8595
        %v8660 = vunpack.c.l.b16 %v8596
        %v8661 = vunpack.c.l.b16 %v8597
        %v8662 = vunpack.c.l.b16 %v8598
        %v8663 = vunpack.c.l.b16 %v8599
        %v8664 = vunpack.c.l.b16 %v8600
        %v8665 = vunpack.c.l.b16 %v8601
        %v8666 = vunpack.c.l.b16 %v8602
        %v8667 = vunpack.c.l.b16 %v8603
        %v8668 = vunpack.c.l.b16 %v8604
        %v8669 = vunpack.c.l.b16 %v8605
        %v8670 = vunpack.c.l.b16 %v8606
        %v8671 = vunpack.c.l.b16 %v8607
        %v8672 = vpack.c.b16 %v8641, %v8640
        %v8673 = vpack.c.b16 %v8643, %v8642
        %v8674 = vpack.c.b16 %v8645, %v8644
        %v8675 = vpack.c.b16 %v8647, %v8646
        %v8676 = vpack.c.b16 %v8649, %v8648
        %v8677 = vpack.c.b16 %v8651, %v8650
        %v8678 = vpack.c.b16 %v8653, %v8652
        %v8679 = vpack.c.b16 %v8655, %v8654
        %v8680 = vpack.c.b16 %v8657, %v8656
        %v8681 = vpack.c.b16 %v8659, %v8658
        %v8682 = vpack.c.b16 %v8661, %v8660
        %v8683 = vpack.c.b16 %v8663, %v8662
        %v8684 = vpack.c.b16 %v8665, %v8664
        %v8685 = vpack.c.b16 %v8667, %v8666
        %v8686 = vpack.c.b16 %v8669, %v8668
        %v8687 = vpack.c.b16 %v8671, %v8670
        %8704 = vmatprep.subr.bf16.mxu0 0
        %8705 = vmatpush1.bf16.msra.mxu0 %v8679
        %8706 = vmatprep.subr.bf16.mxu0 0
        %8707 = vmatpush1.bf16.msra.mxu0 %v8678
        %8708 = vmatprep.subr.bf16.mxu0 0
        %8709 = vmatpush1.bf16.msra.mxu0 %v8677
        %8710 = vmatprep.subr.bf16.mxu0 0
        %8711 = vmatpush1.bf16.msra.mxu0 %v8676
        %8712 = vmatprep.subr.bf16.mxu0 0
        %8713 = vmatpush1.bf16.msra.mxu0 %v8675
        %8714 = vmatprep.subr.bf16.mxu0 0
        %8715 = vmatpush1.bf16.msra.mxu0 %v8674
        %8716 = vmatprep.subr.bf16.mxu0 0
        %8717 = vmatpush1.bf16.msra.mxu0 %v8673
        %8718 = vmatprep.subr.bf16.mxu0 0
        %8719 = vmatpush1.bf16.msra.mxu0 %v8672
        %8720 = vmatprep.subr.bf16.mxu0 0
        %8721 = vmatpush2.bf16.msra.mxu0 %v8687
        %8722 = vmatprep.subr.bf16.mxu0 0
        %8723 = vmatpush2.bf16.msra.mxu0 %v8686
        %8724 = vmatprep.subr.bf16.mxu0 0
        %8725 = vmatpush2.bf16.msra.mxu0 %v8685
        %8726 = vmatprep.subr.bf16.mxu0 0
        %8727 = vmatpush2.bf16.msra.mxu0 %v8684
        %8728 = vmatprep.subr.bf16.mxu0 0
        %8729 = vmatpush2.bf16.msra.mxu0 %v8683
        %8730 = vmatprep.subr.bf16.mxu0 0
        %8731 = vmatpush2.bf16.msra.mxu0 %v8682
        %8732 = vmatprep.subr.bf16.mxu0 0
        %8733 = vmatpush2.bf16.msra.mxu0 %v8681
        %8734 = vmatprep.subr.bf16.mxu0 0
        %8735 = vmatpush2.bf16.msra.mxu0 %v8680
        %8736 = vmatprep.mubr.bf16.mxu0 %v8513
        %8737 = vmatmul.mubr.bf16.gmra.mxu0 %v8512
        %v8738 = vpop.f32.mrf.mxu0
        %v8739 = vadd.f32 0.0, %v8738
        %v8740 = vpop.f32.mrf.mxu0
        %v8741 = vpop.f32.mrf.mxu0
        %v8742 = vadd.f32 0.0, %v8741
        %v8743 = vpop.f32.mrf.mxu0
        %8744 = vmatprep.mubr.bf16.mxu0 %v8515
        %8745 = vmatmul.mubr.bf16.gmra.mxu0 %v8514
        %v8746 = vpop.f32.mrf.mxu0
        %v8747 = vadd.f32 0.0, %v8746
        %v8748 = vpop.f32.mrf.mxu0
        %v8749 = vpop.f32.mrf.mxu0
        %v8750 = vadd.f32 0.0, %v8749
        %v8751 = vpop.f32.mrf.mxu0
        %8752 = vmatprep.mubr.bf16.mxu0 %v8517
        %8753 = vmatmul.mubr.bf16.gmra.mxu0 %v8516
        %v8754 = vpop.f32.mrf.mxu0
        %v8755 = vadd.f32 0.0, %v8754
        %v8756 = vpop.f32.mrf.mxu0
        %v8757 = vpop.f32.mrf.mxu0
        %v8758 = vadd.f32 0.0, %v8757
        %v8759 = vpop.f32.mrf.mxu0
        %8760 = vmatprep.mubr.bf16.mxu0 %v8519
        %8761 = vmatmul.mubr.bf16.gmra.mxu0 %v8518
        %v8762 = vpop.f32.mrf.mxu0
        %v8763 = vadd.f32 0.0, %v8762
        %v8764 = vpop.f32.mrf.mxu0
        %v8765 = vpop.f32.mrf.mxu0
        %v8766 = vadd.f32 0.0, %v8765
        %v8767 = vpop.f32.mrf.mxu0
        %8768 = vmatprep.mubr.bf16.mxu0 %v8521
        %8769 = vmatmul.mubr.bf16.gmra.mxu0 %v8520
        %v8770 = vpop.f32.mrf.mxu0
        %v8771 = vadd.f32 0.0, %v8770
        %v8772 = vpop.f32.mrf.mxu0
        %v8773 = vpop.f32.mrf.mxu0
        %v8774 = vadd.f32 0.0, %v8773
        %v8775 = vpop.f32.mrf.mxu0
        %8776 = vmatprep.mubr.bf16.mxu0 %v8523
        %8777 = vmatmul.mubr.bf16.gmra.mxu0 %v8522
        %v8778 = vpop.f32.mrf.mxu0
        %v8779 = vadd.f32 0.0, %v8778
        %v8780 = vpop.f32.mrf.mxu0
        %v8781 = vpop.f32.mrf.mxu0
        %v8782 = vadd.f32 0.0, %v8781
        %v8783 = vpop.f32.mrf.mxu0
        %8784 = vmatprep.mubr.bf16.mxu0 %v8525
        %8785 = vmatmul.mubr.bf16.gmra.mxu0 %v8524
        %v8786 = vpop.f32.mrf.mxu0
        %v8787 = vadd.f32 0.0, %v8786
        %v8788 = vpop.f32.mrf.mxu0
        %v8789 = vpop.f32.mrf.mxu0
        %v8790 = vadd.f32 0.0, %v8789
        %v8791 = vpop.f32.mrf.mxu0
        %8792 = vmatprep.mubr.bf16.mxu0 %v8527
        %8793 = vmatmul.mubr.bf16.gmra.mxu0 %v8526
        %v8794 = vpop.f32.mrf.mxu0
        %v8795 = vadd.f32 0.0, %v8794
        %v8796 = vpop.f32.mrf.mxu0
        %v8797 = vpop.f32.mrf.mxu0
        %v8798 = vadd.f32 0.0, %v8797
        %v8799 = vpop.f32.mrf.mxu0
        %8800 = vmatprep.mubr.bf16.mxu0 %v8529
        %8801 = vmatmul.mubr.bf16.gmra.mxu0 %v8528
        %v8802 = vpop.f32.mrf.mxu0
        %v8803 = vadd.f32 0.0, %v8802
        %v8804 = vpop.f32.mrf.mxu0
        %v8805 = vpop.f32.mrf.mxu0
        %v8806 = vadd.f32 0.0, %v8805
        %v8807 = vpop.f32.mrf.mxu0
        %8808 = vmatprep.mubr.bf16.mxu0 %v8531
        %8809 = vmatmul.mubr.bf16.gmra.mxu0 %v8530
        %v8810 = vpop.f32.mrf.mxu0
        %v8811 = vadd.f32 0.0, %v8810
        %v8812 = vpop.f32.mrf.mxu0
        %v8813 = vpop.f32.mrf.mxu0
        %v8814 = vadd.f32 0.0, %v8813
        %v8815 = vpop.f32.mrf.mxu0
        %8816 = vmatprep.mubr.bf16.mxu0 %v8533
        %8817 = vmatmul.mubr.bf16.gmra.mxu0 %v8532
        %v8818 = vpop.f32.mrf.mxu0
        %v8819 = vadd.f32 0.0, %v8818
        %v8820 = vpop.f32.mrf.mxu0
        %v8821 = vpop.f32.mrf.mxu0
        %v8822 = vadd.f32 0.0, %v8821
        %v8823 = vpop.f32.mrf.mxu0
        %8824 = vmatprep.mubr.bf16.mxu0 %v8535
        %8825 = vmatmul.mubr.bf16.gmra.mxu0 %v8534
        %v8826 = vpop.f32.mrf.mxu0
        %v8827 = vadd.f32 0.0, %v8826
        %v8828 = vpop.f32.mrf.mxu0
        %v8829 = vpop.f32.mrf.mxu0
        %v8830 = vadd.f32 0.0, %v8829
        %v8831 = vpop.f32.mrf.mxu0
        %8832 = vmatprep.mubr.bf16.mxu0 %v8537
        %8833 = vmatmul.mubr.bf16.gmra.mxu0 %v8536
        %v8834 = vpop.f32.mrf.mxu0
        %v8835 = vadd.f32 0.0, %v8834
        %v8836 = vpop.f32.mrf.mxu0
        %v8837 = vpop.f32.mrf.mxu0
        %v8838 = vadd.f32 0.0, %v8837
        %v8839 = vpop.f32.mrf.mxu0
        %8840 = vmatprep.mubr.bf16.mxu0 %v8539
        %8841 = vmatmul.mubr.bf16.gmra.mxu0 %v8538
        %v8842 = vpop.f32.mrf.mxu0
        %v8843 = vadd.f32 0.0, %v8842
        %v8844 = vpop.f32.mrf.mxu0
        %v8845 = vpop.f32.mrf.mxu0
        %v8846 = vadd.f32 0.0, %v8845
        %v8847 = vpop.f32.mrf.mxu0
        %8848 = vmatprep.mubr.bf16.mxu0 %v8541
        %8849 = vmatmul.mubr.bf16.gmra.mxu0 %v8540
        %v8850 = vpop.f32.mrf.mxu0
        %v8851 = vadd.f32 0.0, %v8850
        %v8852 = vpop.f32.mrf.mxu0
        %v8853 = vpop.f32.mrf.mxu0
        %v8854 = vadd.f32 0.0, %v8853
        %v8855 = vpop.f32.mrf.mxu0
        %8856 = vmatprep.mubr.bf16.mxu0 %v8543
        %8857 = vmatmul.mubr.bf16.gmra.mxu0 %v8542
        %v8858 = vpop.f32.mrf.mxu0
        %v8859 = vadd.f32 0.0, %v8858
        %v8860 = vpop.f32.mrf.mxu0
        %v8861 = vpop.f32.mrf.mxu0
        %v8862 = vadd.f32 0.0, %v8861
        %v8863 = vpop.f32.mrf.mxu0
        %8864 = vmatprep.mubr.bf16.mxu0 %v8545
        %8865 = vmatmul.mubr.bf16.gmra.mxu0 %v8544
        %v8866 = vpop.f32.mrf.mxu0
        %v8867 = vadd.f32 0.0, %v8866
        %v8868 = vpop.f32.mrf.mxu0
        %v8869 = vpop.f32.mrf.mxu0
        %v8870 = vadd.f32 0.0, %v8869
        %v8871 = vpop.f32.mrf.mxu0
        %8872 = vmatprep.mubr.bf16.mxu0 %v8547
        %8873 = vmatmul.mubr.bf16.gmra.mxu0 %v8546
        %v8874 = vpop.f32.mrf.mxu0
        %v8875 = vadd.f32 0.0, %v8874
        %v8876 = vpop.f32.mrf.mxu0
        %v8877 = vpop.f32.mrf.mxu0
        %v8878 = vadd.f32 0.0, %v8877
        %v8879 = vpop.f32.mrf.mxu0
        %8880 = vmatprep.mubr.bf16.mxu0 %v8549
        %8881 = vmatmul.mubr.bf16.gmra.mxu0 %v8548
        %v8882 = vpop.f32.mrf.mxu0
        %v8883 = vadd.f32 0.0, %v8882
        %v8884 = vpop.f32.mrf.mxu0
        %v8885 = vpop.f32.mrf.mxu0
        %v8886 = vadd.f32 0.0, %v8885
        %v8887 = vpop.f32.mrf.mxu0
        %8888 = vmatprep.mubr.bf16.mxu0 %v8551
        %8889 = vmatmul.mubr.bf16.gmra.mxu0 %v8550
        %v8890 = vpop.f32.mrf.mxu0
        %v8891 = vadd.f32 0.0, %v8890
        %v8892 = vpop.f32.mrf.mxu0
        %v8893 = vpop.f32.mrf.mxu0
        %v8894 = vadd.f32 0.0, %v8893
        %v8895 = vpop.f32.mrf.mxu0
        %8896 = vmatprep.mubr.bf16.mxu0 %v8553
        %8897 = vmatmul.mubr.bf16.gmra.mxu0 %v8552
        %v8898 = vpop.f32.mrf.mxu0
        %v8899 = vadd.f32 0.0, %v8898
        %v8900 = vpop.f32.mrf.mxu0
        %v8901 = vpop.f32.mrf.mxu0
        %v8902 = vadd.f32 0.0, %v8901
        %v8903 = vpop.f32.mrf.mxu0
        %8904 = vmatprep.mubr.bf16.mxu0 %v8555
        %8905 = vmatmul.mubr.bf16.gmra.mxu0 %v8554
        %v8906 = vpop.f32.mrf.mxu0
        %v8907 = vadd.f32 0.0, %v8906
        %v8908 = vpop.f32.mrf.mxu0
        %v8909 = vpop.f32.mrf.mxu0
        %v8910 = vadd.f32 0.0, %v8909
        %v8911 = vpop.f32.mrf.mxu0
        %8912 = vmatprep.mubr.bf16.mxu0 %v8557
        %8913 = vmatmul.mubr.bf16.gmra.mxu0 %v8556
        %v8914 = vpop.f32.mrf.mxu0
        %v8915 = vadd.f32 0.0, %v8914
        %v8916 = vpop.f32.mrf.mxu0
        %v8917 = vpop.f32.mrf.mxu0
        %v8918 = vadd.f32 0.0, %v8917
        %v8919 = vpop.f32.mrf.mxu0
        %8920 = vmatprep.mubr.bf16.mxu0 %v8559
        %8921 = vmatmul.mubr.bf16.gmra.mxu0 %v8558
        %v8922 = vpop.f32.mrf.mxu0
        %v8923 = vadd.f32 0.0, %v8922
        %v8924 = vpop.f32.mrf.mxu0
        %v8925 = vpop.f32.mrf.mxu0
        %v8926 = vadd.f32 0.0, %v8925
        %v8927 = vpop.f32.mrf.mxu0
        %8928 = vmatprep.mubr.bf16.mxu0 %v8561
        %8929 = vmatmul.mubr.bf16.gmra.mxu0 %v8560
        %v8930 = vpop.f32.mrf.mxu0
        %v8931 = vadd.f32 0.0, %v8930
        %v8932 = vpop.f32.mrf.mxu0
        %v8933 = vpop.f32.mrf.mxu0
        %v8934 = vadd.f32 0.0, %v8933
        %v8935 = vpop.f32.mrf.mxu0
        %8936 = vmatprep.mubr.bf16.mxu0 %v8563
        %8937 = vmatmul.mubr.bf16.gmra.mxu0 %v8562
        %v8938 = vpop.f32.mrf.mxu0
        %v8939 = vadd.f32 0.0, %v8938
        %v8940 = vpop.f32.mrf.mxu0
        %v8941 = vpop.f32.mrf.mxu0
        %v8942 = vadd.f32 0.0, %v8941
        %v8943 = vpop.f32.mrf.mxu0
        %8944 = vmatprep.mubr.bf16.mxu0 %v8565
        %8945 = vmatmul.mubr.bf16.gmra.mxu0 %v8564
        %v8946 = vpop.f32.mrf.mxu0
        %v8947 = vadd.f32 0.0, %v8946
        %v8948 = vpop.f32.mrf.mxu0
        %v8949 = vpop.f32.mrf.mxu0
        %v8950 = vadd.f32 0.0, %v8949
        %v8951 = vpop.f32.mrf.mxu0
        %8952 = vmatprep.mubr.bf16.mxu0 %v8567
        %8953 = vmatmul.mubr.bf16.gmra.mxu0 %v8566
        %v8954 = vpop.f32.mrf.mxu0
        %v8955 = vadd.f32 0.0, %v8954
        %v8956 = vpop.f32.mrf.mxu0
        %v8957 = vpop.f32.mrf.mxu0
        %v8958 = vadd.f32 0.0, %v8957
        %v8959 = vpop.f32.mrf.mxu0
        %8960 = vmatprep.mubr.bf16.mxu0 %v8569
        %8961 = vmatmul.mubr.bf16.gmra.mxu0 %v8568
        %v8962 = vpop.f32.mrf.mxu0
        %v8963 = vadd.f32 0.0, %v8962
        %v8964 = vpop.f32.mrf.mxu0
        %v8965 = vpop.f32.mrf.mxu0
        %v8966 = vadd.f32 0.0, %v8965
        %v8967 = vpop.f32.mrf.mxu0
        %8968 = vmatprep.mubr.bf16.mxu0 %v8571
        %8969 = vmatmul.mubr.bf16.gmra.mxu0 %v8570
        %v8970 = vpop.f32.mrf.mxu0
        %v8971 = vadd.f32 0.0, %v8970
        %v8972 = vpop.f32.mrf.mxu0
        %v8973 = vpop.f32.mrf.mxu0
        %v8974 = vadd.f32 0.0, %v8973
        %v8975 = vpop.f32.mrf.mxu0
        %8976 = vmatprep.mubr.bf16.mxu0 %v8573
        %8977 = vmatmul.mubr.bf16.gmra.mxu0 %v8572
        %v8978 = vpop.f32.mrf.mxu0
        %v8979 = vadd.f32 0.0, %v8978
        %v8980 = vpop.f32.mrf.mxu0
        %v8981 = vpop.f32.mrf.mxu0
        %v8982 = vadd.f32 0.0, %v8981
        %v8983 = vpop.f32.mrf.mxu0
        %8984 = vmatprep.mubr.bf16.mxu0 %v8575
        %8985 = vmatmul.mubr.bf16.gmra.mxu0 %v8574
        %v8986 = vpop.f32.mrf.mxu0
        %v8987 = vadd.f32 0.0, %v8986
        %v8988 = vpop.f32.mrf.mxu0
        %v8989 = vpop.f32.mrf.mxu0
        %v8990 = vadd.f32 0.0, %v8989
        %v8991 = vpop.f32.mrf.mxu0
        %8992 = vdwg.mxu0
        %v9009 = vunpack.c.l.b16 %v8496
        %v9010 = vunpack.c.l.b16 %v8497
        %v9011 = vunpack.c.l.b16 %v8498
        %v9012 = vunpack.c.l.b16 %v8499
        %v9013 = vunpack.c.l.b16 %v8500
        %v9014 = vunpack.c.l.b16 %v8501
        %v9015 = vunpack.c.l.b16 %v8502
        %v9016 = vunpack.c.l.b16 %v8503
        %v9017 = vunpack.c.l.b16 %v8504
        %v9018 = vunpack.c.l.b16 %v8505
        %v9019 = vunpack.c.l.b16 %v8506
        %v9020 = vunpack.c.l.b16 %v8507
        %v9021 = vunpack.c.l.b16 %v8508
        %v9022 = vunpack.c.l.b16 %v8509
        %v9023 = vunpack.c.l.b16 %v8510
        %v9024 = vunpack.c.l.b16 %v8511
        %v9025 = vpack.c.b16 %v9010, %v9009
        %v9026 = vpack.c.b16 %v9012, %v9011
        %v9027 = vpack.c.b16 %v9014, %v9013
        %v9028 = vpack.c.b16 %v9016, %v9015
        %v9029 = vpack.c.b16 %v9018, %v9017
        %v9030 = vpack.c.b16 %v9020, %v9019
        %v9031 = vpack.c.b16 %v9022, %v9021
        %v9032 = vpack.c.b16 %v9024, %v9023
        %9041 = vmatprep.subr.bf16.mxu0 0
        %9042 = vmatpush1.bf16.msra.mxu0 %v9032
        %9043 = vmatprep.subr.bf16.mxu0 0
        %9044 = vmatpush1.bf16.msra.mxu0 %v9031
        %9045 = vmatprep.subr.bf16.mxu0 0
        %9046 = vmatpush1.bf16.msra.mxu0 %v9030
        %9047 = vmatprep.subr.bf16.mxu0 0
        %9048 = vmatpush1.bf16.msra.mxu0 %v9029
        %9049 = vmatprep.subr.bf16.mxu0 0
        %9050 = vmatpush1.bf16.msra.mxu0 %v9028
        %9051 = vmatprep.subr.bf16.mxu0 0
        %9052 = vmatpush1.bf16.msra.mxu0 %v9027
        %9053 = vmatprep.subr.bf16.mxu0 0
        %9054 = vmatpush1.bf16.msra.mxu0 %v9026
        %9055 = vmatprep.subr.bf16.mxu0 0
        %9056 = vmatpush1.bf16.msra.mxu0 %v9025
        %9057 = vmatprep.subr.bf16.mxu0 0
        %9058 = vmatpush2.bf16.msra.mxu0 0
        %9059 = vmatprep.subr.bf16.mxu0 0
        %9060 = vmatpush2.bf16.msra.mxu0 0
        %9061 = vmatprep.subr.bf16.mxu0 0
        %9062 = vmatpush2.bf16.msra.mxu0 0
        %9063 = vmatprep.subr.bf16.mxu0 0
        %9064 = vmatpush2.bf16.msra.mxu0 0
        %9065 = vmatprep.subr.bf16.mxu0 0
        %9066 = vmatpush2.bf16.msra.mxu0 0
        %9067 = vmatprep.subr.bf16.mxu0 0
        %9068 = vmatpush2.bf16.msra.mxu0 0
        %9069 = vmatprep.subr.bf16.mxu0 0
        %9070 = vmatpush2.bf16.msra.mxu0 0
        %9071 = vmatprep.subr.bf16.mxu0 0
        %9072 = vmatpush2.bf16.msra.mxu0 0
        %9073 = vmatprep.mubr.bf16.mxu0 0
        %9074 = vmatmul.mubr.bf16.gmra.mxu0 %v1012
        %v9075 = vpop.f32.mrf.mxu0
        %v9076 = vadd.f32 %v8739, %v9075
        %v9077 = vpop.f32.mrf.mxu0
        %v9078 = vpop.f32.mrf.mxu0
        %v9079 = vadd.f32 %v8742, %v9078
        %v9080 = vpop.f32.mrf.mxu0
        %9081 = vmatprep.mubr.bf16.mxu0 0
        %9082 = vmatmul.mubr.bf16.gmra.mxu0 %v1013
        %v9083 = vpop.f32.mrf.mxu0
        %v9084 = vadd.f32 %v8747, %v9083
        %v9085 = vpop.f32.mrf.mxu0
        %v9086 = vpop.f32.mrf.mxu0
        %v9087 = vadd.f32 %v8750, %v9086
        %v9088 = vpop.f32.mrf.mxu0
        %9089 = vmatprep.mubr.bf16.mxu0 0
        %9090 = vmatmul.mubr.bf16.gmra.mxu0 %v1014
        %v9091 = vpop.f32.mrf.mxu0
        %v9092 = vadd.f32 %v8755, %v9091
        %v9093 = vpop.f32.mrf.mxu0
        %v9094 = vpop.f32.mrf.mxu0
        %v9095 = vadd.f32 %v8758, %v9094
        %v9096 = vpop.f32.mrf.mxu0
        %9097 = vmatprep.mubr.bf16.mxu0 0
        %9098 = vmatmul.mubr.bf16.gmra.mxu0 %v1015
        %v9099 = vpop.f32.mrf.mxu0
        %v9100 = vadd.f32 %v8763, %v9099
        %v9101 = vpop.f32.mrf.mxu0
        %v9102 = vpop.f32.mrf.mxu0
        %v9103 = vadd.f32 %v8766, %v9102
        %v9104 = vpop.f32.mrf.mxu0
        %9105 = vmatprep.mubr.bf16.mxu0 0
        %9106 = vmatmul.mubr.bf16.gmra.mxu0 %v1016
        %v9107 = vpop.f32.mrf.mxu0
        %v9108 = vadd.f32 %v8771, %v9107
        %v9109 = vpop.f32.mrf.mxu0
        %v9110 = vpop.f32.mrf.mxu0
        %v9111 = vadd.f32 %v8774, %v9110
        %v9112 = vpop.f32.mrf.mxu0
        %9113 = vmatprep.mubr.bf16.mxu0 0
        %9114 = vmatmul.mubr.bf16.gmra.mxu0 %v1017
        %v9115 = vpop.f32.mrf.mxu0
        %v9116 = vadd.f32 %v8779, %v9115
        %v9117 = vpop.f32.mrf.mxu0
        %v9118 = vpop.f32.mrf.mxu0
        %v9119 = vadd.f32 %v8782, %v9118
        %v9120 = vpop.f32.mrf.mxu0
        %9121 = vmatprep.mubr.bf16.mxu0 0
        %9122 = vmatmul.mubr.bf16.gmra.mxu0 %v1018
        %v9123 = vpop.f32.mrf.mxu0
        %v9124 = vadd.f32 %v8787, %v9123
        %v9125 = vpop.f32.mrf.mxu0
        %v9126 = vpop.f32.mrf.mxu0
        %v9127 = vadd.f32 %v8790, %v9126
        %v9128 = vpop.f32.mrf.mxu0
        %9129 = vmatprep.mubr.bf16.mxu0 0
        %9130 = vmatmul.mubr.bf16.gmra.mxu0 %v1019
        %v9131 = vpop.f32.mrf.mxu0
        %v9132 = vadd.f32 %v8795, %v9131
        %v9133 = vpop.f32.mrf.mxu0
        %v9134 = vpop.f32.mrf.mxu0
        %v9135 = vadd.f32 %v8798, %v9134
        %v9136 = vpop.f32.mrf.mxu0
        %9137 = vmatprep.mubr.bf16.mxu0 0
        %9138 = vmatmul.mubr.bf16.gmra.mxu0 %v1020
        %v9139 = vpop.f32.mrf.mxu0
        %v9140 = vadd.f32 %v8803, %v9139
        %v9141 = vpop.f32.mrf.mxu0
        %v9142 = vpop.f32.mrf.mxu0
        %v9143 = vadd.f32 %v8806, %v9142
        %v9144 = vpop.f32.mrf.mxu0
        %9145 = vmatprep.mubr.bf16.mxu0 0
        %9146 = vmatmul.mubr.bf16.gmra.mxu0 %v1021
        %v9147 = vpop.f32.mrf.mxu0
        %v9148 = vadd.f32 %v8811, %v9147
        %v9149 = vpop.f32.mrf.mxu0
        %v9150 = vpop.f32.mrf.mxu0
        %v9151 = vadd.f32 %v8814, %v9150
        %v9152 = vpop.f32.mrf.mxu0
        %9153 = vmatprep.mubr.bf16.mxu0 0
        %9154 = vmatmul.mubr.bf16.gmra.mxu0 %v1022
        %v9155 = vpop.f32.mrf.mxu0
        %v9156 = vadd.f32 %v8819, %v9155
        %v9157 = vpop.f32.mrf.mxu0
        %v9158 = vpop.f32.mrf.mxu0
        %v9159 = vadd.f32 %v8822, %v9158
        %v9160 = vpop.f32.mrf.mxu0
        %9161 = vmatprep.mubr.bf16.mxu0 0
        %9162 = vmatmul.mubr.bf16.gmra.mxu0 %v1023
        %v9163 = vpop.f32.mrf.mxu0
        %v9164 = vadd.f32 %v8827, %v9163
        %v9165 = vpop.f32.mrf.mxu0
        %v9166 = vpop.f32.mrf.mxu0
        %v9167 = vadd.f32 %v8830, %v9166
        %v9168 = vpop.f32.mrf.mxu0
        %9169 = vmatprep.mubr.bf16.mxu0 0
        %9170 = vmatmul.mubr.bf16.gmra.mxu0 %v1024
        %v9171 = vpop.f32.mrf.mxu0
        %v9172 = vadd.f32 %v8835, %v9171
        %v9173 = vpop.f32.mrf.mxu0
        %v9174 = vpop.f32.mrf.mxu0
        %v9175 = vadd.f32 %v8838, %v9174
        %v9176 = vpop.f32.mrf.mxu0
        %9177 = vmatprep.mubr.bf16.mxu0 0
        %9178 = vmatmul.mubr.bf16.gmra.mxu0 %v1025
        %v9179 = vpop.f32.mrf.mxu0
        %v9180 = vadd.f32 %v8843, %v9179
        %v9181 = vpop.f32.mrf.mxu0
        %v9182 = vpop.f32.mrf.mxu0
        %v9183 = vadd.f32 %v8846, %v9182
        %v9184 = vpop.f32.mrf.mxu0
        %9185 = vmatprep.mubr.bf16.mxu0 0
        %9186 = vmatmul.mubr.bf16.gmra.mxu0 %v1026
        %v9187 = vpop.f32.mrf.mxu0
        %v9188 = vadd.f32 %v8851, %v9187
        %v9189 = vpop.f32.mrf.mxu0
        %v9190 = vpop.f32.mrf.mxu0
        %v9191 = vadd.f32 %v8854, %v9190
        %v9192 = vpop.f32.mrf.mxu0
        %9193 = vmatprep.mubr.bf16.mxu0 0
        %9194 = vmatmul.mubr.bf16.gmra.mxu0 %v1027
        %v9195 = vpop.f32.mrf.mxu0
        %v9196 = vadd.f32 %v8859, %v9195
        %v9197 = vpop.f32.mrf.mxu0
        %v9198 = vpop.f32.mrf.mxu0
        %v9199 = vadd.f32 %v8862, %v9198
        %v9200 = vpop.f32.mrf.mxu0
        %9201 = vmatprep.mubr.bf16.mxu0 0
        %9202 = vmatmul.mubr.bf16.gmra.mxu0 %v1028
        %v9203 = vpop.f32.mrf.mxu0
        %v9204 = vadd.f32 %v8867, %v9203
        %v9205 = vpop.f32.mrf.mxu0
        %v9206 = vpop.f32.mrf.mxu0
        %v9207 = vadd.f32 %v8870, %v9206
        %v9208 = vpop.f32.mrf.mxu0
        %9209 = vmatprep.mubr.bf16.mxu0 0
        %9210 = vmatmul.mubr.bf16.gmra.mxu0 %v1029
        %v9211 = vpop.f32.mrf.mxu0
        %v9212 = vadd.f32 %v8875, %v9211
        %v9213 = vpop.f32.mrf.mxu0
        %v9214 = vpop.f32.mrf.mxu0
        %v9215 = vadd.f32 %v8878, %v9214
        %v9216 = vpop.f32.mrf.mxu0
        %9217 = vmatprep.mubr.bf16.mxu0 0
        %9218 = vmatmul.mubr.bf16.gmra.mxu0 %v1030
        %v9219 = vpop.f32.mrf.mxu0
        %v9220 = vadd.f32 %v8883, %v9219
        %v9221 = vpop.f32.mrf.mxu0
        %v9222 = vpop.f32.mrf.mxu0
        %v9223 = vadd.f32 %v8886, %v9222
        %v9224 = vpop.f32.mrf.mxu0
        %9225 = vmatprep.mubr.bf16.mxu0 0
        %9226 = vmatmul.mubr.bf16.gmra.mxu0 %v1031
        %v9227 = vpop.f32.mrf.mxu0
        %v9228 = vadd.f32 %v8891, %v9227
        %v9229 = vpop.f32.mrf.mxu0
        %v9230 = vpop.f32.mrf.mxu0
        %v9231 = vadd.f32 %v8894, %v9230
        %v9232 = vpop.f32.mrf.mxu0
        %9233 = vmatprep.mubr.bf16.mxu0 0
        %9234 = vmatmul.mubr.bf16.gmra.mxu0 %v1032
        %v9235 = vpop.f32.mrf.mxu0
        %v9236 = vadd.f32 %v8899, %v9235
        %v9237 = vpop.f32.mrf.mxu0
        %v9238 = vpop.f32.mrf.mxu0
        %v9239 = vadd.f32 %v8902, %v9238
        %v9240 = vpop.f32.mrf.mxu0
        %9241 = vmatprep.mubr.bf16.mxu0 0
        %9242 = vmatmul.mubr.bf16.gmra.mxu0 %v1033
        %v9243 = vpop.f32.mrf.mxu0
        %v9244 = vadd.f32 %v8907, %v9243
        %v9245 = vpop.f32.mrf.mxu0
        %v9246 = vpop.f32.mrf.mxu0
        %v9247 = vadd.f32 %v8910, %v9246
        %v9248 = vpop.f32.mrf.mxu0
        %9249 = vmatprep.mubr.bf16.mxu0 0
        %9250 = vmatmul.mubr.bf16.gmra.mxu0 %v1034
        %v9251 = vpop.f32.mrf.mxu0
        %v9252 = vadd.f32 %v8915, %v9251
        %v9253 = vpop.f32.mrf.mxu0
        %v9254 = vpop.f32.mrf.mxu0
        %v9255 = vadd.f32 %v8918, %v9254
        %v9256 = vpop.f32.mrf.mxu0
        %9257 = vmatprep.mubr.bf16.mxu0 0
        %9258 = vmatmul.mubr.bf16.gmra.mxu0 %v1035
        %v9259 = vpop.f32.mrf.mxu0
        %v9260 = vadd.f32 %v8923, %v9259
        %v9261 = vpop.f32.mrf.mxu0
        %v9262 = vpop.f32.mrf.mxu0
        %v9263 = vadd.f32 %v8926, %v9262
        %v9264 = vpop.f32.mrf.mxu0
        %9265 = vmatprep.mubr.bf16.mxu0 0
        %9266 = vmatmul.mubr.bf16.gmra.mxu0 %v1036
        %v9267 = vpop.f32.mrf.mxu0
        %v9268 = vadd.f32 %v8931, %v9267
        %v9269 = vpop.f32.mrf.mxu0
        %v9270 = vpop.f32.mrf.mxu0
        %v9271 = vadd.f32 %v8934, %v9270
        %v9272 = vpop.f32.mrf.mxu0
        %9273 = vmatprep.mubr.bf16.mxu0 0
        %9274 = vmatmul.mubr.bf16.gmra.mxu0 %v1037
        %v9275 = vpop.f32.mrf.mxu0
        %v9276 = vadd.f32 %v8939, %v9275
        %v9277 = vpop.f32.mrf.mxu0
        %v9278 = vpop.f32.mrf.mxu0
        %v9279 = vadd.f32 %v8942, %v9278
        %v9280 = vpop.f32.mrf.mxu0
        %9281 = vmatprep.mubr.bf16.mxu0 0
        %9282 = vmatmul.mubr.bf16.gmra.mxu0 %v1038
        %v9283 = vpop.f32.mrf.mxu0
        %v9284 = vadd.f32 %v8947, %v9283
        %v9285 = vpop.f32.mrf.mxu0
        %v9286 = vpop.f32.mrf.mxu0
        %v9287 = vadd.f32 %v8950, %v9286
        %v9288 = vpop.f32.mrf.mxu0
        %9289 = vmatprep.mubr.bf16.mxu0 0
        %9290 = vmatmul.mubr.bf16.gmra.mxu0 %v1039
        %v9291 = vpop.f32.mrf.mxu0
        %v9292 = vadd.f32 %v8955, %v9291
        %v9293 = vpop.f32.mrf.mxu0
        %v9294 = vpop.f32.mrf.mxu0
        %v9295 = vadd.f32 %v8958, %v9294
        %v9296 = vpop.f32.mrf.mxu0
        %9297 = vmatprep.mubr.bf16.mxu0 0
        %9298 = vmatmul.mubr.bf16.gmra.mxu0 %v1040
        %v9299 = vpop.f32.mrf.mxu0
        %v9300 = vadd.f32 %v8963, %v9299
        %v9301 = vpop.f32.mrf.mxu0
        %v9302 = vpop.f32.mrf.mxu0
        %v9303 = vadd.f32 %v8966, %v9302
        %v9304 = vpop.f32.mrf.mxu0
        %9305 = vmatprep.mubr.bf16.mxu0 0
        %9306 = vmatmul.mubr.bf16.gmra.mxu0 %v1041
        %v9307 = vpop.f32.mrf.mxu0
        %v9308 = vadd.f32 %v8971, %v9307
        %v9309 = vpop.f32.mrf.mxu0
        %v9310 = vpop.f32.mrf.mxu0
        %v9311 = vadd.f32 %v8974, %v9310
        %v9312 = vpop.f32.mrf.mxu0
        %9313 = vmatprep.mubr.bf16.mxu0 0
        %9314 = vmatmul.mubr.bf16.gmra.mxu0 %v1042
        %v9315 = vpop.f32.mrf.mxu0
        %v9316 = vadd.f32 %v8979, %v9315
        %v9317 = vpop.f32.mrf.mxu0
        %v9318 = vpop.f32.mrf.mxu0
        %v9319 = vadd.f32 %v8982, %v9318
        %v9320 = vpop.f32.mrf.mxu0
        %9321 = vmatprep.mubr.bf16.mxu0 0
        %9322 = vmatmul.mubr.bf16.gmra.mxu0 %v1043
        %v9323 = vpop.f32.mrf.mxu0
        %v9324 = vadd.f32 %v8987, %v9323
        %v9325 = vpop.f32.mrf.mxu0
        %v9326 = vpop.f32.mrf.mxu0
        %v9327 = vadd.f32 %v8990, %v9326
        %v9328 = vpop.f32.mrf.mxu0
        %9329 = vdwg.mxu0
        %v9330 = vld [vmem:[%s22] sm:$0x1]
        %v9332 = vlaneseq
        %v9333 = vshrl.u32 %v9332, 7
        %v9334 = vsub.s32 0, %v9333
        %v9335 = vrot.slane %v9330, %v9334
        %v9337 = vadd.f32 %v9076, %v9335
        %v9338 = vadd.f32 %v9079, %v9335
        %v9339 = vadd.f32 %v9084, %v9335
        %v9340 = vadd.f32 %v9087, %v9335
        %v9341 = vadd.f32 %v9092, %v9335
        %v9342 = vadd.f32 %v9095, %v9335
        %v9343 = vadd.f32 %v9100, %v9335
        %v9344 = vadd.f32 %v9103, %v9335
        %v9345 = vadd.f32 %v9108, %v9335
        %v9346 = vadd.f32 %v9111, %v9335
        %v9347 = vadd.f32 %v9116, %v9335
        %v9348 = vadd.f32 %v9119, %v9335
        %v9349 = vadd.f32 %v9124, %v9335
        %v9350 = vadd.f32 %v9127, %v9335
        %v9351 = vadd.f32 %v9132, %v9335
        %v9352 = vadd.f32 %v9135, %v9335
        %v9353 = vadd.f32 %v9140, %v9335
        %v9354 = vadd.f32 %v9143, %v9335
        %v9355 = vadd.f32 %v9148, %v9335
        %v9356 = vadd.f32 %v9151, %v9335
        %v9357 = vadd.f32 %v9156, %v9335
        %v9358 = vadd.f32 %v9159, %v9335
        %v9359 = vadd.f32 %v9164, %v9335
        %v9360 = vadd.f32 %v9167, %v9335
        %v9361 = vadd.f32 %v9172, %v9335
        %v9362 = vadd.f32 %v9175, %v9335
        %v9363 = vadd.f32 %v9180, %v9335
        %v9364 = vadd.f32 %v9183, %v9335
        %v9365 = vadd.f32 %v9188, %v9335
        %v9366 = vadd.f32 %v9191, %v9335
        %v9367 = vadd.f32 %v9196, %v9335
        %v9368 = vadd.f32 %v9199, %v9335
        %v9369 = vadd.f32 %v9204, %v9335
        %v9370 = vadd.f32 %v9207, %v9335
        %v9371 = vadd.f32 %v9212, %v9335
        %v9372 = vadd.f32 %v9215, %v9335
        %v9373 = vadd.f32 %v9220, %v9335
        %v9374 = vadd.f32 %v9223, %v9335
        %v9375 = vadd.f32 %v9228, %v9335
        %v9376 = vadd.f32 %v9231, %v9335
        %v9377 = vadd.f32 %v9236, %v9335
        %v9378 = vadd.f32 %v9239, %v9335
        %v9379 = vadd.f32 %v9244, %v9335
        %v9380 = vadd.f32 %v9247, %v9335
        %v9381 = vadd.f32 %v9252, %v9335
        %v9382 = vadd.f32 %v9255, %v9335
        %v9383 = vadd.f32 %v9260, %v9335
        %v9384 = vadd.f32 %v9263, %v9335
        %v9385 = vadd.f32 %v9268, %v9335
        %v9386 = vadd.f32 %v9271, %v9335
        %v9387 = vadd.f32 %v9276, %v9335
        %v9388 = vadd.f32 %v9279, %v9335
        %v9389 = vadd.f32 %v9284, %v9335
        %v9390 = vadd.f32 %v9287, %v9335
        %v9391 = vadd.f32 %v9292, %v9335
        %v9392 = vadd.f32 %v9295, %v9335
        %v9393 = vadd.f32 %v9300, %v9335
        %v9394 = vadd.f32 %v9303, %v9335
        %v9395 = vadd.f32 %v9308, %v9335
        %v9396 = vadd.f32 %v9311, %v9335
        %v9397 = vadd.f32 %v9316, %v9335
        %v9398 = vadd.f32 %v9319, %v9335
        %v9399 = vadd.f32 %v9324, %v9335
        %v9400 = vadd.f32 %v9327, %v9335
        %v9401 = vmax.f32 %v9337, 0.0
        %v9402 = vmax.f32 %v9338, 0.0
        %v9403 = vmax.f32 %v9339, 0.0
        %v9404 = vmax.f32 %v9340, 0.0
        %v9405 = vmax.f32 %v9341, 0.0
        %v9406 = vmax.f32 %v9342, 0.0
        %v9407 = vmax.f32 %v9343, 0.0
        %v9408 = vmax.f32 %v9344, 0.0
        %v9409 = vmax.f32 %v9345, 0.0
        %v9410 = vmax.f32 %v9346, 0.0
        %v9411 = vmax.f32 %v9347, 0.0
        %v9412 = vmax.f32 %v9348, 0.0
        %v9413 = vmax.f32 %v9349, 0.0
        %v9414 = vmax.f32 %v9350, 0.0
        %v9415 = vmax.f32 %v9351, 0.0
        %v9416 = vmax.f32 %v9352, 0.0
        %v9417 = vmax.f32 %v9353, 0.0
        %v9418 = vmax.f32 %v9354, 0.0
        %v9419 = vmax.f32 %v9355, 0.0
        %v9420 = vmax.f32 %v9356, 0.0
        %v9421 = vmax.f32 %v9357, 0.0
        %v9422 = vmax.f32 %v9358, 0.0
        %v9423 = vmax.f32 %v9359, 0.0
        %v9424 = vmax.f32 %v9360, 0.0
        %v9425 = vmax.f32 %v9361, 0.0
        %v9426 = vmax.f32 %v9362, 0.0
        %v9427 = vmax.f32 %v9363, 0.0
        %v9428 = vmax.f32 %v9364, 0.0
        %v9429 = vmax.f32 %v9365, 0.0
        %v9430 = vmax.f32 %v9366, 0.0
        %v9431 = vmax.f32 %v9367, 0.0
        %v9432 = vmax.f32 %v9368, 0.0
        %v9433 = vmax.f32 %v9369, 0.0
        %v9434 = vmax.f32 %v9370, 0.0
        %v9435 = vmax.f32 %v9371, 0.0
        %v9436 = vmax.f32 %v9372, 0.0
        %v9437 = vmax.f32 %v9373, 0.0
        %v9438 = vmax.f32 %v9374, 0.0
        %v9439 = vmax.f32 %v9375, 0.0
        %v9440 = vmax.f32 %v9376, 0.0
        %v9441 = vmax.f32 %v9377, 0.0
        %v9442 = vmax.f32 %v9378, 0.0
        %v9443 = vmax.f32 %v9379, 0.0
        %v9444 = vmax.f32 %v9380, 0.0
        %v9445 = vmax.f32 %v9381, 0.0
        %v9446 = vmax.f32 %v9382, 0.0
        %v9447 = vmax.f32 %v9383, 0.0
        %v9448 = vmax.f32 %v9384, 0.0
        %v9449 = vmax.f32 %v9385, 0.0
        %v9450 = vmax.f32 %v9386, 0.0
        %v9451 = vmax.f32 %v9387, 0.0
        %v9452 = vmax.f32 %v9388, 0.0
        %v9453 = vmax.f32 %v9389, 0.0
        %v9454 = vmax.f32 %v9390, 0.0
        %v9455 = vmax.f32 %v9391, 0.0
        %v9456 = vmax.f32 %v9392, 0.0
        %v9457 = vmax.f32 %v9393, 0.0
        %v9458 = vmax.f32 %v9394, 0.0
        %v9459 = vmax.f32 %v9395, 0.0
        %v9460 = vmax.f32 %v9396, 0.0
        %v9461 = vmax.f32 %v9397, 0.0
        %v9462 = vmax.f32 %v9398, 0.0
        %v9463 = vmax.f32 %v9399, 0.0
        %v9464 = vmax.f32 %v9400, 0.0
        %v9465 = vpack.c.bf16 %v9402, %v9401
        %v9466 = vpack.c.bf16 %v9404, %v9403
        %v9467 = vpack.c.bf16 %v9406, %v9405
        %v9468 = vpack.c.bf16 %v9408, %v9407
        %v9469 = vpack.c.bf16 %v9410, %v9409
        %v9470 = vpack.c.bf16 %v9412, %v9411
        %v9471 = vpack.c.bf16 %v9414, %v9413
        %v9472 = vpack.c.bf16 %v9416, %v9415
        %v9473 = vpack.c.bf16 %v9418, %v9417
        %v9474 = vpack.c.bf16 %v9420, %v9419
        %v9475 = vpack.c.bf16 %v9422, %v9421
        %v9476 = vpack.c.bf16 %v9424, %v9423
        %v9477 = vpack.c.bf16 %v9426, %v9425
        %v9478 = vpack.c.bf16 %v9428, %v9427
        %v9479 = vpack.c.bf16 %v9430, %v9429
        %v9480 = vpack.c.bf16 %v9432, %v9431
        %v9481 = vpack.c.bf16 %v9434, %v9433
        %v9482 = vpack.c.bf16 %v9436, %v9435
        %v9483 = vpack.c.bf16 %v9438, %v9437
        %v9484 = vpack.c.bf16 %v9440, %v9439
        %v9485 = vpack.c.bf16 %v9442, %v9441
        %v9486 = vpack.c.bf16 %v9444, %v9443
        %v9487 = vpack.c.bf16 %v9446, %v9445
        %v9488 = vpack.c.bf16 %v9448, %v9447
        %v9489 = vpack.c.bf16 %v9450, %v9449
        %v9490 = vpack.c.bf16 %v9452, %v9451
        %v9491 = vpack.c.bf16 %v9454, %v9453
        %v9492 = vpack.c.bf16 %v9456, %v9455
        %v9493 = vpack.c.bf16 %v9458, %v9457
        %v9494 = vpack.c.bf16 %v9460, %v9459
        %v9495 = vpack.c.bf16 %v9462, %v9461
        %v9496 = vpack.c.bf16 %v9464, %v9463
        %v9497 = vld [vmem:[%s23] sm:$0xf]
        %v9498 = vld [vmem:[%s23 + $0x4] sm:$0xf]
        %v9499 = vld [vmem:[%s23 + $0x8] sm:$0xf]
        %v9500 = vld [vmem:[%s23 + $0xc] sm:$0xf]
        %v9501 = vld [vmem:[%s23 + $0x10] sm:$0xf]
        %v9502 = vld [vmem:[%s23 + $0x14] sm:$0xf]
        %v9503 = vld [vmem:[%s23 + $0x18] sm:$0xf]
        %v9504 = vld [vmem:[%s23 + $0x1c] sm:$0xf]
        %v9505 = vld [vmem:[%s23 + $0x20] sm:$0xf]
        %v9506 = vld [vmem:[%s23 + $0x24] sm:$0xf]
        %v9507 = vld [vmem:[%s23 + $0x28] sm:$0xf]
        %v9508 = vld [vmem:[%s23 + $0x2c] sm:$0xf]
        %v9509 = vld [vmem:[%s23 + $0x30] sm:$0xf]
        %v9510 = vld [vmem:[%s23 + $0x34] sm:$0xf]
        %v9511 = vld [vmem:[%s23 + $0x38] sm:$0xf]
        %v9512 = vld [vmem:[%s23 + $0x3c] sm:$0xf]
        %v9513 = vld [vmem:[%s24] sm:$0x1]
        %v9515 = vlaneseq
        %v9516 = vshrl.u32 %v9515, 7
        %v9517 = vsub.s32 0, %v9516
        %v9518 = vrot.slane %v9513, %v9517
        %v9536 = vunpack.c.l.b16 %v9497
        %v9537 = vunpack.c.l.b16 %v9498
        %v9538 = vunpack.c.l.b16 %v9499
        %v9539 = vunpack.c.l.b16 %v9500
        %v9540 = vunpack.c.l.b16 %v9501
        %v9541 = vunpack.c.l.b16 %v9502
        %v9542 = vunpack.c.l.b16 %v9503
        %v9543 = vunpack.c.l.b16 %v9504
        %v9544 = vunpack.c.l.b16 %v9505
        %v9545 = vunpack.c.l.b16 %v9506
        %v9546 = vunpack.c.l.b16 %v9507
        %v9547 = vunpack.c.l.b16 %v9508
        %v9548 = vunpack.c.l.b16 %v9509
        %v9549 = vunpack.c.l.b16 %v9510
        %v9550 = vunpack.c.l.b16 %v9511
        %v9551 = vunpack.c.l.b16 %v9512
        %v9552 = vpack.c.b16 %v9537, %v9536
        %v9553 = vpack.c.b16 %v9539, %v9538
        %v9554 = vpack.c.b16 %v9541, %v9540
        %v9555 = vpack.c.b16 %v9543, %v9542
        %v9556 = vpack.c.b16 %v9545, %v9544
        %v9557 = vpack.c.b16 %v9547, %v9546
        %v9558 = vpack.c.b16 %v9549, %v9548
        %v9559 = vpack.c.b16 %v9551, %v9550
        %9568 = vmatprep.subr.bf16.mxu0 0
        %9569 = vmatpush1.bf16.msra.mxu0 %v9559
        %9570 = vmatprep.subr.bf16.mxu0 0
        %9571 = vmatpush1.bf16.msra.mxu0 %v9558
        %9572 = vmatprep.subr.bf16.mxu0 0
        %9573 = vmatpush1.bf16.msra.mxu0 %v9557
        %9574 = vmatprep.subr.bf16.mxu0 0
        %9575 = vmatpush1.bf16.msra.mxu0 %v9556
        %9576 = vmatprep.subr.bf16.mxu0 0
        %9577 = vmatpush1.bf16.msra.mxu0 %v9555
        %9578 = vmatprep.subr.bf16.mxu0 0
        %9579 = vmatpush1.bf16.msra.mxu0 %v9554
        %9580 = vmatprep.subr.bf16.mxu0 0
        %9581 = vmatpush1.bf16.msra.mxu0 %v9553
        %9582 = vmatprep.subr.bf16.mxu0 0
        %9583 = vmatpush1.bf16.msra.mxu0 %v9552
        %9584 = vmatprep.subr.bf16.mxu0 0
        %9585 = vmatpush2.bf16.msra.mxu0 0
        %9586 = vmatprep.subr.bf16.mxu0 0
        %9587 = vmatpush2.bf16.msra.mxu0 0
        %9588 = vmatprep.subr.bf16.mxu0 0
        %9589 = vmatpush2.bf16.msra.mxu0 0
        %9590 = vmatprep.subr.bf16.mxu0 0
        %9591 = vmatpush2.bf16.msra.mxu0 0
        %9592 = vmatprep.subr.bf16.mxu0 0
        %9593 = vmatpush2.bf16.msra.mxu0 0
        %9594 = vmatprep.subr.bf16.mxu0 0
        %9595 = vmatpush2.bf16.msra.mxu0 0
        %9596 = vmatprep.subr.bf16.mxu0 0
        %9597 = vmatpush2.bf16.msra.mxu0 0
        %9598 = vmatprep.subr.bf16.mxu0 0
        %9599 = vmatpush2.bf16.msra.mxu0 0
        %9600 = vmatprep.mubr.bf16.mxu0 0
        %9601 = vmatmul.mubr.bf16.gmra.mxu0 %v9465
        %v9602 = vpop.f32.mrf.mxu0
        %v9603 = vadd.f32 %v9518, %v9602
        %v9604 = vpop.f32.mrf.mxu0
        %v9605 = vpop.f32.mrf.mxu0
        %v9606 = vadd.f32 %v9518, %v9605
        %v9607 = vpop.f32.mrf.mxu0
        %9608 = vmatprep.mubr.bf16.mxu0 0
        %9609 = vmatmul.mubr.bf16.gmra.mxu0 %v9466
        %v9610 = vpop.f32.mrf.mxu0
        %v9611 = vadd.f32 %v9518, %v9610
        %v9612 = vpop.f32.mrf.mxu0
        %v9613 = vpop.f32.mrf.mxu0
        %v9614 = vadd.f32 %v9518, %v9613
        %v9615 = vpop.f32.mrf.mxu0
        %9616 = vmatprep.mubr.bf16.mxu0 0
        %9617 = vmatmul.mubr.bf16.gmra.mxu0 %v9467
        %v9618 = vpop.f32.mrf.mxu0
        %v9619 = vadd.f32 %v9518, %v9618
        %v9620 = vpop.f32.mrf.mxu0
        %v9621 = vpop.f32.mrf.mxu0
        %v9622 = vadd.f32 %v9518, %v9621
        %v9623 = vpop.f32.mrf.mxu0
        %9624 = vmatprep.mubr.bf16.mxu0 0
        %9625 = vmatmul.mubr.bf16.gmra.mxu0 %v9468
        %v9626 = vpop.f32.mrf.mxu0
        %v9627 = vadd.f32 %v9518, %v9626
        %v9628 = vpop.f32.mrf.mxu0
        %v9629 = vpop.f32.mrf.mxu0
        %v9630 = vadd.f32 %v9518, %v9629
        %v9631 = vpop.f32.mrf.mxu0
        %9632 = vmatprep.mubr.bf16.mxu0 0
        %9633 = vmatmul.mubr.bf16.gmra.mxu0 %v9469
        %v9634 = vpop.f32.mrf.mxu0
        %v9635 = vadd.f32 %v9518, %v9634
        %v9636 = vpop.f32.mrf.mxu0
        %v9637 = vpop.f32.mrf.mxu0
        %v9638 = vadd.f32 %v9518, %v9637
        %v9639 = vpop.f32.mrf.mxu0
        %9640 = vmatprep.mubr.bf16.mxu0 0
        %9641 = vmatmul.mubr.bf16.gmra.mxu0 %v9470
        %v9642 = vpop.f32.mrf.mxu0
        %v9643 = vadd.f32 %v9518, %v9642
        %v9644 = vpop.f32.mrf.mxu0
        %v9645 = vpop.f32.mrf.mxu0
        %v9646 = vadd.f32 %v9518, %v9645
        %v9647 = vpop.f32.mrf.mxu0
        %9648 = vmatprep.mubr.bf16.mxu0 0
        %9649 = vmatmul.mubr.bf16.gmra.mxu0 %v9471
        %v9650 = vpop.f32.mrf.mxu0
        %v9651 = vadd.f32 %v9518, %v9650
        %v9652 = vpop.f32.mrf.mxu0
        %v9653 = vpop.f32.mrf.mxu0
        %v9654 = vadd.f32 %v9518, %v9653
        %v9655 = vpop.f32.mrf.mxu0
        %9656 = vmatprep.mubr.bf16.mxu0 0
        %9657 = vmatmul.mubr.bf16.gmra.mxu0 %v9472
        %v9658 = vpop.f32.mrf.mxu0
        %v9659 = vadd.f32 %v9518, %v9658
        %v9660 = vpop.f32.mrf.mxu0
        %v9661 = vpop.f32.mrf.mxu0
        %v9662 = vadd.f32 %v9518, %v9661
        %v9663 = vpop.f32.mrf.mxu0
        %9664 = vmatprep.mubr.bf16.mxu0 0
        %9665 = vmatmul.mubr.bf16.gmra.mxu0 %v9473
        %v9666 = vpop.f32.mrf.mxu0
        %v9667 = vadd.f32 %v9518, %v9666
        %v9668 = vpop.f32.mrf.mxu0
        %v9669 = vpop.f32.mrf.mxu0
        %v9670 = vadd.f32 %v9518, %v9669
        %v9671 = vpop.f32.mrf.mxu0
        %9672 = vmatprep.mubr.bf16.mxu0 0
        %9673 = vmatmul.mubr.bf16.gmra.mxu0 %v9474
        %v9674 = vpop.f32.mrf.mxu0
        %v9675 = vadd.f32 %v9518, %v9674
        %v9676 = vpop.f32.mrf.mxu0
        %v9677 = vpop.f32.mrf.mxu0
        %v9678 = vadd.f32 %v9518, %v9677
        %v9679 = vpop.f32.mrf.mxu0
        %9680 = vmatprep.mubr.bf16.mxu0 0
        %9681 = vmatmul.mubr.bf16.gmra.mxu0 %v9475
        %v9682 = vpop.f32.mrf.mxu0
        %v9683 = vadd.f32 %v9518, %v9682
        %v9684 = vpop.f32.mrf.mxu0
        %v9685 = vpop.f32.mrf.mxu0
        %v9686 = vadd.f32 %v9518, %v9685
        %v9687 = vpop.f32.mrf.mxu0
        %9688 = vmatprep.mubr.bf16.mxu0 0
        %9689 = vmatmul.mubr.bf16.gmra.mxu0 %v9476
        %v9690 = vpop.f32.mrf.mxu0
        %v9691 = vadd.f32 %v9518, %v9690
        %v9692 = vpop.f32.mrf.mxu0
        %v9693 = vpop.f32.mrf.mxu0
        %v9694 = vadd.f32 %v9518, %v9693
        %v9695 = vpop.f32.mrf.mxu0
        %9696 = vmatprep.mubr.bf16.mxu0 0
        %9697 = vmatmul.mubr.bf16.gmra.mxu0 %v9477
        %v9698 = vpop.f32.mrf.mxu0
        %v9699 = vadd.f32 %v9518, %v9698
        %v9700 = vpop.f32.mrf.mxu0
        %v9701 = vpop.f32.mrf.mxu0
        %v9702 = vadd.f32 %v9518, %v9701
        %v9703 = vpop.f32.mrf.mxu0
        %9704 = vmatprep.mubr.bf16.mxu0 0
        %9705 = vmatmul.mubr.bf16.gmra.mxu0 %v9478
        %v9706 = vpop.f32.mrf.mxu0
        %v9707 = vadd.f32 %v9518, %v9706
        %v9708 = vpop.f32.mrf.mxu0
        %v9709 = vpop.f32.mrf.mxu0
        %v9710 = vadd.f32 %v9518, %v9709
        %v9711 = vpop.f32.mrf.mxu0
        %9712 = vmatprep.mubr.bf16.mxu0 0
        %9713 = vmatmul.mubr.bf16.gmra.mxu0 %v9479
        %v9714 = vpop.f32.mrf.mxu0
        %v9715 = vadd.f32 %v9518, %v9714
        %v9716 = vpop.f32.mrf.mxu0
        %v9717 = vpop.f32.mrf.mxu0
        %v9718 = vadd.f32 %v9518, %v9717
        %v9719 = vpop.f32.mrf.mxu0
        %9720 = vmatprep.mubr.bf16.mxu0 0
        %9721 = vmatmul.mubr.bf16.gmra.mxu0 %v9480
        %v9722 = vpop.f32.mrf.mxu0
        %v9723 = vadd.f32 %v9518, %v9722
        %v9724 = vpop.f32.mrf.mxu0
        %v9725 = vpop.f32.mrf.mxu0
        %v9726 = vadd.f32 %v9518, %v9725
        %v9727 = vpop.f32.mrf.mxu0
        %9728 = vmatprep.mubr.bf16.mxu0 0
        %9729 = vmatmul.mubr.bf16.gmra.mxu0 %v9481
        %v9730 = vpop.f32.mrf.mxu0
        %v9731 = vadd.f32 %v9518, %v9730
        %v9732 = vpop.f32.mrf.mxu0
        %v9733 = vpop.f32.mrf.mxu0
        %v9734 = vadd.f32 %v9518, %v9733
        %v9735 = vpop.f32.mrf.mxu0
        %9736 = vmatprep.mubr.bf16.mxu0 0
        %9737 = vmatmul.mubr.bf16.gmra.mxu0 %v9482
        %v9738 = vpop.f32.mrf.mxu0
        %v9739 = vadd.f32 %v9518, %v9738
        %v9740 = vpop.f32.mrf.mxu0
        %v9741 = vpop.f32.mrf.mxu0
        %v9742 = vadd.f32 %v9518, %v9741
        %v9743 = vpop.f32.mrf.mxu0
        %9744 = vmatprep.mubr.bf16.mxu0 0
        %9745 = vmatmul.mubr.bf16.gmra.mxu0 %v9483
        %v9746 = vpop.f32.mrf.mxu0
        %v9747 = vadd.f32 %v9518, %v9746
        %v9748 = vpop.f32.mrf.mxu0
        %v9749 = vpop.f32.mrf.mxu0
        %v9750 = vadd.f32 %v9518, %v9749
        %v9751 = vpop.f32.mrf.mxu0
        %9752 = vmatprep.mubr.bf16.mxu0 0
        %9753 = vmatmul.mubr.bf16.gmra.mxu0 %v9484
        %v9754 = vpop.f32.mrf.mxu0
        %v9755 = vadd.f32 %v9518, %v9754
        %v9756 = vpop.f32.mrf.mxu0
        %v9757 = vpop.f32.mrf.mxu0
        %v9758 = vadd.f32 %v9518, %v9757
        %v9759 = vpop.f32.mrf.mxu0
        %9760 = vmatprep.mubr.bf16.mxu0 0
        %9761 = vmatmul.mubr.bf16.gmra.mxu0 %v9485
        %v9762 = vpop.f32.mrf.mxu0
        %v9763 = vadd.f32 %v9518, %v9762
        %v9764 = vpop.f32.mrf.mxu0
        %v9765 = vpop.f32.mrf.mxu0
        %v9766 = vadd.f32 %v9518, %v9765
        %v9767 = vpop.f32.mrf.mxu0
        %9768 = vmatprep.mubr.bf16.mxu0 0
        %9769 = vmatmul.mubr.bf16.gmra.mxu0 %v9486
        %v9770 = vpop.f32.mrf.mxu0
        %v9771 = vadd.f32 %v9518, %v9770
        %v9772 = vpop.f32.mrf.mxu0
        %v9773 = vpop.f32.mrf.mxu0
        %v9774 = vadd.f32 %v9518, %v9773
        %v9775 = vpop.f32.mrf.mxu0
        %9776 = vmatprep.mubr.bf16.mxu0 0
        %9777 = vmatmul.mubr.bf16.gmra.mxu0 %v9487
        %v9778 = vpop.f32.mrf.mxu0
        %v9779 = vadd.f32 %v9518, %v9778
        %v9780 = vpop.f32.mrf.mxu0
        %v9781 = vpop.f32.mrf.mxu0
        %v9782 = vadd.f32 %v9518, %v9781
        %v9783 = vpop.f32.mrf.mxu0
        %9784 = vmatprep.mubr.bf16.mxu0 0
        %9785 = vmatmul.mubr.bf16.gmra.mxu0 %v9488
        %v9786 = vpop.f32.mrf.mxu0
        %v9787 = vadd.f32 %v9518, %v9786
        %v9788 = vpop.f32.mrf.mxu0
        %v9789 = vpop.f32.mrf.mxu0
        %v9790 = vadd.f32 %v9518, %v9789
        %v9791 = vpop.f32.mrf.mxu0
        %9792 = vmatprep.mubr.bf16.mxu0 0
        %9793 = vmatmul.mubr.bf16.gmra.mxu0 %v9489
        %v9794 = vpop.f32.mrf.mxu0
        %v9795 = vadd.f32 %v9518, %v9794
        %v9796 = vpop.f32.mrf.mxu0
        %v9797 = vpop.f32.mrf.mxu0
        %v9798 = vadd.f32 %v9518, %v9797
        %v9799 = vpop.f32.mrf.mxu0
        %9800 = vmatprep.mubr.bf16.mxu0 0
        %9801 = vmatmul.mubr.bf16.gmra.mxu0 %v9490
        %v9802 = vpop.f32.mrf.mxu0
        %v9803 = vadd.f32 %v9518, %v9802
        %v9804 = vpop.f32.mrf.mxu0
        %v9805 = vpop.f32.mrf.mxu0
        %v9806 = vadd.f32 %v9518, %v9805
        %v9807 = vpop.f32.mrf.mxu0
        %9808 = vmatprep.mubr.bf16.mxu0 0
        %9809 = vmatmul.mubr.bf16.gmra.mxu0 %v9491
        %v9810 = vpop.f32.mrf.mxu0
        %v9811 = vadd.f32 %v9518, %v9810
        %v9812 = vpop.f32.mrf.mxu0
        %v9813 = vpop.f32.mrf.mxu0
        %v9814 = vadd.f32 %v9518, %v9813
        %v9815 = vpop.f32.mrf.mxu0
        %9816 = vmatprep.mubr.bf16.mxu0 0
        %9817 = vmatmul.mubr.bf16.gmra.mxu0 %v9492
        %v9818 = vpop.f32.mrf.mxu0
        %v9819 = vadd.f32 %v9518, %v9818
        %v9820 = vpop.f32.mrf.mxu0
        %v9821 = vpop.f32.mrf.mxu0
        %v9822 = vadd.f32 %v9518, %v9821
        %v9823 = vpop.f32.mrf.mxu0
        %9824 = vmatprep.mubr.bf16.mxu0 0
        %9825 = vmatmul.mubr.bf16.gmra.mxu0 %v9493
        %v9826 = vpop.f32.mrf.mxu0
        %v9827 = vadd.f32 %v9518, %v9826
        %v9828 = vpop.f32.mrf.mxu0
        %v9829 = vpop.f32.mrf.mxu0
        %v9830 = vadd.f32 %v9518, %v9829
        %v9831 = vpop.f32.mrf.mxu0
        %9832 = vmatprep.mubr.bf16.mxu0 0
        %9833 = vmatmul.mubr.bf16.gmra.mxu0 %v9494
        %v9834 = vpop.f32.mrf.mxu0
        %v9835 = vadd.f32 %v9518, %v9834
        %v9836 = vpop.f32.mrf.mxu0
        %v9837 = vpop.f32.mrf.mxu0
        %v9838 = vadd.f32 %v9518, %v9837
        %v9839 = vpop.f32.mrf.mxu0
        %9840 = vmatprep.mubr.bf16.mxu0 0
        %9841 = vmatmul.mubr.bf16.gmra.mxu0 %v9495
        %v9842 = vpop.f32.mrf.mxu0
        %v9843 = vadd.f32 %v9518, %v9842
        %v9844 = vpop.f32.mrf.mxu0
        %v9845 = vpop.f32.mrf.mxu0
        %v9846 = vadd.f32 %v9518, %v9845
        %v9847 = vpop.f32.mrf.mxu0
        %9848 = vmatprep.mubr.bf16.mxu0 0
        %9849 = vmatmul.mubr.bf16.gmra.mxu0 %v9496
        %v9850 = vpop.f32.mrf.mxu0
        %v9851 = vadd.f32 %v9518, %v9850
        %v9852 = vpop.f32.mrf.mxu0
        %v9853 = vpop.f32.mrf.mxu0
        %v9854 = vadd.f32 %v9518, %v9853
        %v9855 = vpop.f32.mrf.mxu0
        %9856 = vdwg.mxu0
        %v9857 = vadd.f32 %v9603, %v8242
        %v9858 = vadd.f32 %v9606, %v8245
        %v9859 = vadd.f32 %v9611, %v8250
        %v9860 = vadd.f32 %v9614, %v8253
        %v9861 = vadd.f32 %v9619, %v8258
        %v9862 = vadd.f32 %v9622, %v8261
        %v9863 = vadd.f32 %v9627, %v8266
        %v9864 = vadd.f32 %v9630, %v8269
        %v9865 = vadd.f32 %v9635, %v8274
        %v9866 = vadd.f32 %v9638, %v8277
        %v9867 = vadd.f32 %v9643, %v8282
        %v9868 = vadd.f32 %v9646, %v8285
        %v9869 = vadd.f32 %v9651, %v8290
        %v9870 = vadd.f32 %v9654, %v8293
        %v9871 = vadd.f32 %v9659, %v8298
        %v9872 = vadd.f32 %v9662, %v8301
        %v9873 = vadd.f32 %v9667, %v8306
        %v9874 = vadd.f32 %v9670, %v8309
        %v9875 = vadd.f32 %v9675, %v8314
        %v9876 = vadd.f32 %v9678, %v8317
        %v9877 = vadd.f32 %v9683, %v8322
        %v9878 = vadd.f32 %v9686, %v8325
        %v9879 = vadd.f32 %v9691, %v8330
        %v9880 = vadd.f32 %v9694, %v8333
        %v9881 = vadd.f32 %v9699, %v8338
        %v9882 = vadd.f32 %v9702, %v8341
        %v9883 = vadd.f32 %v9707, %v8346
        %v9884 = vadd.f32 %v9710, %v8349
        %v9885 = vadd.f32 %v9715, %v8354
        %v9886 = vadd.f32 %v9718, %v8357
        %v9887 = vadd.f32 %v9723, %v8362
        %v9888 = vadd.f32 %v9726, %v8365
        %v9889 = vadd.f32 %v9731, %v8370
        %v9890 = vadd.f32 %v9734, %v8373
        %v9891 = vadd.f32 %v9739, %v8378
        %v9892 = vadd.f32 %v9742, %v8381
        %v9893 = vadd.f32 %v9747, %v8386
        %v9894 = vadd.f32 %v9750, %v8389
        %v9895 = vadd.f32 %v9755, %v8394
        %v9896 = vadd.f32 %v9758, %v8397
        %v9897 = vadd.f32 %v9763, %v8402
        %v9898 = vadd.f32 %v9766, %v8405
        %v9899 = vadd.f32 %v9771, %v8410
        %v9900 = vadd.f32 %v9774, %v8413
        %v9901 = vadd.f32 %v9779, %v8418
        %v9902 = vadd.f32 %v9782, %v8421
        %v9903 = vadd.f32 %v9787, %v8426
        %v9904 = vadd.f32 %v9790, %v8429
        %v9905 = vadd.f32 %v9795, %v8434
        %v9906 = vadd.f32 %v9798, %v8437
        %v9907 = vadd.f32 %v9803, %v8442
        %v9908 = vadd.f32 %v9806, %v8445
        %v9909 = vadd.f32 %v9811, %v8450
        %v9910 = vadd.f32 %v9814, %v8453
        %v9911 = vadd.f32 %v9819, %v8458
        %v9912 = vadd.f32 %v9822, %v8461
        %v9913 = vadd.f32 %v9827, %v8466
        %v9914 = vadd.f32 %v9830, %v8469
        %v9915 = vadd.f32 %v9835, %v8474
        %v9916 = vadd.f32 %v9838, %v8477
        %v9917 = vadd.f32 %v9843, %v8482
        %v9918 = vadd.f32 %v9846, %v8485
        %v9919 = vadd.f32 %v9851, %v8490
        %v9920 = vadd.f32 %v9854, %v8493
        %vm9921 = vcmask 31744
        %9922 = vst.msk [vmem:[%s945] sm:$0xff] %vm9921, %v9857
        %9923 = vst.msk [vmem:[%s945 + $0x8] sm:$0xff] %vm9921, %v9858
        %9924 = vst.msk [vmem:[%s945 + $0x10] sm:$0xff] %vm9921, %v9859
        %9925 = vst.msk [vmem:[%s945 + $0x18] sm:$0xff] %vm9921, %v9860
        %9926 = vst.msk [vmem:[%s945 + $0x20] sm:$0xff] %vm9921, %v9861
        %9927 = vst.msk [vmem:[%s945 + $0x28] sm:$0xff] %vm9921, %v9862
        %9928 = vst.msk [vmem:[%s945 + $0x30] sm:$0xff] %vm9921, %v9863
        %9929 = vst.msk [vmem:[%s945 + $0x38] sm:$0xff] %vm9921, %v9864
        %9930 = vst.msk [vmem:[%s945 + $0x40] sm:$0xff] %vm9921, %v9865
        %9931 = vst.msk [vmem:[%s945 + $0x48] sm:$0xff] %vm9921, %v9866
        %9932 = vst.msk [vmem:[%s945 + $0x50] sm:$0xff] %vm9921, %v9867
        %9933 = vst.msk [vmem:[%s945 + $0x58] sm:$0xff] %vm9921, %v9868
        %9934 = vst.msk [vmem:[%s945 + $0x60] sm:$0xff] %vm9921, %v9869
        %9935 = vst.msk [vmem:[%s945 + $0x68] sm:$0xff] %vm9921, %v9870
        %9936 = vst.msk [vmem:[%s945 + $0x70] sm:$0xff] %vm9921, %v9871
        %9937 = vst.msk [vmem:[%s945 + $0x78] sm:$0xff] %vm9921, %v9872
        %9938 = vst.msk [vmem:[%s945 + $0x80] sm:$0xff] %vm9921, %v9873
        %9939 = vst.msk [vmem:[%s945 + $0x88] sm:$0xff] %vm9921, %v9874
        %9940 = vst.msk [vmem:[%s945 + $0x90] sm:$0xff] %vm9921, %v9875
        %9941 = vst.msk [vmem:[%s945 + $0x98] sm:$0xff] %vm9921, %v9876
        %9942 = vst.msk [vmem:[%s945 + $0xa0] sm:$0xff] %vm9921, %v9877
        %9943 = vst.msk [vmem:[%s945 + $0xa8] sm:$0xff] %vm9921, %v9878
        %9944 = vst.msk [vmem:[%s945 + $0xb0] sm:$0xff] %vm9921, %v9879
        %9945 = vst.msk [vmem:[%s945 + $0xb8] sm:$0xff] %vm9921, %v9880
        %9946 = vst.msk [vmem:[%s945 + $0xc0] sm:$0xff] %vm9921, %v9881
        %9947 = vst.msk [vmem:[%s945 + $0xc8] sm:$0xff] %vm9921, %v9882
        %9948 = vst.msk [vmem:[%s945 + $0xd0] sm:$0xff] %vm9921, %v9883
        %9949 = vst.msk [vmem:[%s945 + $0xd8] sm:$0xff] %vm9921, %v9884
        %9950 = vst.msk [vmem:[%s945 + $0xe0] sm:$0xff] %vm9921, %v9885
        %9951 = vst.msk [vmem:[%s945 + $0xe8] sm:$0xff] %vm9921, %v9886
        %9952 = vst.msk [vmem:[%s945 + $0xf0] sm:$0xff] %vm9921, %v9887
        %9953 = vst.msk [vmem:[%s945 + $0xf8] sm:$0xff] %vm9921, %v9888
        %9954 = vst.msk [vmem:[%s945 + $0x100] sm:$0xff] %vm9921, %v9889
        %9955 = vst.msk [vmem:[%s945 + $0x108] sm:$0xff] %vm9921, %v9890
        %9956 = vst.msk [vmem:[%s945 + $0x110] sm:$0xff] %vm9921, %v9891
        %9957 = vst.msk [vmem:[%s945 + $0x118] sm:$0xff] %vm9921, %v9892
        %9958 = vst.msk [vmem:[%s945 + $0x120] sm:$0xff] %vm9921, %v9893
        %9959 = vst.msk [vmem:[%s945 + $0x128] sm:$0xff] %vm9921, %v9894
        %9960 = vst.msk [vmem:[%s945 + $0x130] sm:$0xff] %vm9921, %v9895
        %9961 = vst.msk [vmem:[%s945 + $0x138] sm:$0xff] %vm9921, %v9896
        %9962 = vst.msk [vmem:[%s945 + $0x140] sm:$0xff] %vm9921, %v9897
        %9963 = vst.msk [vmem:[%s945 + $0x148] sm:$0xff] %vm9921, %v9898
        %9964 = vst.msk [vmem:[%s945 + $0x150] sm:$0xff] %vm9921, %v9899
        %9965 = vst.msk [vmem:[%s945 + $0x158] sm:$0xff] %vm9921, %v9900
        %9966 = vst.msk [vmem:[%s945 + $0x160] sm:$0xff] %vm9921, %v9901
        %9967 = vst.msk [vmem:[%s945 + $0x168] sm:$0xff] %vm9921, %v9902
        %9968 = vst.msk [vmem:[%s945 + $0x170] sm:$0xff] %vm9921, %v9903
        %9969 = vst.msk [vmem:[%s945 + $0x178] sm:$0xff] %vm9921, %v9904
        %9970 = vst.msk [vmem:[%s945 + $0x180] sm:$0xff] %vm9921, %v9905
        %9971 = vst.msk [vmem:[%s945 + $0x188] sm:$0xff] %vm9921, %v9906
        %9972 = vst.msk [vmem:[%s945 + $0x190] sm:$0xff] %vm9921, %v9907
        %9973 = vst.msk [vmem:[%s945 + $0x198] sm:$0xff] %vm9921, %v9908
        %9974 = vst.msk [vmem:[%s945 + $0x1a0] sm:$0xff] %vm9921, %v9909
        %9975 = vst.msk [vmem:[%s945 + $0x1a8] sm:$0xff] %vm9921, %v9910
        %9976 = vst.msk [vmem:[%s945 + $0x1b0] sm:$0xff] %vm9921, %v9911
        %9977 = vst.msk [vmem:[%s945 + $0x1b8] sm:$0xff] %vm9921, %v9912
        %9978 = vst.msk [vmem:[%s945 + $0x1c0] sm:$0xff] %vm9921, %v9913
        %9979 = vst.msk [vmem:[%s945 + $0x1c8] sm:$0xff] %vm9921, %v9914
        %9980 = vst.msk [vmem:[%s945 + $0x1d0] sm:$0xff] %vm9921, %v9915
        %9981 = vst.msk [vmem:[%s945 + $0x1d8] sm:$0xff] %vm9921, %v9916
        %9982 = vst.msk [vmem:[%s945 + $0x1e0] sm:$0xff] %vm9921, %v9917
        %9983 = vst.msk [vmem:[%s945 + $0x1e8] sm:$0xff] %vm9921, %v9918
        %9984 = vst.msk [vmem:[%s945 + $0x1f0] sm:$0xff] %vm9921, %v9919
        %9985 = vst.msk [vmem:[%s945 + $0x1f8] sm:$0xff] %vm9921, %v9920
        %s9986 = smul.u32 64, %s45
        %p9987 = scmp.lt.s32.totalorder %s9986, 127
        %s9988 = scalar_select %p9987, %s9986, 127
        %s9989 = smul.addr %s9988, 8
        %s9990 = scalar_lea.vmem %s25, %s9989
        // Predicated region
        $region169: #{tpu_custom_call.1} parent=119 // pred_check
          %p9991 = pneg %p593
        $region170: #{tpu_custom_call.1} parent=119 // pred_check_branch
          %9993 = sbr.rel (%p9991) target = $region172
        $region171: #{tpu_custom_call.1} parent=119 // pred_region
          %s9994 = smul.u32 64, %s45
        $region172: #{tpu_custom_call.1} parent=119 // pred_fallthru
          _
      $region120: #{tpu_custom_call.1} parent=5 // pred_fallthru
        _
      %p9995 = scmp.le.s32.totalorder 2, %s40
      // Predicated region
      $region173: #{tpu_custom_call.1} parent=5 // pred_check
        %p9996 = pneg %p9995
      $region174: #{tpu_custom_call.1} parent=5 // pred_check_branch
        %9998 = sbr.rel (%p9996) target = $region176
      $region175: #{tpu_custom_call.1} parent=5 // pred_region
        %s9999 = ssub.s32 %s40, 2
        // Predicated region
        $region177: #{tpu_custom_call.1} parent=175 // pred_check
          %p10000 = pneg %p599
        $region178: #{tpu_custom_call.1} parent=175 // pred_check_branch
          %10002 = sbr.rel (%p10000) target = $region180
        $region179: #{tpu_custom_call.1} parent=175 // pred_region
          %s10003 = smul.u32 64, %s46
          %p10004 = scmp.lt.s32.totalorder %s10003, 127
          %s10005 = scalar_select %p10004, %s10003, 127
          %s10006 = smul.addr %s10005, 8
          %s10007 = scalar_lea.vmem %s25, %s10006
        $region180: #{tpu_custom_call.1} parent=175 // pred_fallthru
          _
      $region176: #{tpu_custom_call.1} parent=5 // pred_fallthru
        _
    $region6: #{tpu_custom_call.1} parent=1 // loop_footer
      %s44 = sadd.s32 1, %s40
    $region7: #{tpu_custom_call.1} parent=1 // loop_footer_branch
      %39 = sbr.rel target = $region3
    $region8: #{tpu_custom_call.1} parent=1 // loop_exit
      _
    %10008 = vsyncpa [#allocation3], 1
    %s10009 = scalar_lea.sflag [#allocation3], 1
    %10010 = vsyncpa %s10009, 1
    %10011 = vsyncpa [#allocation5], 1
    %10012 = vsyncpa [#allocation8], 1
    %10013 = vsyncpa [#allocation11], 1
    %10014 = vsyncpa [#allocation14], 1
    %10015 = vsyncpa [#allocation17], 1
    %10016 = vsyncpa [#allocation20], 1

</llo_original>
